<compile_context>
chip_gen: v7x
topology: tpu7x:2x2x1
jax: 0.10.0
libtpu: 0.0.40
codegen_flags: <defaults>
</compile_context>

<pallas_src>
import math

import numpy as np

import jax
import jax.numpy as jnp
from jax.experimental import pallas as pl
from jax.experimental.pallas import tpu as pltpu

GROUPS = 4
FC_IN = 128
CLASSES = 397

CPAD = 128        # all activation channel dims zero-padded to 128 lanes
FC_PAD = 512      # head fc output padded 397 -> 512 lanes
STEM_KPAD = 256   # stem im2col K: 7*7*3 = 147 -> 256
BPAD = 8          # logits row dim padded to a full sublane tile

BF16 = jnp.bfloat16


# ---------------------------------------------------------------------------
# Pallas kernels
# ---------------------------------------------------------------------------

def _stem_kernel(a_ref, w_ref, s_ref, b_ref, o_ref):
    # stem: im2col'd 7x7/s2 conv as one bf16 matmul + folded BN + ReLU.
    out = jnp.dot(a_ref[...], w_ref[...], preferred_element_type=jnp.float32)
    out = jnp.maximum(out * s_ref[...] + b_ref[...], 0.0)
    o_ref[...] = out.astype(o_ref.dtype)


def _bottleneck_compute(x_bf16, shift_ref, w1x1_ref, w2_ref, sc_ref, sh_ref):
    # Fused ResNeXt bottleneck evaluated at every stride-1 spatial position.
    #   x_bf16    : (M, 128) block input, M = B*H*W, rows ordered (b, y, x)
    #   shift_ref : (9, M, M) one-hot tap-shift matrices (zero rows where the 3x3 tap
    #               falls in the spatial zero padding) -- forms conv2's taps in-kernel.
    #   w1x1_ref  : (3, 128, 128) [w1, w3, w_downsample]            (bf16)
    #   w2_ref    : (9*128, 128) block-diag grouped 3x3 weight, taps stacked along K
    #   sc/sh_ref : (4, 128) folded-BN scale/shift rows [bn1, bn2, bn3, bn_ds]  (f32)
    s1, sh1 = sc_ref[pl.ds(0, 1), :], sh_ref[pl.ds(0, 1), :]
    s2, sh2 = sc_ref[pl.ds(1, 1), :], sh_ref[pl.ds(1, 1), :]
    s3, sh3 = sc_ref[pl.ds(2, 1), :], sh_ref[pl.ds(2, 1), :]
    sd, shd = sc_ref[pl.ds(3, 1), :], sh_ref[pl.ds(3, 1), :]

    # conv1 (1x1) + BN + ReLU, once on the whole grid (no per-tap recompute).
    h = jnp.dot(x_bf16, w1x1_ref[0], preferred_element_type=jnp.float32)
    h = jnp.maximum(h * s1 + sh1, 0.0).astype(BF16)

    # grouped 3x3 conv: form the 9 taps (shift + padding mask) via the constant one-hot
    # matrices, stack them along lanes, and do ONE K=1152 matmul.
    taps = [jnp.dot(shift_ref[t], h, preferred_element_type=jnp.float32).astype(BF16)
            for t in range(9)]
    hcat = jnp.concatenate(taps, axis=-1)                              # (M, 9*128)
    o2 = jnp.dot(hcat, w2_ref[...], preferred_element_type=jnp.float32)
    o2 = jnp.maximum(o2 * s2 + sh2, 0.0).astype(BF16)                  # BN2 + ReLU

    # conv3 (1x1) + BN, downsample (1x1) + BN, residual add + ReLU.
    o3 = jnp.dot(o2, w1x1_ref[1], preferred_element_type=jnp.float32) * s3 + sh3
    ident = jnp.dot(x_bf16, w1x1_ref[2], preferred_element_type=jnp.float32) * sd + shd
    return jnp.maximum(o3 + ident, 0.0)                                # (M, 128) f32


def _mp_block1_kernel(taps_ref, shift_ref, w1x1_ref, w2_ref, sc_ref, sh_ref, o_ref):
    # 3x3/s2 maxpool (elementwise max over 9 pre-shifted taps) fused with
    # bottleneck block 1 (stride 1).
    mp = taps_ref[0]
    for t in range(1, 9):
        mp = jnp.maximum(mp, taps_ref[t])
    out = _bottleneck_compute(mp, shift_ref, w1x1_ref, w2_ref, sc_ref, sh_ref)
    o_ref[...] = out.astype(o_ref.dtype)


def _block2_head_kernel(x_ref, shift_ref, w1x1_ref, w2_ref, sc_ref, sh_ref,
                        pool_ref, fcw_ref, fcb_ref, o_ref):
    # Bottleneck block 2 (stride 2) + global-average-pool + head fc, fused.
    # Stride 2 is folded into pool_ref: the block is evaluated at every stride-1
    # position and pool_ref averages only the even-(y, x) rows per batch.
    y = _bottleneck_compute(x_ref[...], shift_ref, w1x1_ref, w2_ref, sc_ref, sh_ref)
    pooled = jnp.dot(pool_ref[...], y.astype(BF16),
                     preferred_element_type=jnp.float32).astype(BF16)   # (BPAD, 128)
    logits = jnp.dot(pooled, fcw_ref[...], preferred_element_type=jnp.float32)
    o_ref[...] = logits + fcb_ref[...]


# ---------------------------------------------------------------------------
# pallas_call wrappers (grid=(1,): everything fits VMEM, avoid per-step overhead)
# ---------------------------------------------------------------------------

def _full_spec(shape):
    zeros = (0,) * len(shape)
    return pl.BlockSpec(shape, lambda i: zeros)


_PARAMS = pltpu.CompilerParams(dimension_semantics=("arbitrary",))


def stem_conv(a, w, scale, shift):
    m, k = a.shape
    n = w.shape[1]
    return pl.pallas_call(
        _stem_kernel,
        grid=(1,),
        in_specs=[_full_spec((m, k)), _full_spec((k, n)),
                  _full_spec((1, n)), _full_spec((1, n))],
        out_specs=_full_spec((m, n)),
        out_shape=jax.ShapeDtypeStruct((m, n), BF16),
        compiler_params=_PARAMS,
    )(a, w, scale, shift)


def mp_block1(taps, tapmat, bq):
    _, m, c = taps.shape
    return pl.pallas_call(
        _mp_block1_kernel,
        grid=(1,),
        in_specs=[_full_spec(taps.shape), _full_spec(tapmat.shape),
                  _full_spec(bq['w1x1'].shape), _full_spec(bq['w2'].shape),
                  _full_spec(bq['scales'].shape), _full_spec(bq['shifts'].shape)],
        out_specs=_full_spec((m, c)),
        out_shape=jax.ShapeDtypeStruct((m, c), BF16),
        compiler_params=_PARAMS,
    )(taps, tapmat, bq['w1x1'], bq['w2'], bq['scales'], bq['shifts'])


def block2_head(x1, tapmat, bq, pool, fc_w, fc_b):
    n = fc_w.shape[1]
    bp = pool.shape[0]
    return pl.pallas_call(
        _block2_head_kernel,
        grid=(1,),
        in_specs=[_full_spec(x1.shape), _full_spec(tapmat.shape),
                  _full_spec(bq['w1x1'].shape), _full_spec(bq['w2'].shape),
                  _full_spec(bq['scales'].shape), _full_spec(bq['shifts'].shape),
                  _full_spec(pool.shape), _full_spec(fc_w.shape),
                  _full_spec(fc_b.shape)],
        out_specs=_full_spec((bp, n)),
        out_shape=jax.ShapeDtypeStruct((bp, n), jnp.float32),
        compiler_params=_PARAMS,
    )(x1, tapmat, bq['w1x1'], bq['w2'], bq['scales'], bq['shifts'], pool, fc_w, fc_b)


# ---------------------------------------------------------------------------
# Trace-time constants and layout plumbing (no runtime compute)
# ---------------------------------------------------------------------------

def _tap_shift_matrices(batch, H, W):
    # One (M, M) one-hot matrix per 3x3 tap: row r (output position b,y,x) selects the
    # flattened source row of (y+dy-1, x+dx-1); rows whose tap falls in the spatial
    # zero-padding are all-zero (this replaces the old (9, M, 1) mask input).
    # Built with numpy at trace time -> baked-in constant, shared by both blocks.
    M = batch * H * W
    r = np.arange(M)
    yi = (r // W) % H
    xi = r % W
    mats = np.zeros((9, M, M), np.float32)
    t = 0
    for dy in range(3):
        for dx in range(3):
            yy, xx = yi + dy - 1, xi + dx - 1
            valid = (yy >= 0) & (yy < H) & (xx >= 0) & (xx < W)
            src = r + (dy - 1) * W + (dx - 1)
            mats[t, r[valid], src[valid]] = 1.0
            t += 1
    return jnp.asarray(mats, dtype=BF16)


def _pool_matrix(batch, H, W, bpad):
    # (bpad, M) matrix: masked global-average-pool over the stride-2 output positions
    # (even y, x), folding bottleneck2's conv/downsample stride into the pooling and
    # the mean into a single matmul (mean commutes with the head fc).
    M = batch * H * W
    r = np.arange(M)
    b = r // (H * W)
    yi = (r // W) % H
    xi = r % W
    sel = ((yi % 2) == 0) & ((xi % 2) == 0)
    mat = np.zeros((bpad, M), np.float32)
    mat[b[sel], r[sel]] = 1.0 / ((H // 2) * (W // 2))
    return jnp.asarray(mat, dtype=BF16)


def _extract_patches(x, k, stride, pad):
    # x: (B,H,W,C) NHWC -> (B,Ho,Wo,k*k*C), tap ordering (ky,kx,C). Layout only.
    b, h, w, c = x.shape
    xp = jnp.pad(x, ((0, 0), (pad, pad), (pad, pad), (0, 0)))
    ho = (h + 2 * pad - k) // stride + 1
    wo = (w + 2 * pad - k) // stride + 1
    cols = [xp[:, dy:dy + stride * ho:stride, dx:dx + stride * wo:stride, :]
            for dy in range(k) for dx in range(k)]
    return jnp.concatenate(cols, axis=-1), ho, wo


def _maxpool_taps(x):
    # 3x3 / stride 2 / pad 1 window views of the stem output.
    # TODO(synk): stride-2 window extraction is the one remaining wrapper-side tap
    #             materialization; move it in-kernel for realistic resolutions.
    b, h, w, c = x.shape
    neg = float(jnp.finfo(x.dtype).min)
    xp = jnp.pad(x, ((0, 0), (1, 1), (1, 1), (0, 0)), constant_values=neg)
    ho = (h - 1) // 2 + 1
    wo = (w - 1) // 2 + 1
    m = b * ho * wo
    taps = [xp[:, dy:dy + 2 * ho:2, dx:dx + 2 * wo:2, :].reshape(m, c)
            for dy in range(3) for dx in range(3)]
    return jnp.stack(taps, 0), ho, wo


# ---------------------------------------------------------------------------
# Model forward
# ---------------------------------------------------------------------------

def forward(packed, x_nchw):
    x = jnp.transpose(x_nchw, (0, 2, 3, 1)).astype(BF16)   # NCHW -> NHWC (B,32,32,3)
    b = x.shape[0]

    # stem conv 7x7 / s2 / p3 + BN + ReLU  (im2col K padded 147 -> 256, N -> 128 lanes)
    patches, ho, wo = _extract_patches(x, 7, 2, 3)
    a = patches.reshape(b * ho * wo, -1)
    a = jnp.pad(a, ((0, 0), (0, STEM_KPAD - a.shape[1])))
    xs = stem_conv(a, packed['stem_w'], packed['stem_scale'], packed['stem_shift'])
    xs = xs.reshape(b, ho, wo, CPAD)                        # (B,16,16,128) bf16

    # maxpool 3x3/s2 + bottleneck1 (stride 1), one fused kernel
    taps, hp, wp = _maxpool_taps(xs)                        # (9, B*8*8, 128)
    tapmat = _tap_shift_matrices(b, hp, wp)                 # trace-time constants
    pool = _pool_matrix(b, hp, wp, BPAD)
    x1 = mp_block1(taps, tapmat, packed['b1'])              # (B*64, 128) bf16

    # bottleneck2 (stride 2) + GAP + head fc, one fused kernel
    logits = block2_head(x1, tapmat, packed['b2'], pool,
                         packed['fc_w'], packed['fc_b'])    # (BPAD, 512) f32
    return logits[:b, :CLASSES]


# ---------------------------------------------------------------------------
# Parameter init (PyTorch layouts) and inference-time packing (pad / transpose /
# block-diagonal grouped weights / bf16 cast). Packing runs once, outside the jit.
# ---------------------------------------------------------------------------

def init_params(key, classes=CLASSES, groups=GROUPS):
    keys = jax.random.split(key, 64)
    ki = iter(keys)

    def conv_w(cout, cin_g, k):
        std = math.sqrt(2.0 / (cin_g * k * k))
        return std * jax.random.normal(next(ki), (cout, cin_g, k, k), jnp.float32)

    def bn(c):
        # eval-mode BN folded: running_mean=0, running_var=1, eps=1e-5
        gamma = 1.0 + 0.1 * jax.random.normal(next(ki), (c,), jnp.float32)
        beta = 0.1 * jax.random.normal(next(ki), (c,), jnp.float32)
        return gamma / jnp.sqrt(1.0 + 1e-5), beta

    p = {}
    p['stem_w'] = conv_w(16, 3, 7)
    p['stem_scale'], p['stem_shift'] = bn(16)

    def block(cin, width, cout):
        bp = {}
        bp['w1'] = conv_w(width, cin, 1);             bp['s1'], bp['sh1'] = bn(width)
        bp['w2'] = conv_w(width, width // groups, 3); bp['s2'], bp['sh2'] = bn(width)
        bp['w3'] = conv_w(cout, width, 1);            bp['s3'], bp['sh3'] = bn(cout)
        bp['wd'] = conv_w(cout, cin, 1);              bp['sd'], bp['shd'] = bn(cout)
        return bp

    p['b1'] = block(16, 32, 64)
    p['b2'] = block(64, 64, FC_IN)

    std = math.sqrt(1.0 / FC_IN)
    p['fc_w'] = std * jax.random.normal(next(ki), (classes, FC_IN), jnp.float32)
    p['fc_b'] = 0.01 * jax.random.normal(next(ki), (classes,), jnp.float32)
    return p


def _pad1(v, n):
    return jnp.pad(v.astype(jnp.float32), (0, n - v.shape[0]))


def _pack_conv1x1(w, cin_pad, cout_pad):
    cout, cin = w.shape[0], w.shape[1]
    m = w[:, :, 0, 0].T                                # (cin, cout)
    return jnp.pad(m, ((0, cin_pad - cin), (0, cout_pad - cout)))


def _pack_conv_dense(w, k_pad, cout_pad):
    cout, cin, kh, kw = w.shape
    m = jnp.transpose(w, (2, 3, 1, 0)).reshape(kh * kw * cin, cout)  # (ky,kx,C) order
    return jnp.pad(m, ((0, k_pad - kh * kw * cin), (0, cout_pad - cout)))


def _pack_grouped_conv3x3(w, groups, cpad):
    # (cout, cin/groups, 3, 3) -> (9*cpad, cpad): per-tap block-diagonal matrices
    # stacked along K in (ky, kx) order, matching the kernel's lane-stacked taps.
    cout, cin_g, kh, kw = w.shape
    cg_out = cout // groups
    mats = []
    for ky in range(kh):
        for kx in range(kw):
            m = jnp.zeros((cpad, cpad), jnp.float32)
            for g in range(groups):
                blk = w[g * cg_out:(g + 1) * cg_out, :, ky, kx]      # (cg_out, cin_g)
                m = m.at[g * cin_g:(g + 1) * cin_g,
                         g * cg_out:(g + 1) * cg_out].set(blk.T)
            mats.append(m)
    return jnp.concatenate(mats, axis=0).astype(BF16)                # (9*cpad, cpad)


def _pack_block(bp):
    w1 = _pack_conv1x1(bp['w1'], CPAD, CPAD)
    w3 = _pack_conv1x1(bp['w3'], CPAD, CPAD)
    wd = _pack_conv1x1(bp['wd'], CPAD, CPAD)
    return {
        'w2': _pack_grouped_conv3x3(bp['w2'], GROUPS, CPAD),
        'w1x1': jnp.stack([w1, w3, wd], 0).astype(BF16),
        'scales': jnp.stack([_pad1(bp['s1'], CPAD), _pad1(bp['s2'], CPAD),
                             _pad1(bp['s3'], CPAD), _pad1(bp['sd'], CPAD)], 0),
        'shifts': jnp.stack([_pad1(bp['sh1'], CPAD), _pad1(bp['sh2'], CPAD),
                             _pad1(bp['sh3'], CPAD), _pad1(bp['shd'], CPAD)], 0),
    }


def pack_params(p):
    return {
        'stem_w': _pack_conv_dense(p['stem_w'], STEM_KPAD, CPAD).astype(BF16),
        'stem_scale': _pad1(p['stem_scale'], CPAD).reshape(1, CPAD),
        'stem_shift': _pad1(p['stem_shift'], CPAD).reshape(1, CPAD),
        'b1': _pack_block(p['b1']),
        'b2': _pack_block(p['b2']),
        'fc_w': jnp.pad(p['fc_w'].T,
                        ((0, CPAD - FC_IN),
                         (0, FC_PAD - p['fc_w'].shape[0]))).astype(BF16),
        'fc_b': _pad1(p['fc_b'], FC_PAD).reshape(1, FC_PAD),
    }


if __name__ == "__main__":
    key = jax.random.PRNGKey(0)
    pkey, xkey = jax.random.split(key)
    params = init_params(pkey)
    packed = pack_params(params)
    x = jax.random.normal(xkey, (2, 3, 32, 32), jnp.float32)   # NCHW, like PyTorch

    fwd = jax.jit(forward)
    out = fwd(packed, x)
    jax.block_until_ready(out)
    assert out.shape == (2, CLASSES), out.shape
    assert bool(jnp.all(jnp.isfinite(out)))
    print("KERNEL_OK")
</pallas_src>

<mosaic_0001>
module attributes {stable_mosaic.version = 11 : i64} {
  func.func @_stem_kernel(%arg0: i32, %arg1: memref<512x256xbf16, #tpu.memory_space<vmem>>, %arg2: memref<256x128xbf16, #tpu.memory_space<vmem>>, %arg3: memref<1x128xf32, #tpu.memory_space<vmem>>, %arg4: memref<1x128xf32, #tpu.memory_space<vmem>>, %arg5: memref<512x128xbf16, #tpu.memory_space<vmem>>) attributes {dimension_semantics = [#tpu.dimension_semantics<arbitrary>], iteration_bounds = array<i64: 1>, scalar_prefetch = 0 : i64, scratch_operands = 0 : i64, tpu.core_type = #tpu.core_type<tc>, window_params = [{pipeline_mode = #tpu.pipeline_mode<synchronous>, transform_indices = @transform_0, window_bounds = array<i64: 512, 256>}, {pipeline_mode = #tpu.pipeline_mode<synchronous>, transform_indices = @transform_1, window_bounds = array<i64: 256, 128>}, {pipeline_mode = #tpu.pipeline_mode<synchronous>, transform_indices = @transform_2, window_bounds = array<i64: 1, 128>}, {pipeline_mode = #tpu.pipeline_mode<synchronous>, transform_indices = @transform_3, window_bounds = array<i64: 1, 128>}, {pipeline_mode = #tpu.pipeline_mode<synchronous>, transform_indices = @transform_4, window_bounds = array<i64: 512, 128>}]} {
    %c0 = arith.constant 0 : index
    %c0_0 = arith.constant 0 : index
    %0 = vector.load %arg1[%c0, %c0_0] : memref<512x256xbf16, #tpu.memory_space<vmem>>, vector<512x256xbf16>
    %c0_1 = arith.constant 0 : index
    %c0_2 = arith.constant 0 : index
    %1 = vector.load %arg2[%c0_1, %c0_2] : memref<256x128xbf16, #tpu.memory_space<vmem>>, vector<256x128xbf16>
    %cst = arith.constant dense<0.000000e+00> : vector<512x128xf32>
    %2 = tpu.matmul %0, %1, %cst {dimension_numbers = #tpu.dot_dimension_numbers<[1], [0], [0], [1], [0, 0, 1, 1], [], []>} : vector<512x256xbf16>, vector<256x128xbf16>, vector<512x128xf32> -> vector<512x128xf32>
    %c0_3 = arith.constant 0 : index
    %c0_4 = arith.constant 0 : index
    %3 = vector.load %arg3[%c0_3, %c0_4] : memref<1x128xf32, #tpu.memory_space<vmem>>, vector<1x128xf32>
    %4 = vector.broadcast %3 : vector<1x128xf32> to vector<512x128xf32>
    %5 = arith.mulf %2, %4 : vector<512x128xf32>
    %c0_5 = arith.constant 0 : index
    %c0_6 = arith.constant 0 : index
    %6 = vector.load %arg4[%c0_5, %c0_6] : memref<1x128xf32, #tpu.memory_space<vmem>>, vector<1x128xf32>
    %7 = vector.broadcast %6 : vector<1x128xf32> to vector<512x128xf32>
    %8 = arith.addf %5, %7 : vector<512x128xf32>
    %cst_7 = arith.constant 0.000000e+00 : f32
    %9 = vector.broadcast %cst_7 : f32 to vector<512x128xf32>
    %10 = arith.maximumf %8, %9 : vector<512x128xf32>
    %11 = arith.truncf %10 : vector<512x128xf32> to vector<512x128xbf16>
    %c0_8 = arith.constant 0 : index
    %c0_9 = arith.constant 0 : index
    %12 = vector.load %arg5[%c0_8, %c0_9] : memref<512x128xbf16, #tpu.memory_space<vmem>>, vector<512x128xbf16>
    tpu.vector_store %arg5[%c0_8, %c0_9], %11 {strides = array<i32>} : memref<512x128xbf16, #tpu.memory_space<vmem>>, vector<512x128xbf16>,
    return
  }
  func.func @transform_0(%arg0: i32) -> (i32, i32) {
    %c0_i32 = arith.constant 0 : i32
    %c0_i32_0 = arith.constant 0 : i32
    %c0_i32_1 = arith.constant 0 : i32
    return %c0_i32, %c0_i32_0 : i32, i32
  }
  func.func @transform_1(%arg0: i32) -> (i32, i32) {
    %c0_i32 = arith.constant 0 : i32
    %c0_i32_0 = arith.constant 0 : i32
    %c0_i32_1 = arith.constant 0 : i32
    return %c0_i32, %c0_i32_0 : i32, i32
  }
  func.func @transform_2(%arg0: i32) -> (i32, i32) {
    %c0_i32 = arith.constant 0 : i32
    %c0_i32_0 = arith.constant 0 : i32
    %c0_i32_1 = arith.constant 0 : i32
    return %c0_i32, %c0_i32_0 : i32, i32
  }
  func.func @transform_3(%arg0: i32) -> (i32, i32) {
    %c0_i32 = arith.constant 0 : i32
    %c0_i32_0 = arith.constant 0 : i32
    %c0_i32_1 = arith.constant 0 : i32
    return %c0_i32, %c0_i32_0 : i32, i32
  }
  func.func @transform_4(%arg0: i32) -> (i32, i32) {
    %c0_i32 = arith.constant 0 : i32
    %c0_i32_0 = arith.constant 0 : i32
    %c0_i32_1 = arith.constant 0 : i32
    return %c0_i32, %c0_i32_0 : i32, i32
  }
}

module attributes {stable_mosaic.version = 11 : i64} {
  func.func @_block2_head_kernel(%arg0: i32, %arg1: memref<128x128xbf16, #tpu.memory_space<vmem>>, %arg2: memref<9x128x128xbf16, #tpu.memory_space<vmem>>, %arg3: memref<3x128x128xbf16, #tpu.memory_space<vmem>>, %arg4: memref<1152x128xbf16, #tpu.memory_space<vmem>>, %arg5: memref<4x128xf32, #tpu.memory_space<vmem>>, %arg6: memref<4x128xf32, #tpu.memory_space<vmem>>, %arg7: memref<8x128xbf16, #tpu.memory_space<vmem>>, %arg8: memref<128x512xbf16, #tpu.memory_space<vmem>>, %arg9: memref<1x512xf32, #tpu.memory_space<vmem>>, %arg10: memref<8x512xf32, #tpu.memory_space<vmem>>) attributes {dimension_semantics = [#tpu.dimension_semantics<arbitrary>], iteration_bounds = array<i64: 1>, scalar_prefetch = 0 : i64, scratch_operands = 0 : i64, tpu.core_type = #tpu.core_type<tc>, window_params = [{pipeline_mode = #tpu.pipeline_mode<synchronous>, transform_indices = @transform_0, window_bounds = array<i64: 128, 128>}, {pipeline_mode = #tpu.pipeline_mode<synchronous>, transform_indices = @transform_1, window_bounds = array<i64: 9, 128, 128>}, {pipeline_mode = #tpu.pipeline_mode<synchronous>, transform_indices = @transform_2, window_bounds = array<i64: 3, 128, 128>}, {pipeline_mode = #tpu.pipeline_mode<synchronous>, transform_indices = @transform_3, window_bounds = array<i64: 1152, 128>}, {pipeline_mode = #tpu.pipeline_mode<synchronous>, transform_indices = @transform_4, window_bounds = array<i64: 4, 128>}, {pipeline_mode = #tpu.pipeline_mode<synchronous>, transform_indices = @transform_5, window_bounds = array<i64: 4, 128>}, {pipeline_mode = #tpu.pipeline_mode<synchronous>, transform_indices = @transform_6, window_bounds = array<i64: 8, 128>}, {pipeline_mode = #tpu.pipeline_mode<synchronous>, transform_indices = @transform_7, window_bounds = array<i64: 128, 512>}, {pipeline_mode = #tpu.pipeline_mode<synchronous>, transform_indices = @transform_8, window_bounds = array<i64: 1, 512>}, {pipeline_mode = #tpu.pipeline_mode<synchronous>, transform_indices = @transform_9, window_bounds = array<i64: 8, 512>}]} {
    %c0 = arith.constant 0 : index
    %c0_0 = arith.constant 0 : index
    %0 = vector.load %arg1[%c0, %c0_0] : memref<128x128xbf16, #tpu.memory_space<vmem>>, vector<128x128xbf16>
    %c0_1 = arith.constant 0 : index
    %c0_2 = arith.constant 0 : index
    %1 = vector.load %arg5[%c0_1, %c0_2] : memref<4x128xf32, #tpu.memory_space<vmem>>, vector<1x128xf32>
    %c0_3 = arith.constant 0 : index
    %c0_4 = arith.constant 0 : index
    %2 = vector.load %arg6[%c0_3, %c0_4] : memref<4x128xf32, #tpu.memory_space<vmem>>, vector<1x128xf32>
    %c1 = arith.constant 1 : index
    %c0_5 = arith.constant 0 : index
    %3 = vector.load %arg5[%c1, %c0_5] : memref<4x128xf32, #tpu.memory_space<vmem>>, vector<1x128xf32>
    %c1_6 = arith.constant 1 : index
    %c0_7 = arith.constant 0 : index
    %4 = vector.load %arg6[%c1_6, %c0_7] : memref<4x128xf32, #tpu.memory_space<vmem>>, vector<1x128xf32>
    %c2 = arith.constant 2 : index
    %c0_8 = arith.constant 0 : index
    %5 = vector.load %arg5[%c2, %c0_8] : memref<4x128xf32, #tpu.memory_space<vmem>>, vector<1x128xf32>
    %c2_9 = arith.constant 2 : index
    %c0_10 = arith.constant 0 : index
    %6 = vector.load %arg6[%c2_9, %c0_10] : memref<4x128xf32, #tpu.memory_space<vmem>>, vector<1x128xf32>
    %c3 = arith.constant 3 : index
    %c0_11 = arith.constant 0 : index
    %7 = vector.load %arg5[%c3, %c0_11] : memref<4x128xf32, #tpu.memory_space<vmem>>, vector<1x128xf32>
    %c3_12 = arith.constant 3 : index
    %c0_13 = arith.constant 0 : index
    %8 = vector.load %arg6[%c3_12, %c0_13] : memref<4x128xf32, #tpu.memory_space<vmem>>, vector<1x128xf32>
    %c0_14 = arith.constant 0 : index
    %c0_15 = arith.constant 0 : index
    %c0_16 = arith.constant 0 : index
    %9 = vector.load %arg3[%c0_14, %c0_15, %c0_16] : memref<3x128x128xbf16, #tpu.memory_space<vmem>>, vector<1x128x128xbf16>
    %10 = vector.shape_cast %9 : vector<1x128x128xbf16> to vector<128x128xbf16>
    %cst = arith.constant dense<0.000000e+00> : vector<128x128xf32>
    %11 = tpu.matmul %0, %10, %cst {dimension_numbers = #tpu.dot_dimension_numbers<[1], [0], [0], [1], [0, 0, 1, 1], [], []>} : vector<128x128xbf16>, vector<128x128xbf16>, vector<128x128xf32> -> vector<128x128xf32>
    %12 = vector.broadcast %1 : vector<1x128xf32> to vector<128x128xf32>
    %13 = arith.mulf %11, %12 : vector<128x128xf32>
    %14 = vector.broadcast %2 : vector<1x128xf32> to vector<128x128xf32>
    %15 = arith.addf %13, %14 : vector<128x128xf32>
    %cst_17 = arith.constant 0.000000e+00 : f32
    %16 = vector.broadcast %cst_17 : f32 to vector<128x128xf32>
    %17 = arith.maximumf %15, %16 : vector<128x128xf32>
    %18 = arith.truncf %17 : vector<128x128xf32> to vector<128x128xbf16>
    %c0_18 = arith.constant 0 : index
    %c0_19 = arith.constant 0 : index
    %c0_20 = arith.constant 0 : index
    %19 = vector.load %arg2[%c0_18, %c0_19, %c0_20] : memref<9x128x128xbf16, #tpu.memory_space<vmem>>, vector<1x128x128xbf16>
    %20 = vector.shape_cast %19 : vector<1x128x128xbf16> to vector<128x128xbf16>
    %cst_21 = arith.constant dense<0.000000e+00> : vector<128x128xf32>
    %21 = tpu.matmul %20, %18, %cst_21 {dimension_numbers = #tpu.dot_dimension_numbers<[1], [0], [0], [1], [0, 0, 1, 1], [], []>} : vector<128x128xbf16>, vector<128x128xbf16>, vector<128x128xf32> -> vector<128x128xf32>
    %22 = arith.truncf %21 : vector<128x128xf32> to vector<128x128xbf16>
    %c1_22 = arith.constant 1 : index
    %c0_23 = arith.constant 0 : index
    %c0_24 = arith.constant 0 : index
    %23 = vector.load %arg2[%c1_22, %c0_23, %c0_24] : memref<9x128x128xbf16, #tpu.memory_space<vmem>>, vector<1x128x128xbf16>
    %24 = vector.shape_cast %23 : vector<1x128x128xbf16> to vector<128x128xbf16>
    %cst_25 = arith.constant dense<0.000000e+00> : vector<128x128xf32>
    %25 = tpu.matmul %24, %18, %cst_25 {dimension_numbers = #tpu.dot_dimension_numbers<[1], [0], [0], [1], [0, 0, 1, 1], [], []>} : vector<128x128xbf16>, vector<128x128xbf16>, vector<128x128xf32> -> vector<128x128xf32>
    %26 = arith.truncf %25 : vector<128x128xf32> to vector<128x128xbf16>
    %c2_26 = arith.constant 2 : index
    %c0_27 = arith.constant 0 : index
    %c0_28 = arith.constant 0 : index
    %27 = vector.load %arg2[%c2_26, %c0_27, %c0_28] : memref<9x128x128xbf16, #tpu.memory_space<vmem>>, vector<1x128x128xbf16>
    %28 = vector.shape_cast %27 : vector<1x128x128xbf16> to vector<128x128xbf16>
    %cst_29 = arith.constant dense<0.000000e+00> : vector<128x128xf32>
    %29 = tpu.matmul %28, %18, %cst_29 {dimension_numbers = #tpu.dot_dimension_numbers<[1], [0], [0], [1], [0, 0, 1, 1], [], []>} : vector<128x128xbf16>, vector<128x128xbf16>, vector<128x128xf32> -> vector<128x128xf32>
    %30 = arith.truncf %29 : vector<128x128xf32> to vector<128x128xbf16>
    %c3_30 = arith.constant 3 : index
    %c0_31 = arith.constant 0 : index
    %c0_32 = arith.constant 0 : index
    %31 = vector.load %arg2[%c3_30, %c0_31, %c0_32] : memref<9x128x128xbf16, #tpu.memory_space<vmem>>, vector<1x128x128xbf16>
    %32 = vector.shape_cast %31 : vector<1x128x128xbf16> to vector<128x128xbf16>
    %cst_33 = arith.constant dense<0.000000e+00> : vector<128x128xf32>
    %33 = tpu.matmul %32, %18, %cst_33 {dimension_numbers = #tpu.dot_dimension_numbers<[1], [0], [0], [1], [0, 0, 1, 1], [], []>} : vector<128x128xbf16>, vector<128x128xbf16>, vector<128x128xf32> -> vector<128x128xf32>
    %34 = arith.truncf %33 : vector<128x128xf32> to vector<128x128xbf16>
    %c4 = arith.constant 4 : index
    %c0_34 = arith.constant 0 : index
    %c0_35 = arith.constant 0 : index
    %35 = vector.load %arg2[%c4, %c0_34, %c0_35] : memref<9x128x128xbf16, #tpu.memory_space<vmem>>, vector<1x128x128xbf16>
    %36 = vector.shape_cast %35 : vector<1x128x128xbf16> to vector<128x128xbf16>
    %cst_36 = arith.constant dense<0.000000e+00> : vector<128x128xf32>
    %37 = tpu.matmul %36, %18, %cst_36 {dimension_numbers = #tpu.dot_dimension_numbers<[1], [0], [0], [1], [0, 0, 1, 1], [], []>} : vector<128x128xbf16>, vector<128x128xbf16>, vector<128x128xf32> -> vector<128x128xf32>
    %38 = arith.truncf %37 : vector<128x128xf32> to vector<128x128xbf16>
    %c5 = arith.constant 5 : index
    %c0_37 = arith.constant 0 : index
    %c0_38 = arith.constant 0 : index
    %39 = vector.load %arg2[%c5, %c0_37, %c0_38] : memref<9x128x128xbf16, #tpu.memory_space<vmem>>, vector<1x128x128xbf16>
    %40 = vector.shape_cast %39 : vector<1x128x128xbf16> to vector<128x128xbf16>
    %cst_39 = arith.constant dense<0.000000e+00> : vector<128x128xf32>
    %41 = tpu.matmul %40, %18, %cst_39 {dimension_numbers = #tpu.dot_dimension_numbers<[1], [0], [0], [1], [0, 0, 1, 1], [], []>} : vector<128x128xbf16>, vector<128x128xbf16>, vector<128x128xf32> -> vector<128x128xf32>
    %42 = arith.truncf %41 : vector<128x128xf32> to vector<128x128xbf16>
    %c6 = arith.constant 6 : index
    %c0_40 = arith.constant 0 : index
    %c0_41 = arith.constant 0 : index
    %43 = vector.load %arg2[%c6, %c0_40, %c0_41] : memref<9x128x128xbf16, #tpu.memory_space<vmem>>, vector<1x128x128xbf16>
    %44 = vector.shape_cast %43 : vector<1x128x128xbf16> to vector<128x128xbf16>
    %cst_42 = arith.constant dense<0.000000e+00> : vector<128x128xf32>
    %45 = tpu.matmul %44, %18, %cst_42 {dimension_numbers = #tpu.dot_dimension_numbers<[1], [0], [0], [1], [0, 0, 1, 1], [], []>} : vector<128x128xbf16>, vector<128x128xbf16>, vector<128x128xf32> -> vector<128x128xf32>
    %46 = arith.truncf %45 : vector<128x128xf32> to vector<128x128xbf16>
    %c7 = arith.constant 7 : index
    %c0_43 = arith.constant 0 : index
    %c0_44 = arith.constant 0 : index
    %47 = vector.load %arg2[%c7, %c0_43, %c0_44] : memref<9x128x128xbf16, #tpu.memory_space<vmem>>, vector<1x128x128xbf16>
    %48 = vector.shape_cast %47 : vector<1x128x128xbf16> to vector<128x128xbf16>
    %cst_45 = arith.constant dense<0.000000e+00> : vector<128x128xf32>
    %49 = tpu.matmul %48, %18, %cst_45 {dimension_numbers = #tpu.dot_dimension_numbers<[1], [0], [0], [1], [0, 0, 1, 1], [], []>} : vector<128x128xbf16>, vector<128x128xbf16>, vector<128x128xf32> -> vector<128x128xf32>
    %50 = arith.truncf %49 : vector<128x128xf32> to vector<128x128xbf16>
    %c8 = arith.constant 8 : index
    %c0_46 = arith.constant 0 : index
    %c0_47 = arith.constant 0 : index
    %51 = vector.load %arg2[%c8, %c0_46, %c0_47] : memref<9x128x128xbf16, #tpu.memory_space<vmem>>, vector<1x128x128xbf16>
    %52 = vector.shape_cast %51 : vector<1x128x128xbf16> to vector<128x128xbf16>
    %cst_48 = arith.constant dense<0.000000e+00> : vector<128x128xf32>
    %53 = tpu.matmul %52, %18, %cst_48 {dimension_numbers = #tpu.dot_dimension_numbers<[1], [0], [0], [1], [0, 0, 1, 1], [], []>} : vector<128x128xbf16>, vector<128x128xbf16>, vector<128x128xf32> -> vector<128x128xf32>
    %54 = arith.truncf %53 : vector<128x128xf32> to vector<128x128xbf16>
    %55 = tpu.concatenate %22, %26, %30, %34, %38, %42, %46, %50, %54 in 1 : vector<128x128xbf16>, vector<128x128xbf16>, vector<128x128xbf16>, vector<128x128xbf16>, vector<128x128xbf16>, vector<128x128xbf16>, vector<128x128xbf16>, vector<128x128xbf16>, vector<128x128xbf16> -> vector<128x1152xbf16>
    %c0_49 = arith.constant 0 : index
    %c0_50 = arith.constant 0 : index
    %56 = vector.load %arg4[%c0_49, %c0_50] : memref<1152x128xbf16, #tpu.memory_space<vmem>>, vector<1152x128xbf16>
    %cst_51 = arith.constant dense<0.000000e+00> : vector<128x128xf32>
    %57 = tpu.matmul %55, %56, %cst_51 {dimension_numbers = #tpu.dot_dimension_numbers<[1], [0], [0], [1], [0, 0, 1, 1], [], []>} : vector<128x1152xbf16>, vector<1152x128xbf16>, vector<128x128xf32> -> vector<128x128xf32>
    %58 = vector.broadcast %3 : vector<1x128xf32> to vector<128x128xf32>
    %59 = arith.mulf %57, %58 : vector<128x128xf32>
    %60 = vector.broadcast %4 : vector<1x128xf32> to vector<128x128xf32>
    %61 = arith.addf %59, %60 : vector<128x128xf32>
    %cst_52 = arith.constant 0.000000e+00 : f32
    %62 = vector.broadcast %cst_52 : f32 to vector<128x128xf32>
    %63 = arith.maximumf %61, %62 : vector<128x128xf32>
    %64 = arith.truncf %63 : vector<128x128xf32> to vector<128x128xbf16>
    %c1_53 = arith.constant 1 : index
    %c0_54 = arith.constant 0 : index
    %c0_55 = arith.constant 0 : index
    %65 = vector.load %arg3[%c1_53, %c0_54, %c0_55] : memref<3x128x128xbf16, #tpu.memory_space<vmem>>, vector<1x128x128xbf16>
    %66 = vector.shape_cast %65 : vector<1x128x128xbf16> to vector<128x128xbf16>
    %cst_56 = arith.constant dense<0.000000e+00> : vector<128x128xf32>
    %67 = tpu.matmul %64, %66, %cst_56 {dimension_numbers = #tpu.dot_dimension_numbers<[1], [0], [0], [1], [0, 0, 1, 1], [], []>} : vector<128x128xbf16>, vector<128x128xbf16>, vector<128x128xf32> -> vector<128x128xf32>
    %68 = vector.broadcast %5 : vector<1x128xf32> to vector<128x128xf32>
    %69 = arith.mulf %67, %68 : vector<128x128xf32>
    %70 = vector.broadcast %6 : vector<1x128xf32> to vector<128x128xf32>
    %71 = arith.addf %69, %70 : vector<128x128xf32>
    %c2_57 = arith.constant 2 : index
    %c0_58 = arith.constant 0 : index
    %c0_59 = arith.constant 0 : index
    %72 = vector.load %arg3[%c2_57, %c0_58, %c0_59] : memref<3x128x128xbf16, #tpu.memory_space<vmem>>, vector<1x128x128xbf16>
    %73 = vector.shape_cast %72 : vector<1x128x128xbf16> to vector<128x128xbf16>
    %cst_60 = arith.constant dense<0.000000e+00> : vector<128x128xf32>
    %74 = tpu.matmul %0, %73, %cst_60 {dimension_numbers = #tpu.dot_dimension_numbers<[1], [0], [0], [1], [0, 0, 1, 1], [], []>} : vector<128x128xbf16>, vector<128x128xbf16>, vector<128x128xf32> -> vector<128x128xf32>
    %75 = vector.broadcast %7 : vector<1x128xf32> to vector<128x128xf32>
    %76 = arith.mulf %74, %75 : vector<128x128xf32>
    %77 = vector.broadcast %8 : vector<1x128xf32> to vector<128x128xf32>
    %78 = arith.addf %76, %77 : vector<128x128xf32>
    %79 = arith.addf %71, %78 : vector<128x128xf32>
    %cst_61 = arith.constant 0.000000e+00 : f32
    %80 = vector.broadcast %cst_61 : f32 to vector<128x128xf32>
    %81 = arith.maximumf %79, %80 : vector<128x128xf32>
    %c0_62 = arith.constant 0 : index
    %c0_63 = arith.constant 0 : index
    %82 = vector.load %arg7[%c0_62, %c0_63] : memref<8x128xbf16, #tpu.memory_space<vmem>>, vector<8x128xbf16>
    %83 = arith.truncf %81 : vector<128x128xf32> to vector<128x128xbf16>
    %cst_64 = arith.constant dense<0.000000e+00> : vector<8x128xf32>
    %84 = tpu.matmul %82, %83, %cst_64 {dimension_numbers = #tpu.dot_dimension_numbers<[1], [0], [0], [1], [0, 0, 1, 1], [], []>} : vector<8x128xbf16>, vector<128x128xbf16>, vector<8x128xf32> -> vector<8x128xf32>
    %85 = arith.truncf %84 : vector<8x128xf32> to vector<8x128xbf16>
    %c0_65 = arith.constant 0 : index
    %c0_66 = arith.constant 0 : index
    %86 = vector.load %arg8[%c0_65, %c0_66] : memref<128x512xbf16, #tpu.memory_space<vmem>>, vector<128x512xbf16>
    %cst_67 = arith.constant dense<0.000000e+00> : vector<8x512xf32>
    %87 = tpu.matmul %85, %86, %cst_67 {dimension_numbers = #tpu.dot_dimension_numbers<[1], [0], [0], [1], [0, 0, 1, 1], [], []>} : vector<8x128xbf16>, vector<128x512xbf16>, vector<8x512xf32> -> vector<8x512xf32>
    %c0_68 = arith.constant 0 : index
    %c0_69 = arith.constant 0 : index
    %88 = vector.load %arg9[%c0_68, %c0_69] : memref<1x512xf32, #tpu.memory_space<vmem>>, vector<1x512xf32>
    %89 = vector.broadcast %88 : vector<1x512xf32> to vector<8x512xf32>
    %90 = arith.addf %87, %89 : vector<8x512xf32>
    %c0_70 = arith.constant 0 : index
    %c0_71 = arith.constant 0 : index
    %91 = vector.load %arg10[%c0_70, %c0_71] : memref<8x512xf32, #tpu.memory_space<vmem>>, vector<8x512xf32>
    tpu.vector_store %arg10[%c0_70, %c0_71], %90 {strides = array<i32>} : memref<8x512xf32, #tpu.memory_space<vmem>>, vector<8x512xf32>,
    return
  }
  func.func @transform_0(%arg0: i32) -> (i32, i32) {
    %c0_i32 = arith.constant 0 : i32
    %c0_i32_0 = arith.constant 0 : i32
    %c0_i32_1 = arith.constant 0 : i32
    return %c0_i32, %c0_i32_0 : i32, i32
  }
  func.func @transform_1(%arg0: i32) -> (i32, i32, i32) {
    %c0_i32 = arith.constant 0 : i32
    %c0_i32_0 = arith.constant 0 : i32
    %c0_i32_1 = arith.constant 0 : i32
    %c0_i32_2 = arith.constant 0 : i32
    return %c0_i32, %c0_i32_0, %c0_i32_1 : i32, i32, i32
  }
  func.func @transform_2(%arg0: i32) -> (i32, i32, i32) {
    %c0_i32 = arith.constant 0 : i32
    %c0_i32_0 = arith.constant 0 : i32
    %c0_i32_1 = arith.constant 0 : i32
    %c0_i32_2 = arith.constant 0 : i32
    return %c0_i32, %c0_i32_0, %c0_i32_1 : i32, i32, i32
  }
  func.func @transform_3(%arg0: i32) -> (i32, i32) {
    %c0_i32 = arith.constant 0 : i32
    %c0_i32_0 = arith.constant 0 : i32
    %c0_i32_1 = arith.constant 0 : i32
    return %c0_i32, %c0_i32_0 : i32, i32
  }
  func.func @transform_4(%arg0: i32) -> (i32, i32) {
    %c0_i32 = arith.constant 0 : i32
    %c0_i32_0 = arith.constant 0 : i32
    %c0_i32_1 = arith.constant 0 : i32
    return %c0_i32, %c0_i32_0 : i32, i32
  }
  func.func @transform_5(%arg0: i32) -> (i32, i32) {
    %c0_i32 = arith.constant 0 : i32
    %c0_i32_0 = arith.constant 0 : i32
    %c0_i32_1 = arith.constant 0 : i32
    return %c0_i32, %c0_i32_0 : i32, i32
  }
  func.func @transform_6(%arg0: i32) -> (i32, i32) {
    %c0_i32 = arith.constant 0 : i32
    %c0_i32_0 = arith.constant 0 : i32
    %c0_i32_1 = arith.constant 0 : i32
    return %c0_i32, %c0_i32_0 : i32, i32
  }
  func.func @transform_7(%arg0: i32) -> (i32, i32) {
    %c0_i32 = arith.constant 0 : i32
    %c0_i32_0 = arith.constant 0 : i32
    %c0_i32_1 = arith.constant 0 : i32
    return %c0_i32, %c0_i32_0 : i32, i32
  }
  func.func @transform_8(%arg0: i32) -> (i32, i32) {
    %c0_i32 = arith.constant 0 : i32
    %c0_i32_0 = arith.constant 0 : i32
    %c0_i32_1 = arith.constant 0 : i32
    return %c0_i32, %c0_i32_0 : i32, i32
  }
  func.func @transform_9(%arg0: i32) -> (i32, i32) {
    %c0_i32 = arith.constant 0 : i32
    %c0_i32_0 = arith.constant 0 : i32
    %c0_i32_1 = arith.constant 0 : i32
    return %c0_i32, %c0_i32_0 : i32, i32
  }
}

module attributes {stable_mosaic.version = 11 : i64} {
  func.func @_mp_block1_kernel(%arg0: i32, %arg1: memref<9x128x128xbf16, #tpu.memory_space<vmem>>, %arg2: memref<9x128x128xbf16, #tpu.memory_space<vmem>>, %arg3: memref<3x128x128xbf16, #tpu.memory_space<vmem>>, %arg4: memref<1152x128xbf16, #tpu.memory_space<vmem>>, %arg5: memref<4x128xf32, #tpu.memory_space<vmem>>, %arg6: memref<4x128xf32, #tpu.memory_space<vmem>>, %arg7: memref<128x128xbf16, #tpu.memory_space<vmem>>) attributes {dimension_semantics = [#tpu.dimension_semantics<arbitrary>], iteration_bounds = array<i64: 1>, scalar_prefetch = 0 : i64, scratch_operands = 0 : i64, tpu.core_type = #tpu.core_type<tc>, window_params = [{pipeline_mode = #tpu.pipeline_mode<synchronous>, transform_indices = @transform_0, window_bounds = array<i64: 9, 128, 128>}, {pipeline_mode = #tpu.pipeline_mode<synchronous>, transform_indices = @transform_1, window_bounds = array<i64: 9, 128, 128>}, {pipeline_mode = #tpu.pipeline_mode<synchronous>, transform_indices = @transform_2, window_bounds = array<i64: 3, 128, 128>}, {pipeline_mode = #tpu.pipeline_mode<synchronous>, transform_indices = @transform_3, window_bounds = array<i64: 1152, 128>}, {pipeline_mode = #tpu.pipeline_mode<synchronous>, transform_indices = @transform_4, window_bounds = array<i64: 4, 128>}, {pipeline_mode = #tpu.pipeline_mode<synchronous>, transform_indices = @transform_5, window_bounds = array<i64: 4, 128>}, {pipeline_mode = #tpu.pipeline_mode<synchronous>, transform_indices = @transform_6, window_bounds = array<i64: 128, 128>}]} {
    %c0 = arith.constant 0 : index
    %c0_0 = arith.constant 0 : index
    %c0_1 = arith.constant 0 : index
    %0 = vector.load %arg1[%c0, %c0_0, %c0_1] : memref<9x128x128xbf16, #tpu.memory_space<vmem>>, vector<1x128x128xbf16>
    %1 = vector.shape_cast %0 : vector<1x128x128xbf16> to vector<128x128xbf16>
    %c1 = arith.constant 1 : index
    %c0_2 = arith.constant 0 : index
    %c0_3 = arith.constant 0 : index
    %2 = vector.load %arg1[%c1, %c0_2, %c0_3] : memref<9x128x128xbf16, #tpu.memory_space<vmem>>, vector<1x128x128xbf16>
    %3 = vector.shape_cast %2 : vector<1x128x128xbf16> to vector<128x128xbf16>
    %4 = arith.maximumf %1, %3 : vector<128x128xbf16>
    %c2 = arith.constant 2 : index
    %c0_4 = arith.constant 0 : index
    %c0_5 = arith.constant 0 : index
    %5 = vector.load %arg1[%c2, %c0_4, %c0_5] : memref<9x128x128xbf16, #tpu.memory_space<vmem>>, vector<1x128x128xbf16>
    %6 = vector.shape_cast %5 : vector<1x128x128xbf16> to vector<128x128xbf16>
    %7 = arith.maximumf %4, %6 : vector<128x128xbf16>
    %c3 = arith.constant 3 : index
    %c0_6 = arith.constant 0 : index
    %c0_7 = arith.constant 0 : index
    %8 = vector.load %arg1[%c3, %c0_6, %c0_7] : memref<9x128x128xbf16, #tpu.memory_space<vmem>>, vector<1x128x128xbf16>
    %9 = vector.shape_cast %8 : vector<1x128x128xbf16> to vector<128x128xbf16>
    %10 = arith.maximumf %7, %9 : vector<128x128xbf16>
    %c4 = arith.constant 4 : index
    %c0_8 = arith.constant 0 : index
    %c0_9 = arith.constant 0 : index
    %11 = vector.load %arg1[%c4, %c0_8, %c0_9] : memref<9x128x128xbf16, #tpu.memory_space<vmem>>, vector<1x128x128xbf16>
    %12 = vector.shape_cast %11 : vector<1x128x128xbf16> to vector<128x128xbf16>
    %13 = arith.maximumf %10, %12 : vector<128x128xbf16>
    %c5 = arith.constant 5 : index
    %c0_10 = arith.constant 0 : index
    %c0_11 = arith.constant 0 : index
    %14 = vector.load %arg1[%c5, %c0_10, %c0_11] : memref<9x128x128xbf16, #tpu.memory_space<vmem>>, vector<1x128x128xbf16>
    %15 = vector.shape_cast %14 : vector<1x128x128xbf16> to vector<128x128xbf16>
    %16 = arith.maximumf %13, %15 : vector<128x128xbf16>
    %c6 = arith.constant 6 : index
    %c0_12 = arith.constant 0 : index
    %c0_13 = arith.constant 0 : index
    %17 = vector.load %arg1[%c6, %c0_12, %c0_13] : memref<9x128x128xbf16, #tpu.memory_space<vmem>>, vector<1x128x128xbf16>
    %18 = vector.shape_cast %17 : vector<1x128x128xbf16> to vector<128x128xbf16>
    %19 = arith.maximumf %16, %18 : vector<128x128xbf16>
    %c7 = arith.constant 7 : index
    %c0_14 = arith.constant 0 : index
    %c0_15 = arith.constant 0 : index
    %20 = vector.load %arg1[%c7, %c0_14, %c0_15] : memref<9x128x128xbf16, #tpu.memory_space<vmem>>, vector<1x128x128xbf16>
    %21 = vector.shape_cast %20 : vector<1x128x128xbf16> to vector<128x128xbf16>
    %22 = arith.maximumf %19, %21 : vector<128x128xbf16>
    %c8 = arith.constant 8 : index
    %c0_16 = arith.constant 0 : index
    %c0_17 = arith.constant 0 : index
    %23 = vector.load %arg1[%c8, %c0_16, %c0_17] : memref<9x128x128xbf16, #tpu.memory_space<vmem>>, vector<1x128x128xbf16>
    %24 = vector.shape_cast %23 : vector<1x128x128xbf16> to vector<128x128xbf16>
    %25 = arith.maximumf %22, %24 : vector<128x128xbf16>
    %c0_18 = arith.constant 0 : index
    %c0_19 = arith.constant 0 : index
    %26 = vector.load %arg5[%c0_18, %c0_19] : memref<4x128xf32, #tpu.memory_space<vmem>>, vector<1x128xf32>
    %c0_20 = arith.constant 0 : index
    %c0_21 = arith.constant 0 : index
    %27 = vector.load %arg6[%c0_20, %c0_21] : memref<4x128xf32, #tpu.memory_space<vmem>>, vector<1x128xf32>
    %c1_22 = arith.constant 1 : index
    %c0_23 = arith.constant 0 : index
    %28 = vector.load %arg5[%c1_22, %c0_23] : memref<4x128xf32, #tpu.memory_space<vmem>>, vector<1x128xf32>
    %c1_24 = arith.constant 1 : index
    %c0_25 = arith.constant 0 : index
    %29 = vector.load %arg6[%c1_24, %c0_25] : memref<4x128xf32, #tpu.memory_space<vmem>>, vector<1x128xf32>
    %c2_26 = arith.constant 2 : index
    %c0_27 = arith.constant 0 : index
    %30 = vector.load %arg5[%c2_26, %c0_27] : memref<4x128xf32, #tpu.memory_space<vmem>>, vector<1x128xf32>
    %c2_28 = arith.constant 2 : index
    %c0_29 = arith.constant 0 : index
    %31 = vector.load %arg6[%c2_28, %c0_29] : memref<4x128xf32, #tpu.memory_space<vmem>>, vector<1x128xf32>
    %c3_30 = arith.constant 3 : index
    %c0_31 = arith.constant 0 : index
    %32 = vector.load %arg5[%c3_30, %c0_31] : memref<4x128xf32, #tpu.memory_space<vmem>>, vector<1x128xf32>
    %c3_32 = arith.constant 3 : index
    %c0_33 = arith.constant 0 : index
    %33 = vector.load %arg6[%c3_32, %c0_33] : memref<4x128xf32, #tpu.memory_space<vmem>>, vector<1x128xf32>
    %c0_34 = arith.constant 0 : index
    %c0_35 = arith.constant 0 : index
    %c0_36 = arith.constant 0 : index
    %34 = vector.load %arg3[%c0_34, %c0_35, %c0_36] : memref<3x128x128xbf16, #tpu.memory_space<vmem>>, vector<1x128x128xbf16>
    %35 = vector.shape_cast %34 : vector<1x128x128xbf16> to vector<128x128xbf16>
    %cst = arith.constant dense<0.000000e+00> : vector<128x128xf32>
    %36 = tpu.matmul %25, %35, %cst {dimension_numbers = #tpu.dot_dimension_numbers<[1], [0], [0], [1], [0, 0, 1, 1], [], []>} : vector<128x128xbf16>, vector<128x128xbf16>, vector<128x128xf32> -> vector<128x128xf32>
    %37 = vector.broadcast %26 : vector<1x128xf32> to vector<128x128xf32>
    %38 = arith.mulf %36, %37 : vector<128x128xf32>
    %39 = vector.broadcast %27 : vector<1x128xf32> to vector<128x128xf32>
    %40 = arith.addf %38, %39 : vector<128x128xf32>
    %cst_37 = arith.constant 0.000000e+00 : f32
    %41 = vector.broadcast %cst_37 : f32 to vector<128x128xf32>
    %42 = arith.maximumf %40, %41 : vector<128x128xf32>
    %43 = arith.truncf %42 : vector<128x128xf32> to vector<128x128xbf16>
    %c0_38 = arith.constant 0 : index
    %c0_39 = arith.constant 0 : index
    %c0_40 = arith.constant 0 : index
    %44 = vector.load %arg2[%c0_38, %c0_39, %c0_40] : memref<9x128x128xbf16, #tpu.memory_space<vmem>>, vector<1x128x128xbf16>
    %45 = vector.shape_cast %44 : vector<1x128x128xbf16> to vector<128x128xbf16>
    %cst_41 = arith.constant dense<0.000000e+00> : vector<128x128xf32>
    %46 = tpu.matmul %45, %43, %cst_41 {dimension_numbers = #tpu.dot_dimension_numbers<[1], [0], [0], [1], [0, 0, 1, 1], [], []>} : vector<128x128xbf16>, vector<128x128xbf16>, vector<128x128xf32> -> vector<128x128xf32>
    %47 = arith.truncf %46 : vector<128x128xf32> to vector<128x128xbf16>
    %c1_42 = arith.constant 1 : index
    %c0_43 = arith.constant 0 : index
    %c0_44 = arith.constant 0 : index
    %48 = vector.load %arg2[%c1_42, %c0_43, %c0_44] : memref<9x128x128xbf16, #tpu.memory_space<vmem>>, vector<1x128x128xbf16>
    %49 = vector.shape_cast %48 : vector<1x128x128xbf16> to vector<128x128xbf16>
    %cst_45 = arith.constant dense<0.000000e+00> : vector<128x128xf32>
    %50 = tpu.matmul %49, %43, %cst_45 {dimension_numbers = #tpu.dot_dimension_numbers<[1], [0], [0], [1], [0, 0, 1, 1], [], []>} : vector<128x128xbf16>, vector<128x128xbf16>, vector<128x128xf32> -> vector<128x128xf32>
    %51 = arith.truncf %50 : vector<128x128xf32> to vector<128x128xbf16>
    %c2_46 = arith.constant 2 : index
    %c0_47 = arith.constant 0 : index
    %c0_48 = arith.constant 0 : index
    %52 = vector.load %arg2[%c2_46, %c0_47, %c0_48] : memref<9x128x128xbf16, #tpu.memory_space<vmem>>, vector<1x128x128xbf16>
    %53 = vector.shape_cast %52 : vector<1x128x128xbf16> to vector<128x128xbf16>
    %cst_49 = arith.constant dense<0.000000e+00> : vector<128x128xf32>
    %54 = tpu.matmul %53, %43, %cst_49 {dimension_numbers = #tpu.dot_dimension_numbers<[1], [0], [0], [1], [0, 0, 1, 1], [], []>} : vector<128x128xbf16>, vector<128x128xbf16>, vector<128x128xf32> -> vector<128x128xf32>
    %55 = arith.truncf %54 : vector<128x128xf32> to vector<128x128xbf16>
    %c3_50 = arith.constant 3 : index
    %c0_51 = arith.constant 0 : index
    %c0_52 = arith.constant 0 : index
    %56 = vector.load %arg2[%c3_50, %c0_51, %c0_52] : memref<9x128x128xbf16, #tpu.memory_space<vmem>>, vector<1x128x128xbf16>
    %57 = vector.shape_cast %56 : vector<1x128x128xbf16> to vector<128x128xbf16>
    %cst_53 = arith.constant dense<0.000000e+00> : vector<128x128xf32>
    %58 = tpu.matmul %57, %43, %cst_53 {dimension_numbers = #tpu.dot_dimension_numbers<[1], [0], [0], [1], [0, 0, 1, 1], [], []>} : vector<128x128xbf16>, vector<128x128xbf16>, vector<128x128xf32> -> vector<128x128xf32>
    %59 = arith.truncf %58 : vector<128x128xf32> to vector<128x128xbf16>
    %c4_54 = arith.constant 4 : index
    %c0_55 = arith.constant 0 : index
    %c0_56 = arith.constant 0 : index
    %60 = vector.load %arg2[%c4_54, %c0_55, %c0_56] : memref<9x128x128xbf16, #tpu.memory_space<vmem>>, vector<1x128x128xbf16>
    %61 = vector.shape_cast %60 : vector<1x128x128xbf16> to vector<128x128xbf16>
    %cst_57 = arith.constant dense<0.000000e+00> : vector<128x128xf32>
    %62 = tpu.matmul %61, %43, %cst_57 {dimension_numbers = #tpu.dot_dimension_numbers<[1], [0], [0], [1], [0, 0, 1, 1], [], []>} : vector<128x128xbf16>, vector<128x128xbf16>, vector<128x128xf32> -> vector<128x128xf32>
    %63 = arith.truncf %62 : vector<128x128xf32> to vector<128x128xbf16>
    %c5_58 = arith.constant 5 : index
    %c0_59 = arith.constant 0 : index
    %c0_60 = arith.constant 0 : index
    %64 = vector.load %arg2[%c5_58, %c0_59, %c0_60] : memref<9x128x128xbf16, #tpu.memory_space<vmem>>, vector<1x128x128xbf16>
    %65 = vector.shape_cast %64 : vector<1x128x128xbf16> to vector<128x128xbf16>
    %cst_61 = arith.constant dense<0.000000e+00> : vector<128x128xf32>
    %66 = tpu.matmul %65, %43, %cst_61 {dimension_numbers = #tpu.dot_dimension_numbers<[1], [0], [0], [1], [0, 0, 1, 1], [], []>} : vector<128x128xbf16>, vector<128x128xbf16>, vector<128x128xf32> -> vector<128x128xf32>
    %67 = arith.truncf %66 : vector<128x128xf32> to vector<128x128xbf16>
    %c6_62 = arith.constant 6 : index
    %c0_63 = arith.constant 0 : index
    %c0_64 = arith.constant 0 : index
    %68 = vector.load %arg2[%c6_62, %c0_63, %c0_64] : memref<9x128x128xbf16, #tpu.memory_space<vmem>>, vector<1x128x128xbf16>
    %69 = vector.shape_cast %68 : vector<1x128x128xbf16> to vector<128x128xbf16>
    %cst_65 = arith.constant dense<0.000000e+00> : vector<128x128xf32>
    %70 = tpu.matmul %69, %43, %cst_65 {dimension_numbers = #tpu.dot_dimension_numbers<[1], [0], [0], [1], [0, 0, 1, 1], [], []>} : vector<128x128xbf16>, vector<128x128xbf16>, vector<128x128xf32> -> vector<128x128xf32>
    %71 = arith.truncf %70 : vector<128x128xf32> to vector<128x128xbf16>
    %c7_66 = arith.constant 7 : index
    %c0_67 = arith.constant 0 : index
    %c0_68 = arith.constant 0 : index
    %72 = vector.load %arg2[%c7_66, %c0_67, %c0_68] : memref<9x128x128xbf16, #tpu.memory_space<vmem>>, vector<1x128x128xbf16>
    %73 = vector.shape_cast %72 : vector<1x128x128xbf16> to vector<128x128xbf16>
    %cst_69 = arith.constant dense<0.000000e+00> : vector<128x128xf32>
    %74 = tpu.matmul %73, %43, %cst_69 {dimension_numbers = #tpu.dot_dimension_numbers<[1], [0], [0], [1], [0, 0, 1, 1], [], []>} : vector<128x128xbf16>, vector<128x128xbf16>, vector<128x128xf32> -> vector<128x128xf32>
    %75 = arith.truncf %74 : vector<128x128xf32> to vector<128x128xbf16>
    %c8_70 = arith.constant 8 : index
    %c0_71 = arith.constant 0 : index
    %c0_72 = arith.constant 0 : index
    %76 = vector.load %arg2[%c8_70, %c0_71, %c0_72] : memref<9x128x128xbf16, #tpu.memory_space<vmem>>, vector<1x128x128xbf16>
    %77 = vector.shape_cast %76 : vector<1x128x128xbf16> to vector<128x128xbf16>
    %cst_73 = arith.constant dense<0.000000e+00> : vector<128x128xf32>
    %78 = tpu.matmul %77, %43, %cst_73 {dimension_numbers = #tpu.dot_dimension_numbers<[1], [0], [0], [1], [0, 0, 1, 1], [], []>} : vector<128x128xbf16>, vector<128x128xbf16>, vector<128x128xf32> -> vector<128x128xf32>
    %79 = arith.truncf %78 : vector<128x128xf32> to vector<128x128xbf16>
    %80 = tpu.concatenate %47, %51, %55, %59, %63, %67, %71, %75, %79 in 1 : vector<128x128xbf16>, vector<128x128xbf16>, vector<128x128xbf16>, vector<128x128xbf16>, vector<128x128xbf16>, vector<128x128xbf16>, vector<128x128xbf16>, vector<128x128xbf16>, vector<128x128xbf16> -> vector<128x1152xbf16>
    %c0_74 = arith.constant 0 : index
    %c0_75 = arith.constant 0 : index
    %81 = vector.load %arg4[%c0_74, %c0_75] : memref<1152x128xbf16, #tpu.memory_space<vmem>>, vector<1152x128xbf16>
    %cst_76 = arith.constant dense<0.000000e+00> : vector<128x128xf32>
    %82 = tpu.matmul %80, %81, %cst_76 {dimension_numbers = #tpu.dot_dimension_numbers<[1], [0], [0], [1], [0, 0, 1, 1], [], []>} : vector<128x1152xbf16>, vector<1152x128xbf16>, vector<128x128xf32> -> vector<128x128xf32>
    %83 = vector.broadcast %28 : vector<1x128xf32> to vector<128x128xf32>
    %84 = arith.mulf %82, %83 : vector<128x128xf32>
    %85 = vector.broadcast %29 : vector<1x128xf32> to vector<128x128xf32>
    %86 = arith.addf %84, %85 : vector<128x128xf32>
    %cst_77 = arith.constant 0.000000e+00 : f32
    %87 = vector.broadcast %cst_77 : f32 to vector<128x128xf32>
    %88 = arith.maximumf %86, %87 : vector<128x128xf32>
    %89 = arith.truncf %88 : vector<128x128xf32> to vector<128x128xbf16>
    %c1_78 = arith.constant 1 : index
    %c0_79 = arith.constant 0 : index
    %c0_80 = arith.constant 0 : index
    %90 = vector.load %arg3[%c1_78, %c0_79, %c0_80] : memref<3x128x128xbf16, #tpu.memory_space<vmem>>, vector<1x128x128xbf16>
    %91 = vector.shape_cast %90 : vector<1x128x128xbf16> to vector<128x128xbf16>
    %cst_81 = arith.constant dense<0.000000e+00> : vector<128x128xf32>
    %92 = tpu.matmul %89, %91, %cst_81 {dimension_numbers = #tpu.dot_dimension_numbers<[1], [0], [0], [1], [0, 0, 1, 1], [], []>} : vector<128x128xbf16>, vector<128x128xbf16>, vector<128x128xf32> -> vector<128x128xf32>
    %93 = vector.broadcast %30 : vector<1x128xf32> to vector<128x128xf32>
    %94 = arith.mulf %92, %93 : vector<128x128xf32>
    %95 = vector.broadcast %31 : vector<1x128xf32> to vector<128x128xf32>
    %96 = arith.addf %94, %95 : vector<128x128xf32>
    %c2_82 = arith.constant 2 : index
    %c0_83 = arith.constant 0 : index
    %c0_84 = arith.constant 0 : index
    %97 = vector.load %arg3[%c2_82, %c0_83, %c0_84] : memref<3x128x128xbf16, #tpu.memory_space<vmem>>, vector<1x128x128xbf16>
    %98 = vector.shape_cast %97 : vector<1x128x128xbf16> to vector<128x128xbf16>
    %cst_85 = arith.constant dense<0.000000e+00> : vector<128x128xf32>
    %99 = tpu.matmul %25, %98, %cst_85 {dimension_numbers = #tpu.dot_dimension_numbers<[1], [0], [0], [1], [0, 0, 1, 1], [], []>} : vector<128x128xbf16>, vector<128x128xbf16>, vector<128x128xf32> -> vector<128x128xf32>
    %100 = vector.broadcast %32 : vector<1x128xf32> to vector<128x128xf32>
    %101 = arith.mulf %99, %100 : vector<128x128xf32>
    %102 = vector.broadcast %33 : vector<1x128xf32> to vector<128x128xf32>
    %103 = arith.addf %101, %102 : vector<128x128xf32>
    %104 = arith.addf %96, %103 : vector<128x128xf32>
    %cst_86 = arith.constant 0.000000e+00 : f32
    %105 = vector.broadcast %cst_86 : f32 to vector<128x128xf32>
    %106 = arith.maximumf %104, %105 : vector<128x128xf32>
    %107 = arith.truncf %106 : vector<128x128xf32> to vector<128x128xbf16>
    %c0_87 = arith.constant 0 : index
    %c0_88 = arith.constant 0 : index
    %108 = vector.load %arg7[%c0_87, %c0_88] : memref<128x128xbf16, #tpu.memory_space<vmem>>, vector<128x128xbf16>
    tpu.vector_store %arg7[%c0_87, %c0_88], %107 {strides = array<i32>} : memref<128x128xbf16, #tpu.memory_space<vmem>>, vector<128x128xbf16>,
    return
  }
  func.func @transform_0(%arg0: i32) -> (i32, i32, i32) {
    %c0_i32 = arith.constant 0 : i32
    %c0_i32_0 = arith.constant 0 : i32
    %c0_i32_1 = arith.constant 0 : i32
    %c0_i32_2 = arith.constant 0 : i32
    return %c0_i32, %c0_i32_0, %c0_i32_1 : i32, i32, i32
  }
  func.func @transform_1(%arg0: i32) -> (i32, i32, i32) {
    %c0_i32 = arith.constant 0 : i32
    %c0_i32_0 = arith.constant 0 : i32
    %c0_i32_1 = arith.constant 0 : i32
    %c0_i32_2 = arith.constant 0 : i32
    return %c0_i32, %c0_i32_0, %c0_i32_1 : i32, i32, i32
  }
  func.func @transform_2(%arg0: i32) -> (i32, i32, i32) {
    %c0_i32 = arith.constant 0 : i32
    %c0_i32_0 = arith.constant 0 : i32
    %c0_i32_1 = arith.constant 0 : i32
    %c0_i32_2 = arith.constant 0 : i32
    return %c0_i32, %c0_i32_0, %c0_i32_1 : i32, i32, i32
  }
  func.func @transform_3(%arg0: i32) -> (i32, i32) {
    %c0_i32 = arith.constant 0 : i32
    %c0_i32_0 = arith.constant 0 : i32
    %c0_i32_1 = arith.constant 0 : i32
    return %c0_i32, %c0_i32_0 : i32, i32
  }
  func.func @transform_4(%arg0: i32) -> (i32, i32) {
    %c0_i32 = arith.constant 0 : i32
    %c0_i32_0 = arith.constant 0 : i32
    %c0_i32_1 = arith.constant 0 : i32
    return %c0_i32, %c0_i32_0 : i32, i32
  }
  func.func @transform_5(%arg0: i32) -> (i32, i32) {
    %c0_i32 = arith.constant 0 : i32
    %c0_i32_0 = arith.constant 0 : i32
    %c0_i32_1 = arith.constant 0 : i32
    return %c0_i32, %c0_i32_0 : i32, i32
  }
  func.func @transform_6(%arg0: i32) -> (i32, i32) {
    %c0_i32 = arith.constant 0 : i32
    %c0_i32_0 = arith.constant 0 : i32
    %c0_i32_1 = arith.constant 0 : i32
    return %c0_i32, %c0_i32_0 : i32, i32
  }
}

</mosaic_0001>

<llo_original>
// kernel: forward.3
$region0: #{forward.3}
  #allocation0 [shape = 'u32[]', space=smem, size = 0x4, offset = 0x4, fixed_abs, tag = 'smem constant byte address 0x4 - core index']
  #allocation1 [shape = 'u32[144,128]{1,0:T(1,128)}', space=vmem, size = 0x12000, scoped, tag = 'internal scratch']
  %s0 = inlined_call_operand.vmem [shape: bf16[512,256], index: 0, kind: input, shape index: {}]
  %s1 = inlined_call_operand.vmem [shape: bf16[256,128], index: 1, kind: input, shape index: {}]
  %s2 = inlined_call_operand.vmem [shape: f32[1,128], index: 2, kind: input, shape index: {}]
  %s3 = inlined_call_operand.vmem [shape: f32[1,128], index: 3, kind: input, shape index: {}]
  %s4 = inlined_call_operand.vmem [shape: bf16[512,128], index: 4, kind: output, shape index: {}]
  %s5 = sld [smem:[#allocation0]]
  $region26: #{forward.3} parent=0
    _
  %s7 = ssub.s32 1, %s5
  %s8 = scalar_select 0, %s7, %s5
  // Predicated region
  $region2: #{forward.3} parent=0 // pred_check
    _
  $region3: #{forward.3} parent=0 // pred_check_branch
    %10 = sbr.rel (0) target = $region5
  $region4: #{forward.3} parent=0 // pred_region
    _
  $region5: #{forward.3} parent=0 // pred_fallthru
    _
  // Predicated region
  $region6: #{forward.3} parent=0 // pred_check
    _
  $region7: #{forward.3} parent=0 // pred_check_branch
    %12 = sbr.rel (0) target = $region9
  $region8: #{forward.3} parent=0 // pred_region
    _
  $region9: #{forward.3} parent=0 // pred_fallthru
    _
  // Predicated region
  $region10: #{forward.3} parent=0 // pred_check
    _
  $region11: #{forward.3} parent=0 // pred_check_branch
    %14 = sbr.rel (0) target = $region13
  $region12: #{forward.3} parent=0 // pred_region
    _
  $region13: #{forward.3} parent=0 // pred_fallthru
    _
  // Predicated region
  $region14: #{forward.3} parent=0 // pred_check
    _
  $region15: #{forward.3} parent=0 // pred_check_branch
    %16 = sbr.rel (0) target = $region17
  $region16: #{forward.3} parent=0 // pred_region
    _
  $region17: #{forward.3} parent=0 // pred_fallthru
    _
  %v18 = vld [vmem:[%s0] sm:$0xff]
  %v19 = vld [vmem:[%s0 + $0x8] sm:$0xff]
  %v20 = vld [vmem:[%s0 + $0x10] sm:$0xff]
  %v21 = vld [vmem:[%s0 + $0x18] sm:$0xff]
  %v22 = vld [vmem:[%s0 + $0x20] sm:$0xff]
  %v23 = vld [vmem:[%s0 + $0x28] sm:$0xff]
  %v24 = vld [vmem:[%s0 + $0x30] sm:$0xff]
  %v25 = vld [vmem:[%s0 + $0x38] sm:$0xff]
  %v26 = vld [vmem:[%s0 + $0x40] sm:$0xff]
  %v27 = vld [vmem:[%s0 + $0x48] sm:$0xff]
  %v28 = vld [vmem:[%s0 + $0x50] sm:$0xff]
  %v29 = vld [vmem:[%s0 + $0x58] sm:$0xff]
  %v30 = vld [vmem:[%s0 + $0x60] sm:$0xff]
  %v31 = vld [vmem:[%s0 + $0x68] sm:$0xff]
  %v32 = vld [vmem:[%s0 + $0x70] sm:$0xff]
  %v33 = vld [vmem:[%s0 + $0x78] sm:$0xff]
  %v34 = vld [vmem:[%s0 + $0x80] sm:$0xff]
  %v35 = vld [vmem:[%s0 + $0x88] sm:$0xff]
  %v36 = vld [vmem:[%s0 + $0x90] sm:$0xff]
  %v37 = vld [vmem:[%s0 + $0x98] sm:$0xff]
  %v38 = vld [vmem:[%s0 + $0xa0] sm:$0xff]
  %v39 = vld [vmem:[%s0 + $0xa8] sm:$0xff]
  %v40 = vld [vmem:[%s0 + $0xb0] sm:$0xff]
  %v41 = vld [vmem:[%s0 + $0xb8] sm:$0xff]
  %v42 = vld [vmem:[%s0 + $0xc0] sm:$0xff]
  %v43 = vld [vmem:[%s0 + $0xc8] sm:$0xff]
  %v44 = vld [vmem:[%s0 + $0xd0] sm:$0xff]
  %v45 = vld [vmem:[%s0 + $0xd8] sm:$0xff]
  %v46 = vld [vmem:[%s0 + $0xe0] sm:$0xff]
  %v47 = vld [vmem:[%s0 + $0xe8] sm:$0xff]
  %v48 = vld [vmem:[%s0 + $0xf0] sm:$0xff]
  %v49 = vld [vmem:[%s0 + $0xf8] sm:$0xff]
  %v50 = vld [vmem:[%s0 + $0x100] sm:$0xff]
  %v51 = vld [vmem:[%s0 + $0x108] sm:$0xff]
  %v52 = vld [vmem:[%s0 + $0x110] sm:$0xff]
  %v53 = vld [vmem:[%s0 + $0x118] sm:$0xff]
  %v54 = vld [vmem:[%s0 + $0x120] sm:$0xff]
  %v55 = vld [vmem:[%s0 + $0x128] sm:$0xff]
  %v56 = vld [vmem:[%s0 + $0x130] sm:$0xff]
  %v57 = vld [vmem:[%s0 + $0x138] sm:$0xff]
  %v58 = vld [vmem:[%s0 + $0x140] sm:$0xff]
  %v59 = vld [vmem:[%s0 + $0x148] sm:$0xff]
  %v60 = vld [vmem:[%s0 + $0x150] sm:$0xff]
  %v61 = vld [vmem:[%s0 + $0x158] sm:$0xff]
  %v62 = vld [vmem:[%s0 + $0x160] sm:$0xff]
  %v63 = vld [vmem:[%s0 + $0x168] sm:$0xff]
  %v64 = vld [vmem:[%s0 + $0x170] sm:$0xff]
  %v65 = vld [vmem:[%s0 + $0x178] sm:$0xff]
  %v66 = vld [vmem:[%s0 + $0x180] sm:$0xff]
  %v67 = vld [vmem:[%s0 + $0x188] sm:$0xff]
  %v68 = vld [vmem:[%s0 + $0x190] sm:$0xff]
  %v69 = vld [vmem:[%s0 + $0x198] sm:$0xff]
  %v70 = vld [vmem:[%s0 + $0x1a0] sm:$0xff]
  %v71 = vld [vmem:[%s0 + $0x1a8] sm:$0xff]
  %v72 = vld [vmem:[%s0 + $0x1b0] sm:$0xff]
  %v73 = vld [vmem:[%s0 + $0x1b8] sm:$0xff]
  %v74 = vld [vmem:[%s0 + $0x1c0] sm:$0xff]
  %v75 = vld [vmem:[%s0 + $0x1c8] sm:$0xff]
  %v76 = vld [vmem:[%s0 + $0x1d0] sm:$0xff]
  %v77 = vld [vmem:[%s0 + $0x1d8] sm:$0xff]
  %v78 = vld [vmem:[%s0 + $0x1e0] sm:$0xff]
  %v79 = vld [vmem:[%s0 + $0x1e8] sm:$0xff]
  %v80 = vld [vmem:[%s0 + $0x1f0] sm:$0xff]
  %v81 = vld [vmem:[%s0 + $0x1f8] sm:$0xff]
  %v82 = vld [vmem:[%s1] sm:$0xf]
  %v83 = vld [vmem:[%s1 + $0x4] sm:$0xf]
  %v84 = vld [vmem:[%s1 + $0x8] sm:$0xf]
  %v85 = vld [vmem:[%s1 + $0xc] sm:$0xf]
  %v86 = vld [vmem:[%s1 + $0x10] sm:$0xf]
  %v87 = vld [vmem:[%s1 + $0x14] sm:$0xf]
  %v88 = vld [vmem:[%s1 + $0x18] sm:$0xf]
  %v89 = vld [vmem:[%s1 + $0x1c] sm:$0xf]
  %v90 = vld [vmem:[%s1 + $0x20] sm:$0xf]
  %v91 = vld [vmem:[%s1 + $0x24] sm:$0xf]
  %v92 = vld [vmem:[%s1 + $0x28] sm:$0xf]
  %v93 = vld [vmem:[%s1 + $0x2c] sm:$0xf]
  %v94 = vld [vmem:[%s1 + $0x30] sm:$0xf]
  %v95 = vld [vmem:[%s1 + $0x34] sm:$0xf]
  %v96 = vld [vmem:[%s1 + $0x38] sm:$0xf]
  %v97 = vld [vmem:[%s1 + $0x3c] sm:$0xf]
  %v98 = vld [vmem:[%s1 + $0x40] sm:$0xf]
  %v99 = vld [vmem:[%s1 + $0x44] sm:$0xf]
  %v100 = vld [vmem:[%s1 + $0x48] sm:$0xf]
  %v101 = vld [vmem:[%s1 + $0x4c] sm:$0xf]
  %v102 = vld [vmem:[%s1 + $0x50] sm:$0xf]
  %v103 = vld [vmem:[%s1 + $0x54] sm:$0xf]
  %v104 = vld [vmem:[%s1 + $0x58] sm:$0xf]
  %v105 = vld [vmem:[%s1 + $0x5c] sm:$0xf]
  %v106 = vld [vmem:[%s1 + $0x60] sm:$0xf]
  %v107 = vld [vmem:[%s1 + $0x64] sm:$0xf]
  %v108 = vld [vmem:[%s1 + $0x68] sm:$0xf]
  %v109 = vld [vmem:[%s1 + $0x6c] sm:$0xf]
  %v110 = vld [vmem:[%s1 + $0x70] sm:$0xf]
  %v111 = vld [vmem:[%s1 + $0x74] sm:$0xf]
  %v112 = vld [vmem:[%s1 + $0x78] sm:$0xf]
  %v113 = vld [vmem:[%s1 + $0x7c] sm:$0xf]
  %v178 = vunpack.c.l.b16 %v18
  %v179 = vunpack.c.h.b16 %v18
  %v180 = vunpack.c.l.b16 %v19
  %v181 = vunpack.c.h.b16 %v19
  %v182 = vunpack.c.l.b16 %v20
  %v183 = vunpack.c.h.b16 %v20
  %v184 = vunpack.c.l.b16 %v21
  %v185 = vunpack.c.h.b16 %v21
  %v186 = vunpack.c.l.b16 %v22
  %v187 = vunpack.c.h.b16 %v22
  %v188 = vunpack.c.l.b16 %v23
  %v189 = vunpack.c.h.b16 %v23
  %v190 = vunpack.c.l.b16 %v24
  %v191 = vunpack.c.h.b16 %v24
  %v192 = vunpack.c.l.b16 %v25
  %v193 = vunpack.c.h.b16 %v25
  %v194 = vunpack.c.l.b16 %v26
  %v195 = vunpack.c.h.b16 %v26
  %v196 = vunpack.c.l.b16 %v27
  %v197 = vunpack.c.h.b16 %v27
  %v198 = vunpack.c.l.b16 %v28
  %v199 = vunpack.c.h.b16 %v28
  %v200 = vunpack.c.l.b16 %v29
  %v201 = vunpack.c.h.b16 %v29
  %v202 = vunpack.c.l.b16 %v30
  %v203 = vunpack.c.h.b16 %v30
  %v204 = vunpack.c.l.b16 %v31
  %v205 = vunpack.c.h.b16 %v31
  %v206 = vunpack.c.l.b16 %v32
  %v207 = vunpack.c.h.b16 %v32
  %v208 = vunpack.c.l.b16 %v33
  %v209 = vunpack.c.h.b16 %v33
  %v210 = vunpack.c.l.b16 %v34
  %v211 = vunpack.c.h.b16 %v34
  %v212 = vunpack.c.l.b16 %v35
  %v213 = vunpack.c.h.b16 %v35
  %v214 = vunpack.c.l.b16 %v36
  %v215 = vunpack.c.h.b16 %v36
  %v216 = vunpack.c.l.b16 %v37
  %v217 = vunpack.c.h.b16 %v37
  %v218 = vunpack.c.l.b16 %v38
  %v219 = vunpack.c.h.b16 %v38
  %v220 = vunpack.c.l.b16 %v39
  %v221 = vunpack.c.h.b16 %v39
  %v222 = vunpack.c.l.b16 %v40
  %v223 = vunpack.c.h.b16 %v40
  %v224 = vunpack.c.l.b16 %v41
  %v225 = vunpack.c.h.b16 %v41
  %v226 = vunpack.c.l.b16 %v42
  %v227 = vunpack.c.h.b16 %v42
  %v228 = vunpack.c.l.b16 %v43
  %v229 = vunpack.c.h.b16 %v43
  %v230 = vunpack.c.l.b16 %v44
  %v231 = vunpack.c.h.b16 %v44
  %v232 = vunpack.c.l.b16 %v45
  %v233 = vunpack.c.h.b16 %v45
  %v234 = vunpack.c.l.b16 %v46
  %v235 = vunpack.c.h.b16 %v46
  %v236 = vunpack.c.l.b16 %v47
  %v237 = vunpack.c.h.b16 %v47
  %v238 = vunpack.c.l.b16 %v48
  %v239 = vunpack.c.h.b16 %v48
  %v240 = vunpack.c.l.b16 %v49
  %v241 = vunpack.c.h.b16 %v49
  %v242 = vunpack.c.l.b16 %v50
  %v243 = vunpack.c.h.b16 %v50
  %v244 = vunpack.c.l.b16 %v51
  %v245 = vunpack.c.h.b16 %v51
  %v246 = vunpack.c.l.b16 %v52
  %v247 = vunpack.c.h.b16 %v52
  %v248 = vunpack.c.l.b16 %v53
  %v249 = vunpack.c.h.b16 %v53
  %v250 = vunpack.c.l.b16 %v54
  %v251 = vunpack.c.h.b16 %v54
  %v252 = vunpack.c.l.b16 %v55
  %v253 = vunpack.c.h.b16 %v55
  %v254 = vunpack.c.l.b16 %v56
  %v255 = vunpack.c.h.b16 %v56
  %v256 = vunpack.c.l.b16 %v57
  %v257 = vunpack.c.h.b16 %v57
  %v258 = vunpack.c.l.b16 %v58
  %v259 = vunpack.c.h.b16 %v58
  %v260 = vunpack.c.l.b16 %v59
  %v261 = vunpack.c.h.b16 %v59
  %v262 = vunpack.c.l.b16 %v60
  %v263 = vunpack.c.h.b16 %v60
  %v264 = vunpack.c.l.b16 %v61
  %v265 = vunpack.c.h.b16 %v61
  %v266 = vunpack.c.l.b16 %v62
  %v267 = vunpack.c.h.b16 %v62
  %v268 = vunpack.c.l.b16 %v63
  %v269 = vunpack.c.h.b16 %v63
  %v270 = vunpack.c.l.b16 %v64
  %v271 = vunpack.c.h.b16 %v64
  %v272 = vunpack.c.l.b16 %v65
  %v273 = vunpack.c.h.b16 %v65
  %v274 = vunpack.c.l.b16 %v66
  %v275 = vunpack.c.h.b16 %v66
  %v276 = vunpack.c.l.b16 %v67
  %v277 = vunpack.c.h.b16 %v67
  %v278 = vunpack.c.l.b16 %v68
  %v279 = vunpack.c.h.b16 %v68
  %v280 = vunpack.c.l.b16 %v69
  %v281 = vunpack.c.h.b16 %v69
  %v282 = vunpack.c.l.b16 %v70
  %v283 = vunpack.c.h.b16 %v70
  %v284 = vunpack.c.l.b16 %v71
  %v285 = vunpack.c.h.b16 %v71
  %v286 = vunpack.c.l.b16 %v72
  %v287 = vunpack.c.h.b16 %v72
  %v288 = vunpack.c.l.b16 %v73
  %v289 = vunpack.c.h.b16 %v73
  %v290 = vunpack.c.l.b16 %v74
  %v291 = vunpack.c.h.b16 %v74
  %v292 = vunpack.c.l.b16 %v75
  %v293 = vunpack.c.h.b16 %v75
  %v294 = vunpack.c.l.b16 %v76
  %v295 = vunpack.c.h.b16 %v76
  %v296 = vunpack.c.l.b16 %v77
  %v297 = vunpack.c.h.b16 %v77
  %v298 = vunpack.c.l.b16 %v78
  %v299 = vunpack.c.h.b16 %v78
  %v300 = vunpack.c.l.b16 %v79
  %v301 = vunpack.c.h.b16 %v79
  %v302 = vunpack.c.l.b16 %v80
  %v303 = vunpack.c.h.b16 %v80
  %v304 = vunpack.c.l.b16 %v81
  %v305 = vunpack.c.h.b16 %v81
  %v306 = vpack.c.b16 %v180, %v178
  %v307 = vpack.c.b16 %v181, %v179
  %v308 = vpack.c.b16 %v184, %v182
  %v309 = vpack.c.b16 %v185, %v183
  %v310 = vpack.c.b16 %v188, %v186
  %v311 = vpack.c.b16 %v189, %v187
  %v312 = vpack.c.b16 %v192, %v190
  %v313 = vpack.c.b16 %v193, %v191
  %v314 = vpack.c.b16 %v196, %v194
  %v315 = vpack.c.b16 %v197, %v195
  %v316 = vpack.c.b16 %v200, %v198
  %v317 = vpack.c.b16 %v201, %v199
  %v318 = vpack.c.b16 %v204, %v202
  %v319 = vpack.c.b16 %v205, %v203
  %v320 = vpack.c.b16 %v208, %v206
  %v321 = vpack.c.b16 %v209, %v207
  %v322 = vpack.c.b16 %v212, %v210
  %v323 = vpack.c.b16 %v213, %v211
  %v324 = vpack.c.b16 %v216, %v214
  %v325 = vpack.c.b16 %v217, %v215
  %v326 = vpack.c.b16 %v220, %v218
  %v327 = vpack.c.b16 %v221, %v219
  %v328 = vpack.c.b16 %v224, %v222
  %v329 = vpack.c.b16 %v225, %v223
  %v330 = vpack.c.b16 %v228, %v226
  %v331 = vpack.c.b16 %v229, %v227
  %v332 = vpack.c.b16 %v232, %v230
  %v333 = vpack.c.b16 %v233, %v231
  %v334 = vpack.c.b16 %v236, %v234
  %v335 = vpack.c.b16 %v237, %v235
  %v336 = vpack.c.b16 %v240, %v238
  %v337 = vpack.c.b16 %v241, %v239
  %v338 = vpack.c.b16 %v244, %v242
  %v339 = vpack.c.b16 %v245, %v243
  %v340 = vpack.c.b16 %v248, %v246
  %v341 = vpack.c.b16 %v249, %v247
  %v342 = vpack.c.b16 %v252, %v250
  %v343 = vpack.c.b16 %v253, %v251
  %v344 = vpack.c.b16 %v256, %v254
  %v345 = vpack.c.b16 %v257, %v255
  %v346 = vpack.c.b16 %v260, %v258
  %v347 = vpack.c.b16 %v261, %v259
  %v348 = vpack.c.b16 %v264, %v262
  %v349 = vpack.c.b16 %v265, %v263
  %v350 = vpack.c.b16 %v268, %v266
  %v351 = vpack.c.b16 %v269, %v267
  %v352 = vpack.c.b16 %v272, %v270
  %v353 = vpack.c.b16 %v273, %v271
  %v354 = vpack.c.b16 %v276, %v274
  %v355 = vpack.c.b16 %v277, %v275
  %v356 = vpack.c.b16 %v280, %v278
  %v357 = vpack.c.b16 %v281, %v279
  %v358 = vpack.c.b16 %v284, %v282
  %v359 = vpack.c.b16 %v285, %v283
  %v360 = vpack.c.b16 %v288, %v286
  %v361 = vpack.c.b16 %v289, %v287
  %v362 = vpack.c.b16 %v292, %v290
  %v363 = vpack.c.b16 %v293, %v291
  %v364 = vpack.c.b16 %v296, %v294
  %v365 = vpack.c.b16 %v297, %v295
  %v366 = vpack.c.b16 %v300, %v298
  %v367 = vpack.c.b16 %v301, %v299
  %v368 = vpack.c.b16 %v304, %v302
  %v369 = vpack.c.b16 %v305, %v303
  %v466 = vunpack.c.l.b16 %v82
  %v467 = vunpack.c.l.b16 %v83
  %v468 = vunpack.c.l.b16 %v84
  %v469 = vunpack.c.l.b16 %v85
  %v470 = vunpack.c.l.b16 %v86
  %v471 = vunpack.c.l.b16 %v87
  %v472 = vunpack.c.l.b16 %v88
  %v473 = vunpack.c.l.b16 %v89
  %v474 = vunpack.c.l.b16 %v90
  %v475 = vunpack.c.l.b16 %v91
  %v476 = vunpack.c.l.b16 %v92
  %v477 = vunpack.c.l.b16 %v93
  %v478 = vunpack.c.l.b16 %v94
  %v479 = vunpack.c.l.b16 %v95
  %v480 = vunpack.c.l.b16 %v96
  %v481 = vunpack.c.l.b16 %v97
  %v482 = vunpack.c.l.b16 %v98
  %v483 = vunpack.c.l.b16 %v99
  %v484 = vunpack.c.l.b16 %v100
  %v485 = vunpack.c.l.b16 %v101
  %v486 = vunpack.c.l.b16 %v102
  %v487 = vunpack.c.l.b16 %v103
  %v488 = vunpack.c.l.b16 %v104
  %v489 = vunpack.c.l.b16 %v105
  %v490 = vunpack.c.l.b16 %v106
  %v491 = vunpack.c.l.b16 %v107
  %v492 = vunpack.c.l.b16 %v108
  %v493 = vunpack.c.l.b16 %v109
  %v494 = vunpack.c.l.b16 %v110
  %v495 = vunpack.c.l.b16 %v111
  %v496 = vunpack.c.l.b16 %v112
  %v497 = vunpack.c.l.b16 %v113
  %v498 = vpack.c.b16 %v467, %v466
  %v499 = vpack.c.b16 %v469, %v468
  %v500 = vpack.c.b16 %v471, %v470
  %v501 = vpack.c.b16 %v473, %v472
  %v502 = vpack.c.b16 %v475, %v474
  %v503 = vpack.c.b16 %v477, %v476
  %v504 = vpack.c.b16 %v479, %v478
  %v505 = vpack.c.b16 %v481, %v480
  %v506 = vpack.c.b16 %v483, %v482
  %v507 = vpack.c.b16 %v485, %v484
  %v508 = vpack.c.b16 %v487, %v486
  %v509 = vpack.c.b16 %v489, %v488
  %v510 = vpack.c.b16 %v491, %v490
  %v511 = vpack.c.b16 %v493, %v492
  %v512 = vpack.c.b16 %v495, %v494
  %v513 = vpack.c.b16 %v497, %v496
  %530 = vmatprep.subr.bf16.mxu0 0
  %531 = vmatpush1.bf16.msra.mxu0 %v498
  %532 = vmatprep.subr.bf16.mxu0 0
  %533 = vmatpush1.bf16.msra.mxu0 %v499
  %534 = vmatprep.subr.bf16.mxu0 0
  %535 = vmatpush1.bf16.msra.mxu0 %v500
  %536 = vmatprep.subr.bf16.mxu0 0
  %537 = vmatpush1.bf16.msra.mxu0 %v501
  %538 = vmatprep.subr.bf16.mxu0 0
  %539 = vmatpush1.bf16.msra.mxu0 %v502
  %540 = vmatprep.subr.bf16.mxu0 0
  %541 = vmatpush1.bf16.msra.mxu0 %v503
  %542 = vmatprep.subr.bf16.mxu0 0
  %543 = vmatpush1.bf16.msra.mxu0 %v504
  %544 = vmatprep.subr.bf16.mxu0 0
  %545 = vmatpush1.bf16.msra.mxu0 %v505
  %546 = vmatprep.subr.bf16.mxu0 0
  %547 = vmatpush1.bf16.msra.mxu0 %v506
  %548 = vmatprep.subr.bf16.mxu0 0
  %549 = vmatpush1.bf16.msra.mxu0 %v507
  %550 = vmatprep.subr.bf16.mxu0 0
  %551 = vmatpush1.bf16.msra.mxu0 %v508
  %552 = vmatprep.subr.bf16.mxu0 0
  %553 = vmatpush1.bf16.msra.mxu0 %v509
  %554 = vmatprep.subr.bf16.mxu0 0
  %555 = vmatpush1.bf16.msra.mxu0 %v510
  %556 = vmatprep.subr.bf16.mxu0 0
  %557 = vmatpush1.bf16.msra.mxu0 %v511
  %558 = vmatprep.subr.bf16.mxu0 0
  %559 = vmatpush1.bf16.msra.mxu0 %v512
  %560 = vmatprep.subr.bf16.mxu0 0
  %561 = vmatpush1.bf16.msra.mxu0 %v513
  %562 = vmatprep.mubr.bf16.mxu0 %v307
  %563 = vmatmul.mubr.bf16.gmra.mrb[0].mxu0 %v306
  %v564 = vpop.f32.mrb[0].mxu0
  %v565 = vadd.f32 0.0, %v564
  %v566 = vpop.f32.mrb[0].mxu0
  %v567 = vpop.f32.mrb[0].mxu0
  %v568 = vadd.f32 0.0, %v567
  %v569 = vpop.f32.mrb[0].mxu0
  %570 = vmatprep.mubr.bf16.mxu0 %v309
  %571 = vmatmul.mubr.bf16.gmra.mrb[0].mxu0 %v308
  %v572 = vpop.f32.mrb[0].mxu0
  %v573 = vadd.f32 0.0, %v572
  %v574 = vpop.f32.mrb[0].mxu0
  %v575 = vpop.f32.mrb[0].mxu0
  %v576 = vadd.f32 0.0, %v575
  %v577 = vpop.f32.mrb[0].mxu0
  %578 = vmatprep.mubr.bf16.mxu0 %v311
  %579 = vmatmul.mubr.bf16.gmra.mrb[0].mxu0 %v310
  %v580 = vpop.f32.mrb[0].mxu0
  %v581 = vadd.f32 0.0, %v580
  %v582 = vpop.f32.mrb[0].mxu0
  %v583 = vpop.f32.mrb[0].mxu0
  %v584 = vadd.f32 0.0, %v583
  %v585 = vpop.f32.mrb[0].mxu0
  %586 = vmatprep.mubr.bf16.mxu0 %v313
  %587 = vmatmul.mubr.bf16.gmra.mrb[0].mxu0 %v312
  %v588 = vpop.f32.mrb[0].mxu0
  %v589 = vadd.f32 0.0, %v588
  %v590 = vpop.f32.mrb[0].mxu0
  %v591 = vpop.f32.mrb[0].mxu0
  %v592 = vadd.f32 0.0, %v591
  %v593 = vpop.f32.mrb[0].mxu0
  %594 = vmatprep.mubr.bf16.mxu0 %v315
  %595 = vmatmul.mubr.bf16.gmra.mrb[0].mxu0 %v314
  %v596 = vpop.f32.mrb[0].mxu0
  %v597 = vadd.f32 0.0, %v596
  %v598 = vpop.f32.mrb[0].mxu0
  %v599 = vpop.f32.mrb[0].mxu0
  %v600 = vadd.f32 0.0, %v599
  %v601 = vpop.f32.mrb[0].mxu0
  %602 = vmatprep.mubr.bf16.mxu0 %v317
  %603 = vmatmul.mubr.bf16.gmra.mrb[0].mxu0 %v316
  %v604 = vpop.f32.mrb[0].mxu0
  %v605 = vadd.f32 0.0, %v604
  %v606 = vpop.f32.mrb[0].mxu0
  %v607 = vpop.f32.mrb[0].mxu0
  %v608 = vadd.f32 0.0, %v607
  %v609 = vpop.f32.mrb[0].mxu0
  %610 = vmatprep.mubr.bf16.mxu0 %v319
  %611 = vmatmul.mubr.bf16.gmra.mrb[0].mxu0 %v318
  %v612 = vpop.f32.mrb[0].mxu0
  %v613 = vadd.f32 0.0, %v612
  %v614 = vpop.f32.mrb[0].mxu0
  %v615 = vpop.f32.mrb[0].mxu0
  %v616 = vadd.f32 0.0, %v615
  %v617 = vpop.f32.mrb[0].mxu0
  %618 = vmatprep.mubr.bf16.mxu0 %v321
  %619 = vmatmul.mubr.bf16.gmra.mrb[0].mxu0 %v320
  %v620 = vpop.f32.mrb[0].mxu0
  %v621 = vadd.f32 0.0, %v620
  %v622 = vpop.f32.mrb[0].mxu0
  %v623 = vpop.f32.mrb[0].mxu0
  %v624 = vadd.f32 0.0, %v623
  %v625 = vpop.f32.mrb[0].mxu0
  %626 = vmatprep.mubr.bf16.mxu0 %v323
  %627 = vmatmul.mubr.bf16.gmra.mrb[0].mxu0 %v322
  %v628 = vpop.f32.mrb[0].mxu0
  %v629 = vadd.f32 0.0, %v628
  %v630 = vpop.f32.mrb[0].mxu0
  %v631 = vpop.f32.mrb[0].mxu0
  %v632 = vadd.f32 0.0, %v631
  %v633 = vpop.f32.mrb[0].mxu0
  %634 = vmatprep.mubr.bf16.mxu0 %v325
  %635 = vmatmul.mubr.bf16.gmra.mrb[0].mxu0 %v324
  %v636 = vpop.f32.mrb[0].mxu0
  %v637 = vadd.f32 0.0, %v636
  %v638 = vpop.f32.mrb[0].mxu0
  %v639 = vpop.f32.mrb[0].mxu0
  %v640 = vadd.f32 0.0, %v639
  %v641 = vpop.f32.mrb[0].mxu0
  %642 = vmatprep.mubr.bf16.mxu0 %v327
  %643 = vmatmul.mubr.bf16.gmra.mrb[0].mxu0 %v326
  %v644 = vpop.f32.mrb[0].mxu0
  %v645 = vadd.f32 0.0, %v644
  %v646 = vpop.f32.mrb[0].mxu0
  %v647 = vpop.f32.mrb[0].mxu0
  %v648 = vadd.f32 0.0, %v647
  %v649 = vpop.f32.mrb[0].mxu0
  %650 = vmatprep.mubr.bf16.mxu0 %v329
  %651 = vmatmul.mubr.bf16.gmra.mrb[0].mxu0 %v328
  %v652 = vpop.f32.mrb[0].mxu0
  %v653 = vadd.f32 0.0, %v652
  %v654 = vpop.f32.mrb[0].mxu0
  %v655 = vpop.f32.mrb[0].mxu0
  %v656 = vadd.f32 0.0, %v655
  %v657 = vpop.f32.mrb[0].mxu0
  %658 = vmatprep.mubr.bf16.mxu0 %v331
  %659 = vmatmul.mubr.bf16.gmra.mrb[0].mxu0 %v330
  %v660 = vpop.f32.mrb[0].mxu0
  %v661 = vadd.f32 0.0, %v660
  %v662 = vpop.f32.mrb[0].mxu0
  %v663 = vpop.f32.mrb[0].mxu0
  %v664 = vadd.f32 0.0, %v663
  %v665 = vpop.f32.mrb[0].mxu0
  %666 = vmatprep.mubr.bf16.mxu0 %v333
  %667 = vmatmul.mubr.bf16.gmra.mrb[0].mxu0 %v332
  %v668 = vpop.f32.mrb[0].mxu0
  %v669 = vadd.f32 0.0, %v668
  %v670 = vpop.f32.mrb[0].mxu0
  %v671 = vpop.f32.mrb[0].mxu0
  %v672 = vadd.f32 0.0, %v671
  %v673 = vpop.f32.mrb[0].mxu0
  %674 = vmatprep.mubr.bf16.mxu0 %v335
  %675 = vmatmul.mubr.bf16.gmra.mrb[0].mxu0 %v334
  %v676 = vpop.f32.mrb[0].mxu0
  %v677 = vadd.f32 0.0, %v676
  %v678 = vpop.f32.mrb[0].mxu0
  %v679 = vpop.f32.mrb[0].mxu0
  %v680 = vadd.f32 0.0, %v679
  %v681 = vpop.f32.mrb[0].mxu0
  %682 = vmatprep.mubr.bf16.mxu0 %v337
  %683 = vmatmul.mubr.bf16.gmra.mrb[0].mxu0 %v336
  %v684 = vpop.f32.mrb[0].mxu0
  %v685 = vadd.f32 0.0, %v684
  %v686 = vpop.f32.mrb[0].mxu0
  %v687 = vpop.f32.mrb[0].mxu0
  %v688 = vadd.f32 0.0, %v687
  %v689 = vpop.f32.mrb[0].mxu0
  %690 = vmatprep.mubr.bf16.mxu0 %v339
  %691 = vmatmul.mubr.bf16.gmra.mrb[0].mxu0 %v338
  %v692 = vpop.f32.mrb[0].mxu0
  %v693 = vadd.f32 0.0, %v692
  %v694 = vpop.f32.mrb[0].mxu0
  %v695 = vpop.f32.mrb[0].mxu0
  %v696 = vadd.f32 0.0, %v695
  %v697 = vpop.f32.mrb[0].mxu0
  %698 = vmatprep.mubr.bf16.mxu0 %v341
  %699 = vmatmul.mubr.bf16.gmra.mrb[0].mxu0 %v340
  %v700 = vpop.f32.mrb[0].mxu0
  %v701 = vadd.f32 0.0, %v700
  %v702 = vpop.f32.mrb[0].mxu0
  %v703 = vpop.f32.mrb[0].mxu0
  %v704 = vadd.f32 0.0, %v703
  %v705 = vpop.f32.mrb[0].mxu0
  %706 = vmatprep.mubr.bf16.mxu0 %v343
  %707 = vmatmul.mubr.bf16.gmra.mrb[0].mxu0 %v342
  %v708 = vpop.f32.mrb[0].mxu0
  %v709 = vadd.f32 0.0, %v708
  %v710 = vpop.f32.mrb[0].mxu0
  %v711 = vpop.f32.mrb[0].mxu0
  %v712 = vadd.f32 0.0, %v711
  %v713 = vpop.f32.mrb[0].mxu0
  %714 = vmatprep.mubr.bf16.mxu0 %v345
  %715 = vmatmul.mubr.bf16.gmra.mrb[0].mxu0 %v344
  %v716 = vpop.f32.mrb[0].mxu0
  %v717 = vadd.f32 0.0, %v716
  %v718 = vpop.f32.mrb[0].mxu0
  %v719 = vpop.f32.mrb[0].mxu0
  %v720 = vadd.f32 0.0, %v719
  %v721 = vpop.f32.mrb[0].mxu0
  %722 = vmatprep.mubr.bf16.mxu0 %v347
  %723 = vmatmul.mubr.bf16.gmra.mrb[0].mxu0 %v346
  %v724 = vpop.f32.mrb[0].mxu0
  %v725 = vadd.f32 0.0, %v724
  %v726 = vpop.f32.mrb[0].mxu0
  %v727 = vpop.f32.mrb[0].mxu0
  %v728 = vadd.f32 0.0, %v727
  %v729 = vpop.f32.mrb[0].mxu0
  %730 = vmatprep.mubr.bf16.mxu0 %v349
  %731 = vmatmul.mubr.bf16.gmra.mrb[0].mxu0 %v348
  %v732 = vpop.f32.mrb[0].mxu0
  %v733 = vadd.f32 0.0, %v732
  %v734 = vpop.f32.mrb[0].mxu0
  %v735 = vpop.f32.mrb[0].mxu0
  %v736 = vadd.f32 0.0, %v735
  %v737 = vpop.f32.mrb[0].mxu0
  %738 = vmatprep.mubr.bf16.mxu0 %v351
  %739 = vmatmul.mubr.bf16.gmra.mrb[0].mxu0 %v350
  %v740 = vpop.f32.mrb[0].mxu0
  %v741 = vadd.f32 0.0, %v740
  %v742 = vpop.f32.mrb[0].mxu0
  %v743 = vpop.f32.mrb[0].mxu0
  %v744 = vadd.f32 0.0, %v743
  %v745 = vpop.f32.mrb[0].mxu0
  %746 = vmatprep.mubr.bf16.mxu0 %v353
  %747 = vmatmul.mubr.bf16.gmra.mrb[0].mxu0 %v352
  %v748 = vpop.f32.mrb[0].mxu0
  %v749 = vadd.f32 0.0, %v748
  %v750 = vpop.f32.mrb[0].mxu0
  %v751 = vpop.f32.mrb[0].mxu0
  %v752 = vadd.f32 0.0, %v751
  %v753 = vpop.f32.mrb[0].mxu0
  %754 = vmatprep.mubr.bf16.mxu0 %v355
  %755 = vmatmul.mubr.bf16.gmra.mrb[0].mxu0 %v354
  %v756 = vpop.f32.mrb[0].mxu0
  %v757 = vadd.f32 0.0, %v756
  %v758 = vpop.f32.mrb[0].mxu0
  %v759 = vpop.f32.mrb[0].mxu0
  %v760 = vadd.f32 0.0, %v759
  %v761 = vpop.f32.mrb[0].mxu0
  %762 = vmatprep.mubr.bf16.mxu0 %v357
  %763 = vmatmul.mubr.bf16.gmra.mrb[0].mxu0 %v356
  %v764 = vpop.f32.mrb[0].mxu0
  %v765 = vadd.f32 0.0, %v764
  %v766 = vpop.f32.mrb[0].mxu0
  %v767 = vpop.f32.mrb[0].mxu0
  %v768 = vadd.f32 0.0, %v767
  %v769 = vpop.f32.mrb[0].mxu0
  %770 = vmatprep.mubr.bf16.mxu0 %v359
  %771 = vmatmul.mubr.bf16.gmra.mrb[0].mxu0 %v358
  %v772 = vpop.f32.mrb[0].mxu0
  %v773 = vadd.f32 0.0, %v772
  %v774 = vpop.f32.mrb[0].mxu0
  %v775 = vpop.f32.mrb[0].mxu0
  %v776 = vadd.f32 0.0, %v775
  %v777 = vpop.f32.mrb[0].mxu0
  %778 = vmatprep.mubr.bf16.mxu0 %v361
  %779 = vmatmul.mubr.bf16.gmra.mrb[0].mxu0 %v360
  %v780 = vpop.f32.mrb[0].mxu0
  %v781 = vadd.f32 0.0, %v780
  %v782 = vpop.f32.mrb[0].mxu0
  %v783 = vpop.f32.mrb[0].mxu0
  %v784 = vadd.f32 0.0, %v783
  %v785 = vpop.f32.mrb[0].mxu0
  %786 = vmatprep.mubr.bf16.mxu0 %v363
  %787 = vmatmul.mubr.bf16.gmra.mrb[0].mxu0 %v362
  %v788 = vpop.f32.mrb[0].mxu0
  %v789 = vadd.f32 0.0, %v788
  %v790 = vpop.f32.mrb[0].mxu0
  %v791 = vpop.f32.mrb[0].mxu0
  %v792 = vadd.f32 0.0, %v791
  %v793 = vpop.f32.mrb[0].mxu0
  %794 = vmatprep.mubr.bf16.mxu0 %v365
  %795 = vmatmul.mubr.bf16.gmra.mrb[0].mxu0 %v364
  %v796 = vpop.f32.mrb[0].mxu0
  %v797 = vadd.f32 0.0, %v796
  %v798 = vpop.f32.mrb[0].mxu0
  %v799 = vpop.f32.mrb[0].mxu0
  %v800 = vadd.f32 0.0, %v799
  %v801 = vpop.f32.mrb[0].mxu0
  %802 = vmatprep.mubr.bf16.mxu0 %v367
  %803 = vmatmul.mubr.bf16.gmra.mrb[0].mxu0 %v366
  %v804 = vpop.f32.mrb[0].mxu0
  %v805 = vadd.f32 0.0, %v804
  %v806 = vpop.f32.mrb[0].mxu0
  %v807 = vpop.f32.mrb[0].mxu0
  %v808 = vadd.f32 0.0, %v807
  %v809 = vpop.f32.mrb[0].mxu0
  %810 = vmatprep.mubr.bf16.mxu0 %v369
  %811 = vmatmul.mubr.bf16.gmra.mrb[0].mxu0 %v368
  %v812 = vpop.f32.mrb[0].mxu0
  %v813 = vadd.f32 0.0, %v812
  %v814 = vpop.f32.mrb[0].mxu0
  %v815 = vpop.f32.mrb[0].mxu0
  %v816 = vadd.f32 0.0, %v815
  %v817 = vpop.f32.mrb[0].mxu0
  %818 = vdwg.mxu0
  %v819 = vld [vmem:[%s2] sm:$0x1]
  %v821 = vlaneseq
  %v822 = vshrl.u32 %v821, 7
  %v823 = vsub.s32 0, %v822
  %v824 = vrot.slane %v819, %v823
  %v826 = vmul.f32 %v565, %v824
  %v827 = vmul.f32 %v568, %v824
  %v828 = vmul.f32 %v573, %v824
  %v829 = vmul.f32 %v576, %v824
  %v830 = vmul.f32 %v581, %v824
  %v831 = vmul.f32 %v584, %v824
  %v832 = vmul.f32 %v589, %v824
  %v833 = vmul.f32 %v592, %v824
  %v834 = vmul.f32 %v597, %v824
  %v835 = vmul.f32 %v600, %v824
  %v836 = vmul.f32 %v605, %v824
  %v837 = vmul.f32 %v608, %v824
  %v838 = vmul.f32 %v613, %v824
  %v839 = vmul.f32 %v616, %v824
  %v840 = vmul.f32 %v621, %v824
  %v841 = vmul.f32 %v624, %v824
  %v842 = vmul.f32 %v629, %v824
  %v843 = vmul.f32 %v632, %v824
  %v844 = vmul.f32 %v637, %v824
  %v845 = vmul.f32 %v640, %v824
  %v846 = vmul.f32 %v645, %v824
  %v847 = vmul.f32 %v648, %v824
  %v848 = vmul.f32 %v653, %v824
  %v849 = vmul.f32 %v656, %v824
  %v850 = vmul.f32 %v661, %v824
  %v851 = vmul.f32 %v664, %v824
  %v852 = vmul.f32 %v669, %v824
  %v853 = vmul.f32 %v672, %v824
  %v854 = vmul.f32 %v677, %v824
  %v855 = vmul.f32 %v680, %v824
  %v856 = vmul.f32 %v685, %v824
  %v857 = vmul.f32 %v688, %v824
  %v858 = vmul.f32 %v693, %v824
  %v859 = vmul.f32 %v696, %v824
  %v860 = vmul.f32 %v701, %v824
  %v861 = vmul.f32 %v704, %v824
  %v862 = vmul.f32 %v709, %v824
  %v863 = vmul.f32 %v712, %v824
  %v864 = vmul.f32 %v717, %v824
  %v865 = vmul.f32 %v720, %v824
  %v866 = vmul.f32 %v725, %v824
  %v867 = vmul.f32 %v728, %v824
  %v868 = vmul.f32 %v733, %v824
  %v869 = vmul.f32 %v736, %v824
  %v870 = vmul.f32 %v741, %v824
  %v871 = vmul.f32 %v744, %v824
  %v872 = vmul.f32 %v749, %v824
  %v873 = vmul.f32 %v752, %v824
  %v874 = vmul.f32 %v757, %v824
  %v875 = vmul.f32 %v760, %v824
  %v876 = vmul.f32 %v765, %v824
  %v877 = vmul.f32 %v768, %v824
  %v878 = vmul.f32 %v773, %v824
  %v879 = vmul.f32 %v776, %v824
  %v880 = vmul.f32 %v781, %v824
  %v881 = vmul.f32 %v784, %v824
  %v882 = vmul.f32 %v789, %v824
  %v883 = vmul.f32 %v792, %v824
  %v884 = vmul.f32 %v797, %v824
  %v885 = vmul.f32 %v800, %v824
  %v886 = vmul.f32 %v805, %v824
  %v887 = vmul.f32 %v808, %v824
  %v888 = vmul.f32 %v813, %v824
  %v889 = vmul.f32 %v816, %v824
  %v890 = vld [vmem:[%s3] sm:$0x1]
  %v892 = vlaneseq
  %v893 = vshrl.u32 %v892, 7
  %v894 = vsub.s32 0, %v893
  %v895 = vrot.slane %v890, %v894
  %v897 = vadd.f32 %v826, %v895
  %v898 = vadd.f32 %v827, %v895
  %v899 = vadd.f32 %v828, %v895
  %v900 = vadd.f32 %v829, %v895
  %v901 = vadd.f32 %v830, %v895
  %v902 = vadd.f32 %v831, %v895
  %v903 = vadd.f32 %v832, %v895
  %v904 = vadd.f32 %v833, %v895
  %v905 = vadd.f32 %v834, %v895
  %v906 = vadd.f32 %v835, %v895
  %v907 = vadd.f32 %v836, %v895
  %v908 = vadd.f32 %v837, %v895
  %v909 = vadd.f32 %v838, %v895
  %v910 = vadd.f32 %v839, %v895
  %v911 = vadd.f32 %v840, %v895
  %v912 = vadd.f32 %v841, %v895
  %v913 = vadd.f32 %v842, %v895
  %v914 = vadd.f32 %v843, %v895
  %v915 = vadd.f32 %v844, %v895
  %v916 = vadd.f32 %v845, %v895
  %v917 = vadd.f32 %v846, %v895
  %v918 = vadd.f32 %v847, %v895
  %v919 = vadd.f32 %v848, %v895
  %v920 = vadd.f32 %v849, %v895
  %v921 = vadd.f32 %v850, %v895
  %v922 = vadd.f32 %v851, %v895
  %v923 = vadd.f32 %v852, %v895
  %v924 = vadd.f32 %v853, %v895
  %v925 = vadd.f32 %v854, %v895
  %v926 = vadd.f32 %v855, %v895
  %v927 = vadd.f32 %v856, %v895
  %v928 = vadd.f32 %v857, %v895
  %v929 = vadd.f32 %v858, %v895
  %v930 = vadd.f32 %v859, %v895
  %v931 = vadd.f32 %v860, %v895
  %v932 = vadd.f32 %v861, %v895
  %v933 = vadd.f32 %v862, %v895
  %v934 = vadd.f32 %v863, %v895
  %v935 = vadd.f32 %v864, %v895
  %v936 = vadd.f32 %v865, %v895
  %v937 = vadd.f32 %v866, %v895
  %v938 = vadd.f32 %v867, %v895
  %v939 = vadd.f32 %v868, %v895
  %v940 = vadd.f32 %v869, %v895
  %v941 = vadd.f32 %v870, %v895
  %v942 = vadd.f32 %v871, %v895
  %v943 = vadd.f32 %v872, %v895
  %v944 = vadd.f32 %v873, %v895
  %v945 = vadd.f32 %v874, %v895
  %v946 = vadd.f32 %v875, %v895
  %v947 = vadd.f32 %v876, %v895
  %v948 = vadd.f32 %v877, %v895
  %v949 = vadd.f32 %v878, %v895
  %v950 = vadd.f32 %v879, %v895
  %v951 = vadd.f32 %v880, %v895
  %v952 = vadd.f32 %v881, %v895
  %v953 = vadd.f32 %v882, %v895
  %v954 = vadd.f32 %v883, %v895
  %v955 = vadd.f32 %v884, %v895
  %v956 = vadd.f32 %v885, %v895
  %v957 = vadd.f32 %v886, %v895
  %v958 = vadd.f32 %v887, %v895
  %v959 = vadd.f32 %v888, %v895
  %v960 = vadd.f32 %v889, %v895
  %v961 = vmax.f32 %v897, 0.0
  %v962 = vmax.f32 %v898, 0.0
  %v963 = vmax.f32 %v899, 0.0
  %v964 = vmax.f32 %v900, 0.0
  %v965 = vmax.f32 %v901, 0.0
  %v966 = vmax.f32 %v902, 0.0
  %v967 = vmax.f32 %v903, 0.0
  %v968 = vmax.f32 %v904, 0.0
  %v969 = vmax.f32 %v905, 0.0
  %v970 = vmax.f32 %v906, 0.0
  %v971 = vmax.f32 %v907, 0.0
  %v972 = vmax.f32 %v908, 0.0
  %v973 = vmax.f32 %v909, 0.0
  %v974 = vmax.f32 %v910, 0.0
  %v975 = vmax.f32 %v911, 0.0
  %v976 = vmax.f32 %v912, 0.0
  %v977 = vmax.f32 %v913, 0.0
  %v978 = vmax.f32 %v914, 0.0
  %v979 = vmax.f32 %v915, 0.0
  %v980 = vmax.f32 %v916, 0.0
  %v981 = vmax.f32 %v917, 0.0
  %v982 = vmax.f32 %v918, 0.0
  %v983 = vmax.f32 %v919, 0.0
  %v984 = vmax.f32 %v920, 0.0
  %v985 = vmax.f32 %v921, 0.0
  %v986 = vmax.f32 %v922, 0.0
  %v987 = vmax.f32 %v923, 0.0
  %v988 = vmax.f32 %v924, 0.0
  %v989 = vmax.f32 %v925, 0.0
  %v990 = vmax.f32 %v926, 0.0
  %v991 = vmax.f32 %v927, 0.0
  %v992 = vmax.f32 %v928, 0.0
  %v993 = vmax.f32 %v929, 0.0
  %v994 = vmax.f32 %v930, 0.0
  %v995 = vmax.f32 %v931, 0.0
  %v996 = vmax.f32 %v932, 0.0
  %v997 = vmax.f32 %v933, 0.0
  %v998 = vmax.f32 %v934, 0.0
  %v999 = vmax.f32 %v935, 0.0
  %v1000 = vmax.f32 %v936, 0.0
  %v1001 = vmax.f32 %v937, 0.0
  %v1002 = vmax.f32 %v938, 0.0
  %v1003 = vmax.f32 %v939, 0.0
  %v1004 = vmax.f32 %v940, 0.0
  %v1005 = vmax.f32 %v941, 0.0
  %v1006 = vmax.f32 %v942, 0.0
  %v1007 = vmax.f32 %v943, 0.0
  %v1008 = vmax.f32 %v944, 0.0
  %v1009 = vmax.f32 %v945, 0.0
  %v1010 = vmax.f32 %v946, 0.0
  %v1011 = vmax.f32 %v947, 0.0
  %v1012 = vmax.f32 %v948, 0.0
  %v1013 = vmax.f32 %v949, 0.0
  %v1014 = vmax.f32 %v950, 0.0
  %v1015 = vmax.f32 %v951, 0.0
  %v1016 = vmax.f32 %v952, 0.0
  %v1017 = vmax.f32 %v953, 0.0
  %v1018 = vmax.f32 %v954, 0.0
  %v1019 = vmax.f32 %v955, 0.0
  %v1020 = vmax.f32 %v956, 0.0
  %v1021 = vmax.f32 %v957, 0.0
  %v1022 = vmax.f32 %v958, 0.0
  %v1023 = vmax.f32 %v959, 0.0
  %v1024 = vmax.f32 %v960, 0.0
  %v1025 = vpack.c.bf16 %v962, %v961
  %v1026 = vpack.c.bf16 %v964, %v963
  %v1027 = vpack.c.bf16 %v966, %v965
  %v1028 = vpack.c.bf16 %v968, %v967
  %v1029 = vpack.c.bf16 %v970, %v969
  %v1030 = vpack.c.bf16 %v972, %v971
  %v1031 = vpack.c.bf16 %v974, %v973
  %v1032 = vpack.c.bf16 %v976, %v975
  %v1033 = vpack.c.bf16 %v978, %v977
  %v1034 = vpack.c.bf16 %v980, %v979
  %v1035 = vpack.c.bf16 %v982, %v981
  %v1036 = vpack.c.bf16 %v984, %v983
  %v1037 = vpack.c.bf16 %v986, %v985
  %v1038 = vpack.c.bf16 %v988, %v987
  %v1039 = vpack.c.bf16 %v990, %v989
  %v1040 = vpack.c.bf16 %v992, %v991
  %v1041 = vpack.c.bf16 %v994, %v993
  %v1042 = vpack.c.bf16 %v996, %v995
  %v1043 = vpack.c.bf16 %v998, %v997
  %v1044 = vpack.c.bf16 %v1000, %v999
  %v1045 = vpack.c.bf16 %v1002, %v1001
  %v1046 = vpack.c.bf16 %v1004, %v1003
  %v1047 = vpack.c.bf16 %v1006, %v1005
  %v1048 = vpack.c.bf16 %v1008, %v1007
  %v1049 = vpack.c.bf16 %v1010, %v1009
  %v1050 = vpack.c.bf16 %v1012, %v1011
  %v1051 = vpack.c.bf16 %v1014, %v1013
  %v1052 = vpack.c.bf16 %v1016, %v1015
  %v1053 = vpack.c.bf16 %v1018, %v1017
  %v1054 = vpack.c.bf16 %v1020, %v1019
  %v1055 = vpack.c.bf16 %v1022, %v1021
  %v1056 = vpack.c.bf16 %v1024, %v1023
  %v1089 = vunpack.c.l.b16 %v1025
  %v1090 = vunpack.c.h.b16 %v1025
  %v1091 = vunpack.c.l.b16 %v1026
  %v1092 = vunpack.c.h.b16 %v1026
  %v1093 = vunpack.c.l.b16 %v1027
  %v1094 = vunpack.c.h.b16 %v1027
  %v1095 = vunpack.c.l.b16 %v1028
  %v1096 = vunpack.c.h.b16 %v1028
  %v1097 = vunpack.c.l.b16 %v1029
  %v1098 = vunpack.c.h.b16 %v1029
  %v1099 = vunpack.c.l.b16 %v1030
  %v1100 = vunpack.c.h.b16 %v1030
  %v1101 = vunpack.c.l.b16 %v1031
  %v1102 = vunpack.c.h.b16 %v1031
  %v1103 = vunpack.c.l.b16 %v1032
  %v1104 = vunpack.c.h.b16 %v1032
  %v1105 = vunpack.c.l.b16 %v1033
  %v1106 = vunpack.c.h.b16 %v1033
  %v1107 = vunpack.c.l.b16 %v1034
  %v1108 = vunpack.c.h.b16 %v1034
  %v1109 = vunpack.c.l.b16 %v1035
  %v1110 = vunpack.c.h.b16 %v1035
  %v1111 = vunpack.c.l.b16 %v1036
  %v1112 = vunpack.c.h.b16 %v1036
  %v1113 = vunpack.c.l.b16 %v1037
  %v1114 = vunpack.c.h.b16 %v1037
  %v1115 = vunpack.c.l.b16 %v1038
  %v1116 = vunpack.c.h.b16 %v1038
  %v1117 = vunpack.c.l.b16 %v1039
  %v1118 = vunpack.c.h.b16 %v1039
  %v1119 = vunpack.c.l.b16 %v1040
  %v1120 = vunpack.c.h.b16 %v1040
  %v1121 = vunpack.c.l.b16 %v1041
  %v1122 = vunpack.c.h.b16 %v1041
  %v1123 = vunpack.c.l.b16 %v1042
  %v1124 = vunpack.c.h.b16 %v1042
  %v1125 = vunpack.c.l.b16 %v1043
  %v1126 = vunpack.c.h.b16 %v1043
  %v1127 = vunpack.c.l.b16 %v1044
  %v1128 = vunpack.c.h.b16 %v1044
  %v1129 = vunpack.c.l.b16 %v1045
  %v1130 = vunpack.c.h.b16 %v1045
  %v1131 = vunpack.c.l.b16 %v1046
  %v1132 = vunpack.c.h.b16 %v1046
  %v1133 = vunpack.c.l.b16 %v1047
  %v1134 = vunpack.c.h.b16 %v1047
  %v1135 = vunpack.c.l.b16 %v1048
  %v1136 = vunpack.c.h.b16 %v1048
  %v1137 = vunpack.c.l.b16 %v1049
  %v1138 = vunpack.c.h.b16 %v1049
  %v1139 = vunpack.c.l.b16 %v1050
  %v1140 = vunpack.c.h.b16 %v1050
  %v1141 = vunpack.c.l.b16 %v1051
  %v1142 = vunpack.c.h.b16 %v1051
  %v1143 = vunpack.c.l.b16 %v1052
  %v1144 = vunpack.c.h.b16 %v1052
  %v1145 = vunpack.c.l.b16 %v1053
  %v1146 = vunpack.c.h.b16 %v1053
  %v1147 = vunpack.c.l.b16 %v1054
  %v1148 = vunpack.c.h.b16 %v1054
  %v1149 = vunpack.c.l.b16 %v1055
  %v1150 = vunpack.c.h.b16 %v1055
  %v1151 = vunpack.c.l.b16 %v1056
  %v1152 = vunpack.c.h.b16 %v1056
  %v1153 = vpack.c.b16 %v1089, %v1089
  %v1154 = vpack.c.b16 %v1090, %v1090
  %v1155 = vpack.c.b16 %v1091, %v1091
  %v1156 = vpack.c.b16 %v1092, %v1092
  %v1157 = vpack.c.b16 %v1093, %v1093
  %v1158 = vpack.c.b16 %v1094, %v1094
  %v1159 = vpack.c.b16 %v1095, %v1095
  %v1160 = vpack.c.b16 %v1096, %v1096
  %v1161 = vpack.c.b16 %v1097, %v1097
  %v1162 = vpack.c.b16 %v1098, %v1098
  %v1163 = vpack.c.b16 %v1099, %v1099
  %v1164 = vpack.c.b16 %v1100, %v1100
  %v1165 = vpack.c.b16 %v1101, %v1101
  %v1166 = vpack.c.b16 %v1102, %v1102
  %v1167 = vpack.c.b16 %v1103, %v1103
  %v1168 = vpack.c.b16 %v1104, %v1104
  %v1169 = vpack.c.b16 %v1105, %v1105
  %v1170 = vpack.c.b16 %v1106, %v1106
  %v1171 = vpack.c.b16 %v1107, %v1107
  %v1172 = vpack.c.b16 %v1108, %v1108
  %v1173 = vpack.c.b16 %v1109, %v1109
  %v1174 = vpack.c.b16 %v1110, %v1110
  %v1175 = vpack.c.b16 %v1111, %v1111
  %v1176 = vpack.c.b16 %v1112, %v1112
  %v1177 = vpack.c.b16 %v1113, %v1113
  %v1178 = vpack.c.b16 %v1114, %v1114
  %v1179 = vpack.c.b16 %v1115, %v1115
  %v1180 = vpack.c.b16 %v1116, %v1116
  %v1181 = vpack.c.b16 %v1117, %v1117
  %v1182 = vpack.c.b16 %v1118, %v1118
  %v1183 = vpack.c.b16 %v1119, %v1119
  %v1184 = vpack.c.b16 %v1120, %v1120
  %v1185 = vpack.c.b16 %v1121, %v1121
  %v1186 = vpack.c.b16 %v1122, %v1122
  %v1187 = vpack.c.b16 %v1123, %v1123
  %v1188 = vpack.c.b16 %v1124, %v1124
  %v1189 = vpack.c.b16 %v1125, %v1125
  %v1190 = vpack.c.b16 %v1126, %v1126
  %v1191 = vpack.c.b16 %v1127, %v1127
  %v1192 = vpack.c.b16 %v1128, %v1128
  %v1193 = vpack.c.b16 %v1129, %v1129
  %v1194 = vpack.c.b16 %v1130, %v1130
  %v1195 = vpack.c.b16 %v1131, %v1131
  %v1196 = vpack.c.b16 %v1132, %v1132
  %v1197 = vpack.c.b16 %v1133, %v1133
  %v1198 = vpack.c.b16 %v1134, %v1134
  %v1199 = vpack.c.b16 %v1135, %v1135
  %v1200 = vpack.c.b16 %v1136, %v1136
  %v1201 = vpack.c.b16 %v1137, %v1137
  %v1202 = vpack.c.b16 %v1138, %v1138
  %v1203 = vpack.c.b16 %v1139, %v1139
  %v1204 = vpack.c.b16 %v1140, %v1140
  %v1205 = vpack.c.b16 %v1141, %v1141
  %v1206 = vpack.c.b16 %v1142, %v1142
  %v1207 = vpack.c.b16 %v1143, %v1143
  %v1208 = vpack.c.b16 %v1144, %v1144
  %v1209 = vpack.c.b16 %v1145, %v1145
  %v1210 = vpack.c.b16 %v1146, %v1146
  %v1211 = vpack.c.b16 %v1147, %v1147
  %v1212 = vpack.c.b16 %v1148, %v1148
  %v1213 = vpack.c.b16 %v1149, %v1149
  %v1214 = vpack.c.b16 %v1150, %v1150
  %v1215 = vpack.c.b16 %v1151, %v1151
  %v1216 = vpack.c.b16 %v1152, %v1152
  %1281 = vst [vmem:[%s4] sm:$0xf] %v1153
  %1282 = vst [vmem:[%s4 + $0x4] sm:$0xf] %v1154
  %1283 = vst [vmem:[%s4 + $0x8] sm:$0xf] %v1155
  %1284 = vst [vmem:[%s4 + $0xc] sm:$0xf] %v1156
  %1285 = vst [vmem:[%s4 + $0x10] sm:$0xf] %v1157
  %1286 = vst [vmem:[%s4 + $0x14] sm:$0xf] %v1158
  %1287 = vst [vmem:[%s4 + $0x18] sm:$0xf] %v1159
  %1288 = vst [vmem:[%s4 + $0x1c] sm:$0xf] %v1160
  %1289 = vst [vmem:[%s4 + $0x20] sm:$0xf] %v1161
  %1290 = vst [vmem:[%s4 + $0x24] sm:$0xf] %v1162
  %1291 = vst [vmem:[%s4 + $0x28] sm:$0xf] %v1163
  %1292 = vst [vmem:[%s4 + $0x2c] sm:$0xf] %v1164
  %1293 = vst [vmem:[%s4 + $0x30] sm:$0xf] %v1165
  %1294 = vst [vmem:[%s4 + $0x34] sm:$0xf] %v1166
  %1295 = vst [vmem:[%s4 + $0x38] sm:$0xf] %v1167
  %1296 = vst [vmem:[%s4 + $0x3c] sm:$0xf] %v1168
  %1297 = vst [vmem:[%s4 + $0x40] sm:$0xf] %v1169
  %1298 = vst [vmem:[%s4 + $0x44] sm:$0xf] %v1170
  %1299 = vst [vmem:[%s4 + $0x48] sm:$0xf] %v1171
  %1300 = vst [vmem:[%s4 + $0x4c] sm:$0xf] %v1172
  %1301 = vst [vmem:[%s4 + $0x50] sm:$0xf] %v1173
  %1302 = vst [vmem:[%s4 + $0x54] sm:$0xf] %v1174
  %1303 = vst [vmem:[%s4 + $0x58] sm:$0xf] %v1175
  %1304 = vst [vmem:[%s4 + $0x5c] sm:$0xf] %v1176
  %1305 = vst [vmem:[%s4 + $0x60] sm:$0xf] %v1177
  %1306 = vst [vmem:[%s4 + $0x64] sm:$0xf] %v1178
  %1307 = vst [vmem:[%s4 + $0x68] sm:$0xf] %v1179
  %1308 = vst [vmem:[%s4 + $0x6c] sm:$0xf] %v1180
  %1309 = vst [vmem:[%s4 + $0x70] sm:$0xf] %v1181
  %1310 = vst [vmem:[%s4 + $0x74] sm:$0xf] %v1182
  %1311 = vst [vmem:[%s4 + $0x78] sm:$0xf] %v1183
  %1312 = vst [vmem:[%s4 + $0x7c] sm:$0xf] %v1184
  %1313 = vst [vmem:[%s4 + $0x80] sm:$0xf] %v1185
  %1314 = vst [vmem:[%s4 + $0x84] sm:$0xf] %v1186
  %1315 = vst [vmem:[%s4 + $0x88] sm:$0xf] %v1187
  %1316 = vst [vmem:[%s4 + $0x8c] sm:$0xf] %v1188
  %1317 = vst [vmem:[%s4 + $0x90] sm:$0xf] %v1189
  %1318 = vst [vmem:[%s4 + $0x94] sm:$0xf] %v1190
  %1319 = vst [vmem:[%s4 + $0x98] sm:$0xf] %v1191
  %1320 = vst [vmem:[%s4 + $0x9c] sm:$0xf] %v1192
  %1321 = vst [vmem:[%s4 + $0xa0] sm:$0xf] %v1193
  %1322 = vst [vmem:[%s4 + $0xa4] sm:$0xf] %v1194
  %1323 = vst [vmem:[%s4 + $0xa8] sm:$0xf] %v1195
  %1324 = vst [vmem:[%s4 + $0xac] sm:$0xf] %v1196
  %1325 = vst [vmem:[%s4 + $0xb0] sm:$0xf] %v1197
  %1326 = vst [vmem:[%s4 + $0xb4] sm:$0xf] %v1198
  %1327 = vst [vmem:[%s4 + $0xb8] sm:$0xf] %v1199
  %1328 = vst [vmem:[%s4 + $0xbc] sm:$0xf] %v1200
  %1329 = vst [vmem:[%s4 + $0xc0] sm:$0xf] %v1201
  %1330 = vst [vmem:[%s4 + $0xc4] sm:$0xf] %v1202
  %1331 = vst [vmem:[%s4 + $0xc8] sm:$0xf] %v1203
  %1332 = vst [vmem:[%s4 + $0xcc] sm:$0xf] %v1204
  %1333 = vst [vmem:[%s4 + $0xd0] sm:$0xf] %v1205
  %1334 = vst [vmem:[%s4 + $0xd4] sm:$0xf] %v1206
  %1335 = vst [vmem:[%s4 + $0xd8] sm:$0xf] %v1207
  %1336 = vst [vmem:[%s4 + $0xdc] sm:$0xf] %v1208
  %1337 = vst [vmem:[%s4 + $0xe0] sm:$0xf] %v1209
  %1338 = vst [vmem:[%s4 + $0xe4] sm:$0xf] %v1210
  %1339 = vst [vmem:[%s4 + $0xe8] sm:$0xf] %v1211
  %1340 = vst [vmem:[%s4 + $0xec] sm:$0xf] %v1212
  %1341 = vst [vmem:[%s4 + $0xf0] sm:$0xf] %v1213
  %1342 = vst [vmem:[%s4 + $0xf4] sm:$0xf] %v1214
  %1343 = vst [vmem:[%s4 + $0xf8] sm:$0xf] %v1215
  %1344 = vst [vmem:[%s4 + $0xfc] sm:$0xf] %v1216
  // Predicated region
  $region18: #{forward.3} parent=0 // pred_check
    _
  $region19: #{forward.3} parent=0 // pred_check_branch
    %1346 = sbr.rel (0) target = $region21
  $region20: #{forward.3} parent=0 // pred_region
    _
  $region21: #{forward.3} parent=0 // pred_fallthru
    _
  // Predicated region
  $region22: #{forward.3} parent=0 // pred_check
    _
  $region23: #{forward.3} parent=0 // pred_check_branch
    %1348 = sbr.rel (0) target = $region25
  $region24: #{forward.3} parent=0 // pred_region
    _
  $region25: #{forward.3} parent=0 // pred_fallthru
    _

// kernel: forward.5
$region0: #{forward.5}
  #allocation0 [shape = 'u32[]', space=smem, size = 0x4, offset = 0x4, fixed_abs, tag = 'smem constant byte address 0x4 - core index']
  #allocation1 [shape = 'u32[144,128]{1,0:T(1,128)}', space=vmem, size = 0x12000, scoped, tag = 'internal scratch']
  %s0 = inlined_call_operand.vmem [shape: bf16[128,128], index: 0, kind: input, shape index: {}]
  %s1 = inlined_call_operand.vmem [shape: bf16[9,128,128], index: 1, kind: input, shape index: {}]
  %s2 = inlined_call_operand.vmem [shape: bf16[3,128,128], index: 2, kind: input, shape index: {}]
  %s3 = inlined_call_operand.vmem [shape: bf16[1152,128], index: 3, kind: input, shape index: {}]
  %s4 = inlined_call_operand.vmem [shape: f32[4,128], index: 4, kind: input, shape index: {}]
  %s5 = inlined_call_operand.vmem [shape: f32[4,128], index: 5, kind: input, shape index: {}]
  %s6 = inlined_call_operand.vmem [shape: bf16[8,128], index: 6, kind: input, shape index: {}]
  %s7 = inlined_call_operand.vmem [shape: bf16[128,512], index: 7, kind: input, shape index: {}]
  %s8 = inlined_call_operand.vmem [shape: f32[1,512], index: 8, kind: input, shape index: {}]
  %s9 = inlined_call_operand.vmem [shape: f32[8,512], index: 9, kind: output, shape index: {}]
  %s10 = sld [smem:[#allocation0]]
  $region46: #{forward.5} parent=0
    _
  %s12 = ssub.s32 1, %s10
  %s13 = scalar_select 0, %s12, %s10
  // Predicated region
  $region2: #{forward.5} parent=0 // pred_check
    _
  $region3: #{forward.5} parent=0 // pred_check_branch
    %15 = sbr.rel (0) target = $region5
  $region4: #{forward.5} parent=0 // pred_region
    _
  $region5: #{forward.5} parent=0 // pred_fallthru
    _
  // Predicated region
  $region6: #{forward.5} parent=0 // pred_check
    _
  $region7: #{forward.5} parent=0 // pred_check_branch
    %17 = sbr.rel (0) target = $region9
  $region8: #{forward.5} parent=0 // pred_region
    _
  $region9: #{forward.5} parent=0 // pred_fallthru
    _
  // Predicated region
  $region10: #{forward.5} parent=0 // pred_check
    _
  $region11: #{forward.5} parent=0 // pred_check_branch
    %19 = sbr.rel (0) target = $region13
  $region12: #{forward.5} parent=0 // pred_region
    _
  $region13: #{forward.5} parent=0 // pred_fallthru
    _
  // Predicated region
  $region14: #{forward.5} parent=0 // pred_check
    _
  $region15: #{forward.5} parent=0 // pred_check_branch
    %21 = sbr.rel (0) target = $region17
  $region16: #{forward.5} parent=0 // pred_region
    _
  $region17: #{forward.5} parent=0 // pred_fallthru
    _
  // Predicated region
  $region18: #{forward.5} parent=0 // pred_check
    _
  $region19: #{forward.5} parent=0 // pred_check_branch
    %23 = sbr.rel (0) target = $region21
  $region20: #{forward.5} parent=0 // pred_region
    _
  $region21: #{forward.5} parent=0 // pred_fallthru
    _
  // Predicated region
  $region22: #{forward.5} parent=0 // pred_check
    _
  $region23: #{forward.5} parent=0 // pred_check_branch
    %25 = sbr.rel (0) target = $region25
  $region24: #{forward.5} parent=0 // pred_region
    _
  $region25: #{forward.5} parent=0 // pred_fallthru
    _
  // Predicated region
  $region26: #{forward.5} parent=0 // pred_check
    _
  $region27: #{forward.5} parent=0 // pred_check_branch
    %27 = sbr.rel (0) target = $region29
  $region28: #{forward.5} parent=0 // pred_region
    _
  $region29: #{forward.5} parent=0 // pred_fallthru
    _
  // Predicated region
  $region30: #{forward.5} parent=0 // pred_check
    _
  $region31: #{forward.5} parent=0 // pred_check_branch
    %29 = sbr.rel (0) target = $region33
  $region32: #{forward.5} parent=0 // pred_region
    _
  $region33: #{forward.5} parent=0 // pred_fallthru
    _
  // Predicated region
  $region34: #{forward.5} parent=0 // pred_check
    _
  $region35: #{forward.5} parent=0 // pred_check_branch
    %31 = sbr.rel (0) target = $region37
  $region36: #{forward.5} parent=0 // pred_region
    _
  $region37: #{forward.5} parent=0 // pred_fallthru
    _
  %v33 = vld [vmem:[%s0] sm:$0xf]
  %v34 = vld [vmem:[%s0 + $0x4] sm:$0xf]
  %v35 = vld [vmem:[%s0 + $0x8] sm:$0xf]
  %v36 = vld [vmem:[%s0 + $0xc] sm:$0xf]
  %v37 = vld [vmem:[%s0 + $0x10] sm:$0xf]
  %v38 = vld [vmem:[%s0 + $0x14] sm:$0xf]
  %v39 = vld [vmem:[%s0 + $0x18] sm:$0xf]
  %v40 = vld [vmem:[%s0 + $0x1c] sm:$0xf]
  %v41 = vld [vmem:[%s0 + $0x20] sm:$0xf]
  %v42 = vld [vmem:[%s0 + $0x24] sm:$0xf]
  %v43 = vld [vmem:[%s0 + $0x28] sm:$0xf]
  %v44 = vld [vmem:[%s0 + $0x2c] sm:$0xf]
  %v45 = vld [vmem:[%s0 + $0x30] sm:$0xf]
  %v46 = vld [vmem:[%s0 + $0x34] sm:$0xf]
  %v47 = vld [vmem:[%s0 + $0x38] sm:$0xf]
  %v48 = vld [vmem:[%s0 + $0x3c] sm:$0xf]
  %v49 = vld [vmem:[%s4] sm:$0x1]
  %v50 = vld [vmem:[%s5] sm:$0x1]
  %v51 = vld [vmem:[%s4 + $0x1] sm:$0x1]
  %v52 = vld [vmem:[%s5 + $0x1] sm:$0x1]
  %v53 = vld [vmem:[%s4 + $0x2] sm:$0x1]
  %v54 = vld [vmem:[%s5 + $0x2] sm:$0x1]
  %v55 = vld [vmem:[%s4 + $0x3] sm:$0x1]
  %v56 = vld [vmem:[%s5 + $0x3] sm:$0x1]
  %v57 = vld [vmem:[%s2] sm:$0xf]
  %v58 = vld [vmem:[%s2 + $0x4] sm:$0xf]
  %v59 = vld [vmem:[%s2 + $0x8] sm:$0xf]
  %v60 = vld [vmem:[%s2 + $0xc] sm:$0xf]
  %v61 = vld [vmem:[%s2 + $0x10] sm:$0xf]
  %v62 = vld [vmem:[%s2 + $0x14] sm:$0xf]
  %v63 = vld [vmem:[%s2 + $0x18] sm:$0xf]
  %v64 = vld [vmem:[%s2 + $0x1c] sm:$0xf]
  %v65 = vld [vmem:[%s2 + $0x20] sm:$0xf]
  %v66 = vld [vmem:[%s2 + $0x24] sm:$0xf]
  %v67 = vld [vmem:[%s2 + $0x28] sm:$0xf]
  %v68 = vld [vmem:[%s2 + $0x2c] sm:$0xf]
  %v69 = vld [vmem:[%s2 + $0x30] sm:$0xf]
  %v70 = vld [vmem:[%s2 + $0x34] sm:$0xf]
  %v71 = vld [vmem:[%s2 + $0x38] sm:$0xf]
  %v72 = vld [vmem:[%s2 + $0x3c] sm:$0xf]
  %v89 = vunpack.c.l.b16 %v33
  %v90 = vunpack.c.l.b16 %v34
  %v91 = vunpack.c.l.b16 %v35
  %v92 = vunpack.c.l.b16 %v36
  %v93 = vunpack.c.l.b16 %v37
  %v94 = vunpack.c.l.b16 %v38
  %v95 = vunpack.c.l.b16 %v39
  %v96 = vunpack.c.l.b16 %v40
  %v97 = vunpack.c.l.b16 %v41
  %v98 = vunpack.c.l.b16 %v42
  %v99 = vunpack.c.l.b16 %v43
  %v100 = vunpack.c.l.b16 %v44
  %v101 = vunpack.c.l.b16 %v45
  %v102 = vunpack.c.l.b16 %v46
  %v103 = vunpack.c.l.b16 %v47
  %v104 = vunpack.c.l.b16 %v48
  %v105 = vpack.c.b16 %v90, %v89
  %v106 = vpack.c.b16 %v92, %v91
  %v107 = vpack.c.b16 %v94, %v93
  %v108 = vpack.c.b16 %v96, %v95
  %v109 = vpack.c.b16 %v98, %v97
  %v110 = vpack.c.b16 %v100, %v99
  %v111 = vpack.c.b16 %v102, %v101
  %v112 = vpack.c.b16 %v104, %v103
  %v137 = vunpack.c.l.b16 %v57
  %v138 = vunpack.c.l.b16 %v58
  %v139 = vunpack.c.l.b16 %v59
  %v140 = vunpack.c.l.b16 %v60
  %v141 = vunpack.c.l.b16 %v61
  %v142 = vunpack.c.l.b16 %v62
  %v143 = vunpack.c.l.b16 %v63
  %v144 = vunpack.c.l.b16 %v64
  %v145 = vunpack.c.l.b16 %v65
  %v146 = vunpack.c.l.b16 %v66
  %v147 = vunpack.c.l.b16 %v67
  %v148 = vunpack.c.l.b16 %v68
  %v149 = vunpack.c.l.b16 %v69
  %v150 = vunpack.c.l.b16 %v70
  %v151 = vunpack.c.l.b16 %v71
  %v152 = vunpack.c.l.b16 %v72
  %v153 = vpack.c.b16 %v138, %v137
  %v154 = vpack.c.b16 %v140, %v139
  %v155 = vpack.c.b16 %v142, %v141
  %v156 = vpack.c.b16 %v144, %v143
  %v157 = vpack.c.b16 %v146, %v145
  %v158 = vpack.c.b16 %v148, %v147
  %v159 = vpack.c.b16 %v150, %v149
  %v160 = vpack.c.b16 %v152, %v151
  %169 = vmatprep.subr.bf16.mxu0 0
  %170 = vmatpush1.bf16.msra.mxu0 %v153
  %171 = vmatprep.subr.bf16.mxu0 0
  %172 = vmatpush1.bf16.msra.mxu0 %v154
  %173 = vmatprep.subr.bf16.mxu0 0
  %174 = vmatpush1.bf16.msra.mxu0 %v155
  %175 = vmatprep.subr.bf16.mxu0 0
  %176 = vmatpush1.bf16.msra.mxu0 %v156
  %177 = vmatprep.subr.bf16.mxu0 0
  %178 = vmatpush1.bf16.msra.mxu0 %v157
  %179 = vmatprep.subr.bf16.mxu0 0
  %180 = vmatpush1.bf16.msra.mxu0 %v158
  %181 = vmatprep.subr.bf16.mxu0 0
  %182 = vmatpush1.bf16.msra.mxu0 %v159
  %183 = vmatprep.subr.bf16.mxu0 0
  %184 = vmatpush1.bf16.msra.mxu0 %v160
  %185 = vmatprep.subr.bf16.mxu0 0
  %186 = vmatpush1.bf16.msra.mxu0 0
  %187 = vmatprep.subr.bf16.mxu0 0
  %188 = vmatpush1.bf16.msra.mxu0 0
  %189 = vmatprep.subr.bf16.mxu0 0
  %190 = vmatpush1.bf16.msra.mxu0 0
  %191 = vmatprep.subr.bf16.mxu0 0
  %192 = vmatpush1.bf16.msra.mxu0 0
  %193 = vmatprep.subr.bf16.mxu0 0
  %194 = vmatpush1.bf16.msra.mxu0 0
  %195 = vmatprep.subr.bf16.mxu0 0
  %196 = vmatpush1.bf16.msra.mxu0 0
  %197 = vmatprep.subr.bf16.mxu0 0
  %198 = vmatpush1.bf16.msra.mxu0 0
  %199 = vmatprep.subr.bf16.mxu0 0
  %200 = vmatpush1.bf16.msra.mxu0 0
  %201 = vmatprep.mubr.bf16.mxu0 0
  %202 = vmatmul.mubr.bf16.gmra.mrb[0].mxu0 %v105
  %v203 = vpop.f32.mrb[0].mxu0
  %v204 = vadd.f32 0.0, %v203
  %v205 = vpop.f32.mrb[0].mxu0
  %v206 = vpop.f32.mrb[0].mxu0
  %v207 = vadd.f32 0.0, %v206
  %v208 = vpop.f32.mrb[0].mxu0
  %209 = vmatprep.mubr.bf16.mxu0 0
  %210 = vmatmul.mubr.bf16.gmra.mrb[0].mxu0 %v106
  %v211 = vpop.f32.mrb[0].mxu0
  %v212 = vadd.f32 0.0, %v211
  %v213 = vpop.f32.mrb[0].mxu0
  %v214 = vpop.f32.mrb[0].mxu0
  %v215 = vadd.f32 0.0, %v214
  %v216 = vpop.f32.mrb[0].mxu0
  %217 = vmatprep.mubr.bf16.mxu0 0
  %218 = vmatmul.mubr.bf16.gmra.mrb[0].mxu0 %v107
  %v219 = vpop.f32.mrb[0].mxu0
  %v220 = vadd.f32 0.0, %v219
  %v221 = vpop.f32.mrb[0].mxu0
  %v222 = vpop.f32.mrb[0].mxu0
  %v223 = vadd.f32 0.0, %v222
  %v224 = vpop.f32.mrb[0].mxu0
  %225 = vmatprep.mubr.bf16.mxu0 0
  %226 = vmatmul.mubr.bf16.gmra.mrb[0].mxu0 %v108
  %v227 = vpop.f32.mrb[0].mxu0
  %v228 = vadd.f32 0.0, %v227
  %v229 = vpop.f32.mrb[0].mxu0
  %v230 = vpop.f32.mrb[0].mxu0
  %v231 = vadd.f32 0.0, %v230
  %v232 = vpop.f32.mrb[0].mxu0
  %233 = vmatprep.mubr.bf16.mxu0 0
  %234 = vmatmul.mubr.bf16.gmra.mrb[0].mxu0 %v109
  %v235 = vpop.f32.mrb[0].mxu0
  %v236 = vadd.f32 0.0, %v235
  %v237 = vpop.f32.mrb[0].mxu0
  %v238 = vpop.f32.mrb[0].mxu0
  %v239 = vadd.f32 0.0, %v238
  %v240 = vpop.f32.mrb[0].mxu0
  %241 = vmatprep.mubr.bf16.mxu0 0
  %242 = vmatmul.mubr.bf16.gmra.mrb[0].mxu0 %v110
  %v243 = vpop.f32.mrb[0].mxu0
  %v244 = vadd.f32 0.0, %v243
  %v245 = vpop.f32.mrb[0].mxu0
  %v246 = vpop.f32.mrb[0].mxu0
  %v247 = vadd.f32 0.0, %v246
  %v248 = vpop.f32.mrb[0].mxu0
  %249 = vmatprep.mubr.bf16.mxu0 0
  %250 = vmatmul.mubr.bf16.gmra.mrb[0].mxu0 %v111
  %v251 = vpop.f32.mrb[0].mxu0
  %v252 = vadd.f32 0.0, %v251
  %v253 = vpop.f32.mrb[0].mxu0
  %v254 = vpop.f32.mrb[0].mxu0
  %v255 = vadd.f32 0.0, %v254
  %v256 = vpop.f32.mrb[0].mxu0
  %257 = vmatprep.mubr.bf16.mxu0 0
  %258 = vmatmul.mubr.bf16.gmra.mrb[0].mxu0 %v112
  %v259 = vpop.f32.mrb[0].mxu0
  %v260 = vadd.f32 0.0, %v259
  %v261 = vpop.f32.mrb[0].mxu0
  %v262 = vpop.f32.mrb[0].mxu0
  %v263 = vadd.f32 0.0, %v262
  %v264 = vpop.f32.mrb[0].mxu0
  %265 = vdwg.mxu0
  %v266 = vlaneseq
  %v267 = vshrl.u32 %v266, 7
  %v268 = vsub.s32 0, %v267
  %v269 = vrot.slane %v49, %v268
  %v270 = vmul.f32 %v204, %v269
  %v271 = vmul.f32 %v207, %v269
  %v272 = vmul.f32 %v212, %v269
  %v273 = vmul.f32 %v215, %v269
  %v274 = vmul.f32 %v220, %v269
  %v275 = vmul.f32 %v223, %v269
  %v276 = vmul.f32 %v228, %v269
  %v277 = vmul.f32 %v231, %v269
  %v278 = vmul.f32 %v236, %v269
  %v279 = vmul.f32 %v239, %v269
  %v280 = vmul.f32 %v244, %v269
  %v281 = vmul.f32 %v247, %v269
  %v282 = vmul.f32 %v252, %v269
  %v283 = vmul.f32 %v255, %v269
  %v284 = vmul.f32 %v260, %v269
  %v285 = vmul.f32 %v263, %v269
  %v286 = vlaneseq
  %v287 = vshrl.u32 %v286, 7
  %v288 = vsub.s32 0, %v287
  %v289 = vrot.slane %v50, %v288
  %v290 = vadd.f32 %v270, %v289
  %v291 = vadd.f32 %v271, %v289
  %v292 = vadd.f32 %v272, %v289
  %v293 = vadd.f32 %v273, %v289
  %v294 = vadd.f32 %v274, %v289
  %v295 = vadd.f32 %v275, %v289
  %v296 = vadd.f32 %v276, %v289
  %v297 = vadd.f32 %v277, %v289
  %v298 = vadd.f32 %v278, %v289
  %v299 = vadd.f32 %v279, %v289
  %v300 = vadd.f32 %v280, %v289
  %v301 = vadd.f32 %v281, %v289
  %v302 = vadd.f32 %v282, %v289
  %v303 = vadd.f32 %v283, %v289
  %v304 = vadd.f32 %v284, %v289
  %v305 = vadd.f32 %v285, %v289
  %v306 = vmax.f32 %v290, 0.0
  %v307 = vmax.f32 %v291, 0.0
  %v308 = vmax.f32 %v292, 0.0
  %v309 = vmax.f32 %v293, 0.0
  %v310 = vmax.f32 %v294, 0.0
  %v311 = vmax.f32 %v295, 0.0
  %v312 = vmax.f32 %v296, 0.0
  %v313 = vmax.f32 %v297, 0.0
  %v314 = vmax.f32 %v298, 0.0
  %v315 = vmax.f32 %v299, 0.0
  %v316 = vmax.f32 %v300, 0.0
  %v317 = vmax.f32 %v301, 0.0
  %v318 = vmax.f32 %v302, 0.0
  %v319 = vmax.f32 %v303, 0.0
  %v320 = vmax.f32 %v304, 0.0
  %v321 = vmax.f32 %v305, 0.0
  %v322 = vpack.c.bf16 %v307, %v306
  %v323 = vpack.c.bf16 %v309, %v308
  %v324 = vpack.c.bf16 %v311, %v310
  %v325 = vpack.c.bf16 %v313, %v312
  %v326 = vpack.c.bf16 %v315, %v314
  %v327 = vpack.c.bf16 %v317, %v316
  %v328 = vpack.c.bf16 %v319, %v318
  %v329 = vpack.c.bf16 %v321, %v320
  %v330 = vld [vmem:[%s1] sm:$0xf]
  %v331 = vld [vmem:[%s1 + $0x4] sm:$0xf]
  %v332 = vld [vmem:[%s1 + $0x8] sm:$0xf]
  %v333 = vld [vmem:[%s1 + $0xc] sm:$0xf]
  %v334 = vld [vmem:[%s1 + $0x10] sm:$0xf]
  %v335 = vld [vmem:[%s1 + $0x14] sm:$0xf]
  %v336 = vld [vmem:[%s1 + $0x18] sm:$0xf]
  %v337 = vld [vmem:[%s1 + $0x1c] sm:$0xf]
  %v338 = vld [vmem:[%s1 + $0x20] sm:$0xf]
  %v339 = vld [vmem:[%s1 + $0x24] sm:$0xf]
  %v340 = vld [vmem:[%s1 + $0x28] sm:$0xf]
  %v341 = vld [vmem:[%s1 + $0x2c] sm:$0xf]
  %v342 = vld [vmem:[%s1 + $0x30] sm:$0xf]
  %v343 = vld [vmem:[%s1 + $0x34] sm:$0xf]
  %v344 = vld [vmem:[%s1 + $0x38] sm:$0xf]
  %v345 = vld [vmem:[%s1 + $0x3c] sm:$0xf]
  %v362 = vunpack.c.l.b16 %v330
  %v363 = vunpack.c.l.b16 %v331
  %v364 = vunpack.c.l.b16 %v332
  %v365 = vunpack.c.l.b16 %v333
  %v366 = vunpack.c.l.b16 %v334
  %v367 = vunpack.c.l.b16 %v335
  %v368 = vunpack.c.l.b16 %v336
  %v369 = vunpack.c.l.b16 %v337
  %v370 = vunpack.c.l.b16 %v338
  %v371 = vunpack.c.l.b16 %v339
  %v372 = vunpack.c.l.b16 %v340
  %v373 = vunpack.c.l.b16 %v341
  %v374 = vunpack.c.l.b16 %v342
  %v375 = vunpack.c.l.b16 %v343
  %v376 = vunpack.c.l.b16 %v344
  %v377 = vunpack.c.l.b16 %v345
  %v378 = vpack.c.b16 %v363, %v362
  %v379 = vpack.c.b16 %v365, %v364
  %v380 = vpack.c.b16 %v367, %v366
  %v381 = vpack.c.b16 %v369, %v368
  %v382 = vpack.c.b16 %v371, %v370
  %v383 = vpack.c.b16 %v373, %v372
  %v384 = vpack.c.b16 %v375, %v374
  %v385 = vpack.c.b16 %v377, %v376
  %394 = vmatprep.subr.bf16.mxu0 0
  %395 = vmatpush1.bf16.msra.mxu0 %v322
  %396 = vmatprep.subr.bf16.mxu0 0
  %397 = vmatpush1.bf16.msra.mxu0 %v323
  %398 = vmatprep.subr.bf16.mxu0 0
  %399 = vmatpush1.bf16.msra.mxu0 %v324
  %400 = vmatprep.subr.bf16.mxu0 0
  %401 = vmatpush1.bf16.msra.mxu0 %v325
  %402 = vmatprep.subr.bf16.mxu0 0
  %403 = vmatpush1.bf16.msra.mxu0 %v326
  %404 = vmatprep.subr.bf16.mxu0 0
  %405 = vmatpush1.bf16.msra.mxu0 %v327
  %406 = vmatprep.subr.bf16.mxu0 0
  %407 = vmatpush1.bf16.msra.mxu0 %v328
  %408 = vmatprep.subr.bf16.mxu0 0
  %409 = vmatpush1.bf16.msra.mxu0 %v329
  %410 = vmatprep.subr.bf16.mxu0 0
  %411 = vmatpush1.bf16.msra.mxu0 0
  %412 = vmatprep.subr.bf16.mxu0 0
  %413 = vmatpush1.bf16.msra.mxu0 0
  %414 = vmatprep.subr.bf16.mxu0 0
  %415 = vmatpush1.bf16.msra.mxu0 0
  %416 = vmatprep.subr.bf16.mxu0 0
  %417 = vmatpush1.bf16.msra.mxu0 0
  %418 = vmatprep.subr.bf16.mxu0 0
  %419 = vmatpush1.bf16.msra.mxu0 0
  %420 = vmatprep.subr.bf16.mxu0 0
  %421 = vmatpush1.bf16.msra.mxu0 0
  %422 = vmatprep.subr.bf16.mxu0 0
  %423 = vmatpush1.bf16.msra.mxu0 0
  %424 = vmatprep.subr.bf16.mxu0 0
  %425 = vmatpush1.bf16.msra.mxu0 0
  %426 = vmatprep.mubr.bf16.mxu0 0
  %427 = vmatmul.mubr.bf16.gmra.mrb[0].mxu0 %v378
  %v428 = vpop.f32.mrb[0].mxu0
  %v429 = vadd.f32 0.0, %v428
  %v430 = vpop.f32.mrb[0].mxu0
  %v431 = vpop.f32.mrb[0].mxu0
  %v432 = vadd.f32 0.0, %v431
  %v433 = vpop.f32.mrb[0].mxu0
  %434 = vmatprep.mubr.bf16.mxu0 0
  %435 = vmatmul.mubr.bf16.gmra.mrb[0].mxu0 %v379
  %v436 = vpop.f32.mrb[0].mxu0
  %v437 = vadd.f32 0.0, %v436
  %v438 = vpop.f32.mrb[0].mxu0
  %v439 = vpop.f32.mrb[0].mxu0
  %v440 = vadd.f32 0.0, %v439
  %v441 = vpop.f32.mrb[0].mxu0
  %442 = vmatprep.mubr.bf16.mxu0 0
  %443 = vmatmul.mubr.bf16.gmra.mrb[0].mxu0 %v380
  %v444 = vpop.f32.mrb[0].mxu0
  %v445 = vadd.f32 0.0, %v444
  %v446 = vpop.f32.mrb[0].mxu0
  %v447 = vpop.f32.mrb[0].mxu0
  %v448 = vadd.f32 0.0, %v447
  %v449 = vpop.f32.mrb[0].mxu0
  %450 = vmatprep.mubr.bf16.mxu0 0
  %451 = vmatmul.mubr.bf16.gmra.mrb[0].mxu0 %v381
  %v452 = vpop.f32.mrb[0].mxu0
  %v453 = vadd.f32 0.0, %v452
  %v454 = vpop.f32.mrb[0].mxu0
  %v455 = vpop.f32.mrb[0].mxu0
  %v456 = vadd.f32 0.0, %v455
  %v457 = vpop.f32.mrb[0].mxu0
  %458 = vmatprep.mubr.bf16.mxu0 0
  %459 = vmatmul.mubr.bf16.gmra.mrb[0].mxu0 %v382
  %v460 = vpop.f32.mrb[0].mxu0
  %v461 = vadd.f32 0.0, %v460
  %v462 = vpop.f32.mrb[0].mxu0
  %v463 = vpop.f32.mrb[0].mxu0
  %v464 = vadd.f32 0.0, %v463
  %v465 = vpop.f32.mrb[0].mxu0
  %466 = vmatprep.mubr.bf16.mxu0 0
  %467 = vmatmul.mubr.bf16.gmra.mrb[0].mxu0 %v383
  %v468 = vpop.f32.mrb[0].mxu0
  %v469 = vadd.f32 0.0, %v468
  %v470 = vpop.f32.mrb[0].mxu0
  %v471 = vpop.f32.mrb[0].mxu0
  %v472 = vadd.f32 0.0, %v471
  %v473 = vpop.f32.mrb[0].mxu0
  %474 = vmatprep.mubr.bf16.mxu0 0
  %475 = vmatmul.mubr.bf16.gmra.mrb[0].mxu0 %v384
  %v476 = vpop.f32.mrb[0].mxu0
  %v477 = vadd.f32 0.0, %v476
  %v478 = vpop.f32.mrb[0].mxu0
  %v479 = vpop.f32.mrb[0].mxu0
  %v480 = vadd.f32 0.0, %v479
  %v481 = vpop.f32.mrb[0].mxu0
  %482 = vmatprep.mubr.bf16.mxu0 0
  %483 = vmatmul.mubr.bf16.gmra.mrb[0].mxu0 %v385
  %v484 = vpop.f32.mrb[0].mxu0
  %v485 = vadd.f32 0.0, %v484
  %v486 = vpop.f32.mrb[0].mxu0
  %v487 = vpop.f32.mrb[0].mxu0
  %v488 = vadd.f32 0.0, %v487
  %v489 = vpop.f32.mrb[0].mxu0
  %490 = vdwg.mxu0
  %v491 = vpack.c.bf16 %v432, %v429
  %v492 = vpack.c.bf16 %v440, %v437
  %v493 = vpack.c.bf16 %v448, %v445
  %v494 = vpack.c.bf16 %v456, %v453
  %v495 = vpack.c.bf16 %v464, %v461
  %v496 = vpack.c.bf16 %v472, %v469
  %v497 = vpack.c.bf16 %v480, %v477
  %v498 = vpack.c.bf16 %v488, %v485
  %s499 = scalar_lea.vmem %s1, 64
  %v500 = vld [vmem:[%s499] sm:$0xf]
  %v501 = vld [vmem:[%s499 + $0x4] sm:$0xf]
  %v502 = vld [vmem:[%s499 + $0x8] sm:$0xf]
  %v503 = vld [vmem:[%s499 + $0xc] sm:$0xf]
  %v504 = vld [vmem:[%s499 + $0x10] sm:$0xf]
  %v505 = vld [vmem:[%s499 + $0x14] sm:$0xf]
  %v506 = vld [vmem:[%s499 + $0x18] sm:$0xf]
  %v507 = vld [vmem:[%s499 + $0x1c] sm:$0xf]
  %v508 = vld [vmem:[%s499 + $0x20] sm:$0xf]
  %v509 = vld [vmem:[%s499 + $0x24] sm:$0xf]
  %v510 = vld [vmem:[%s499 + $0x28] sm:$0xf]
  %v511 = vld [vmem:[%s499 + $0x2c] sm:$0xf]
  %v512 = vld [vmem:[%s499 + $0x30] sm:$0xf]
  %v513 = vld [vmem:[%s499 + $0x34] sm:$0xf]
  %v514 = vld [vmem:[%s499 + $0x38] sm:$0xf]
  %v515 = vld [vmem:[%s499 + $0x3c] sm:$0xf]
  %v532 = vunpack.c.l.b16 %v500
  %v533 = vunpack.c.l.b16 %v501
  %v534 = vunpack.c.l.b16 %v502
  %v535 = vunpack.c.l.b16 %v503
  %v536 = vunpack.c.l.b16 %v504
  %v537 = vunpack.c.l.b16 %v505
  %v538 = vunpack.c.l.b16 %v506
  %v539 = vunpack.c.l.b16 %v507
  %v540 = vunpack.c.l.b16 %v508
  %v541 = vunpack.c.l.b16 %v509
  %v542 = vunpack.c.l.b16 %v510
  %v543 = vunpack.c.l.b16 %v511
  %v544 = vunpack.c.l.b16 %v512
  %v545 = vunpack.c.l.b16 %v513
  %v546 = vunpack.c.l.b16 %v514
  %v547 = vunpack.c.l.b16 %v515
  %v548 = vpack.c.b16 %v533, %v532
  %v549 = vpack.c.b16 %v535, %v534
  %v550 = vpack.c.b16 %v537, %v536
  %v551 = vpack.c.b16 %v539, %v538
  %v552 = vpack.c.b16 %v541, %v540
  %v553 = vpack.c.b16 %v543, %v542
  %v554 = vpack.c.b16 %v545, %v544
  %v555 = vpack.c.b16 %v547, %v546
  %564 = vmatprep.subr.bf16.mxu0 0
  %565 = vmatpush1.bf16.msra.mxu0 %v322
  %566 = vmatprep.subr.bf16.mxu0 0
  %567 = vmatpush1.bf16.msra.mxu0 %v323
  %568 = vmatprep.subr.bf16.mxu0 0
  %569 = vmatpush1.bf16.msra.mxu0 %v324
  %570 = vmatprep.subr.bf16.mxu0 0
  %571 = vmatpush1.bf16.msra.mxu0 %v325
  %572 = vmatprep.subr.bf16.mxu0 0
  %573 = vmatpush1.bf16.msra.mxu0 %v326
  %574 = vmatprep.subr.bf16.mxu0 0
  %575 = vmatpush1.bf16.msra.mxu0 %v327
  %576 = vmatprep.subr.bf16.mxu0 0
  %577 = vmatpush1.bf16.msra.mxu0 %v328
  %578 = vmatprep.subr.bf16.mxu0 0
  %579 = vmatpush1.bf16.msra.mxu0 %v329
  %580 = vmatprep.subr.bf16.mxu0 0
  %581 = vmatpush1.bf16.msra.mxu0 0
  %582 = vmatprep.subr.bf16.mxu0 0
  %583 = vmatpush1.bf16.msra.mxu0 0
  %584 = vmatprep.subr.bf16.mxu0 0
  %585 = vmatpush1.bf16.msra.mxu0 0
  %586 = vmatprep.subr.bf16.mxu0 0
  %587 = vmatpush1.bf16.msra.mxu0 0
  %588 = vmatprep.subr.bf16.mxu0 0
  %589 = vmatpush1.bf16.msra.mxu0 0
  %590 = vmatprep.subr.bf16.mxu0 0
  %591 = vmatpush1.bf16.msra.mxu0 0
  %592 = vmatprep.subr.bf16.mxu0 0
  %593 = vmatpush1.bf16.msra.mxu0 0
  %594 = vmatprep.subr.bf16.mxu0 0
  %595 = vmatpush1.bf16.msra.mxu0 0
  %596 = vmatprep.mubr.bf16.mxu0 0
  %597 = vmatmul.mubr.bf16.gmra.mrb[0].mxu0 %v548
  %v598 = vpop.f32.mrb[0].mxu0
  %v599 = vadd.f32 0.0, %v598
  %v600 = vpop.f32.mrb[0].mxu0
  %v601 = vpop.f32.mrb[0].mxu0
  %v602 = vadd.f32 0.0, %v601
  %v603 = vpop.f32.mrb[0].mxu0
  %604 = vmatprep.mubr.bf16.mxu0 0
  %605 = vmatmul.mubr.bf16.gmra.mrb[0].mxu0 %v549
  %v606 = vpop.f32.mrb[0].mxu0
  %v607 = vadd.f32 0.0, %v606
  %v608 = vpop.f32.mrb[0].mxu0
  %v609 = vpop.f32.mrb[0].mxu0
  %v610 = vadd.f32 0.0, %v609
  %v611 = vpop.f32.mrb[0].mxu0
  %612 = vmatprep.mubr.bf16.mxu0 0
  %613 = vmatmul.mubr.bf16.gmra.mrb[0].mxu0 %v550
  %v614 = vpop.f32.mrb[0].mxu0
  %v615 = vadd.f32 0.0, %v614
  %v616 = vpop.f32.mrb[0].mxu0
  %v617 = vpop.f32.mrb[0].mxu0
  %v618 = vadd.f32 0.0, %v617
  %v619 = vpop.f32.mrb[0].mxu0
  %620 = vmatprep.mubr.bf16.mxu0 0
  %621 = vmatmul.mubr.bf16.gmra.mrb[0].mxu0 %v551
  %v622 = vpop.f32.mrb[0].mxu0
  %v623 = vadd.f32 0.0, %v622
  %v624 = vpop.f32.mrb[0].mxu0
  %v625 = vpop.f32.mrb[0].mxu0
  %v626 = vadd.f32 0.0, %v625
  %v627 = vpop.f32.mrb[0].mxu0
  %628 = vmatprep.mubr.bf16.mxu0 0
  %629 = vmatmul.mubr.bf16.gmra.mrb[0].mxu0 %v552
  %v630 = vpop.f32.mrb[0].mxu0
  %v631 = vadd.f32 0.0, %v630
  %v632 = vpop.f32.mrb[0].mxu0
  %v633 = vpop.f32.mrb[0].mxu0
  %v634 = vadd.f32 0.0, %v633
  %v635 = vpop.f32.mrb[0].mxu0
  %636 = vmatprep.mubr.bf16.mxu0 0
  %637 = vmatmul.mubr.bf16.gmra.mrb[0].mxu0 %v553
  %v638 = vpop.f32.mrb[0].mxu0
  %v639 = vadd.f32 0.0, %v638
  %v640 = vpop.f32.mrb[0].mxu0
  %v641 = vpop.f32.mrb[0].mxu0
  %v642 = vadd.f32 0.0, %v641
  %v643 = vpop.f32.mrb[0].mxu0
  %644 = vmatprep.mubr.bf16.mxu0 0
  %645 = vmatmul.mubr.bf16.gmra.mrb[0].mxu0 %v554
  %v646 = vpop.f32.mrb[0].mxu0
  %v647 = vadd.f32 0.0, %v646
  %v648 = vpop.f32.mrb[0].mxu0
  %v649 = vpop.f32.mrb[0].mxu0
  %v650 = vadd.f32 0.0, %v649
  %v651 = vpop.f32.mrb[0].mxu0
  %652 = vmatprep.mubr.bf16.mxu0 0
  %653 = vmatmul.mubr.bf16.gmra.mrb[0].mxu0 %v555
  %v654 = vpop.f32.mrb[0].mxu0
  %v655 = vadd.f32 0.0, %v654
  %v656 = vpop.f32.mrb[0].mxu0
  %v657 = vpop.f32.mrb[0].mxu0
  %v658 = vadd.f32 0.0, %v657
  %v659 = vpop.f32.mrb[0].mxu0
  %660 = vdwg.mxu0
  %v661 = vpack.c.bf16 %v602, %v599
  %v662 = vpack.c.bf16 %v610, %v607
  %v663 = vpack.c.bf16 %v618, %v615
  %v664 = vpack.c.bf16 %v626, %v623
  %v665 = vpack.c.bf16 %v634, %v631
  %v666 = vpack.c.bf16 %v642, %v639
  %v667 = vpack.c.bf16 %v650, %v647
  %v668 = vpack.c.bf16 %v658, %v655
  %s669 = scalar_lea.vmem %s1, 128
  %v670 = vld [vmem:[%s669] sm:$0xf]
  %v671 = vld [vmem:[%s669 + $0x4] sm:$0xf]
  %v672 = vld [vmem:[%s669 + $0x8] sm:$0xf]
  %v673 = vld [vmem:[%s669 + $0xc] sm:$0xf]
  %v674 = vld [vmem:[%s669 + $0x10] sm:$0xf]
  %v675 = vld [vmem:[%s669 + $0x14] sm:$0xf]
  %v676 = vld [vmem:[%s669 + $0x18] sm:$0xf]
  %v677 = vld [vmem:[%s669 + $0x1c] sm:$0xf]
  %v678 = vld [vmem:[%s669 + $0x20] sm:$0xf]
  %v679 = vld [vmem:[%s669 + $0x24] sm:$0xf]
  %v680 = vld [vmem:[%s669 + $0x28] sm:$0xf]
  %v681 = vld [vmem:[%s669 + $0x2c] sm:$0xf]
  %v682 = vld [vmem:[%s669 + $0x30] sm:$0xf]
  %v683 = vld [vmem:[%s669 + $0x34] sm:$0xf]
  %v684 = vld [vmem:[%s669 + $0x38] sm:$0xf]
  %v685 = vld [vmem:[%s669 + $0x3c] sm:$0xf]
  %v702 = vunpack.c.l.b16 %v670
  %v703 = vunpack.c.l.b16 %v671
  %v704 = vunpack.c.l.b16 %v672
  %v705 = vunpack.c.l.b16 %v673
  %v706 = vunpack.c.l.b16 %v674
  %v707 = vunpack.c.l.b16 %v675
  %v708 = vunpack.c.l.b16 %v676
  %v709 = vunpack.c.l.b16 %v677
  %v710 = vunpack.c.l.b16 %v678
  %v711 = vunpack.c.l.b16 %v679
  %v712 = vunpack.c.l.b16 %v680
  %v713 = vunpack.c.l.b16 %v681
  %v714 = vunpack.c.l.b16 %v682
  %v715 = vunpack.c.l.b16 %v683
  %v716 = vunpack.c.l.b16 %v684
  %v717 = vunpack.c.l.b16 %v685
  %v718 = vpack.c.b16 %v703, %v702
  %v719 = vpack.c.b16 %v705, %v704
  %v720 = vpack.c.b16 %v707, %v706
  %v721 = vpack.c.b16 %v709, %v708
  %v722 = vpack.c.b16 %v711, %v710
  %v723 = vpack.c.b16 %v713, %v712
  %v724 = vpack.c.b16 %v715, %v714
  %v725 = vpack.c.b16 %v717, %v716
  %734 = vmatprep.subr.bf16.mxu0 0
  %735 = vmatpush1.bf16.msra.mxu0 %v322
  %736 = vmatprep.subr.bf16.mxu0 0
  %737 = vmatpush1.bf16.msra.mxu0 %v323
  %738 = vmatprep.subr.bf16.mxu0 0
  %739 = vmatpush1.bf16.msra.mxu0 %v324
  %740 = vmatprep.subr.bf16.mxu0 0
  %741 = vmatpush1.bf16.msra.mxu0 %v325
  %742 = vmatprep.subr.bf16.mxu0 0
  %743 = vmatpush1.bf16.msra.mxu0 %v326
  %744 = vmatprep.subr.bf16.mxu0 0
  %745 = vmatpush1.bf16.msra.mxu0 %v327
  %746 = vmatprep.subr.bf16.mxu0 0
  %747 = vmatpush1.bf16.msra.mxu0 %v328
  %748 = vmatprep.subr.bf16.mxu0 0
  %749 = vmatpush1.bf16.msra.mxu0 %v329
  %750 = vmatprep.subr.bf16.mxu0 0
  %751 = vmatpush1.bf16.msra.mxu0 0
  %752 = vmatprep.subr.bf16.mxu0 0
  %753 = vmatpush1.bf16.msra.mxu0 0
  %754 = vmatprep.subr.bf16.mxu0 0
  %755 = vmatpush1.bf16.msra.mxu0 0
  %756 = vmatprep.subr.bf16.mxu0 0
  %757 = vmatpush1.bf16.msra.mxu0 0
  %758 = vmatprep.subr.bf16.mxu0 0
  %759 = vmatpush1.bf16.msra.mxu0 0
  %760 = vmatprep.subr.bf16.mxu0 0
  %761 = vmatpush1.bf16.msra.mxu0 0
  %762 = vmatprep.subr.bf16.mxu0 0
  %763 = vmatpush1.bf16.msra.mxu0 0
  %764 = vmatprep.subr.bf16.mxu0 0
  %765 = vmatpush1.bf16.msra.mxu0 0
  %766 = vmatprep.mubr.bf16.mxu0 0
  %767 = vmatmul.mubr.bf16.gmra.mrb[0].mxu0 %v718
  %v768 = vpop.f32.mrb[0].mxu0
  %v769 = vadd.f32 0.0, %v768
  %v770 = vpop.f32.mrb[0].mxu0
  %v771 = vpop.f32.mrb[0].mxu0
  %v772 = vadd.f32 0.0, %v771
  %v773 = vpop.f32.mrb[0].mxu0
  %774 = vmatprep.mubr.bf16.mxu0 0
  %775 = vmatmul.mubr.bf16.gmra.mrb[0].mxu0 %v719
  %v776 = vpop.f32.mrb[0].mxu0
  %v777 = vadd.f32 0.0, %v776
  %v778 = vpop.f32.mrb[0].mxu0
  %v779 = vpop.f32.mrb[0].mxu0
  %v780 = vadd.f32 0.0, %v779
  %v781 = vpop.f32.mrb[0].mxu0
  %782 = vmatprep.mubr.bf16.mxu0 0
  %783 = vmatmul.mubr.bf16.gmra.mrb[0].mxu0 %v720
  %v784 = vpop.f32.mrb[0].mxu0
  %v785 = vadd.f32 0.0, %v784
  %v786 = vpop.f32.mrb[0].mxu0
  %v787 = vpop.f32.mrb[0].mxu0
  %v788 = vadd.f32 0.0, %v787
  %v789 = vpop.f32.mrb[0].mxu0
  %790 = vmatprep.mubr.bf16.mxu0 0
  %791 = vmatmul.mubr.bf16.gmra.mrb[0].mxu0 %v721
  %v792 = vpop.f32.mrb[0].mxu0
  %v793 = vadd.f32 0.0, %v792
  %v794 = vpop.f32.mrb[0].mxu0
  %v795 = vpop.f32.mrb[0].mxu0
  %v796 = vadd.f32 0.0, %v795
  %v797 = vpop.f32.mrb[0].mxu0
  %798 = vmatprep.mubr.bf16.mxu0 0
  %799 = vmatmul.mubr.bf16.gmra.mrb[0].mxu0 %v722
  %v800 = vpop.f32.mrb[0].mxu0
  %v801 = vadd.f32 0.0, %v800
  %v802 = vpop.f32.mrb[0].mxu0
  %v803 = vpop.f32.mrb[0].mxu0
  %v804 = vadd.f32 0.0, %v803
  %v805 = vpop.f32.mrb[0].mxu0
  %806 = vmatprep.mubr.bf16.mxu0 0
  %807 = vmatmul.mubr.bf16.gmra.mrb[0].mxu0 %v723
  %v808 = vpop.f32.mrb[0].mxu0
  %v809 = vadd.f32 0.0, %v808
  %v810 = vpop.f32.mrb[0].mxu0
  %v811 = vpop.f32.mrb[0].mxu0
  %v812 = vadd.f32 0.0, %v811
  %v813 = vpop.f32.mrb[0].mxu0
  %814 = vmatprep.mubr.bf16.mxu0 0
  %815 = vmatmul.mubr.bf16.gmra.mrb[0].mxu0 %v724
  %v816 = vpop.f32.mrb[0].mxu0
  %v817 = vadd.f32 0.0, %v816
  %v818 = vpop.f32.mrb[0].mxu0
  %v819 = vpop.f32.mrb[0].mxu0
  %v820 = vadd.f32 0.0, %v819
  %v821 = vpop.f32.mrb[0].mxu0
  %822 = vmatprep.mubr.bf16.mxu0 0
  %823 = vmatmul.mubr.bf16.gmra.mrb[0].mxu0 %v725
  %v824 = vpop.f32.mrb[0].mxu0
  %v825 = vadd.f32 0.0, %v824
  %v826 = vpop.f32.mrb[0].mxu0
  %v827 = vpop.f32.mrb[0].mxu0
  %v828 = vadd.f32 0.0, %v827
  %v829 = vpop.f32.mrb[0].mxu0
  %830 = vdwg.mxu0
  %v831 = vpack.c.bf16 %v772, %v769
  %v832 = vpack.c.bf16 %v780, %v777
  %v833 = vpack.c.bf16 %v788, %v785
  %v834 = vpack.c.bf16 %v796, %v793
  %v835 = vpack.c.bf16 %v804, %v801
  %v836 = vpack.c.bf16 %v812, %v809
  %v837 = vpack.c.bf16 %v820, %v817
  %v838 = vpack.c.bf16 %v828, %v825
  %s839 = scalar_lea.vmem %s1, 192
  %v840 = vld [vmem:[%s839] sm:$0xf]
  %v841 = vld [vmem:[%s839 + $0x4] sm:$0xf]
  %v842 = vld [vmem:[%s839 + $0x8] sm:$0xf]
  %v843 = vld [vmem:[%s839 + $0xc] sm:$0xf]
  %v844 = vld [vmem:[%s839 + $0x10] sm:$0xf]
  %v845 = vld [vmem:[%s839 + $0x14] sm:$0xf]
  %v846 = vld [vmem:[%s839 + $0x18] sm:$0xf]
  %v847 = vld [vmem:[%s839 + $0x1c] sm:$0xf]
  %v848 = vld [vmem:[%s839 + $0x20] sm:$0xf]
  %v849 = vld [vmem:[%s839 + $0x24] sm:$0xf]
  %v850 = vld [vmem:[%s839 + $0x28] sm:$0xf]
  %v851 = vld [vmem:[%s839 + $0x2c] sm:$0xf]
  %v852 = vld [vmem:[%s839 + $0x30] sm:$0xf]
  %v853 = vld [vmem:[%s839 + $0x34] sm:$0xf]
  %v854 = vld [vmem:[%s839 + $0x38] sm:$0xf]
  %v855 = vld [vmem:[%s839 + $0x3c] sm:$0xf]
  %v872 = vunpack.c.l.b16 %v840
  %v873 = vunpack.c.l.b16 %v841
  %v874 = vunpack.c.l.b16 %v842
  %v875 = vunpack.c.l.b16 %v843
  %v876 = vunpack.c.l.b16 %v844
  %v877 = vunpack.c.l.b16 %v845
  %v878 = vunpack.c.l.b16 %v846
  %v879 = vunpack.c.l.b16 %v847
  %v880 = vunpack.c.l.b16 %v848
  %v881 = vunpack.c.l.b16 %v849
  %v882 = vunpack.c.l.b16 %v850
  %v883 = vunpack.c.l.b16 %v851
  %v884 = vunpack.c.l.b16 %v852
  %v885 = vunpack.c.l.b16 %v853
  %v886 = vunpack.c.l.b16 %v854
  %v887 = vunpack.c.l.b16 %v855
  %v888 = vpack.c.b16 %v873, %v872
  %v889 = vpack.c.b16 %v875, %v874
  %v890 = vpack.c.b16 %v877, %v876
  %v891 = vpack.c.b16 %v879, %v878
  %v892 = vpack.c.b16 %v881, %v880
  %v893 = vpack.c.b16 %v883, %v882
  %v894 = vpack.c.b16 %v885, %v884
  %v895 = vpack.c.b16 %v887, %v886
  %904 = vmatprep.subr.bf16.mxu0 0
  %905 = vmatpush1.bf16.msra.mxu0 %v322
  %906 = vmatprep.subr.bf16.mxu0 0
  %907 = vmatpush1.bf16.msra.mxu0 %v323
  %908 = vmatprep.subr.bf16.mxu0 0
  %909 = vmatpush1.bf16.msra.mxu0 %v324
  %910 = vmatprep.subr.bf16.mxu0 0
  %911 = vmatpush1.bf16.msra.mxu0 %v325
  %912 = vmatprep.subr.bf16.mxu0 0
  %913 = vmatpush1.bf16.msra.mxu0 %v326
  %914 = vmatprep.subr.bf16.mxu0 0
  %915 = vmatpush1.bf16.msra.mxu0 %v327
  %916 = vmatprep.subr.bf16.mxu0 0
  %917 = vmatpush1.bf16.msra.mxu0 %v328
  %918 = vmatprep.subr.bf16.mxu0 0
  %919 = vmatpush1.bf16.msra.mxu0 %v329
  %920 = vmatprep.subr.bf16.mxu0 0
  %921 = vmatpush1.bf16.msra.mxu0 0
  %922 = vmatprep.subr.bf16.mxu0 0
  %923 = vmatpush1.bf16.msra.mxu0 0
  %924 = vmatprep.subr.bf16.mxu0 0
  %925 = vmatpush1.bf16.msra.mxu0 0
  %926 = vmatprep.subr.bf16.mxu0 0
  %927 = vmatpush1.bf16.msra.mxu0 0
  %928 = vmatprep.subr.bf16.mxu0 0
  %929 = vmatpush1.bf16.msra.mxu0 0
  %930 = vmatprep.subr.bf16.mxu0 0
  %931 = vmatpush1.bf16.msra.mxu0 0
  %932 = vmatprep.subr.bf16.mxu0 0
  %933 = vmatpush1.bf16.msra.mxu0 0
  %934 = vmatprep.subr.bf16.mxu0 0
  %935 = vmatpush1.bf16.msra.mxu0 0
  %936 = vmatprep.mubr.bf16.mxu0 0
  %937 = vmatmul.mubr.bf16.gmra.mrb[0].mxu0 %v888
  %v938 = vpop.f32.mrb[0].mxu0
  %v939 = vadd.f32 0.0, %v938
  %v940 = vpop.f32.mrb[0].mxu0
  %v941 = vpop.f32.mrb[0].mxu0
  %v942 = vadd.f32 0.0, %v941
  %v943 = vpop.f32.mrb[0].mxu0
  %944 = vmatprep.mubr.bf16.mxu0 0
  %945 = vmatmul.mubr.bf16.gmra.mrb[0].mxu0 %v889
  %v946 = vpop.f32.mrb[0].mxu0
  %v947 = vadd.f32 0.0, %v946
  %v948 = vpop.f32.mrb[0].mxu0
  %v949 = vpop.f32.mrb[0].mxu0
  %v950 = vadd.f32 0.0, %v949
  %v951 = vpop.f32.mrb[0].mxu0
  %952 = vmatprep.mubr.bf16.mxu0 0
  %953 = vmatmul.mubr.bf16.gmra.mrb[0].mxu0 %v890
  %v954 = vpop.f32.mrb[0].mxu0
  %v955 = vadd.f32 0.0, %v954
  %v956 = vpop.f32.mrb[0].mxu0
  %v957 = vpop.f32.mrb[0].mxu0
  %v958 = vadd.f32 0.0, %v957
  %v959 = vpop.f32.mrb[0].mxu0
  %960 = vmatprep.mubr.bf16.mxu0 0
  %961 = vmatmul.mubr.bf16.gmra.mrb[0].mxu0 %v891
  %v962 = vpop.f32.mrb[0].mxu0
  %v963 = vadd.f32 0.0, %v962
  %v964 = vpop.f32.mrb[0].mxu0
  %v965 = vpop.f32.mrb[0].mxu0
  %v966 = vadd.f32 0.0, %v965
  %v967 = vpop.f32.mrb[0].mxu0
  %968 = vmatprep.mubr.bf16.mxu0 0
  %969 = vmatmul.mubr.bf16.gmra.mrb[0].mxu0 %v892
  %v970 = vpop.f32.mrb[0].mxu0
  %v971 = vadd.f32 0.0, %v970
  %v972 = vpop.f32.mrb[0].mxu0
  %v973 = vpop.f32.mrb[0].mxu0
  %v974 = vadd.f32 0.0, %v973
  %v975 = vpop.f32.mrb[0].mxu0
  %976 = vmatprep.mubr.bf16.mxu0 0
  %977 = vmatmul.mubr.bf16.gmra.mrb[0].mxu0 %v893
  %v978 = vpop.f32.mrb[0].mxu0
  %v979 = vadd.f32 0.0, %v978
  %v980 = vpop.f32.mrb[0].mxu0
  %v981 = vpop.f32.mrb[0].mxu0
  %v982 = vadd.f32 0.0, %v981
  %v983 = vpop.f32.mrb[0].mxu0
  %984 = vmatprep.mubr.bf16.mxu0 0
  %985 = vmatmul.mubr.bf16.gmra.mrb[0].mxu0 %v894
  %v986 = vpop.f32.mrb[0].mxu0
  %v987 = vadd.f32 0.0, %v986
  %v988 = vpop.f32.mrb[0].mxu0
  %v989 = vpop.f32.mrb[0].mxu0
  %v990 = vadd.f32 0.0, %v989
  %v991 = vpop.f32.mrb[0].mxu0
  %992 = vmatprep.mubr.bf16.mxu0 0
  %993 = vmatmul.mubr.bf16.gmra.mrb[0].mxu0 %v895
  %v994 = vpop.f32.mrb[0].mxu0
  %v995 = vadd.f32 0.0, %v994
  %v996 = vpop.f32.mrb[0].mxu0
  %v997 = vpop.f32.mrb[0].mxu0
  %v998 = vadd.f32 0.0, %v997
  %v999 = vpop.f32.mrb[0].mxu0
  %1000 = vdwg.mxu0
  %v1001 = vpack.c.bf16 %v942, %v939
  %v1002 = vpack.c.bf16 %v950, %v947
  %v1003 = vpack.c.bf16 %v958, %v955
  %v1004 = vpack.c.bf16 %v966, %v963
  %v1005 = vpack.c.bf16 %v974, %v971
  %v1006 = vpack.c.bf16 %v982, %v979
  %v1007 = vpack.c.bf16 %v990, %v987
  %v1008 = vpack.c.bf16 %v998, %v995
  %s1009 = scalar_lea.vmem %s1, 256
  %v1010 = vld [vmem:[%s1009] sm:$0xf]
  %v1011 = vld [vmem:[%s1009 + $0x4] sm:$0xf]
  %v1012 = vld [vmem:[%s1009 + $0x8] sm:$0xf]
  %v1013 = vld [vmem:[%s1009 + $0xc] sm:$0xf]
  %v1014 = vld [vmem:[%s1009 + $0x10] sm:$0xf]
  %v1015 = vld [vmem:[%s1009 + $0x14] sm:$0xf]
  %v1016 = vld [vmem:[%s1009 + $0x18] sm:$0xf]
  %v1017 = vld [vmem:[%s1009 + $0x1c] sm:$0xf]
  %v1018 = vld [vmem:[%s1009 + $0x20] sm:$0xf]
  %v1019 = vld [vmem:[%s1009 + $0x24] sm:$0xf]
  %v1020 = vld [vmem:[%s1009 + $0x28] sm:$0xf]
  %v1021 = vld [vmem:[%s1009 + $0x2c] sm:$0xf]
  %v1022 = vld [vmem:[%s1009 + $0x30] sm:$0xf]
  %v1023 = vld [vmem:[%s1009 + $0x34] sm:$0xf]
  %v1024 = vld [vmem:[%s1009 + $0x38] sm:$0xf]
  %v1025 = vld [vmem:[%s1009 + $0x3c] sm:$0xf]
  %v1042 = vunpack.c.l.b16 %v1010
  %v1043 = vunpack.c.l.b16 %v1011
  %v1044 = vunpack.c.l.b16 %v1012
  %v1045 = vunpack.c.l.b16 %v1013
  %v1046 = vunpack.c.l.b16 %v1014
  %v1047 = vunpack.c.l.b16 %v1015
  %v1048 = vunpack.c.l.b16 %v1016
  %v1049 = vunpack.c.l.b16 %v1017
  %v1050 = vunpack.c.l.b16 %v1018
  %v1051 = vunpack.c.l.b16 %v1019
  %v1052 = vunpack.c.l.b16 %v1020
  %v1053 = vunpack.c.l.b16 %v1021
  %v1054 = vunpack.c.l.b16 %v1022
  %v1055 = vunpack.c.l.b16 %v1023
  %v1056 = vunpack.c.l.b16 %v1024
  %v1057 = vunpack.c.l.b16 %v1025
  %v1058 = vpack.c.b16 %v1043, %v1042
  %v1059 = vpack.c.b16 %v1045, %v1044
  %v1060 = vpack.c.b16 %v1047, %v1046
  %v1061 = vpack.c.b16 %v1049, %v1048
  %v1062 = vpack.c.b16 %v1051, %v1050
  %v1063 = vpack.c.b16 %v1053, %v1052
  %v1064 = vpack.c.b16 %v1055, %v1054
  %v1065 = vpack.c.b16 %v1057, %v1056
  %1074 = vmatprep.subr.bf16.mxu0 0
  %1075 = vmatpush1.bf16.msra.mxu0 %v322
  %1076 = vmatprep.subr.bf16.mxu0 0
  %1077 = vmatpush1.bf16.msra.mxu0 %v323
  %1078 = vmatprep.subr.bf16.mxu0 0
  %1079 = vmatpush1.bf16.msra.mxu0 %v324
  %1080 = vmatprep.subr.bf16.mxu0 0
  %1081 = vmatpush1.bf16.msra.mxu0 %v325
  %1082 = vmatprep.subr.bf16.mxu0 0
  %1083 = vmatpush1.bf16.msra.mxu0 %v326
  %1084 = vmatprep.subr.bf16.mxu0 0
  %1085 = vmatpush1.bf16.msra.mxu0 %v327
  %1086 = vmatprep.subr.bf16.mxu0 0
  %1087 = vmatpush1.bf16.msra.mxu0 %v328
  %1088 = vmatprep.subr.bf16.mxu0 0
  %1089 = vmatpush1.bf16.msra.mxu0 %v329
  %1090 = vmatprep.subr.bf16.mxu0 0
  %1091 = vmatpush1.bf16.msra.mxu0 0
  %1092 = vmatprep.subr.bf16.mxu0 0
  %1093 = vmatpush1.bf16.msra.mxu0 0
  %1094 = vmatprep.subr.bf16.mxu0 0
  %1095 = vmatpush1.bf16.msra.mxu0 0
  %1096 = vmatprep.subr.bf16.mxu0 0
  %1097 = vmatpush1.bf16.msra.mxu0 0
  %1098 = vmatprep.subr.bf16.mxu0 0
  %1099 = vmatpush1.bf16.msra.mxu0 0
  %1100 = vmatprep.subr.bf16.mxu0 0
  %1101 = vmatpush1.bf16.msra.mxu0 0
  %1102 = vmatprep.subr.bf16.mxu0 0
  %1103 = vmatpush1.bf16.msra.mxu0 0
  %1104 = vmatprep.subr.bf16.mxu0 0
  %1105 = vmatpush1.bf16.msra.mxu0 0
  %1106 = vmatprep.mubr.bf16.mxu0 0
  %1107 = vmatmul.mubr.bf16.gmra.mrb[0].mxu0 %v1058
  %v1108 = vpop.f32.mrb[0].mxu0
  %v1109 = vadd.f32 0.0, %v1108
  %v1110 = vpop.f32.mrb[0].mxu0
  %v1111 = vpop.f32.mrb[0].mxu0
  %v1112 = vadd.f32 0.0, %v1111
  %v1113 = vpop.f32.mrb[0].mxu0
  %1114 = vmatprep.mubr.bf16.mxu0 0
  %1115 = vmatmul.mubr.bf16.gmra.mrb[0].mxu0 %v1059
  %v1116 = vpop.f32.mrb[0].mxu0
  %v1117 = vadd.f32 0.0, %v1116
  %v1118 = vpop.f32.mrb[0].mxu0
  %v1119 = vpop.f32.mrb[0].mxu0
  %v1120 = vadd.f32 0.0, %v1119
  %v1121 = vpop.f32.mrb[0].mxu0
  %1122 = vmatprep.mubr.bf16.mxu0 0
  %1123 = vmatmul.mubr.bf16.gmra.mrb[0].mxu0 %v1060
  %v1124 = vpop.f32.mrb[0].mxu0
  %v1125 = vadd.f32 0.0, %v1124
  %v1126 = vpop.f32.mrb[0].mxu0
  %v1127 = vpop.f32.mrb[0].mxu0
  %v1128 = vadd.f32 0.0, %v1127
  %v1129 = vpop.f32.mrb[0].mxu0
  %1130 = vmatprep.mubr.bf16.mxu0 0
  %1131 = vmatmul.mubr.bf16.gmra.mrb[0].mxu0 %v1061
  %v1132 = vpop.f32.mrb[0].mxu0
  %v1133 = vadd.f32 0.0, %v1132
  %v1134 = vpop.f32.mrb[0].mxu0
  %v1135 = vpop.f32.mrb[0].mxu0
  %v1136 = vadd.f32 0.0, %v1135
  %v1137 = vpop.f32.mrb[0].mxu0
  %1138 = vmatprep.mubr.bf16.mxu0 0
  %1139 = vmatmul.mubr.bf16.gmra.mrb[0].mxu0 %v1062
  %v1140 = vpop.f32.mrb[0].mxu0
  %v1141 = vadd.f32 0.0, %v1140
  %v1142 = vpop.f32.mrb[0].mxu0
  %v1143 = vpop.f32.mrb[0].mxu0
  %v1144 = vadd.f32 0.0, %v1143
  %v1145 = vpop.f32.mrb[0].mxu0
  %1146 = vmatprep.mubr.bf16.mxu0 0
  %1147 = vmatmul.mubr.bf16.gmra.mrb[0].mxu0 %v1063
  %v1148 = vpop.f32.mrb[0].mxu0
  %v1149 = vadd.f32 0.0, %v1148
  %v1150 = vpop.f32.mrb[0].mxu0
  %v1151 = vpop.f32.mrb[0].mxu0
  %v1152 = vadd.f32 0.0, %v1151
  %v1153 = vpop.f32.mrb[0].mxu0
  %1154 = vmatprep.mubr.bf16.mxu0 0
  %1155 = vmatmul.mubr.bf16.gmra.mrb[0].mxu0 %v1064
  %v1156 = vpop.f32.mrb[0].mxu0
  %v1157 = vadd.f32 0.0, %v1156
  %v1158 = vpop.f32.mrb[0].mxu0
  %v1159 = vpop.f32.mrb[0].mxu0
  %v1160 = vadd.f32 0.0, %v1159
  %v1161 = vpop.f32.mrb[0].mxu0
  %1162 = vmatprep.mubr.bf16.mxu0 0
  %1163 = vmatmul.mubr.bf16.gmra.mrb[0].mxu0 %v1065
  %v1164 = vpop.f32.mrb[0].mxu0
  %v1165 = vadd.f32 0.0, %v1164
  %v1166 = vpop.f32.mrb[0].mxu0
  %v1167 = vpop.f32.mrb[0].mxu0
  %v1168 = vadd.f32 0.0, %v1167
  %v1169 = vpop.f32.mrb[0].mxu0
  %1170 = vdwg.mxu0
  %v1171 = vpack.c.bf16 %v1112, %v1109
  %v1172 = vpack.c.bf16 %v1120, %v1117
  %v1173 = vpack.c.bf16 %v1128, %v1125
  %v1174 = vpack.c.bf16 %v1136, %v1133
  %v1175 = vpack.c.bf16 %v1144, %v1141
  %v1176 = vpack.c.bf16 %v1152, %v1149
  %v1177 = vpack.c.bf16 %v1160, %v1157
  %v1178 = vpack.c.bf16 %v1168, %v1165
  %s1179 = scalar_lea.vmem %s1, 320
  %v1180 = vld [vmem:[%s1179] sm:$0xf]
  %v1181 = vld [vmem:[%s1179 + $0x4] sm:$0xf]
  %v1182 = vld [vmem:[%s1179 + $0x8] sm:$0xf]
  %v1183 = vld [vmem:[%s1179 + $0xc] sm:$0xf]
  %v1184 = vld [vmem:[%s1179 + $0x10] sm:$0xf]
  %v1185 = vld [vmem:[%s1179 + $0x14] sm:$0xf]
  %v1186 = vld [vmem:[%s1179 + $0x18] sm:$0xf]
  %v1187 = vld [vmem:[%s1179 + $0x1c] sm:$0xf]
  %v1188 = vld [vmem:[%s1179 + $0x20] sm:$0xf]
  %v1189 = vld [vmem:[%s1179 + $0x24] sm:$0xf]
  %v1190 = vld [vmem:[%s1179 + $0x28] sm:$0xf]
  %v1191 = vld [vmem:[%s1179 + $0x2c] sm:$0xf]
  %v1192 = vld [vmem:[%s1179 + $0x30] sm:$0xf]
  %v1193 = vld [vmem:[%s1179 + $0x34] sm:$0xf]
  %v1194 = vld [vmem:[%s1179 + $0x38] sm:$0xf]
  %v1195 = vld [vmem:[%s1179 + $0x3c] sm:$0xf]
  %v1212 = vunpack.c.l.b16 %v1180
  %v1213 = vunpack.c.l.b16 %v1181
  %v1214 = vunpack.c.l.b16 %v1182
  %v1215 = vunpack.c.l.b16 %v1183
  %v1216 = vunpack.c.l.b16 %v1184
  %v1217 = vunpack.c.l.b16 %v1185
  %v1218 = vunpack.c.l.b16 %v1186
  %v1219 = vunpack.c.l.b16 %v1187
  %v1220 = vunpack.c.l.b16 %v1188
  %v1221 = vunpack.c.l.b16 %v1189
  %v1222 = vunpack.c.l.b16 %v1190
  %v1223 = vunpack.c.l.b16 %v1191
  %v1224 = vunpack.c.l.b16 %v1192
  %v1225 = vunpack.c.l.b16 %v1193
  %v1226 = vunpack.c.l.b16 %v1194
  %v1227 = vunpack.c.l.b16 %v1195
  %v1228 = vpack.c.b16 %v1213, %v1212
  %v1229 = vpack.c.b16 %v1215, %v1214
  %v1230 = vpack.c.b16 %v1217, %v1216
  %v1231 = vpack.c.b16 %v1219, %v1218
  %v1232 = vpack.c.b16 %v1221, %v1220
  %v1233 = vpack.c.b16 %v1223, %v1222
  %v1234 = vpack.c.b16 %v1225, %v1224
  %v1235 = vpack.c.b16 %v1227, %v1226
  %1244 = vmatprep.subr.bf16.mxu0 0
  %1245 = vmatpush1.bf16.msra.mxu0 %v322
  %1246 = vmatprep.subr.bf16.mxu0 0
  %1247 = vmatpush1.bf16.msra.mxu0 %v323
  %1248 = vmatprep.subr.bf16.mxu0 0
  %1249 = vmatpush1.bf16.msra.mxu0 %v324
  %1250 = vmatprep.subr.bf16.mxu0 0
  %1251 = vmatpush1.bf16.msra.mxu0 %v325
  %1252 = vmatprep.subr.bf16.mxu0 0
  %1253 = vmatpush1.bf16.msra.mxu0 %v326
  %1254 = vmatprep.subr.bf16.mxu0 0
  %1255 = vmatpush1.bf16.msra.mxu0 %v327
  %1256 = vmatprep.subr.bf16.mxu0 0
  %1257 = vmatpush1.bf16.msra.mxu0 %v328
  %1258 = vmatprep.subr.bf16.mxu0 0
  %1259 = vmatpush1.bf16.msra.mxu0 %v329
  %1260 = vmatprep.subr.bf16.mxu0 0
  %1261 = vmatpush1.bf16.msra.mxu0 0
  %1262 = vmatprep.subr.bf16.mxu0 0
  %1263 = vmatpush1.bf16.msra.mxu0 0
  %1264 = vmatprep.subr.bf16.mxu0 0
  %1265 = vmatpush1.bf16.msra.mxu0 0
  %1266 = vmatprep.subr.bf16.mxu0 0
  %1267 = vmatpush1.bf16.msra.mxu0 0
  %1268 = vmatprep.subr.bf16.mxu0 0
  %1269 = vmatpush1.bf16.msra.mxu0 0
  %1270 = vmatprep.subr.bf16.mxu0 0
  %1271 = vmatpush1.bf16.msra.mxu0 0
  %1272 = vmatprep.subr.bf16.mxu0 0
  %1273 = vmatpush1.bf16.msra.mxu0 0
  %1274 = vmatprep.subr.bf16.mxu0 0
  %1275 = vmatpush1.bf16.msra.mxu0 0
  %1276 = vmatprep.mubr.bf16.mxu0 0
  %1277 = vmatmul.mubr.bf16.gmra.mrb[0].mxu0 %v1228
  %v1278 = vpop.f32.mrb[0].mxu0
  %v1279 = vadd.f32 0.0, %v1278
  %v1280 = vpop.f32.mrb[0].mxu0
  %v1281 = vpop.f32.mrb[0].mxu0
  %v1282 = vadd.f32 0.0, %v1281
  %v1283 = vpop.f32.mrb[0].mxu0
  %1284 = vmatprep.mubr.bf16.mxu0 0
  %1285 = vmatmul.mubr.bf16.gmra.mrb[0].mxu0 %v1229
  %v1286 = vpop.f32.mrb[0].mxu0
  %v1287 = vadd.f32 0.0, %v1286
  %v1288 = vpop.f32.mrb[0].mxu0
  %v1289 = vpop.f32.mrb[0].mxu0
  %v1290 = vadd.f32 0.0, %v1289
  %v1291 = vpop.f32.mrb[0].mxu0
  %1292 = vmatprep.mubr.bf16.mxu0 0
  %1293 = vmatmul.mubr.bf16.gmra.mrb[0].mxu0 %v1230
  %v1294 = vpop.f32.mrb[0].mxu0
  %v1295 = vadd.f32 0.0, %v1294
  %v1296 = vpop.f32.mrb[0].mxu0
  %v1297 = vpop.f32.mrb[0].mxu0
  %v1298 = vadd.f32 0.0, %v1297
  %v1299 = vpop.f32.mrb[0].mxu0
  %1300 = vmatprep.mubr.bf16.mxu0 0
  %1301 = vmatmul.mubr.bf16.gmra.mrb[0].mxu0 %v1231
  %v1302 = vpop.f32.mrb[0].mxu0
  %v1303 = vadd.f32 0.0, %v1302
  %v1304 = vpop.f32.mrb[0].mxu0
  %v1305 = vpop.f32.mrb[0].mxu0
  %v1306 = vadd.f32 0.0, %v1305
  %v1307 = vpop.f32.mrb[0].mxu0
  %1308 = vmatprep.mubr.bf16.mxu0 0
  %1309 = vmatmul.mubr.bf16.gmra.mrb[0].mxu0 %v1232
  %v1310 = vpop.f32.mrb[0].mxu0
  %v1311 = vadd.f32 0.0, %v1310
  %v1312 = vpop.f32.mrb[0].mxu0
  %v1313 = vpop.f32.mrb[0].mxu0
  %v1314 = vadd.f32 0.0, %v1313
  %v1315 = vpop.f32.mrb[0].mxu0
  %1316 = vmatprep.mubr.bf16.mxu0 0
  %1317 = vmatmul.mubr.bf16.gmra.mrb[0].mxu0 %v1233
  %v1318 = vpop.f32.mrb[0].mxu0
  %v1319 = vadd.f32 0.0, %v1318
  %v1320 = vpop.f32.mrb[0].mxu0
  %v1321 = vpop.f32.mrb[0].mxu0
  %v1322 = vadd.f32 0.0, %v1321
  %v1323 = vpop.f32.mrb[0].mxu0
  %1324 = vmatprep.mubr.bf16.mxu0 0
  %1325 = vmatmul.mubr.bf16.gmra.mrb[0].mxu0 %v1234
  %v1326 = vpop.f32.mrb[0].mxu0
  %v1327 = vadd.f32 0.0, %v1326
  %v1328 = vpop.f32.mrb[0].mxu0
  %v1329 = vpop.f32.mrb[0].mxu0
  %v1330 = vadd.f32 0.0, %v1329
  %v1331 = vpop.f32.mrb[0].mxu0
  %1332 = vmatprep.mubr.bf16.mxu0 0
  %1333 = vmatmul.mubr.bf16.gmra.mrb[0].mxu0 %v1235
  %v1334 = vpop.f32.mrb[0].mxu0
  %v1335 = vadd.f32 0.0, %v1334
  %v1336 = vpop.f32.mrb[0].mxu0
  %v1337 = vpop.f32.mrb[0].mxu0
  %v1338 = vadd.f32 0.0, %v1337
  %v1339 = vpop.f32.mrb[0].mxu0
  %1340 = vdwg.mxu0
  %v1341 = vpack.c.bf16 %v1282, %v1279
  %v1342 = vpack.c.bf16 %v1290, %v1287
  %v1343 = vpack.c.bf16 %v1298, %v1295
  %v1344 = vpack.c.bf16 %v1306, %v1303
  %v1345 = vpack.c.bf16 %v1314, %v1311
  %v1346 = vpack.c.bf16 %v1322, %v1319
  %v1347 = vpack.c.bf16 %v1330, %v1327
  %v1348 = vpack.c.bf16 %v1338, %v1335
  %s1349 = scalar_lea.vmem %s1, 384
  %v1350 = vld [vmem:[%s1349] sm:$0xf]
  %v1351 = vld [vmem:[%s1349 + $0x4] sm:$0xf]
  %v1352 = vld [vmem:[%s1349 + $0x8] sm:$0xf]
  %v1353 = vld [vmem:[%s1349 + $0xc] sm:$0xf]
  %v1354 = vld [vmem:[%s1349 + $0x10] sm:$0xf]
  %v1355 = vld [vmem:[%s1349 + $0x14] sm:$0xf]
  %v1356 = vld [vmem:[%s1349 + $0x18] sm:$0xf]
  %v1357 = vld [vmem:[%s1349 + $0x1c] sm:$0xf]
  %v1358 = vld [vmem:[%s1349 + $0x20] sm:$0xf]
  %v1359 = vld [vmem:[%s1349 + $0x24] sm:$0xf]
  %v1360 = vld [vmem:[%s1349 + $0x28] sm:$0xf]
  %v1361 = vld [vmem:[%s1349 + $0x2c] sm:$0xf]
  %v1362 = vld [vmem:[%s1349 + $0x30] sm:$0xf]
  %v1363 = vld [vmem:[%s1349 + $0x34] sm:$0xf]
  %v1364 = vld [vmem:[%s1349 + $0x38] sm:$0xf]
  %v1365 = vld [vmem:[%s1349 + $0x3c] sm:$0xf]
  %v1382 = vunpack.c.l.b16 %v1350
  %v1383 = vunpack.c.l.b16 %v1351
  %v1384 = vunpack.c.l.b16 %v1352
  %v1385 = vunpack.c.l.b16 %v1353
  %v1386 = vunpack.c.l.b16 %v1354
  %v1387 = vunpack.c.l.b16 %v1355
  %v1388 = vunpack.c.l.b16 %v1356
  %v1389 = vunpack.c.l.b16 %v1357
  %v1390 = vunpack.c.l.b16 %v1358
  %v1391 = vunpack.c.l.b16 %v1359
  %v1392 = vunpack.c.l.b16 %v1360
  %v1393 = vunpack.c.l.b16 %v1361
  %v1394 = vunpack.c.l.b16 %v1362
  %v1395 = vunpack.c.l.b16 %v1363
  %v1396 = vunpack.c.l.b16 %v1364
  %v1397 = vunpack.c.l.b16 %v1365
  %v1398 = vpack.c.b16 %v1383, %v1382
  %v1399 = vpack.c.b16 %v1385, %v1384
  %v1400 = vpack.c.b16 %v1387, %v1386
  %v1401 = vpack.c.b16 %v1389, %v1388
  %v1402 = vpack.c.b16 %v1391, %v1390
  %v1403 = vpack.c.b16 %v1393, %v1392
  %v1404 = vpack.c.b16 %v1395, %v1394
  %v1405 = vpack.c.b16 %v1397, %v1396
  %1414 = vmatprep.subr.bf16.mxu0 0
  %1415 = vmatpush1.bf16.msra.mxu0 %v322
  %1416 = vmatprep.subr.bf16.mxu0 0
  %1417 = vmatpush1.bf16.msra.mxu0 %v323
  %1418 = vmatprep.subr.bf16.mxu0 0
  %1419 = vmatpush1.bf16.msra.mxu0 %v324
  %1420 = vmatprep.subr.bf16.mxu0 0
  %1421 = vmatpush1.bf16.msra.mxu0 %v325
  %1422 = vmatprep.subr.bf16.mxu0 0
  %1423 = vmatpush1.bf16.msra.mxu0 %v326
  %1424 = vmatprep.subr.bf16.mxu0 0
  %1425 = vmatpush1.bf16.msra.mxu0 %v327
  %1426 = vmatprep.subr.bf16.mxu0 0
  %1427 = vmatpush1.bf16.msra.mxu0 %v328
  %1428 = vmatprep.subr.bf16.mxu0 0
  %1429 = vmatpush1.bf16.msra.mxu0 %v329
  %1430 = vmatprep.subr.bf16.mxu0 0
  %1431 = vmatpush1.bf16.msra.mxu0 0
  %1432 = vmatprep.subr.bf16.mxu0 0
  %1433 = vmatpush1.bf16.msra.mxu0 0
  %1434 = vmatprep.subr.bf16.mxu0 0
  %1435 = vmatpush1.bf16.msra.mxu0 0
  %1436 = vmatprep.subr.bf16.mxu0 0
  %1437 = vmatpush1.bf16.msra.mxu0 0
  %1438 = vmatprep.subr.bf16.mxu0 0
  %1439 = vmatpush1.bf16.msra.mxu0 0
  %1440 = vmatprep.subr.bf16.mxu0 0
  %1441 = vmatpush1.bf16.msra.mxu0 0
  %1442 = vmatprep.subr.bf16.mxu0 0
  %1443 = vmatpush1.bf16.msra.mxu0 0
  %1444 = vmatprep.subr.bf16.mxu0 0
  %1445 = vmatpush1.bf16.msra.mxu0 0
  %1446 = vmatprep.mubr.bf16.mxu0 0
  %1447 = vmatmul.mubr.bf16.gmra.mrb[0].mxu0 %v1398
  %v1448 = vpop.f32.mrb[0].mxu0
  %v1449 = vadd.f32 0.0, %v1448
  %v1450 = vpop.f32.mrb[0].mxu0
  %v1451 = vpop.f32.mrb[0].mxu0
  %v1452 = vadd.f32 0.0, %v1451
  %v1453 = vpop.f32.mrb[0].mxu0
  %1454 = vmatprep.mubr.bf16.mxu0 0
  %1455 = vmatmul.mubr.bf16.gmra.mrb[0].mxu0 %v1399
  %v1456 = vpop.f32.mrb[0].mxu0
  %v1457 = vadd.f32 0.0, %v1456
  %v1458 = vpop.f32.mrb[0].mxu0
  %v1459 = vpop.f32.mrb[0].mxu0
  %v1460 = vadd.f32 0.0, %v1459
  %v1461 = vpop.f32.mrb[0].mxu0
  %1462 = vmatprep.mubr.bf16.mxu0 0
  %1463 = vmatmul.mubr.bf16.gmra.mrb[0].mxu0 %v1400
  %v1464 = vpop.f32.mrb[0].mxu0
  %v1465 = vadd.f32 0.0, %v1464
  %v1466 = vpop.f32.mrb[0].mxu0
  %v1467 = vpop.f32.mrb[0].mxu0
  %v1468 = vadd.f32 0.0, %v1467
  %v1469 = vpop.f32.mrb[0].mxu0
  %1470 = vmatprep.mubr.bf16.mxu0 0
  %1471 = vmatmul.mubr.bf16.gmra.mrb[0].mxu0 %v1401
  %v1472 = vpop.f32.mrb[0].mxu0
  %v1473 = vadd.f32 0.0, %v1472
  %v1474 = vpop.f32.mrb[0].mxu0
  %v1475 = vpop.f32.mrb[0].mxu0
  %v1476 = vadd.f32 0.0, %v1475
  %v1477 = vpop.f32.mrb[0].mxu0
  %1478 = vmatprep.mubr.bf16.mxu0 0
  %1479 = vmatmul.mubr.bf16.gmra.mrb[0].mxu0 %v1402
  %v1480 = vpop.f32.mrb[0].mxu0
  %v1481 = vadd.f32 0.0, %v1480
  %v1482 = vpop.f32.mrb[0].mxu0
  %v1483 = vpop.f32.mrb[0].mxu0
  %v1484 = vadd.f32 0.0, %v1483
  %v1485 = vpop.f32.mrb[0].mxu0
  %1486 = vmatprep.mubr.bf16.mxu0 0
  %1487 = vmatmul.mubr.bf16.gmra.mrb[0].mxu0 %v1403
  %v1488 = vpop.f32.mrb[0].mxu0
  %v1489 = vadd.f32 0.0, %v1488
  %v1490 = vpop.f32.mrb[0].mxu0
  %v1491 = vpop.f32.mrb[0].mxu0
  %v1492 = vadd.f32 0.0, %v1491
  %v1493 = vpop.f32.mrb[0].mxu0
  %1494 = vmatprep.mubr.bf16.mxu0 0
  %1495 = vmatmul.mubr.bf16.gmra.mrb[0].mxu0 %v1404
  %v1496 = vpop.f32.mrb[0].mxu0
  %v1497 = vadd.f32 0.0, %v1496
  %v1498 = vpop.f32.mrb[0].mxu0
  %v1499 = vpop.f32.mrb[0].mxu0
  %v1500 = vadd.f32 0.0, %v1499
  %v1501 = vpop.f32.mrb[0].mxu0
  %1502 = vmatprep.mubr.bf16.mxu0 0
  %1503 = vmatmul.mubr.bf16.gmra.mrb[0].mxu0 %v1405
  %v1504 = vpop.f32.mrb[0].mxu0
  %v1505 = vadd.f32 0.0, %v1504
  %v1506 = vpop.f32.mrb[0].mxu0
  %v1507 = vpop.f32.mrb[0].mxu0
  %v1508 = vadd.f32 0.0, %v1507
  %v1509 = vpop.f32.mrb[0].mxu0
  %1510 = vdwg.mxu0
  %v1511 = vpack.c.bf16 %v1452, %v1449
  %v1512 = vpack.c.bf16 %v1460, %v1457
  %v1513 = vpack.c.bf16 %v1468, %v1465
  %v1514 = vpack.c.bf16 %v1476, %v1473
  %v1515 = vpack.c.bf16 %v1484, %v1481
  %v1516 = vpack.c.bf16 %v1492, %v1489
  %v1517 = vpack.c.bf16 %v1500, %v1497
  %v1518 = vpack.c.bf16 %v1508, %v1505
  %s1519 = scalar_lea.vmem %s1, 448
  %v1520 = vld [vmem:[%s1519] sm:$0xf]
  %v1521 = vld [vmem:[%s1519 + $0x4] sm:$0xf]
  %v1522 = vld [vmem:[%s1519 + $0x8] sm:$0xf]
  %v1523 = vld [vmem:[%s1519 + $0xc] sm:$0xf]
  %v1524 = vld [vmem:[%s1519 + $0x10] sm:$0xf]
  %v1525 = vld [vmem:[%s1519 + $0x14] sm:$0xf]
  %v1526 = vld [vmem:[%s1519 + $0x18] sm:$0xf]
  %v1527 = vld [vmem:[%s1519 + $0x1c] sm:$0xf]
  %v1528 = vld [vmem:[%s1519 + $0x20] sm:$0xf]
  %v1529 = vld [vmem:[%s1519 + $0x24] sm:$0xf]
  %v1530 = vld [vmem:[%s1519 + $0x28] sm:$0xf]
  %v1531 = vld [vmem:[%s1519 + $0x2c] sm:$0xf]
  %v1532 = vld [vmem:[%s1519 + $0x30] sm:$0xf]
  %v1533 = vld [vmem:[%s1519 + $0x34] sm:$0xf]
  %v1534 = vld [vmem:[%s1519 + $0x38] sm:$0xf]
  %v1535 = vld [vmem:[%s1519 + $0x3c] sm:$0xf]
  %v1552 = vunpack.c.l.b16 %v1520
  %v1553 = vunpack.c.l.b16 %v1521
  %v1554 = vunpack.c.l.b16 %v1522
  %v1555 = vunpack.c.l.b16 %v1523
  %v1556 = vunpack.c.l.b16 %v1524
  %v1557 = vunpack.c.l.b16 %v1525
  %v1558 = vunpack.c.l.b16 %v1526
  %v1559 = vunpack.c.l.b16 %v1527
  %v1560 = vunpack.c.l.b16 %v1528
  %v1561 = vunpack.c.l.b16 %v1529
  %v1562 = vunpack.c.l.b16 %v1530
  %v1563 = vunpack.c.l.b16 %v1531
  %v1564 = vunpack.c.l.b16 %v1532
  %v1565 = vunpack.c.l.b16 %v1533
  %v1566 = vunpack.c.l.b16 %v1534
  %v1567 = vunpack.c.l.b16 %v1535
  %v1568 = vpack.c.b16 %v1553, %v1552
  %v1569 = vpack.c.b16 %v1555, %v1554
  %v1570 = vpack.c.b16 %v1557, %v1556
  %v1571 = vpack.c.b16 %v1559, %v1558
  %v1572 = vpack.c.b16 %v1561, %v1560
  %v1573 = vpack.c.b16 %v1563, %v1562
  %v1574 = vpack.c.b16 %v1565, %v1564
  %v1575 = vpack.c.b16 %v1567, %v1566
  %1584 = vmatprep.subr.bf16.mxu0 0
  %1585 = vmatpush1.bf16.msra.mxu0 %v322
  %1586 = vmatprep.subr.bf16.mxu0 0
  %1587 = vmatpush1.bf16.msra.mxu0 %v323
  %1588 = vmatprep.subr.bf16.mxu0 0
  %1589 = vmatpush1.bf16.msra.mxu0 %v324
  %1590 = vmatprep.subr.bf16.mxu0 0
  %1591 = vmatpush1.bf16.msra.mxu0 %v325
  %1592 = vmatprep.subr.bf16.mxu0 0
  %1593 = vmatpush1.bf16.msra.mxu0 %v326
  %1594 = vmatprep.subr.bf16.mxu0 0
  %1595 = vmatpush1.bf16.msra.mxu0 %v327
  %1596 = vmatprep.subr.bf16.mxu0 0
  %1597 = vmatpush1.bf16.msra.mxu0 %v328
  %1598 = vmatprep.subr.bf16.mxu0 0
  %1599 = vmatpush1.bf16.msra.mxu0 %v329
  %1600 = vmatprep.subr.bf16.mxu0 0
  %1601 = vmatpush1.bf16.msra.mxu0 0
  %1602 = vmatprep.subr.bf16.mxu0 0
  %1603 = vmatpush1.bf16.msra.mxu0 0
  %1604 = vmatprep.subr.bf16.mxu0 0
  %1605 = vmatpush1.bf16.msra.mxu0 0
  %1606 = vmatprep.subr.bf16.mxu0 0
  %1607 = vmatpush1.bf16.msra.mxu0 0
  %1608 = vmatprep.subr.bf16.mxu0 0
  %1609 = vmatpush1.bf16.msra.mxu0 0
  %1610 = vmatprep.subr.bf16.mxu0 0
  %1611 = vmatpush1.bf16.msra.mxu0 0
  %1612 = vmatprep.subr.bf16.mxu0 0
  %1613 = vmatpush1.bf16.msra.mxu0 0
  %1614 = vmatprep.subr.bf16.mxu0 0
  %1615 = vmatpush1.bf16.msra.mxu0 0
  %1616 = vmatprep.mubr.bf16.mxu0 0
  %1617 = vmatmul.mubr.bf16.gmra.mrb[0].mxu0 %v1568
  %v1618 = vpop.f32.mrb[0].mxu0
  %v1619 = vadd.f32 0.0, %v1618
  %v1620 = vpop.f32.mrb[0].mxu0
  %v1621 = vpop.f32.mrb[0].mxu0
  %v1622 = vadd.f32 0.0, %v1621
  %v1623 = vpop.f32.mrb[0].mxu0
  %1624 = vmatprep.mubr.bf16.mxu0 0
  %1625 = vmatmul.mubr.bf16.gmra.mrb[0].mxu0 %v1569
  %v1626 = vpop.f32.mrb[0].mxu0
  %v1627 = vadd.f32 0.0, %v1626
  %v1628 = vpop.f32.mrb[0].mxu0
  %v1629 = vpop.f32.mrb[0].mxu0
  %v1630 = vadd.f32 0.0, %v1629
  %v1631 = vpop.f32.mrb[0].mxu0
  %1632 = vmatprep.mubr.bf16.mxu0 0
  %1633 = vmatmul.mubr.bf16.gmra.mrb[0].mxu0 %v1570
  %v1634 = vpop.f32.mrb[0].mxu0
  %v1635 = vadd.f32 0.0, %v1634
  %v1636 = vpop.f32.mrb[0].mxu0
  %v1637 = vpop.f32.mrb[0].mxu0
  %v1638 = vadd.f32 0.0, %v1637
  %v1639 = vpop.f32.mrb[0].mxu0
  %1640 = vmatprep.mubr.bf16.mxu0 0
  %1641 = vmatmul.mubr.bf16.gmra.mrb[0].mxu0 %v1571
  %v1642 = vpop.f32.mrb[0].mxu0
  %v1643 = vadd.f32 0.0, %v1642
  %v1644 = vpop.f32.mrb[0].mxu0
  %v1645 = vpop.f32.mrb[0].mxu0
  %v1646 = vadd.f32 0.0, %v1645
  %v1647 = vpop.f32.mrb[0].mxu0
  %1648 = vmatprep.mubr.bf16.mxu0 0
  %1649 = vmatmul.mubr.bf16.gmra.mrb[0].mxu0 %v1572
  %v1650 = vpop.f32.mrb[0].mxu0
  %v1651 = vadd.f32 0.0, %v1650
  %v1652 = vpop.f32.mrb[0].mxu0
  %v1653 = vpop.f32.mrb[0].mxu0
  %v1654 = vadd.f32 0.0, %v1653
  %v1655 = vpop.f32.mrb[0].mxu0
  %1656 = vmatprep.mubr.bf16.mxu0 0
  %1657 = vmatmul.mubr.bf16.gmra.mrb[0].mxu0 %v1573
  %v1658 = vpop.f32.mrb[0].mxu0
  %v1659 = vadd.f32 0.0, %v1658
  %v1660 = vpop.f32.mrb[0].mxu0
  %v1661 = vpop.f32.mrb[0].mxu0
  %v1662 = vadd.f32 0.0, %v1661
  %v1663 = vpop.f32.mrb[0].mxu0
  %1664 = vmatprep.mubr.bf16.mxu0 0
  %1665 = vmatmul.mubr.bf16.gmra.mrb[0].mxu0 %v1574
  %v1666 = vpop.f32.mrb[0].mxu0
  %v1667 = vadd.f32 0.0, %v1666
  %v1668 = vpop.f32.mrb[0].mxu0
  %v1669 = vpop.f32.mrb[0].mxu0
  %v1670 = vadd.f32 0.0, %v1669
  %v1671 = vpop.f32.mrb[0].mxu0
  %1672 = vmatprep.mubr.bf16.mxu0 0
  %1673 = vmatmul.mubr.bf16.gmra.mrb[0].mxu0 %v1575
  %v1674 = vpop.f32.mrb[0].mxu0
  %v1675 = vadd.f32 0.0, %v1674
  %v1676 = vpop.f32.mrb[0].mxu0
  %v1677 = vpop.f32.mrb[0].mxu0
  %v1678 = vadd.f32 0.0, %v1677
  %v1679 = vpop.f32.mrb[0].mxu0
  %1680 = vdwg.mxu0
  %v1681 = vpack.c.bf16 %v1622, %v1619
  %v1682 = vpack.c.bf16 %v1630, %v1627
  %v1683 = vpack.c.bf16 %v1638, %v1635
  %v1684 = vpack.c.bf16 %v1646, %v1643
  %v1685 = vpack.c.bf16 %v1654, %v1651
  %v1686 = vpack.c.bf16 %v1662, %v1659
  %v1687 = vpack.c.bf16 %v1670, %v1667
  %v1688 = vpack.c.bf16 %v1678, %v1675
  %s1689 = scalar_lea.vmem %s1, 512
  %v1690 = vld [vmem:[%s1689] sm:$0xf]
  %v1691 = vld [vmem:[%s1689 + $0x4] sm:$0xf]
  %v1692 = vld [vmem:[%s1689 + $0x8] sm:$0xf]
  %v1693 = vld [vmem:[%s1689 + $0xc] sm:$0xf]
  %v1694 = vld [vmem:[%s1689 + $0x10] sm:$0xf]
  %v1695 = vld [vmem:[%s1689 + $0x14] sm:$0xf]
  %v1696 = vld [vmem:[%s1689 + $0x18] sm:$0xf]
  %v1697 = vld [vmem:[%s1689 + $0x1c] sm:$0xf]
  %v1698 = vld [vmem:[%s1689 + $0x20] sm:$0xf]
  %v1699 = vld [vmem:[%s1689 + $0x24] sm:$0xf]
  %v1700 = vld [vmem:[%s1689 + $0x28] sm:$0xf]
  %v1701 = vld [vmem:[%s1689 + $0x2c] sm:$0xf]
  %v1702 = vld [vmem:[%s1689 + $0x30] sm:$0xf]
  %v1703 = vld [vmem:[%s1689 + $0x34] sm:$0xf]
  %v1704 = vld [vmem:[%s1689 + $0x38] sm:$0xf]
  %v1705 = vld [vmem:[%s1689 + $0x3c] sm:$0xf]
  %v1722 = vunpack.c.l.b16 %v1690
  %v1723 = vunpack.c.l.b16 %v1691
  %v1724 = vunpack.c.l.b16 %v1692
  %v1725 = vunpack.c.l.b16 %v1693
  %v1726 = vunpack.c.l.b16 %v1694
  %v1727 = vunpack.c.l.b16 %v1695
  %v1728 = vunpack.c.l.b16 %v1696
  %v1729 = vunpack.c.l.b16 %v1697
  %v1730 = vunpack.c.l.b16 %v1698
  %v1731 = vunpack.c.l.b16 %v1699
  %v1732 = vunpack.c.l.b16 %v1700
  %v1733 = vunpack.c.l.b16 %v1701
  %v1734 = vunpack.c.l.b16 %v1702
  %v1735 = vunpack.c.l.b16 %v1703
  %v1736 = vunpack.c.l.b16 %v1704
  %v1737 = vunpack.c.l.b16 %v1705
  %v1738 = vpack.c.b16 %v1723, %v1722
  %v1739 = vpack.c.b16 %v1725, %v1724
  %v1740 = vpack.c.b16 %v1727, %v1726
  %v1741 = vpack.c.b16 %v1729, %v1728
  %v1742 = vpack.c.b16 %v1731, %v1730
  %v1743 = vpack.c.b16 %v1733, %v1732
  %v1744 = vpack.c.b16 %v1735, %v1734
  %v1745 = vpack.c.b16 %v1737, %v1736
  %1754 = vmatprep.subr.bf16.mxu0 0
  %1755 = vmatpush1.bf16.msra.mxu0 %v322
  %1756 = vmatprep.subr.bf16.mxu0 0
  %1757 = vmatpush1.bf16.msra.mxu0 %v323
  %1758 = vmatprep.subr.bf16.mxu0 0
  %1759 = vmatpush1.bf16.msra.mxu0 %v324
  %1760 = vmatprep.subr.bf16.mxu0 0
  %1761 = vmatpush1.bf16.msra.mxu0 %v325
  %1762 = vmatprep.subr.bf16.mxu0 0
  %1763 = vmatpush1.bf16.msra.mxu0 %v326
  %1764 = vmatprep.subr.bf16.mxu0 0
  %1765 = vmatpush1.bf16.msra.mxu0 %v327
  %1766 = vmatprep.subr.bf16.mxu0 0
  %1767 = vmatpush1.bf16.msra.mxu0 %v328
  %1768 = vmatprep.subr.bf16.mxu0 0
  %1769 = vmatpush1.bf16.msra.mxu0 %v329
  %1770 = vmatprep.subr.bf16.mxu0 0
  %1771 = vmatpush1.bf16.msra.mxu0 0
  %1772 = vmatprep.subr.bf16.mxu0 0
  %1773 = vmatpush1.bf16.msra.mxu0 0
  %1774 = vmatprep.subr.bf16.mxu0 0
  %1775 = vmatpush1.bf16.msra.mxu0 0
  %1776 = vmatprep.subr.bf16.mxu0 0
  %1777 = vmatpush1.bf16.msra.mxu0 0
  %1778 = vmatprep.subr.bf16.mxu0 0
  %1779 = vmatpush1.bf16.msra.mxu0 0
  %1780 = vmatprep.subr.bf16.mxu0 0
  %1781 = vmatpush1.bf16.msra.mxu0 0
  %1782 = vmatprep.subr.bf16.mxu0 0
  %1783 = vmatpush1.bf16.msra.mxu0 0
  %1784 = vmatprep.subr.bf16.mxu0 0
  %1785 = vmatpush1.bf16.msra.mxu0 0
  %1786 = vmatprep.mubr.bf16.mxu0 0
  %1787 = vmatmul.mubr.bf16.gmra.mrb[0].mxu0 %v1738
  %v1788 = vpop.f32.mrb[0].mxu0
  %v1789 = vadd.f32 0.0, %v1788
  %v1790 = vpop.f32.mrb[0].mxu0
  %v1791 = vpop.f32.mrb[0].mxu0
  %v1792 = vadd.f32 0.0, %v1791
  %v1793 = vpop.f32.mrb[0].mxu0
  %1794 = vmatprep.mubr.bf16.mxu0 0
  %1795 = vmatmul.mubr.bf16.gmra.mrb[0].mxu0 %v1739
  %v1796 = vpop.f32.mrb[0].mxu0
  %v1797 = vadd.f32 0.0, %v1796
  %v1798 = vpop.f32.mrb[0].mxu0
  %v1799 = vpop.f32.mrb[0].mxu0
  %v1800 = vadd.f32 0.0, %v1799
  %v1801 = vpop.f32.mrb[0].mxu0
  %1802 = vmatprep.mubr.bf16.mxu0 0
  %1803 = vmatmul.mubr.bf16.gmra.mrb[0].mxu0 %v1740
  %v1804 = vpop.f32.mrb[0].mxu0
  %v1805 = vadd.f32 0.0, %v1804
  %v1806 = vpop.f32.mrb[0].mxu0
  %v1807 = vpop.f32.mrb[0].mxu0
  %v1808 = vadd.f32 0.0, %v1807
  %v1809 = vpop.f32.mrb[0].mxu0
  %1810 = vmatprep.mubr.bf16.mxu0 0
  %1811 = vmatmul.mubr.bf16.gmra.mrb[0].mxu0 %v1741
  %v1812 = vpop.f32.mrb[0].mxu0
  %v1813 = vadd.f32 0.0, %v1812
  %v1814 = vpop.f32.mrb[0].mxu0
  %v1815 = vpop.f32.mrb[0].mxu0
  %v1816 = vadd.f32 0.0, %v1815
  %v1817 = vpop.f32.mrb[0].mxu0
  %1818 = vmatprep.mubr.bf16.mxu0 0
  %1819 = vmatmul.mubr.bf16.gmra.mrb[0].mxu0 %v1742
  %v1820 = vpop.f32.mrb[0].mxu0
  %v1821 = vadd.f32 0.0, %v1820
  %v1822 = vpop.f32.mrb[0].mxu0
  %v1823 = vpop.f32.mrb[0].mxu0
  %v1824 = vadd.f32 0.0, %v1823
  %v1825 = vpop.f32.mrb[0].mxu0
  %1826 = vmatprep.mubr.bf16.mxu0 0
  %1827 = vmatmul.mubr.bf16.gmra.mrb[0].mxu0 %v1743
  %v1828 = vpop.f32.mrb[0].mxu0
  %v1829 = vadd.f32 0.0, %v1828
  %v1830 = vpop.f32.mrb[0].mxu0
  %v1831 = vpop.f32.mrb[0].mxu0
  %v1832 = vadd.f32 0.0, %v1831
  %v1833 = vpop.f32.mrb[0].mxu0
  %1834 = vmatprep.mubr.bf16.mxu0 0
  %1835 = vmatmul.mubr.bf16.gmra.mrb[0].mxu0 %v1744
  %v1836 = vpop.f32.mrb[0].mxu0
  %v1837 = vadd.f32 0.0, %v1836
  %v1838 = vpop.f32.mrb[0].mxu0
  %v1839 = vpop.f32.mrb[0].mxu0
  %v1840 = vadd.f32 0.0, %v1839
  %v1841 = vpop.f32.mrb[0].mxu0
  %1842 = vmatprep.mubr.bf16.mxu0 0
  %1843 = vmatmul.mubr.bf16.gmra.mrb[0].mxu0 %v1745
  %v1844 = vpop.f32.mrb[0].mxu0
  %v1845 = vadd.f32 0.0, %v1844
  %v1846 = vpop.f32.mrb[0].mxu0
  %v1847 = vpop.f32.mrb[0].mxu0
  %v1848 = vadd.f32 0.0, %v1847
  %v1849 = vpop.f32.mrb[0].mxu0
  %1850 = vdwg.mxu0
  %v1851 = vpack.c.bf16 %v1792, %v1789
  %v1852 = vpack.c.bf16 %v1800, %v1797
  %v1853 = vpack.c.bf16 %v1808, %v1805
  %v1854 = vpack.c.bf16 %v1816, %v1813
  %v1855 = vpack.c.bf16 %v1824, %v1821
  %v1856 = vpack.c.bf16 %v1832, %v1829
  %v1857 = vpack.c.bf16 %v1840, %v1837
  %v1858 = vpack.c.bf16 %v1848, %v1845
  %v1859 = vld [vmem:[%s3] sm:$0xf]
  %v1860 = vld [vmem:[%s3 + $0x4] sm:$0xf]
  %v1861 = vld [vmem:[%s3 + $0x8] sm:$0xf]
  %v1862 = vld [vmem:[%s3 + $0xc] sm:$0xf]
  %v1863 = vld [vmem:[%s3 + $0x10] sm:$0xf]
  %v1864 = vld [vmem:[%s3 + $0x14] sm:$0xf]
  %v1865 = vld [vmem:[%s3 + $0x18] sm:$0xf]
  %v1866 = vld [vmem:[%s3 + $0x1c] sm:$0xf]
  %v1867 = vld [vmem:[%s3 + $0x20] sm:$0xf]
  %v1868 = vld [vmem:[%s3 + $0x24] sm:$0xf]
  %v1869 = vld [vmem:[%s3 + $0x28] sm:$0xf]
  %v1870 = vld [vmem:[%s3 + $0x2c] sm:$0xf]
  %v1871 = vld [vmem:[%s3 + $0x30] sm:$0xf]
  %v1872 = vld [vmem:[%s3 + $0x34] sm:$0xf]
  %v1873 = vld [vmem:[%s3 + $0x38] sm:$0xf]
  %v1874 = vld [vmem:[%s3 + $0x3c] sm:$0xf]
  %v1875 = vld [vmem:[%s3 + $0x40] sm:$0xf]
  %v1876 = vld [vmem:[%s3 + $0x44] sm:$0xf]
  %v1877 = vld [vmem:[%s3 + $0x48] sm:$0xf]
  %v1878 = vld [vmem:[%s3 + $0x4c] sm:$0xf]
  %v1879 = vld [vmem:[%s3 + $0x50] sm:$0xf]
  %v1880 = vld [vmem:[%s3 + $0x54] sm:$0xf]
  %v1881 = vld [vmem:[%s3 + $0x58] sm:$0xf]
  %v1882 = vld [vmem:[%s3 + $0x5c] sm:$0xf]
  %v1883 = vld [vmem:[%s3 + $0x60] sm:$0xf]
  %v1884 = vld [vmem:[%s3 + $0x64] sm:$0xf]
  %v1885 = vld [vmem:[%s3 + $0x68] sm:$0xf]
  %v1886 = vld [vmem:[%s3 + $0x6c] sm:$0xf]
  %v1887 = vld [vmem:[%s3 + $0x70] sm:$0xf]
  %v1888 = vld [vmem:[%s3 + $0x74] sm:$0xf]
  %v1889 = vld [vmem:[%s3 + $0x78] sm:$0xf]
  %v1890 = vld [vmem:[%s3 + $0x7c] sm:$0xf]
  %v1891 = vld [vmem:[%s3 + $0x80] sm:$0xf]
  %v1892 = vld [vmem:[%s3 + $0x84] sm:$0xf]
  %v1893 = vld [vmem:[%s3 + $0x88] sm:$0xf]
  %v1894 = vld [vmem:[%s3 + $0x8c] sm:$0xf]
  %v1895 = vld [vmem:[%s3 + $0x90] sm:$0xf]
  %v1896 = vld [vmem:[%s3 + $0x94] sm:$0xf]
  %v1897 = vld [vmem:[%s3 + $0x98] sm:$0xf]
  %v1898 = vld [vmem:[%s3 + $0x9c] sm:$0xf]
  %v1899 = vld [vmem:[%s3 + $0xa0] sm:$0xf]
  %v1900 = vld [vmem:[%s3 + $0xa4] sm:$0xf]
  %v1901 = vld [vmem:[%s3 + $0xa8] sm:$0xf]
  %v1902 = vld [vmem:[%s3 + $0xac] sm:$0xf]
  %v1903 = vld [vmem:[%s3 + $0xb0] sm:$0xf]
  %v1904 = vld [vmem:[%s3 + $0xb4] sm:$0xf]
  %v1905 = vld [vmem:[%s3 + $0xb8] sm:$0xf]
  %v1906 = vld [vmem:[%s3 + $0xbc] sm:$0xf]
  %v1907 = vld [vmem:[%s3 + $0xc0] sm:$0xf]
  %v1908 = vld [vmem:[%s3 + $0xc4] sm:$0xf]
  %v1909 = vld [vmem:[%s3 + $0xc8] sm:$0xf]
  %v1910 = vld [vmem:[%s3 + $0xcc] sm:$0xf]
  %v1911 = vld [vmem:[%s3 + $0xd0] sm:$0xf]
  %v1912 = vld [vmem:[%s3 + $0xd4] sm:$0xf]
  %v1913 = vld [vmem:[%s3 + $0xd8] sm:$0xf]
  %v1914 = vld [vmem:[%s3 + $0xdc] sm:$0xf]
  %v1915 = vld [vmem:[%s3 + $0xe0] sm:$0xf]
  %v1916 = vld [vmem:[%s3 + $0xe4] sm:$0xf]
  %v1917 = vld [vmem:[%s3 + $0xe8] sm:$0xf]
  %v1918 = vld [vmem:[%s3 + $0xec] sm:$0xf]
  %v1919 = vld [vmem:[%s3 + $0xf0] sm:$0xf]
  %v1920 = vld [vmem:[%s3 + $0xf4] sm:$0xf]
  %v1921 = vld [vmem:[%s3 + $0xf8] sm:$0xf]
  %v1922 = vld [vmem:[%s3 + $0xfc] sm:$0xf]
  %v1923 = vld [vmem:[%s3 + $0x100] sm:$0xf]
  %v1924 = vld [vmem:[%s3 + $0x104] sm:$0xf]
  %v1925 = vld [vmem:[%s3 + $0x108] sm:$0xf]
  %v1926 = vld [vmem:[%s3 + $0x10c] sm:$0xf]
  %v1927 = vld [vmem:[%s3 + $0x110] sm:$0xf]
  %v1928 = vld [vmem:[%s3 + $0x114] sm:$0xf]
  %v1929 = vld [vmem:[%s3 + $0x118] sm:$0xf]
  %v1930 = vld [vmem:[%s3 + $0x11c] sm:$0xf]
  %v1931 = vld [vmem:[%s3 + $0x120] sm:$0xf]
  %v1932 = vld [vmem:[%s3 + $0x124] sm:$0xf]
  %v1933 = vld [vmem:[%s3 + $0x128] sm:$0xf]
  %v1934 = vld [vmem:[%s3 + $0x12c] sm:$0xf]
  %v1935 = vld [vmem:[%s3 + $0x130] sm:$0xf]
  %v1936 = vld [vmem:[%s3 + $0x134] sm:$0xf]
  %v1937 = vld [vmem:[%s3 + $0x138] sm:$0xf]
  %v1938 = vld [vmem:[%s3 + $0x13c] sm:$0xf]
  %v1939 = vld [vmem:[%s3 + $0x140] sm:$0xf]
  %v1940 = vld [vmem:[%s3 + $0x144] sm:$0xf]
  %v1941 = vld [vmem:[%s3 + $0x148] sm:$0xf]
  %v1942 = vld [vmem:[%s3 + $0x14c] sm:$0xf]
  %v1943 = vld [vmem:[%s3 + $0x150] sm:$0xf]
  %v1944 = vld [vmem:[%s3 + $0x154] sm:$0xf]
  %v1945 = vld [vmem:[%s3 + $0x158] sm:$0xf]
  %v1946 = vld [vmem:[%s3 + $0x15c] sm:$0xf]
  %v1947 = vld [vmem:[%s3 + $0x160] sm:$0xf]
  %v1948 = vld [vmem:[%s3 + $0x164] sm:$0xf]
  %v1949 = vld [vmem:[%s3 + $0x168] sm:$0xf]
  %v1950 = vld [vmem:[%s3 + $0x16c] sm:$0xf]
  %v1951 = vld [vmem:[%s3 + $0x170] sm:$0xf]
  %v1952 = vld [vmem:[%s3 + $0x174] sm:$0xf]
  %v1953 = vld [vmem:[%s3 + $0x178] sm:$0xf]
  %v1954 = vld [vmem:[%s3 + $0x17c] sm:$0xf]
  %v1955 = vld [vmem:[%s3 + $0x180] sm:$0xf]
  %v1956 = vld [vmem:[%s3 + $0x184] sm:$0xf]
  %v1957 = vld [vmem:[%s3 + $0x188] sm:$0xf]
  %v1958 = vld [vmem:[%s3 + $0x18c] sm:$0xf]
  %v1959 = vld [vmem:[%s3 + $0x190] sm:$0xf]
  %v1960 = vld [vmem:[%s3 + $0x194] sm:$0xf]
  %v1961 = vld [vmem:[%s3 + $0x198] sm:$0xf]
  %v1962 = vld [vmem:[%s3 + $0x19c] sm:$0xf]
  %v1963 = vld [vmem:[%s3 + $0x1a0] sm:$0xf]
  %v1964 = vld [vmem:[%s3 + $0x1a4] sm:$0xf]
  %v1965 = vld [vmem:[%s3 + $0x1a8] sm:$0xf]
  %v1966 = vld [vmem:[%s3 + $0x1ac] sm:$0xf]
  %v1967 = vld [vmem:[%s3 + $0x1b0] sm:$0xf]
  %v1968 = vld [vmem:[%s3 + $0x1b4] sm:$0xf]
  %v1969 = vld [vmem:[%s3 + $0x1b8] sm:$0xf]
  %v1970 = vld [vmem:[%s3 + $0x1bc] sm:$0xf]
  %v1971 = vld [vmem:[%s3 + $0x1c0] sm:$0xf]
  %v1972 = vld [vmem:[%s3 + $0x1c4] sm:$0xf]
  %v1973 = vld [vmem:[%s3 + $0x1c8] sm:$0xf]
  %v1974 = vld [vmem:[%s3 + $0x1cc] sm:$0xf]
  %v1975 = vld [vmem:[%s3 + $0x1d0] sm:$0xf]
  %v1976 = vld [vmem:[%s3 + $0x1d4] sm:$0xf]
  %v1977 = vld [vmem:[%s3 + $0x1d8] sm:$0xf]
  %v1978 = vld [vmem:[%s3 + $0x1dc] sm:$0xf]
  %v1979 = vld [vmem:[%s3 + $0x1e0] sm:$0xf]
  %v1980 = vld [vmem:[%s3 + $0x1e4] sm:$0xf]
  %v1981 = vld [vmem:[%s3 + $0x1e8] sm:$0xf]
  %v1982 = vld [vmem:[%s3 + $0x1ec] sm:$0xf]
  %v1983 = vld [vmem:[%s3 + $0x1f0] sm:$0xf]
  %v1984 = vld [vmem:[%s3 + $0x1f4] sm:$0xf]
  %v1985 = vld [vmem:[%s3 + $0x1f8] sm:$0xf]
  %v1986 = vld [vmem:[%s3 + $0x1fc] sm:$0xf]
  %v1987 = vld [vmem:[%s3 + $0x200] sm:$0xf]
  %v1988 = vld [vmem:[%s3 + $0x204] sm:$0xf]
  %v1989 = vld [vmem:[%s3 + $0x208] sm:$0xf]
  %v1990 = vld [vmem:[%s3 + $0x20c] sm:$0xf]
  %v1991 = vld [vmem:[%s3 + $0x210] sm:$0xf]
  %v1992 = vld [vmem:[%s3 + $0x214] sm:$0xf]
  %v1993 = vld [vmem:[%s3 + $0x218] sm:$0xf]
  %v1994 = vld [vmem:[%s3 + $0x21c] sm:$0xf]
  %v1995 = vld [vmem:[%s3 + $0x220] sm:$0xf]
  %v1996 = vld [vmem:[%s3 + $0x224] sm:$0xf]
  %v1997 = vld [vmem:[%s3 + $0x228] sm:$0xf]
  %v1998 = vld [vmem:[%s3 + $0x22c] sm:$0xf]
  %v1999 = vld [vmem:[%s3 + $0x230] sm:$0xf]
  %v2000 = vld [vmem:[%s3 + $0x234] sm:$0xf]
  %v2001 = vld [vmem:[%s3 + $0x238] sm:$0xf]
  %v2002 = vld [vmem:[%s3 + $0x23c] sm:$0xf]
  %v2147 = vunpack.c.l.b16 %v1859
  %v2148 = vunpack.c.l.b16 %v1860
  %v2149 = vunpack.c.l.b16 %v1861
  %v2150 = vunpack.c.l.b16 %v1862
  %v2151 = vunpack.c.l.b16 %v1863
  %v2152 = vunpack.c.l.b16 %v1864
  %v2153 = vunpack.c.l.b16 %v1865
  %v2154 = vunpack.c.l.b16 %v1866
  %v2155 = vunpack.c.l.b16 %v1867
  %v2156 = vunpack.c.l.b16 %v1868
  %v2157 = vunpack.c.l.b16 %v1869
  %v2158 = vunpack.c.l.b16 %v1870
  %v2159 = vunpack.c.l.b16 %v1871
  %v2160 = vunpack.c.l.b16 %v1872
  %v2161 = vunpack.c.l.b16 %v1873
  %v2162 = vunpack.c.l.b16 %v1874
  %v2163 = vunpack.c.l.b16 %v1875
  %v2164 = vunpack.c.l.b16 %v1876
  %v2165 = vunpack.c.l.b16 %v1877
  %v2166 = vunpack.c.l.b16 %v1878
  %v2167 = vunpack.c.l.b16 %v1879
  %v2168 = vunpack.c.l.b16 %v1880
  %v2169 = vunpack.c.l.b16 %v1881
  %v2170 = vunpack.c.l.b16 %v1882
  %v2171 = vunpack.c.l.b16 %v1883
  %v2172 = vunpack.c.l.b16 %v1884
  %v2173 = vunpack.c.l.b16 %v1885
  %v2174 = vunpack.c.l.b16 %v1886
  %v2175 = vunpack.c.l.b16 %v1887
  %v2176 = vunpack.c.l.b16 %v1888
  %v2177 = vunpack.c.l.b16 %v1889
  %v2178 = vunpack.c.l.b16 %v1890
  %v2179 = vunpack.c.l.b16 %v1891
  %v2180 = vunpack.c.l.b16 %v1892
  %v2181 = vunpack.c.l.b16 %v1893
  %v2182 = vunpack.c.l.b16 %v1894
  %v2183 = vunpack.c.l.b16 %v1895
  %v2184 = vunpack.c.l.b16 %v1896
  %v2185 = vunpack.c.l.b16 %v1897
  %v2186 = vunpack.c.l.b16 %v1898
  %v2187 = vunpack.c.l.b16 %v1899
  %v2188 = vunpack.c.l.b16 %v1900
  %v2189 = vunpack.c.l.b16 %v1901
  %v2190 = vunpack.c.l.b16 %v1902
  %v2191 = vunpack.c.l.b16 %v1903
  %v2192 = vunpack.c.l.b16 %v1904
  %v2193 = vunpack.c.l.b16 %v1905
  %v2194 = vunpack.c.l.b16 %v1906
  %v2195 = vunpack.c.l.b16 %v1907
  %v2196 = vunpack.c.l.b16 %v1908
  %v2197 = vunpack.c.l.b16 %v1909
  %v2198 = vunpack.c.l.b16 %v1910
  %v2199 = vunpack.c.l.b16 %v1911
  %v2200 = vunpack.c.l.b16 %v1912
  %v2201 = vunpack.c.l.b16 %v1913
  %v2202 = vunpack.c.l.b16 %v1914
  %v2203 = vunpack.c.l.b16 %v1915
  %v2204 = vunpack.c.l.b16 %v1916
  %v2205 = vunpack.c.l.b16 %v1917
  %v2206 = vunpack.c.l.b16 %v1918
  %v2207 = vunpack.c.l.b16 %v1919
  %v2208 = vunpack.c.l.b16 %v1920
  %v2209 = vunpack.c.l.b16 %v1921
  %v2210 = vunpack.c.l.b16 %v1922
  %v2211 = vunpack.c.l.b16 %v1923
  %v2212 = vunpack.c.l.b16 %v1924
  %v2213 = vunpack.c.l.b16 %v1925
  %v2214 = vunpack.c.l.b16 %v1926
  %v2215 = vunpack.c.l.b16 %v1927
  %v2216 = vunpack.c.l.b16 %v1928
  %v2217 = vunpack.c.l.b16 %v1929
  %v2218 = vunpack.c.l.b16 %v1930
  %v2219 = vunpack.c.l.b16 %v1931
  %v2220 = vunpack.c.l.b16 %v1932
  %v2221 = vunpack.c.l.b16 %v1933
  %v2222 = vunpack.c.l.b16 %v1934
  %v2223 = vunpack.c.l.b16 %v1935
  %v2224 = vunpack.c.l.b16 %v1936
  %v2225 = vunpack.c.l.b16 %v1937
  %v2226 = vunpack.c.l.b16 %v1938
  %v2227 = vunpack.c.l.b16 %v1939
  %v2228 = vunpack.c.l.b16 %v1940
  %v2229 = vunpack.c.l.b16 %v1941
  %v2230 = vunpack.c.l.b16 %v1942
  %v2231 = vunpack.c.l.b16 %v1943
  %v2232 = vunpack.c.l.b16 %v1944
  %v2233 = vunpack.c.l.b16 %v1945
  %v2234 = vunpack.c.l.b16 %v1946
  %v2235 = vunpack.c.l.b16 %v1947
  %v2236 = vunpack.c.l.b16 %v1948
  %v2237 = vunpack.c.l.b16 %v1949
  %v2238 = vunpack.c.l.b16 %v1950
  %v2239 = vunpack.c.l.b16 %v1951
  %v2240 = vunpack.c.l.b16 %v1952
  %v2241 = vunpack.c.l.b16 %v1953
  %v2242 = vunpack.c.l.b16 %v1954
  %v2243 = vunpack.c.l.b16 %v1955
  %v2244 = vunpack.c.l.b16 %v1956
  %v2245 = vunpack.c.l.b16 %v1957
  %v2246 = vunpack.c.l.b16 %v1958
  %v2247 = vunpack.c.l.b16 %v1959
  %v2248 = vunpack.c.l.b16 %v1960
  %v2249 = vunpack.c.l.b16 %v1961
  %v2250 = vunpack.c.l.b16 %v1962
  %v2251 = vunpack.c.l.b16 %v1963
  %v2252 = vunpack.c.l.b16 %v1964
  %v2253 = vunpack.c.l.b16 %v1965
  %v2254 = vunpack.c.l.b16 %v1966
  %v2255 = vunpack.c.l.b16 %v1967
  %v2256 = vunpack.c.l.b16 %v1968
  %v2257 = vunpack.c.l.b16 %v1969
  %v2258 = vunpack.c.l.b16 %v1970
  %v2259 = vunpack.c.l.b16 %v1971
  %v2260 = vunpack.c.l.b16 %v1972
  %v2261 = vunpack.c.l.b16 %v1973
  %v2262 = vunpack.c.l.b16 %v1974
  %v2263 = vunpack.c.l.b16 %v1975
  %v2264 = vunpack.c.l.b16 %v1976
  %v2265 = vunpack.c.l.b16 %v1977
  %v2266 = vunpack.c.l.b16 %v1978
  %v2267 = vunpack.c.l.b16 %v1979
  %v2268 = vunpack.c.l.b16 %v1980
  %v2269 = vunpack.c.l.b16 %v1981
  %v2270 = vunpack.c.l.b16 %v1982
  %v2271 = vunpack.c.l.b16 %v1983
  %v2272 = vunpack.c.l.b16 %v1984
  %v2273 = vunpack.c.l.b16 %v1985
  %v2274 = vunpack.c.l.b16 %v1986
  %v2275 = vunpack.c.l.b16 %v1987
  %v2276 = vunpack.c.l.b16 %v1988
  %v2277 = vunpack.c.l.b16 %v1989
  %v2278 = vunpack.c.l.b16 %v1990
  %v2279 = vunpack.c.l.b16 %v1991
  %v2280 = vunpack.c.l.b16 %v1992
  %v2281 = vunpack.c.l.b16 %v1993
  %v2282 = vunpack.c.l.b16 %v1994
  %v2283 = vunpack.c.l.b16 %v1995
  %v2284 = vunpack.c.l.b16 %v1996
  %v2285 = vunpack.c.l.b16 %v1997
  %v2286 = vunpack.c.l.b16 %v1998
  %v2287 = vunpack.c.l.b16 %v1999
  %v2288 = vunpack.c.l.b16 %v2000
  %v2289 = vunpack.c.l.b16 %v2001
  %v2290 = vunpack.c.l.b16 %v2002
  %v2291 = vpack.c.b16 %v2148, %v2147
  %v2292 = vpack.c.b16 %v2150, %v2149
  %v2293 = vpack.c.b16 %v2152, %v2151
  %v2294 = vpack.c.b16 %v2154, %v2153
  %v2295 = vpack.c.b16 %v2156, %v2155
  %v2296 = vpack.c.b16 %v2158, %v2157
  %v2297 = vpack.c.b16 %v2160, %v2159
  %v2298 = vpack.c.b16 %v2162, %v2161
  %v2299 = vpack.c.b16 %v2164, %v2163
  %v2300 = vpack.c.b16 %v2166, %v2165
  %v2301 = vpack.c.b16 %v2168, %v2167
  %v2302 = vpack.c.b16 %v2170, %v2169
  %v2303 = vpack.c.b16 %v2172, %v2171
  %v2304 = vpack.c.b16 %v2174, %v2173
  %v2305 = vpack.c.b16 %v2176, %v2175
  %v2306 = vpack.c.b16 %v2178, %v2177
  %v2307 = vpack.c.b16 %v2180, %v2179
  %v2308 = vpack.c.b16 %v2182, %v2181
  %v2309 = vpack.c.b16 %v2184, %v2183
  %v2310 = vpack.c.b16 %v2186, %v2185
  %v2311 = vpack.c.b16 %v2188, %v2187
  %v2312 = vpack.c.b16 %v2190, %v2189
  %v2313 = vpack.c.b16 %v2192, %v2191
  %v2314 = vpack.c.b16 %v2194, %v2193
  %v2315 = vpack.c.b16 %v2196, %v2195
  %v2316 = vpack.c.b16 %v2198, %v2197
  %v2317 = vpack.c.b16 %v2200, %v2199
  %v2318 = vpack.c.b16 %v2202, %v2201
  %v2319 = vpack.c.b16 %v2204, %v2203
  %v2320 = vpack.c.b16 %v2206, %v2205
  %v2321 = vpack.c.b16 %v2208, %v2207
  %v2322 = vpack.c.b16 %v2210, %v2209
  %v2323 = vpack.c.b16 %v2212, %v2211
  %v2324 = vpack.c.b16 %v2214, %v2213
  %v2325 = vpack.c.b16 %v2216, %v2215
  %v2326 = vpack.c.b16 %v2218, %v2217
  %v2327 = vpack.c.b16 %v2220, %v2219
  %v2328 = vpack.c.b16 %v2222, %v2221
  %v2329 = vpack.c.b16 %v2224, %v2223
  %v2330 = vpack.c.b16 %v2226, %v2225
  %v2331 = vpack.c.b16 %v2228, %v2227
  %v2332 = vpack.c.b16 %v2230, %v2229
  %v2333 = vpack.c.b16 %v2232, %v2231
  %v2334 = vpack.c.b16 %v2234, %v2233
  %v2335 = vpack.c.b16 %v2236, %v2235
  %v2336 = vpack.c.b16 %v2238, %v2237
  %v2337 = vpack.c.b16 %v2240, %v2239
  %v2338 = vpack.c.b16 %v2242, %v2241
  %v2339 = vpack.c.b16 %v2244, %v2243
  %v2340 = vpack.c.b16 %v2246, %v2245
  %v2341 = vpack.c.b16 %v2248, %v2247
  %v2342 = vpack.c.b16 %v2250, %v2249
  %v2343 = vpack.c.b16 %v2252, %v2251
  %v2344 = vpack.c.b16 %v2254, %v2253
  %v2345 = vpack.c.b16 %v2256, %v2255
  %v2346 = vpack.c.b16 %v2258, %v2257
  %v2347 = vpack.c.b16 %v2260, %v2259
  %v2348 = vpack.c.b16 %v2262, %v2261
  %v2349 = vpack.c.b16 %v2264, %v2263
  %v2350 = vpack.c.b16 %v2266, %v2265
  %v2351 = vpack.c.b16 %v2268, %v2267
  %v2352 = vpack.c.b16 %v2270, %v2269
  %v2353 = vpack.c.b16 %v2272, %v2271
  %v2354 = vpack.c.b16 %v2274, %v2273
  %v2355 = vpack.c.b16 %v2276, %v2275
  %v2356 = vpack.c.b16 %v2278, %v2277
  %v2357 = vpack.c.b16 %v2280, %v2279
  %v2358 = vpack.c.b16 %v2282, %v2281
  %v2359 = vpack.c.b16 %v2284, %v2283
  %v2360 = vpack.c.b16 %v2286, %v2285
  %v2361 = vpack.c.b16 %v2288, %v2287
  %v2362 = vpack.c.b16 %v2290, %v2289
  %2435 = vmatprep.subr.bf16.mxu0 0
  %2436 = vmatpush1.bf16.msra.mxu0 %v2291
  %2437 = vmatprep.subr.bf16.mxu0 0
  %2438 = vmatpush1.bf16.msra.mxu0 %v2292
  %2439 = vmatprep.subr.bf16.mxu0 0
  %2440 = vmatpush1.bf16.msra.mxu0 %v2293
  %2441 = vmatprep.subr.bf16.mxu0 0
  %2442 = vmatpush1.bf16.msra.mxu0 %v2294
  %2443 = vmatprep.subr.bf16.mxu0 0
  %2444 = vmatpush1.bf16.msra.mxu0 %v2295
  %2445 = vmatprep.subr.bf16.mxu0 0
  %2446 = vmatpush1.bf16.msra.mxu0 %v2296
  %2447 = vmatprep.subr.bf16.mxu0 0
  %2448 = vmatpush1.bf16.msra.mxu0 %v2297
  %2449 = vmatprep.subr.bf16.mxu0 0
  %2450 = vmatpush1.bf16.msra.mxu0 %v2298
  %2451 = vmatprep.subr.bf16.mxu0 0
  %2452 = vmatpush1.bf16.msra.mxu0 %v2299
  %2453 = vmatprep.subr.bf16.mxu0 0
  %2454 = vmatpush1.bf16.msra.mxu0 %v2300
  %2455 = vmatprep.subr.bf16.mxu0 0
  %2456 = vmatpush1.bf16.msra.mxu0 %v2301
  %2457 = vmatprep.subr.bf16.mxu0 0
  %2458 = vmatpush1.bf16.msra.mxu0 %v2302
  %2459 = vmatprep.subr.bf16.mxu0 0
  %2460 = vmatpush1.bf16.msra.mxu0 %v2303
  %2461 = vmatprep.subr.bf16.mxu0 0
  %2462 = vmatpush1.bf16.msra.mxu0 %v2304
  %2463 = vmatprep.subr.bf16.mxu0 0
  %2464 = vmatpush1.bf16.msra.mxu0 %v2305
  %2465 = vmatprep.subr.bf16.mxu0 0
  %2466 = vmatpush1.bf16.msra.mxu0 %v2306
  %2467 = vmatprep.mubr.bf16.mxu0 %v661
  %2468 = vmatmul.mubr.bf16.gmra.mrb[0].mxu0 %v491
  %v2469 = vpop.f32.mrb[0].mxu0
  %v2470 = vadd.f32 0.0, %v2469
  %v2471 = vpop.f32.mrb[0].mxu0
  %v2472 = vpop.f32.mrb[0].mxu0
  %v2473 = vadd.f32 0.0, %v2472
  %v2474 = vpop.f32.mrb[0].mxu0
  %2475 = vmatprep.mubr.bf16.mxu0 %v662
  %2476 = vmatmul.mubr.bf16.gmra.mrb[0].mxu0 %v492
  %v2477 = vpop.f32.mrb[0].mxu0
  %v2478 = vadd.f32 0.0, %v2477
  %v2479 = vpop.f32.mrb[0].mxu0
  %v2480 = vpop.f32.mrb[0].mxu0
  %v2481 = vadd.f32 0.0, %v2480
  %v2482 = vpop.f32.mrb[0].mxu0
  %2483 = vmatprep.mubr.bf16.mxu0 %v663
  %2484 = vmatmul.mubr.bf16.gmra.mrb[0].mxu0 %v493
  %v2485 = vpop.f32.mrb[0].mxu0
  %v2486 = vadd.f32 0.0, %v2485
  %v2487 = vpop.f32.mrb[0].mxu0
  %v2488 = vpop.f32.mrb[0].mxu0
  %v2489 = vadd.f32 0.0, %v2488
  %v2490 = vpop.f32.mrb[0].mxu0
  %2491 = vmatprep.mubr.bf16.mxu0 %v664
  %2492 = vmatmul.mubr.bf16.gmra.mrb[0].mxu0 %v494
  %v2493 = vpop.f32.mrb[0].mxu0
  %v2494 = vadd.f32 0.0, %v2493
  %v2495 = vpop.f32.mrb[0].mxu0
  %v2496 = vpop.f32.mrb[0].mxu0
  %v2497 = vadd.f32 0.0, %v2496
  %v2498 = vpop.f32.mrb[0].mxu0
  %2499 = vmatprep.mubr.bf16.mxu0 %v665
  %2500 = vmatmul.mubr.bf16.gmra.mrb[0].mxu0 %v495
  %v2501 = vpop.f32.mrb[0].mxu0
  %v2502 = vadd.f32 0.0, %v2501
  %v2503 = vpop.f32.mrb[0].mxu0
  %v2504 = vpop.f32.mrb[0].mxu0
  %v2505 = vadd.f32 0.0, %v2504
  %v2506 = vpop.f32.mrb[0].mxu0
  %2507 = vmatprep.mubr.bf16.mxu0 %v666
  %2508 = vmatmul.mubr.bf16.gmra.mrb[0].mxu0 %v496
  %v2509 = vpop.f32.mrb[0].mxu0
  %v2510 = vadd.f32 0.0, %v2509
  %v2511 = vpop.f32.mrb[0].mxu0
  %v2512 = vpop.f32.mrb[0].mxu0
  %v2513 = vadd.f32 0.0, %v2512
  %v2514 = vpop.f32.mrb[0].mxu0
  %2515 = vmatprep.mubr.bf16.mxu0 %v667
  %2516 = vmatmul.mubr.bf16.gmra.mrb[0].mxu0 %v497
  %v2517 = vpop.f32.mrb[0].mxu0
  %v2518 = vadd.f32 0.0, %v2517
  %v2519 = vpop.f32.mrb[0].mxu0
  %v2520 = vpop.f32.mrb[0].mxu0
  %v2521 = vadd.f32 0.0, %v2520
  %v2522 = vpop.f32.mrb[0].mxu0
  %2523 = vmatprep.mubr.bf16.mxu0 %v668
  %2524 = vmatmul.mubr.bf16.gmra.mrb[0].mxu0 %v498
  %v2525 = vpop.f32.mrb[0].mxu0
  %v2526 = vadd.f32 0.0, %v2525
  %v2527 = vpop.f32.mrb[0].mxu0
  %v2528 = vpop.f32.mrb[0].mxu0
  %v2529 = vadd.f32 0.0, %v2528
  %v2530 = vpop.f32.mrb[0].mxu0
  %2531 = vdwg.mxu0
  %2532 = vmatprep.subr.bf16.mxu0 0
  %2533 = vmatpush1.bf16.msra.mxu0 %v2307
  %2534 = vmatprep.subr.bf16.mxu0 0
  %2535 = vmatpush1.bf16.msra.mxu0 %v2308
  %2536 = vmatprep.subr.bf16.mxu0 0
  %2537 = vmatpush1.bf16.msra.mxu0 %v2309
  %2538 = vmatprep.subr.bf16.mxu0 0
  %2539 = vmatpush1.bf16.msra.mxu0 %v2310
  %2540 = vmatprep.subr.bf16.mxu0 0
  %2541 = vmatpush1.bf16.msra.mxu0 %v2311
  %2542 = vmatprep.subr.bf16.mxu0 0
  %2543 = vmatpush1.bf16.msra.mxu0 %v2312
  %2544 = vmatprep.subr.bf16.mxu0 0
  %2545 = vmatpush1.bf16.msra.mxu0 %v2313
  %2546 = vmatprep.subr.bf16.mxu0 0
  %2547 = vmatpush1.bf16.msra.mxu0 %v2314
  %2548 = vmatprep.subr.bf16.mxu0 0
  %2549 = vmatpush1.bf16.msra.mxu0 %v2315
  %2550 = vmatprep.subr.bf16.mxu0 0
  %2551 = vmatpush1.bf16.msra.mxu0 %v2316
  %2552 = vmatprep.subr.bf16.mxu0 0
  %2553 = vmatpush1.bf16.msra.mxu0 %v2317
  %2554 = vmatprep.subr.bf16.mxu0 0
  %2555 = vmatpush1.bf16.msra.mxu0 %v2318
  %2556 = vmatprep.subr.bf16.mxu0 0
  %2557 = vmatpush1.bf16.msra.mxu0 %v2319
  %2558 = vmatprep.subr.bf16.mxu0 0
  %2559 = vmatpush1.bf16.msra.mxu0 %v2320
  %2560 = vmatprep.subr.bf16.mxu0 0
  %2561 = vmatpush1.bf16.msra.mxu0 %v2321
  %2562 = vmatprep.subr.bf16.mxu0 0
  %2563 = vmatpush1.bf16.msra.mxu0 %v2322
  %2564 = vmatprep.mubr.bf16.mxu0 %v1001
  %2565 = vmatmul.mubr.bf16.gmra.mrb[0].mxu0 %v831
  %v2566 = vpop.f32.mrb[0].mxu0
  %v2567 = vadd.f32 %v2470, %v2566
  %v2568 = vpop.f32.mrb[0].mxu0
  %v2569 = vpop.f32.mrb[0].mxu0
  %v2570 = vadd.f32 %v2473, %v2569
  %v2571 = vpop.f32.mrb[0].mxu0
  %2572 = vmatprep.mubr.bf16.mxu0 %v1002
  %2573 = vmatmul.mubr.bf16.gmra.mrb[0].mxu0 %v832
  %v2574 = vpop.f32.mrb[0].mxu0
  %v2575 = vadd.f32 %v2478, %v2574
  %v2576 = vpop.f32.mrb[0].mxu0
  %v2577 = vpop.f32.mrb[0].mxu0
  %v2578 = vadd.f32 %v2481, %v2577
  %v2579 = vpop.f32.mrb[0].mxu0
  %2580 = vmatprep.mubr.bf16.mxu0 %v1003
  %2581 = vmatmul.mubr.bf16.gmra.mrb[0].mxu0 %v833
  %v2582 = vpop.f32.mrb[0].mxu0
  %v2583 = vadd.f32 %v2486, %v2582
  %v2584 = vpop.f32.mrb[0].mxu0
  %v2585 = vpop.f32.mrb[0].mxu0
  %v2586 = vadd.f32 %v2489, %v2585
  %v2587 = vpop.f32.mrb[0].mxu0
  %2588 = vmatprep.mubr.bf16.mxu0 %v1004
  %2589 = vmatmul.mubr.bf16.gmra.mrb[0].mxu0 %v834
  %v2590 = vpop.f32.mrb[0].mxu0
  %v2591 = vadd.f32 %v2494, %v2590
  %v2592 = vpop.f32.mrb[0].mxu0
  %v2593 = vpop.f32.mrb[0].mxu0
  %v2594 = vadd.f32 %v2497, %v2593
  %v2595 = vpop.f32.mrb[0].mxu0
  %2596 = vmatprep.mubr.bf16.mxu0 %v1005
  %2597 = vmatmul.mubr.bf16.gmra.mrb[0].mxu0 %v835
  %v2598 = vpop.f32.mrb[0].mxu0
  %v2599 = vadd.f32 %v2502, %v2598
  %v2600 = vpop.f32.mrb[0].mxu0
  %v2601 = vpop.f32.mrb[0].mxu0
  %v2602 = vadd.f32 %v2505, %v2601
  %v2603 = vpop.f32.mrb[0].mxu0
  %2604 = vmatprep.mubr.bf16.mxu0 %v1006
  %2605 = vmatmul.mubr.bf16.gmra.mrb[0].mxu0 %v836
  %v2606 = vpop.f32.mrb[0].mxu0
  %v2607 = vadd.f32 %v2510, %v2606
  %v2608 = vpop.f32.mrb[0].mxu0
  %v2609 = vpop.f32.mrb[0].mxu0
  %v2610 = vadd.f32 %v2513, %v2609
  %v2611 = vpop.f32.mrb[0].mxu0
  %2612 = vmatprep.mubr.bf16.mxu0 %v1007
  %2613 = vmatmul.mubr.bf16.gmra.mrb[0].mxu0 %v837
  %v2614 = vpop.f32.mrb[0].mxu0
  %v2615 = vadd.f32 %v2518, %v2614
  %v2616 = vpop.f32.mrb[0].mxu0
  %v2617 = vpop.f32.mrb[0].mxu0
  %v2618 = vadd.f32 %v2521, %v2617
  %v2619 = vpop.f32.mrb[0].mxu0
  %2620 = vmatprep.mubr.bf16.mxu0 %v1008
  %2621 = vmatmul.mubr.bf16.gmra.mrb[0].mxu0 %v838
  %v2622 = vpop.f32.mrb[0].mxu0
  %v2623 = vadd.f32 %v2526, %v2622
  %v2624 = vpop.f32.mrb[0].mxu0
  %v2625 = vpop.f32.mrb[0].mxu0
  %v2626 = vadd.f32 %v2529, %v2625
  %v2627 = vpop.f32.mrb[0].mxu0
  %2628 = vdwg.mxu0
  %2629 = vmatprep.subr.bf16.mxu0 0
  %2630 = vmatpush1.bf16.msra.mxu0 %v2323
  %2631 = vmatprep.subr.bf16.mxu0 0
  %2632 = vmatpush1.bf16.msra.mxu0 %v2324
  %2633 = vmatprep.subr.bf16.mxu0 0
  %2634 = vmatpush1.bf16.msra.mxu0 %v2325
  %2635 = vmatprep.subr.bf16.mxu0 0
  %2636 = vmatpush1.bf16.msra.mxu0 %v2326
  %2637 = vmatprep.subr.bf16.mxu0 0
  %2638 = vmatpush1.bf16.msra.mxu0 %v2327
  %2639 = vmatprep.subr.bf16.mxu0 0
  %2640 = vmatpush1.bf16.msra.mxu0 %v2328
  %2641 = vmatprep.subr.bf16.mxu0 0
  %2642 = vmatpush1.bf16.msra.mxu0 %v2329
  %2643 = vmatprep.subr.bf16.mxu0 0
  %2644 = vmatpush1.bf16.msra.mxu0 %v2330
  %2645 = vmatprep.subr.bf16.mxu0 0
  %2646 = vmatpush1.bf16.msra.mxu0 %v2331
  %2647 = vmatprep.subr.bf16.mxu0 0
  %2648 = vmatpush1.bf16.msra.mxu0 %v2332
  %2649 = vmatprep.subr.bf16.mxu0 0
  %2650 = vmatpush1.bf16.msra.mxu0 %v2333
  %2651 = vmatprep.subr.bf16.mxu0 0
  %2652 = vmatpush1.bf16.msra.mxu0 %v2334
  %2653 = vmatprep.subr.bf16.mxu0 0
  %2654 = vmatpush1.bf16.msra.mxu0 %v2335
  %2655 = vmatprep.subr.bf16.mxu0 0
  %2656 = vmatpush1.bf16.msra.mxu0 %v2336
  %2657 = vmatprep.subr.bf16.mxu0 0
  %2658 = vmatpush1.bf16.msra.mxu0 %v2337
  %2659 = vmatprep.subr.bf16.mxu0 0
  %2660 = vmatpush1.bf16.msra.mxu0 %v2338
  %2661 = vmatprep.mubr.bf16.mxu0 %v1341
  %2662 = vmatmul.mubr.bf16.gmra.mrb[0].mxu0 %v1171
  %v2663 = vpop.f32.mrb[0].mxu0
  %v2664 = vadd.f32 %v2567, %v2663
  %v2665 = vpop.f32.mrb[0].mxu0
  %v2666 = vpop.f32.mrb[0].mxu0
  %v2667 = vadd.f32 %v2570, %v2666
  %v2668 = vpop.f32.mrb[0].mxu0
  %2669 = vmatprep.mubr.bf16.mxu0 %v1342
  %2670 = vmatmul.mubr.bf16.gmra.mrb[0].mxu0 %v1172
  %v2671 = vpop.f32.mrb[0].mxu0
  %v2672 = vadd.f32 %v2575, %v2671
  %v2673 = vpop.f32.mrb[0].mxu0
  %v2674 = vpop.f32.mrb[0].mxu0
  %v2675 = vadd.f32 %v2578, %v2674
  %v2676 = vpop.f32.mrb[0].mxu0
  %2677 = vmatprep.mubr.bf16.mxu0 %v1343
  %2678 = vmatmul.mubr.bf16.gmra.mrb[0].mxu0 %v1173
  %v2679 = vpop.f32.mrb[0].mxu0
  %v2680 = vadd.f32 %v2583, %v2679
  %v2681 = vpop.f32.mrb[0].mxu0
  %v2682 = vpop.f32.mrb[0].mxu0
  %v2683 = vadd.f32 %v2586, %v2682
  %v2684 = vpop.f32.mrb[0].mxu0
  %2685 = vmatprep.mubr.bf16.mxu0 %v1344
  %2686 = vmatmul.mubr.bf16.gmra.mrb[0].mxu0 %v1174
  %v2687 = vpop.f32.mrb[0].mxu0
  %v2688 = vadd.f32 %v2591, %v2687
  %v2689 = vpop.f32.mrb[0].mxu0
  %v2690 = vpop.f32.mrb[0].mxu0
  %v2691 = vadd.f32 %v2594, %v2690
  %v2692 = vpop.f32.mrb[0].mxu0
  %2693 = vmatprep.mubr.bf16.mxu0 %v1345
  %2694 = vmatmul.mubr.bf16.gmra.mrb[0].mxu0 %v1175
  %v2695 = vpop.f32.mrb[0].mxu0
  %v2696 = vadd.f32 %v2599, %v2695
  %v2697 = vpop.f32.mrb[0].mxu0
  %v2698 = vpop.f32.mrb[0].mxu0
  %v2699 = vadd.f32 %v2602, %v2698
  %v2700 = vpop.f32.mrb[0].mxu0
  %2701 = vmatprep.mubr.bf16.mxu0 %v1346
  %2702 = vmatmul.mubr.bf16.gmra.mrb[0].mxu0 %v1176
  %v2703 = vpop.f32.mrb[0].mxu0
  %v2704 = vadd.f32 %v2607, %v2703
  %v2705 = vpop.f32.mrb[0].mxu0
  %v2706 = vpop.f32.mrb[0].mxu0
  %v2707 = vadd.f32 %v2610, %v2706
  %v2708 = vpop.f32.mrb[0].mxu0
  %2709 = vmatprep.mubr.bf16.mxu0 %v1347
  %2710 = vmatmul.mubr.bf16.gmra.mrb[0].mxu0 %v1177
  %v2711 = vpop.f32.mrb[0].mxu0
  %v2712 = vadd.f32 %v2615, %v2711
  %v2713 = vpop.f32.mrb[0].mxu0
  %v2714 = vpop.f32.mrb[0].mxu0
  %v2715 = vadd.f32 %v2618, %v2714
  %v2716 = vpop.f32.mrb[0].mxu0
  %2717 = vmatprep.mubr.bf16.mxu0 %v1348
  %2718 = vmatmul.mubr.bf16.gmra.mrb[0].mxu0 %v1178
  %v2719 = vpop.f32.mrb[0].mxu0
  %v2720 = vadd.f32 %v2623, %v2719
  %v2721 = vpop.f32.mrb[0].mxu0
  %v2722 = vpop.f32.mrb[0].mxu0
  %v2723 = vadd.f32 %v2626, %v2722
  %v2724 = vpop.f32.mrb[0].mxu0
  %2725 = vdwg.mxu0
  %2726 = vmatprep.subr.bf16.mxu0 0
  %2727 = vmatpush1.bf16.msra.mxu0 %v2339
  %2728 = vmatprep.subr.bf16.mxu0 0
  %2729 = vmatpush1.bf16.msra.mxu0 %v2340
  %2730 = vmatprep.subr.bf16.mxu0 0
  %2731 = vmatpush1.bf16.msra.mxu0 %v2341
  %2732 = vmatprep.subr.bf16.mxu0 0
  %2733 = vmatpush1.bf16.msra.mxu0 %v2342
  %2734 = vmatprep.subr.bf16.mxu0 0
  %2735 = vmatpush1.bf16.msra.mxu0 %v2343
  %2736 = vmatprep.subr.bf16.mxu0 0
  %2737 = vmatpush1.bf16.msra.mxu0 %v2344
  %2738 = vmatprep.subr.bf16.mxu0 0
  %2739 = vmatpush1.bf16.msra.mxu0 %v2345
  %2740 = vmatprep.subr.bf16.mxu0 0
  %2741 = vmatpush1.bf16.msra.mxu0 %v2346
  %2742 = vmatprep.subr.bf16.mxu0 0
  %2743 = vmatpush1.bf16.msra.mxu0 %v2347
  %2744 = vmatprep.subr.bf16.mxu0 0
  %2745 = vmatpush1.bf16.msra.mxu0 %v2348
  %2746 = vmatprep.subr.bf16.mxu0 0
  %2747 = vmatpush1.bf16.msra.mxu0 %v2349
  %2748 = vmatprep.subr.bf16.mxu0 0
  %2749 = vmatpush1.bf16.msra.mxu0 %v2350
  %2750 = vmatprep.subr.bf16.mxu0 0
  %2751 = vmatpush1.bf16.msra.mxu0 %v2351
  %2752 = vmatprep.subr.bf16.mxu0 0
  %2753 = vmatpush1.bf16.msra.mxu0 %v2352
  %2754 = vmatprep.subr.bf16.mxu0 0
  %2755 = vmatpush1.bf16.msra.mxu0 %v2353
  %2756 = vmatprep.subr.bf16.mxu0 0
  %2757 = vmatpush1.bf16.msra.mxu0 %v2354
  %2758 = vmatprep.mubr.bf16.mxu0 %v1681
  %2759 = vmatmul.mubr.bf16.gmra.mrb[0].mxu0 %v1511
  %v2760 = vpop.f32.mrb[0].mxu0
  %v2761 = vadd.f32 %v2664, %v2760
  %v2762 = vpop.f32.mrb[0].mxu0
  %v2763 = vpop.f32.mrb[0].mxu0
  %v2764 = vadd.f32 %v2667, %v2763
  %v2765 = vpop.f32.mrb[0].mxu0
  %2766 = vmatprep.mubr.bf16.mxu0 %v1682
  %2767 = vmatmul.mubr.bf16.gmra.mrb[0].mxu0 %v1512
  %v2768 = vpop.f32.mrb[0].mxu0
  %v2769 = vadd.f32 %v2672, %v2768
  %v2770 = vpop.f32.mrb[0].mxu0
  %v2771 = vpop.f32.mrb[0].mxu0
  %v2772 = vadd.f32 %v2675, %v2771
  %v2773 = vpop.f32.mrb[0].mxu0
  %2774 = vmatprep.mubr.bf16.mxu0 %v1683
  %2775 = vmatmul.mubr.bf16.gmra.mrb[0].mxu0 %v1513
  %v2776 = vpop.f32.mrb[0].mxu0
  %v2777 = vadd.f32 %v2680, %v2776
  %v2778 = vpop.f32.mrb[0].mxu0
  %v2779 = vpop.f32.mrb[0].mxu0
  %v2780 = vadd.f32 %v2683, %v2779
  %v2781 = vpop.f32.mrb[0].mxu0
  %2782 = vmatprep.mubr.bf16.mxu0 %v1684
  %2783 = vmatmul.mubr.bf16.gmra.mrb[0].mxu0 %v1514
  %v2784 = vpop.f32.mrb[0].mxu0
  %v2785 = vadd.f32 %v2688, %v2784
  %v2786 = vpop.f32.mrb[0].mxu0
  %v2787 = vpop.f32.mrb[0].mxu0
  %v2788 = vadd.f32 %v2691, %v2787
  %v2789 = vpop.f32.mrb[0].mxu0
  %2790 = vmatprep.mubr.bf16.mxu0 %v1685
  %2791 = vmatmul.mubr.bf16.gmra.mrb[0].mxu0 %v1515
  %v2792 = vpop.f32.mrb[0].mxu0
  %v2793 = vadd.f32 %v2696, %v2792
  %v2794 = vpop.f32.mrb[0].mxu0
  %v2795 = vpop.f32.mrb[0].mxu0
  %v2796 = vadd.f32 %v2699, %v2795
  %v2797 = vpop.f32.mrb[0].mxu0
  %2798 = vmatprep.mubr.bf16.mxu0 %v1686
  %2799 = vmatmul.mubr.bf16.gmra.mrb[0].mxu0 %v1516
  %v2800 = vpop.f32.mrb[0].mxu0
  %v2801 = vadd.f32 %v2704, %v2800
  %v2802 = vpop.f32.mrb[0].mxu0
  %v2803 = vpop.f32.mrb[0].mxu0
  %v2804 = vadd.f32 %v2707, %v2803
  %v2805 = vpop.f32.mrb[0].mxu0
  %2806 = vmatprep.mubr.bf16.mxu0 %v1687
  %2807 = vmatmul.mubr.bf16.gmra.mrb[0].mxu0 %v1517
  %v2808 = vpop.f32.mrb[0].mxu0
  %v2809 = vadd.f32 %v2712, %v2808
  %v2810 = vpop.f32.mrb[0].mxu0
  %v2811 = vpop.f32.mrb[0].mxu0
  %v2812 = vadd.f32 %v2715, %v2811
  %v2813 = vpop.f32.mrb[0].mxu0
  %2814 = vmatprep.mubr.bf16.mxu0 %v1688
  %2815 = vmatmul.mubr.bf16.gmra.mrb[0].mxu0 %v1518
  %v2816 = vpop.f32.mrb[0].mxu0
  %v2817 = vadd.f32 %v2720, %v2816
  %v2818 = vpop.f32.mrb[0].mxu0
  %v2819 = vpop.f32.mrb[0].mxu0
  %v2820 = vadd.f32 %v2723, %v2819
  %v2821 = vpop.f32.mrb[0].mxu0
  %2822 = vdwg.mxu0
  %2823 = vmatprep.subr.bf16.mxu0 0
  %2824 = vmatpush1.bf16.msra.mxu0 %v2355
  %2825 = vmatprep.subr.bf16.mxu0 0
  %2826 = vmatpush1.bf16.msra.mxu0 %v2356
  %2827 = vmatprep.subr.bf16.mxu0 0
  %2828 = vmatpush1.bf16.msra.mxu0 %v2357
  %2829 = vmatprep.subr.bf16.mxu0 0
  %2830 = vmatpush1.bf16.msra.mxu0 %v2358
  %2831 = vmatprep.subr.bf16.mxu0 0
  %2832 = vmatpush1.bf16.msra.mxu0 %v2359
  %2833 = vmatprep.subr.bf16.mxu0 0
  %2834 = vmatpush1.bf16.msra.mxu0 %v2360
  %2835 = vmatprep.subr.bf16.mxu0 0
  %2836 = vmatpush1.bf16.msra.mxu0 %v2361
  %2837 = vmatprep.subr.bf16.mxu0 0
  %2838 = vmatpush1.bf16.msra.mxu0 %v2362
  %2839 = vmatprep.subr.bf16.mxu0 0
  %2840 = vmatpush1.bf16.msra.mxu0 0
  %2841 = vmatprep.subr.bf16.mxu0 0
  %2842 = vmatpush1.bf16.msra.mxu0 0
  %2843 = vmatprep.subr.bf16.mxu0 0
  %2844 = vmatpush1.bf16.msra.mxu0 0
  %2845 = vmatprep.subr.bf16.mxu0 0
  %2846 = vmatpush1.bf16.msra.mxu0 0
  %2847 = vmatprep.subr.bf16.mxu0 0
  %2848 = vmatpush1.bf16.msra.mxu0 0
  %2849 = vmatprep.subr.bf16.mxu0 0
  %2850 = vmatpush1.bf16.msra.mxu0 0
  %2851 = vmatprep.subr.bf16.mxu0 0
  %2852 = vmatpush1.bf16.msra.mxu0 0
  %2853 = vmatprep.subr.bf16.mxu0 0
  %2854 = vmatpush1.bf16.msra.mxu0 0
  %2855 = vmatprep.mubr.bf16.mxu0 0
  %2856 = vmatmul.mubr.bf16.gmra.mrb[0].mxu0 %v1851
  %v2857 = vpop.f32.mrb[0].mxu0
  %v2858 = vadd.f32 %v2761, %v2857
  %v2859 = vpop.f32.mrb[0].mxu0
  %v2860 = vpop.f32.mrb[0].mxu0
  %v2861 = vadd.f32 %v2764, %v2860
  %v2862 = vpop.f32.mrb[0].mxu0
  %2863 = vmatprep.mubr.bf16.mxu0 0
  %2864 = vmatmul.mubr.bf16.gmra.mrb[0].mxu0 %v1852
  %v2865 = vpop.f32.mrb[0].mxu0
  %v2866 = vadd.f32 %v2769, %v2865
  %v2867 = vpop.f32.mrb[0].mxu0
  %v2868 = vpop.f32.mrb[0].mxu0
  %v2869 = vadd.f32 %v2772, %v2868
  %v2870 = vpop.f32.mrb[0].mxu0
  %2871 = vmatprep.mubr.bf16.mxu0 0
  %2872 = vmatmul.mubr.bf16.gmra.mrb[0].mxu0 %v1853
  %v2873 = vpop.f32.mrb[0].mxu0
  %v2874 = vadd.f32 %v2777, %v2873
  %v2875 = vpop.f32.mrb[0].mxu0
  %v2876 = vpop.f32.mrb[0].mxu0
  %v2877 = vadd.f32 %v2780, %v2876
  %v2878 = vpop.f32.mrb[0].mxu0
  %2879 = vmatprep.mubr.bf16.mxu0 0
  %2880 = vmatmul.mubr.bf16.gmra.mrb[0].mxu0 %v1854
  %v2881 = vpop.f32.mrb[0].mxu0
  %v2882 = vadd.f32 %v2785, %v2881
  %v2883 = vpop.f32.mrb[0].mxu0
  %v2884 = vpop.f32.mrb[0].mxu0
  %v2885 = vadd.f32 %v2788, %v2884
  %v2886 = vpop.f32.mrb[0].mxu0
  %2887 = vmatprep.mubr.bf16.mxu0 0
  %2888 = vmatmul.mubr.bf16.gmra.mrb[0].mxu0 %v1855
  %v2889 = vpop.f32.mrb[0].mxu0
  %v2890 = vadd.f32 %v2793, %v2889
  %v2891 = vpop.f32.mrb[0].mxu0
  %v2892 = vpop.f32.mrb[0].mxu0
  %v2893 = vadd.f32 %v2796, %v2892
  %v2894 = vpop.f32.mrb[0].mxu0
  %2895 = vmatprep.mubr.bf16.mxu0 0
  %2896 = vmatmul.mubr.bf16.gmra.mrb[0].mxu0 %v1856
  %v2897 = vpop.f32.mrb[0].mxu0
  %v2898 = vadd.f32 %v2801, %v2897
  %v2899 = vpop.f32.mrb[0].mxu0
  %v2900 = vpop.f32.mrb[0].mxu0
  %v2901 = vadd.f32 %v2804, %v2900
  %v2902 = vpop.f32.mrb[0].mxu0
  %2903 = vmatprep.mubr.bf16.mxu0 0
  %2904 = vmatmul.mubr.bf16.gmra.mrb[0].mxu0 %v1857
  %v2905 = vpop.f32.mrb[0].mxu0
  %v2906 = vadd.f32 %v2809, %v2905
  %v2907 = vpop.f32.mrb[0].mxu0
  %v2908 = vpop.f32.mrb[0].mxu0
  %v2909 = vadd.f32 %v2812, %v2908
  %v2910 = vpop.f32.mrb[0].mxu0
  %2911 = vmatprep.mubr.bf16.mxu0 0
  %2912 = vmatmul.mubr.bf16.gmra.mrb[0].mxu0 %v1858
  %v2913 = vpop.f32.mrb[0].mxu0
  %v2914 = vadd.f32 %v2817, %v2913
  %v2915 = vpop.f32.mrb[0].mxu0
  %v2916 = vpop.f32.mrb[0].mxu0
  %v2917 = vadd.f32 %v2820, %v2916
  %v2918 = vpop.f32.mrb[0].mxu0
  %2919 = vdwg.mxu0
  %v2920 = vlaneseq
  %v2921 = vshrl.u32 %v2920, 7
  %v2922 = vsub.s32 0, %v2921
  %v2923 = vrot.slane %v51, %v2922
  %v2924 = vmul.f32 %v2858, %v2923
  %v2925 = vmul.f32 %v2861, %v2923
  %v2926 = vmul.f32 %v2866, %v2923
  %v2927 = vmul.f32 %v2869, %v2923
  %v2928 = vmul.f32 %v2874, %v2923
  %v2929 = vmul.f32 %v2877, %v2923
  %v2930 = vmul.f32 %v2882, %v2923
  %v2931 = vmul.f32 %v2885, %v2923
  %v2932 = vmul.f32 %v2890, %v2923
  %v2933 = vmul.f32 %v2893, %v2923
  %v2934 = vmul.f32 %v2898, %v2923
  %v2935 = vmul.f32 %v2901, %v2923
  %v2936 = vmul.f32 %v2906, %v2923
  %v2937 = vmul.f32 %v2909, %v2923
  %v2938 = vmul.f32 %v2914, %v2923
  %v2939 = vmul.f32 %v2917, %v2923
  %v2940 = vlaneseq
  %v2941 = vshrl.u32 %v2940, 7
  %v2942 = vsub.s32 0, %v2941
  %v2943 = vrot.slane %v52, %v2942
  %v2944 = vadd.f32 %v2924, %v2943
  %v2945 = vadd.f32 %v2925, %v2943
  %v2946 = vadd.f32 %v2926, %v2943
  %v2947 = vadd.f32 %v2927, %v2943
  %v2948 = vadd.f32 %v2928, %v2943
  %v2949 = vadd.f32 %v2929, %v2943
  %v2950 = vadd.f32 %v2930, %v2943
  %v2951 = vadd.f32 %v2931, %v2943
  %v2952 = vadd.f32 %v2932, %v2943
  %v2953 = vadd.f32 %v2933, %v2943
  %v2954 = vadd.f32 %v2934, %v2943
  %v2955 = vadd.f32 %v2935, %v2943
  %v2956 = vadd.f32 %v2936, %v2943
  %v2957 = vadd.f32 %v2937, %v2943
  %v2958 = vadd.f32 %v2938, %v2943
  %v2959 = vadd.f32 %v2939, %v2943
  %v2960 = vmax.f32 %v2944, 0.0
  %v2961 = vmax.f32 %v2945, 0.0
  %v2962 = vmax.f32 %v2946, 0.0
  %v2963 = vmax.f32 %v2947, 0.0
  %v2964 = vmax.f32 %v2948, 0.0
  %v2965 = vmax.f32 %v2949, 0.0
  %v2966 = vmax.f32 %v2950, 0.0
  %v2967 = vmax.f32 %v2951, 0.0
  %v2968 = vmax.f32 %v2952, 0.0
  %v2969 = vmax.f32 %v2953, 0.0
  %v2970 = vmax.f32 %v2954, 0.0
  %v2971 = vmax.f32 %v2955, 0.0
  %v2972 = vmax.f32 %v2956, 0.0
  %v2973 = vmax.f32 %v2957, 0.0
  %v2974 = vmax.f32 %v2958, 0.0
  %v2975 = vmax.f32 %v2959, 0.0
  %v2976 = vpack.c.bf16 %v2961, %v2960
  %v2977 = vpack.c.bf16 %v2963, %v2962
  %v2978 = vpack.c.bf16 %v2965, %v2964
  %v2979 = vpack.c.bf16 %v2967, %v2966
  %v2980 = vpack.c.bf16 %v2969, %v2968
  %v2981 = vpack.c.bf16 %v2971, %v2970
  %v2982 = vpack.c.bf16 %v2973, %v2972
  %v2983 = vpack.c.bf16 %v2975, %v2974
  %s2984 = scalar_lea.vmem %s2, 64
  %v2985 = vld [vmem:[%s2984] sm:$0xf]
  %v2986 = vld [vmem:[%s2984 + $0x4] sm:$0xf]
  %v2987 = vld [vmem:[%s2984 + $0x8] sm:$0xf]
  %v2988 = vld [vmem:[%s2984 + $0xc] sm:$0xf]
  %v2989 = vld [vmem:[%s2984 + $0x10] sm:$0xf]
  %v2990 = vld [vmem:[%s2984 + $0x14] sm:$0xf]
  %v2991 = vld [vmem:[%s2984 + $0x18] sm:$0xf]
  %v2992 = vld [vmem:[%s2984 + $0x1c] sm:$0xf]
  %v2993 = vld [vmem:[%s2984 + $0x20] sm:$0xf]
  %v2994 = vld [vmem:[%s2984 + $0x24] sm:$0xf]
  %v2995 = vld [vmem:[%s2984 + $0x28] sm:$0xf]
  %v2996 = vld [vmem:[%s2984 + $0x2c] sm:$0xf]
  %v2997 = vld [vmem:[%s2984 + $0x30] sm:$0xf]
  %v2998 = vld [vmem:[%s2984 + $0x34] sm:$0xf]
  %v2999 = vld [vmem:[%s2984 + $0x38] sm:$0xf]
  %v3000 = vld [vmem:[%s2984 + $0x3c] sm:$0xf]
  %v3017 = vunpack.c.l.b16 %v2985
  %v3018 = vunpack.c.l.b16 %v2986
  %v3019 = vunpack.c.l.b16 %v2987
  %v3020 = vunpack.c.l.b16 %v2988
  %v3021 = vunpack.c.l.b16 %v2989
  %v3022 = vunpack.c.l.b16 %v2990
  %v3023 = vunpack.c.l.b16 %v2991
  %v3024 = vunpack.c.l.b16 %v2992
  %v3025 = vunpack.c.l.b16 %v2993
  %v3026 = vunpack.c.l.b16 %v2994
  %v3027 = vunpack.c.l.b16 %v2995
  %v3028 = vunpack.c.l.b16 %v2996
  %v3029 = vunpack.c.l.b16 %v2997
  %v3030 = vunpack.c.l.b16 %v2998
  %v3031 = vunpack.c.l.b16 %v2999
  %v3032 = vunpack.c.l.b16 %v3000
  %v3033 = vpack.c.b16 %v3018, %v3017
  %v3034 = vpack.c.b16 %v3020, %v3019
  %v3035 = vpack.c.b16 %v3022, %v3021
  %v3036 = vpack.c.b16 %v3024, %v3023
  %v3037 = vpack.c.b16 %v3026, %v3025
  %v3038 = vpack.c.b16 %v3028, %v3027
  %v3039 = vpack.c.b16 %v3030, %v3029
  %v3040 = vpack.c.b16 %v3032, %v3031
  %3049 = vmatprep.subr.bf16.mxu0 0
  %3050 = vmatpush1.bf16.msra.mxu0 %v3033
  %3051 = vmatprep.subr.bf16.mxu0 0
  %3052 = vmatpush1.bf16.msra.mxu0 %v3034
  %3053 = vmatprep.subr.bf16.mxu0 0
  %3054 = vmatpush1.bf16.msra.mxu0 %v3035
  %3055 = vmatprep.subr.bf16.mxu0 0
  %3056 = vmatpush1.bf16.msra.mxu0 %v3036
  %3057 = vmatprep.subr.bf16.mxu0 0
  %3058 = vmatpush1.bf16.msra.mxu0 %v3037
  %3059 = vmatprep.subr.bf16.mxu0 0
  %3060 = vmatpush1.bf16.msra.mxu0 %v3038
  %3061 = vmatprep.subr.bf16.mxu0 0
  %3062 = vmatpush1.bf16.msra.mxu0 %v3039
  %3063 = vmatprep.subr.bf16.mxu0 0
  %3064 = vmatpush1.bf16.msra.mxu0 %v3040
  %3065 = vmatprep.subr.bf16.mxu0 0
  %3066 = vmatpush1.bf16.msra.mxu0 0
  %3067 = vmatprep.subr.bf16.mxu0 0
  %3068 = vmatpush1.bf16.msra.mxu0 0
  %3069 = vmatprep.subr.bf16.mxu0 0
  %3070 = vmatpush1.bf16.msra.mxu0 0
  %3071 = vmatprep.subr.bf16.mxu0 0
  %3072 = vmatpush1.bf16.msra.mxu0 0
  %3073 = vmatprep.subr.bf16.mxu0 0
  %3074 = vmatpush1.bf16.msra.mxu0 0
  %3075 = vmatprep.subr.bf16.mxu0 0
  %3076 = vmatpush1.bf16.msra.mxu0 0
  %3077 = vmatprep.subr.bf16.mxu0 0
  %3078 = vmatpush1.bf16.msra.mxu0 0
  %3079 = vmatprep.subr.bf16.mxu0 0
  %3080 = vmatpush1.bf16.msra.mxu0 0
  %3081 = vmatprep.mubr.bf16.mxu0 0
  %3082 = vmatmul.mubr.bf16.gmra.mrb[0].mxu0 %v2976
  %v3083 = vpop.f32.mrb[0].mxu0
  %v3084 = vadd.f32 0.0, %v3083
  %v3085 = vpop.f32.mrb[0].mxu0
  %v3086 = vpop.f32.mrb[0].mxu0
  %v3087 = vadd.f32 0.0, %v3086
  %v3088 = vpop.f32.mrb[0].mxu0
  %3089 = vmatprep.mubr.bf16.mxu0 0
  %3090 = vmatmul.mubr.bf16.gmra.mrb[0].mxu0 %v2977
  %v3091 = vpop.f32.mrb[0].mxu0
  %v3092 = vadd.f32 0.0, %v3091
  %v3093 = vpop.f32.mrb[0].mxu0
  %v3094 = vpop.f32.mrb[0].mxu0
  %v3095 = vadd.f32 0.0, %v3094
  %v3096 = vpop.f32.mrb[0].mxu0
  %3097 = vmatprep.mubr.bf16.mxu0 0
  %3098 = vmatmul.mubr.bf16.gmra.mrb[0].mxu0 %v2978
  %v3099 = vpop.f32.mrb[0].mxu0
  %v3100 = vadd.f32 0.0, %v3099
  %v3101 = vpop.f32.mrb[0].mxu0
  %v3102 = vpop.f32.mrb[0].mxu0
  %v3103 = vadd.f32 0.0, %v3102
  %v3104 = vpop.f32.mrb[0].mxu0
  %3105 = vmatprep.mubr.bf16.mxu0 0
  %3106 = vmatmul.mubr.bf16.gmra.mrb[0].mxu0 %v2979
  %v3107 = vpop.f32.mrb[0].mxu0
  %v3108 = vadd.f32 0.0, %v3107
  %v3109 = vpop.f32.mrb[0].mxu0
  %v3110 = vpop.f32.mrb[0].mxu0
  %v3111 = vadd.f32 0.0, %v3110
  %v3112 = vpop.f32.mrb[0].mxu0
  %3113 = vmatprep.mubr.bf16.mxu0 0
  %3114 = vmatmul.mubr.bf16.gmra.mrb[0].mxu0 %v2980
  %v3115 = vpop.f32.mrb[0].mxu0
  %v3116 = vadd.f32 0.0, %v3115
  %v3117 = vpop.f32.mrb[0].mxu0
  %v3118 = vpop.f32.mrb[0].mxu0
  %v3119 = vadd.f32 0.0, %v3118
  %v3120 = vpop.f32.mrb[0].mxu0
  %3121 = vmatprep.mubr.bf16.mxu0 0
  %3122 = vmatmul.mubr.bf16.gmra.mrb[0].mxu0 %v2981
  %v3123 = vpop.f32.mrb[0].mxu0
  %v3124 = vadd.f32 0.0, %v3123
  %v3125 = vpop.f32.mrb[0].mxu0
  %v3126 = vpop.f32.mrb[0].mxu0
  %v3127 = vadd.f32 0.0, %v3126
  %v3128 = vpop.f32.mrb[0].mxu0
  %3129 = vmatprep.mubr.bf16.mxu0 0
  %3130 = vmatmul.mubr.bf16.gmra.mrb[0].mxu0 %v2982
  %v3131 = vpop.f32.mrb[0].mxu0
  %v3132 = vadd.f32 0.0, %v3131
  %v3133 = vpop.f32.mrb[0].mxu0
  %v3134 = vpop.f32.mrb[0].mxu0
  %v3135 = vadd.f32 0.0, %v3134
  %v3136 = vpop.f32.mrb[0].mxu0
  %3137 = vmatprep.mubr.bf16.mxu0 0
  %3138 = vmatmul.mubr.bf16.gmra.mrb[0].mxu0 %v2983
  %v3139 = vpop.f32.mrb[0].mxu0
  %v3140 = vadd.f32 0.0, %v3139
  %v3141 = vpop.f32.mrb[0].mxu0
  %v3142 = vpop.f32.mrb[0].mxu0
  %v3143 = vadd.f32 0.0, %v3142
  %v3144 = vpop.f32.mrb[0].mxu0
  %3145 = vdwg.mxu0
  %v3146 = vlaneseq
  %v3147 = vshrl.u32 %v3146, 7
  %v3148 = vsub.s32 0, %v3147
  %v3149 = vrot.slane %v53, %v3148
  %v3150 = vmul.f32 %v3084, %v3149
  %v3151 = vmul.f32 %v3087, %v3149
  %v3152 = vmul.f32 %v3092, %v3149
  %v3153 = vmul.f32 %v3095, %v3149
  %v3154 = vmul.f32 %v3100, %v3149
  %v3155 = vmul.f32 %v3103, %v3149
  %v3156 = vmul.f32 %v3108, %v3149
  %v3157 = vmul.f32 %v3111, %v3149
  %v3158 = vmul.f32 %v3116, %v3149
  %v3159 = vmul.f32 %v3119, %v3149
  %v3160 = vmul.f32 %v3124, %v3149
  %v3161 = vmul.f32 %v3127, %v3149
  %v3162 = vmul.f32 %v3132, %v3149
  %v3163 = vmul.f32 %v3135, %v3149
  %v3164 = vmul.f32 %v3140, %v3149
  %v3165 = vmul.f32 %v3143, %v3149
  %v3166 = vlaneseq
  %v3167 = vshrl.u32 %v3166, 7
  %v3168 = vsub.s32 0, %v3167
  %v3169 = vrot.slane %v54, %v3168
  %v3170 = vadd.f32 %v3150, %v3169
  %v3171 = vadd.f32 %v3151, %v3169
  %v3172 = vadd.f32 %v3152, %v3169
  %v3173 = vadd.f32 %v3153, %v3169
  %v3174 = vadd.f32 %v3154, %v3169
  %v3175 = vadd.f32 %v3155, %v3169
  %v3176 = vadd.f32 %v3156, %v3169
  %v3177 = vadd.f32 %v3157, %v3169
  %v3178 = vadd.f32 %v3158, %v3169
  %v3179 = vadd.f32 %v3159, %v3169
  %v3180 = vadd.f32 %v3160, %v3169
  %v3181 = vadd.f32 %v3161, %v3169
  %v3182 = vadd.f32 %v3162, %v3169
  %v3183 = vadd.f32 %v3163, %v3169
  %v3184 = vadd.f32 %v3164, %v3169
  %v3185 = vadd.f32 %v3165, %v3169
  %s3186 = scalar_lea.vmem %s2, 128
  %v3187 = vld [vmem:[%s3186] sm:$0xf]
  %v3188 = vld [vmem:[%s3186 + $0x4] sm:$0xf]
  %v3189 = vld [vmem:[%s3186 + $0x8] sm:$0xf]
  %v3190 = vld [vmem:[%s3186 + $0xc] sm:$0xf]
  %v3191 = vld [vmem:[%s3186 + $0x10] sm:$0xf]
  %v3192 = vld [vmem:[%s3186 + $0x14] sm:$0xf]
  %v3193 = vld [vmem:[%s3186 + $0x18] sm:$0xf]
  %v3194 = vld [vmem:[%s3186 + $0x1c] sm:$0xf]
  %v3195 = vld [vmem:[%s3186 + $0x20] sm:$0xf]
  %v3196 = vld [vmem:[%s3186 + $0x24] sm:$0xf]
  %v3197 = vld [vmem:[%s3186 + $0x28] sm:$0xf]
  %v3198 = vld [vmem:[%s3186 + $0x2c] sm:$0xf]
  %v3199 = vld [vmem:[%s3186 + $0x30] sm:$0xf]
  %v3200 = vld [vmem:[%s3186 + $0x34] sm:$0xf]
  %v3201 = vld [vmem:[%s3186 + $0x38] sm:$0xf]
  %v3202 = vld [vmem:[%s3186 + $0x3c] sm:$0xf]
  %v3219 = vunpack.c.l.b16 %v3187
  %v3220 = vunpack.c.l.b16 %v3188
  %v3221 = vunpack.c.l.b16 %v3189
  %v3222 = vunpack.c.l.b16 %v3190
  %v3223 = vunpack.c.l.b16 %v3191
  %v3224 = vunpack.c.l.b16 %v3192
  %v3225 = vunpack.c.l.b16 %v3193
  %v3226 = vunpack.c.l.b16 %v3194
  %v3227 = vunpack.c.l.b16 %v3195
  %v3228 = vunpack.c.l.b16 %v3196
  %v3229 = vunpack.c.l.b16 %v3197
  %v3230 = vunpack.c.l.b16 %v3198
  %v3231 = vunpack.c.l.b16 %v3199
  %v3232 = vunpack.c.l.b16 %v3200
  %v3233 = vunpack.c.l.b16 %v3201
  %v3234 = vunpack.c.l.b16 %v3202
  %v3235 = vpack.c.b16 %v3220, %v3219
  %v3236 = vpack.c.b16 %v3222, %v3221
  %v3237 = vpack.c.b16 %v3224, %v3223
  %v3238 = vpack.c.b16 %v3226, %v3225
  %v3239 = vpack.c.b16 %v3228, %v3227
  %v3240 = vpack.c.b16 %v3230, %v3229
  %v3241 = vpack.c.b16 %v3232, %v3231
  %v3242 = vpack.c.b16 %v3234, %v3233
  %3251 = vmatprep.subr.bf16.mxu0 0
  %3252 = vmatpush1.bf16.msra.mxu0 %v3235
  %3253 = vmatprep.subr.bf16.mxu0 0
  %3254 = vmatpush1.bf16.msra.mxu0 %v3236
  %3255 = vmatprep.subr.bf16.mxu0 0
  %3256 = vmatpush1.bf16.msra.mxu0 %v3237
  %3257 = vmatprep.subr.bf16.mxu0 0
  %3258 = vmatpush1.bf16.msra.mxu0 %v3238
  %3259 = vmatprep.subr.bf16.mxu0 0
  %3260 = vmatpush1.bf16.msra.mxu0 %v3239
  %3261 = vmatprep.subr.bf16.mxu0 0
  %3262 = vmatpush1.bf16.msra.mxu0 %v3240
  %3263 = vmatprep.subr.bf16.mxu0 0
  %3264 = vmatpush1.bf16.msra.mxu0 %v3241
  %3265 = vmatprep.subr.bf16.mxu0 0
  %3266 = vmatpush1.bf16.msra.mxu0 %v3242
  %3267 = vmatprep.subr.bf16.mxu0 0
  %3268 = vmatpush1.bf16.msra.mxu0 0
  %3269 = vmatprep.subr.bf16.mxu0 0
  %3270 = vmatpush1.bf16.msra.mxu0 0
  %3271 = vmatprep.subr.bf16.mxu0 0
  %3272 = vmatpush1.bf16.msra.mxu0 0
  %3273 = vmatprep.subr.bf16.mxu0 0
  %3274 = vmatpush1.bf16.msra.mxu0 0
  %3275 = vmatprep.subr.bf16.mxu0 0
  %3276 = vmatpush1.bf16.msra.mxu0 0
  %3277 = vmatprep.subr.bf16.mxu0 0
  %3278 = vmatpush1.bf16.msra.mxu0 0
  %3279 = vmatprep.subr.bf16.mxu0 0
  %3280 = vmatpush1.bf16.msra.mxu0 0
  %3281 = vmatprep.subr.bf16.mxu0 0
  %3282 = vmatpush1.bf16.msra.mxu0 0
  %3283 = vmatprep.mubr.bf16.mxu0 0
  %3284 = vmatmul.mubr.bf16.gmra.mrb[0].mxu0 %v105
  %v3285 = vpop.f32.mrb[0].mxu0
  %v3286 = vadd.f32 0.0, %v3285
  %v3287 = vpop.f32.mrb[0].mxu0
  %v3288 = vpop.f32.mrb[0].mxu0
  %v3289 = vadd.f32 0.0, %v3288
  %v3290 = vpop.f32.mrb[0].mxu0
  %3291 = vmatprep.mubr.bf16.mxu0 0
  %3292 = vmatmul.mubr.bf16.gmra.mrb[0].mxu0 %v106
  %v3293 = vpop.f32.mrb[0].mxu0
  %v3294 = vadd.f32 0.0, %v3293
  %v3295 = vpop.f32.mrb[0].mxu0
  %v3296 = vpop.f32.mrb[0].mxu0
  %v3297 = vadd.f32 0.0, %v3296
  %v3298 = vpop.f32.mrb[0].mxu0
  %3299 = vmatprep.mubr.bf16.mxu0 0
  %3300 = vmatmul.mubr.bf16.gmra.mrb[0].mxu0 %v107
  %v3301 = vpop.f32.mrb[0].mxu0
  %v3302 = vadd.f32 0.0, %v3301
  %v3303 = vpop.f32.mrb[0].mxu0
  %v3304 = vpop.f32.mrb[0].mxu0
  %v3305 = vadd.f32 0.0, %v3304
  %v3306 = vpop.f32.mrb[0].mxu0
  %3307 = vmatprep.mubr.bf16.mxu0 0
  %3308 = vmatmul.mubr.bf16.gmra.mrb[0].mxu0 %v108
  %v3309 = vpop.f32.mrb[0].mxu0
  %v3310 = vadd.f32 0.0, %v3309
  %v3311 = vpop.f32.mrb[0].mxu0
  %v3312 = vpop.f32.mrb[0].mxu0
  %v3313 = vadd.f32 0.0, %v3312
  %v3314 = vpop.f32.mrb[0].mxu0
  %3315 = vmatprep.mubr.bf16.mxu0 0
  %3316 = vmatmul.mubr.bf16.gmra.mrb[0].mxu0 %v109
  %v3317 = vpop.f32.mrb[0].mxu0
  %v3318 = vadd.f32 0.0, %v3317
  %v3319 = vpop.f32.mrb[0].mxu0
  %v3320 = vpop.f32.mrb[0].mxu0
  %v3321 = vadd.f32 0.0, %v3320
  %v3322 = vpop.f32.mrb[0].mxu0
  %3323 = vmatprep.mubr.bf16.mxu0 0
  %3324 = vmatmul.mubr.bf16.gmra.mrb[0].mxu0 %v110
  %v3325 = vpop.f32.mrb[0].mxu0
  %v3326 = vadd.f32 0.0, %v3325
  %v3327 = vpop.f32.mrb[0].mxu0
  %v3328 = vpop.f32.mrb[0].mxu0
  %v3329 = vadd.f32 0.0, %v3328
  %v3330 = vpop.f32.mrb[0].mxu0
  %3331 = vmatprep.mubr.bf16.mxu0 0
  %3332 = vmatmul.mubr.bf16.gmra.mrb[0].mxu0 %v111
  %v3333 = vpop.f32.mrb[0].mxu0
  %v3334 = vadd.f32 0.0, %v3333
  %v3335 = vpop.f32.mrb[0].mxu0
  %v3336 = vpop.f32.mrb[0].mxu0
  %v3337 = vadd.f32 0.0, %v3336
  %v3338 = vpop.f32.mrb[0].mxu0
  %3339 = vmatprep.mubr.bf16.mxu0 0
  %3340 = vmatmul.mubr.bf16.gmra.mrb[0].mxu0 %v112
  %v3341 = vpop.f32.mrb[0].mxu0
  %v3342 = vadd.f32 0.0, %v3341
  %v3343 = vpop.f32.mrb[0].mxu0
  %v3344 = vpop.f32.mrb[0].mxu0
  %v3345 = vadd.f32 0.0, %v3344
  %v3346 = vpop.f32.mrb[0].mxu0
  %3347 = vdwg.mxu0
  %v3348 = vlaneseq
  %v3349 = vshrl.u32 %v3348, 7
  %v3350 = vsub.s32 0, %v3349
  %v3351 = vrot.slane %v55, %v3350
  %v3352 = vmul.f32 %v3286, %v3351
  %v3353 = vmul.f32 %v3289, %v3351
  %v3354 = vmul.f32 %v3294, %v3351
  %v3355 = vmul.f32 %v3297, %v3351
  %v3356 = vmul.f32 %v3302, %v3351
  %v3357 = vmul.f32 %v3305, %v3351
  %v3358 = vmul.f32 %v3310, %v3351
  %v3359 = vmul.f32 %v3313, %v3351
  %v3360 = vmul.f32 %v3318, %v3351
  %v3361 = vmul.f32 %v3321, %v3351
  %v3362 = vmul.f32 %v3326, %v3351
  %v3363 = vmul.f32 %v3329, %v3351
  %v3364 = vmul.f32 %v3334, %v3351
  %v3365 = vmul.f32 %v3337, %v3351
  %v3366 = vmul.f32 %v3342, %v3351
  %v3367 = vmul.f32 %v3345, %v3351
  %v3368 = vlaneseq
  %v3369 = vshrl.u32 %v3368, 7
  %v3370 = vsub.s32 0, %v3369
  %v3371 = vrot.slane %v56, %v3370
  %v3372 = vadd.f32 %v3352, %v3371
  %v3373 = vadd.f32 %v3353, %v3371
  %v3374 = vadd.f32 %v3354, %v3371
  %v3375 = vadd.f32 %v3355, %v3371
  %v3376 = vadd.f32 %v3356, %v3371
  %v3377 = vadd.f32 %v3357, %v3371
  %v3378 = vadd.f32 %v3358, %v3371
  %v3379 = vadd.f32 %v3359, %v3371
  %v3380 = vadd.f32 %v3360, %v3371
  %v3381 = vadd.f32 %v3361, %v3371
  %v3382 = vadd.f32 %v3362, %v3371
  %v3383 = vadd.f32 %v3363, %v3371
  %v3384 = vadd.f32 %v3364, %v3371
  %v3385 = vadd.f32 %v3365, %v3371
  %v3386 = vadd.f32 %v3366, %v3371
  %v3387 = vadd.f32 %v3367, %v3371
  %v3388 = vadd.f32 %v3170, %v3372
  %v3389 = vadd.f32 %v3171, %v3373
  %v3390 = vadd.f32 %v3172, %v3374
  %v3391 = vadd.f32 %v3173, %v3375
  %v3392 = vadd.f32 %v3174, %v3376
  %v3393 = vadd.f32 %v3175, %v3377
  %v3394 = vadd.f32 %v3176, %v3378
  %v3395 = vadd.f32 %v3177, %v3379
  %v3396 = vadd.f32 %v3178, %v3380
  %v3397 = vadd.f32 %v3179, %v3381
  %v3398 = vadd.f32 %v3180, %v3382
  %v3399 = vadd.f32 %v3181, %v3383
  %v3400 = vadd.f32 %v3182, %v3384
  %v3401 = vadd.f32 %v3183, %v3385
  %v3402 = vadd.f32 %v3184, %v3386
  %v3403 = vadd.f32 %v3185, %v3387
  %v3404 = vmax.f32 %v3388, 0.0
  %v3405 = vmax.f32 %v3389, 0.0
  %v3406 = vmax.f32 %v3390, 0.0
  %v3407 = vmax.f32 %v3391, 0.0
  %v3408 = vmax.f32 %v3392, 0.0
  %v3409 = vmax.f32 %v3393, 0.0
  %v3410 = vmax.f32 %v3394, 0.0
  %v3411 = vmax.f32 %v3395, 0.0
  %v3412 = vmax.f32 %v3396, 0.0
  %v3413 = vmax.f32 %v3397, 0.0
  %v3414 = vmax.f32 %v3398, 0.0
  %v3415 = vmax.f32 %v3399, 0.0
  %v3416 = vmax.f32 %v3400, 0.0
  %v3417 = vmax.f32 %v3401, 0.0
  %v3418 = vmax.f32 %v3402, 0.0
  %v3419 = vmax.f32 %v3403, 0.0
  %v3420 = vld [vmem:[%s6] sm:$0xf]
  %v3421 = vpack.c.bf16 %v3405, %v3404
  %v3422 = vpack.c.bf16 %v3407, %v3406
  %v3423 = vpack.c.bf16 %v3409, %v3408
  %v3424 = vpack.c.bf16 %v3411, %v3410
  %v3425 = vpack.c.bf16 %v3413, %v3412
  %v3426 = vpack.c.bf16 %v3415, %v3414
  %v3427 = vpack.c.bf16 %v3417, %v3416
  %v3428 = vpack.c.bf16 %v3419, %v3418
  %3429 = vmatprep.subr.bf16.mxu0 0
  %3430 = vmatpush1.bf16.msra.mxu0 %v3421
  %3431 = vmatprep.subr.bf16.mxu0 0
  %3432 = vmatpush1.bf16.msra.mxu0 %v3422
  %3433 = vmatprep.subr.bf16.mxu0 0
  %3434 = vmatpush1.bf16.msra.mxu0 %v3423
  %3435 = vmatprep.subr.bf16.mxu0 0
  %3436 = vmatpush1.bf16.msra.mxu0 %v3424
  %3437 = vmatprep.subr.bf16.mxu0 0
  %3438 = vmatpush1.bf16.msra.mxu0 %v3425
  %3439 = vmatprep.subr.bf16.mxu0 0
  %3440 = vmatpush1.bf16.msra.mxu0 %v3426
  %3441 = vmatprep.subr.bf16.mxu0 0
  %3442 = vmatpush1.bf16.msra.mxu0 %v3427
  %3443 = vmatprep.subr.bf16.mxu0 0
  %3444 = vmatpush1.bf16.msra.mxu0 %v3428
  %3445 = vmatprep.subr.bf16.mxu0 0
  %3446 = vmatpush1.bf16.msra.mxu0 0
  %3447 = vmatprep.subr.bf16.mxu0 0
  %3448 = vmatpush1.bf16.msra.mxu0 0
  %3449 = vmatprep.subr.bf16.mxu0 0
  %3450 = vmatpush1.bf16.msra.mxu0 0
  %3451 = vmatprep.subr.bf16.mxu0 0
  %3452 = vmatpush1.bf16.msra.mxu0 0
  %3453 = vmatprep.subr.bf16.mxu0 0
  %3454 = vmatpush1.bf16.msra.mxu0 0
  %3455 = vmatprep.subr.bf16.mxu0 0
  %3456 = vmatpush1.bf16.msra.mxu0 0
  %3457 = vmatprep.subr.bf16.mxu0 0
  %3458 = vmatpush1.bf16.msra.mxu0 0
  %3459 = vmatprep.subr.bf16.mxu0 0
  %3460 = vmatpush1.bf16.msra.mxu0 0
  %3461 = vmatprep.mubr.bf16.mxu0 0
  %3462 = vmatmul.mubr.bf16.gmra.mrb[0].mxu0 %v3420
  %v3463 = vpop.f32.mrb[0].mxu0
  %v3464 = vadd.f32 0.0, %v3463
  %v3465 = vpop.f32.mrb[0].mxu0
  %v3466 = vpop.f32.mrb[0].mxu0
  %v3467 = vpop.f32.mrb[0].mxu0
  %3468 = vdwg.mxu0
  %v3469 = vpack.c.bf16 %v3464, %v3464
  %v3470 = vld [vmem:[%s7] sm:$0xff]
  %v3471 = vld [vmem:[%s7 + $0x8] sm:$0xff]
  %v3472 = vld [vmem:[%s7 + $0x10] sm:$0xff]
  %v3473 = vld [vmem:[%s7 + $0x18] sm:$0xff]
  %v3474 = vld [vmem:[%s7 + $0x20] sm:$0xff]
  %v3475 = vld [vmem:[%s7 + $0x28] sm:$0xff]
  %v3476 = vld [vmem:[%s7 + $0x30] sm:$0xff]
  %v3477 = vld [vmem:[%s7 + $0x38] sm:$0xff]
  %v3478 = vld [vmem:[%s7 + $0x40] sm:$0xff]
  %v3479 = vld [vmem:[%s7 + $0x48] sm:$0xff]
  %v3480 = vld [vmem:[%s7 + $0x50] sm:$0xff]
  %v3481 = vld [vmem:[%s7 + $0x58] sm:$0xff]
  %v3482 = vld [vmem:[%s7 + $0x60] sm:$0xff]
  %v3483 = vld [vmem:[%s7 + $0x68] sm:$0xff]
  %v3484 = vld [vmem:[%s7 + $0x70] sm:$0xff]
  %v3485 = vld [vmem:[%s7 + $0x78] sm:$0xff]
  %v3486 = vld [vmem:[%s7 + $0x80] sm:$0xff]
  %v3487 = vld [vmem:[%s7 + $0x88] sm:$0xff]
  %v3488 = vld [vmem:[%s7 + $0x90] sm:$0xff]
  %v3489 = vld [vmem:[%s7 + $0x98] sm:$0xff]
  %v3490 = vld [vmem:[%s7 + $0xa0] sm:$0xff]
  %v3491 = vld [vmem:[%s7 + $0xa8] sm:$0xff]
  %v3492 = vld [vmem:[%s7 + $0xb0] sm:$0xff]
  %v3493 = vld [vmem:[%s7 + $0xb8] sm:$0xff]
  %v3494 = vld [vmem:[%s7 + $0xc0] sm:$0xff]
  %v3495 = vld [vmem:[%s7 + $0xc8] sm:$0xff]
  %v3496 = vld [vmem:[%s7 + $0xd0] sm:$0xff]
  %v3497 = vld [vmem:[%s7 + $0xd8] sm:$0xff]
  %v3498 = vld [vmem:[%s7 + $0xe0] sm:$0xff]
  %v3499 = vld [vmem:[%s7 + $0xe8] sm:$0xff]
  %v3500 = vld [vmem:[%s7 + $0xf0] sm:$0xff]
  %v3501 = vld [vmem:[%s7 + $0xf8] sm:$0xff]
  %v3502 = vld [vmem:[%s8] sm:$0xf]
  %v3504 = vlaneseq
  %v3505 = vshrl.u32 %v3504, 7
  %v3506 = vsub.s32 0, %v3505
  %v3507 = vrot.slane %v3502, %v3506
  %v3508 = vlaneseq
  %v3509 = vshrl.u32 %v3508, 7
  %v3510 = vsub.s32 1, %v3509
  %v3511 = vrot.slane %v3502, %v3510
  %v3512 = vlaneseq
  %v3513 = vshrl.u32 %v3512, 7
  %v3514 = vsub.s32 2, %v3513
  %v3515 = vrot.slane %v3502, %v3514
  %v3516 = vlaneseq
  %v3517 = vshrl.u32 %v3516, 7
  %v3518 = vsub.s32 3, %v3517
  %v3519 = vrot.slane %v3502, %v3518
  %v3556 = vunpack.c.l.b16 %v3470
  %v3557 = vunpack.c.h.b16 %v3470
  %v3558 = vunpack.c.l.b16 %v3471
  %v3559 = vunpack.c.h.b16 %v3471
  %v3560 = vunpack.c.l.b16 %v3472
  %v3561 = vunpack.c.h.b16 %v3472
  %v3562 = vunpack.c.l.b16 %v3473
  %v3563 = vunpack.c.h.b16 %v3473
  %v3564 = vunpack.c.l.b16 %v3474
  %v3565 = vunpack.c.h.b16 %v3474
  %v3566 = vunpack.c.l.b16 %v3475
  %v3567 = vunpack.c.h.b16 %v3475
  %v3568 = vunpack.c.l.b16 %v3476
  %v3569 = vunpack.c.h.b16 %v3476
  %v3570 = vunpack.c.l.b16 %v3477
  %v3571 = vunpack.c.h.b16 %v3477
  %v3572 = vunpack.c.l.b16 %v3478
  %v3573 = vunpack.c.h.b16 %v3478
  %v3574 = vunpack.c.l.b16 %v3479
  %v3575 = vunpack.c.h.b16 %v3479
  %v3576 = vunpack.c.l.b16 %v3480
  %v3577 = vunpack.c.h.b16 %v3480
  %v3578 = vunpack.c.l.b16 %v3481
  %v3579 = vunpack.c.h.b16 %v3481
  %v3580 = vunpack.c.l.b16 %v3482
  %v3581 = vunpack.c.h.b16 %v3482
  %v3582 = vunpack.c.l.b16 %v3483
  %v3583 = vunpack.c.h.b16 %v3483
  %v3584 = vunpack.c.l.b16 %v3484
  %v3585 = vunpack.c.h.b16 %v3484
  %v3586 = vunpack.c.l.b16 %v3485
  %v3587 = vunpack.c.h.b16 %v3485
  %v3588 = vunpack.c.l.b16 %v3486
  %v3589 = vunpack.c.h.b16 %v3486
  %v3590 = vunpack.c.l.b16 %v3487
  %v3591 = vunpack.c.h.b16 %v3487
  %v3592 = vunpack.c.l.b16 %v3488
  %v3593 = vunpack.c.h.b16 %v3488
  %v3594 = vunpack.c.l.b16 %v3489
  %v3595 = vunpack.c.h.b16 %v3489
  %v3596 = vunpack.c.l.b16 %v3490
  %v3597 = vunpack.c.h.b16 %v3490
  %v3598 = vunpack.c.l.b16 %v3491
  %v3599 = vunpack.c.h.b16 %v3491
  %v3600 = vunpack.c.l.b16 %v3492
  %v3601 = vunpack.c.h.b16 %v3492
  %v3602 = vunpack.c.l.b16 %v3493
  %v3603 = vunpack.c.h.b16 %v3493
  %v3604 = vunpack.c.l.b16 %v3494
  %v3605 = vunpack.c.h.b16 %v3494
  %v3606 = vunpack.c.l.b16 %v3495
  %v3607 = vunpack.c.h.b16 %v3495
  %v3608 = vunpack.c.l.b16 %v3496
  %v3609 = vunpack.c.h.b16 %v3496
  %v3610 = vunpack.c.l.b16 %v3497
  %v3611 = vunpack.c.h.b16 %v3497
  %v3612 = vunpack.c.l.b16 %v3498
  %v3613 = vunpack.c.h.b16 %v3498
  %v3614 = vunpack.c.l.b16 %v3499
  %v3615 = vunpack.c.h.b16 %v3499
  %v3616 = vunpack.c.l.b16 %v3500
  %v3617 = vunpack.c.h.b16 %v3500
  %v3618 = vunpack.c.l.b16 %v3501
  %v3619 = vunpack.c.h.b16 %v3501
  %v3620 = vpack.c.b16 %v3560, %v3556
  %v3621 = vpack.c.b16 %v3561, %v3557
  %v3622 = vpack.c.b16 %v3562, %v3558
  %v3623 = vpack.c.b16 %v3563, %v3559
  %v3624 = vpack.c.b16 %v3568, %v3564
  %v3625 = vpack.c.b16 %v3569, %v3565
  %v3626 = vpack.c.b16 %v3570, %v3566
  %v3627 = vpack.c.b16 %v3571, %v3567
  %v3628 = vpack.c.b16 %v3576, %v3572
  %v3629 = vpack.c.b16 %v3577, %v3573
  %v3630 = vpack.c.b16 %v3578, %v3574
  %v3631 = vpack.c.b16 %v3579, %v3575
  %v3632 = vpack.c.b16 %v3584, %v3580
  %v3633 = vpack.c.b16 %v3585, %v3581
  %v3634 = vpack.c.b16 %v3586, %v3582
  %v3635 = vpack.c.b16 %v3587, %v3583
  %v3636 = vpack.c.b16 %v3592, %v3588
  %v3637 = vpack.c.b16 %v3593, %v3589
  %v3638 = vpack.c.b16 %v3594, %v3590
  %v3639 = vpack.c.b16 %v3595, %v3591
  %v3640 = vpack.c.b16 %v3600, %v3596
  %v3641 = vpack.c.b16 %v3601, %v3597
  %v3642 = vpack.c.b16 %v3602, %v3598
  %v3643 = vpack.c.b16 %v3603, %v3599
  %v3644 = vpack.c.b16 %v3608, %v3604
  %v3645 = vpack.c.b16 %v3609, %v3605
  %v3646 = vpack.c.b16 %v3610, %v3606
  %v3647 = vpack.c.b16 %v3611, %v3607
  %v3648 = vpack.c.b16 %v3616, %v3612
  %v3649 = vpack.c.b16 %v3617, %v3613
  %v3650 = vpack.c.b16 %v3618, %v3614
  %v3651 = vpack.c.b16 %v3619, %v3615
  %3684 = vmatprep.subr.bf16.mxu0 %v3621
  %3685 = vmatpush1.bf16.msra.mxu0 %v3620
  %3686 = vmatprep.subr.bf16.mxu0 %v3625
  %3687 = vmatpush1.bf16.msra.mxu0 %v3624
  %3688 = vmatprep.subr.bf16.mxu0 %v3629
  %3689 = vmatpush1.bf16.msra.mxu0 %v3628
  %3690 = vmatprep.subr.bf16.mxu0 %v3633
  %3691 = vmatpush1.bf16.msra.mxu0 %v3632
  %3692 = vmatprep.subr.bf16.mxu0 %v3637
  %3693 = vmatpush1.bf16.msra.mxu0 %v3636
  %3694 = vmatprep.subr.bf16.mxu0 %v3641
  %3695 = vmatpush1.bf16.msra.mxu0 %v3640
  %3696 = vmatprep.subr.bf16.mxu0 %v3645
  %3697 = vmatpush1.bf16.msra.mxu0 %v3644
  %3698 = vmatprep.subr.bf16.mxu0 %v3649
  %3699 = vmatpush1.bf16.msra.mxu0 %v3648
  %3700 = vmatprep.subr.bf16.mxu0 0
  %3701 = vmatpush1.bf16.msra.mxu0 0
  %3702 = vmatprep.subr.bf16.mxu0 0
  %3703 = vmatpush1.bf16.msra.mxu0 0
  %3704 = vmatprep.subr.bf16.mxu0 0
  %3705 = vmatpush1.bf16.msra.mxu0 0
  %3706 = vmatprep.subr.bf16.mxu0 0
  %3707 = vmatpush1.bf16.msra.mxu0 0
  %3708 = vmatprep.subr.bf16.mxu0 0
  %3709 = vmatpush1.bf16.msra.mxu0 0
  %3710 = vmatprep.subr.bf16.mxu0 0
  %3711 = vmatpush1.bf16.msra.mxu0 0
  %3712 = vmatprep.subr.bf16.mxu0 0
  %3713 = vmatpush1.bf16.msra.mxu0 0
  %3714 = vmatprep.subr.bf16.mxu0 0
  %3715 = vmatpush1.bf16.msra.mxu0 0
  %3716 = vmatprep.mubr.bf16.mxu0 0
  %3717 = vmatmul.mubr.bf16.gmra.mrb[0].mxu0 %v3469
  %v3718 = vpop.f32.mrb[0].mxu0
  %v3719 = vadd.f32 %v3507, %v3718
  %v3720 = vpop.f32.mrb[0].mxu0
  %v3721 = vadd.f32 %v3511, %v3720
  %v3722 = vpop.f32.mrb[0].mxu0
  %v3723 = vpop.f32.mrb[0].mxu0
  %3724 = vdwg.mxu0
  %3725 = vmatprep.subr.bf16.mxu0 %v3623
  %3726 = vmatpush1.bf16.msra.mxu0 %v3622
  %3727 = vmatprep.subr.bf16.mxu0 %v3627
  %3728 = vmatpush1.bf16.msra.mxu0 %v3626
  %3729 = vmatprep.subr.bf16.mxu0 %v3631
  %3730 = vmatpush1.bf16.msra.mxu0 %v3630
  %3731 = vmatprep.subr.bf16.mxu0 %v3635
  %3732 = vmatpush1.bf16.msra.mxu0 %v3634
  %3733 = vmatprep.subr.bf16.mxu0 %v3639
  %3734 = vmatpush1.bf16.msra.mxu0 %v3638
  %3735 = vmatprep.subr.bf16.mxu0 %v3643
  %3736 = vmatpush1.bf16.msra.mxu0 %v3642
  %3737 = vmatprep.subr.bf16.mxu0 %v3647
  %3738 = vmatpush1.bf16.msra.mxu0 %v3646
  %3739 = vmatprep.subr.bf16.mxu0 %v3651
  %3740 = vmatpush1.bf16.msra.mxu0 %v3650
  %3741 = vmatprep.subr.bf16.mxu0 0
  %3742 = vmatpush1.bf16.msra.mxu0 0
  %3743 = vmatprep.subr.bf16.mxu0 0
  %3744 = vmatpush1.bf16.msra.mxu0 0
  %3745 = vmatprep.subr.bf16.mxu0 0
  %3746 = vmatpush1.bf16.msra.mxu0 0
  %3747 = vmatprep.subr.bf16.mxu0 0
  %3748 = vmatpush1.bf16.msra.mxu0 0
  %3749 = vmatprep.subr.bf16.mxu0 0
  %3750 = vmatpush1.bf16.msra.mxu0 0
  %3751 = vmatprep.subr.bf16.mxu0 0
  %3752 = vmatpush1.bf16.msra.mxu0 0
  %3753 = vmatprep.subr.bf16.mxu0 0
  %3754 = vmatpush1.bf16.msra.mxu0 0
  %3755 = vmatprep.subr.bf16.mxu0 0
  %3756 = vmatpush1.bf16.msra.mxu0 0
  %3757 = vmatprep.mubr.bf16.mxu0 0
  %3758 = vmatmul.mubr.bf16.gmra.mrb[0].mxu0 %v3469
  %v3759 = vpop.f32.mrb[0].mxu0
  %v3760 = vadd.f32 %v3515, %v3759
  %v3761 = vpop.f32.mrb[0].mxu0
  %v3762 = vadd.f32 %v3519, %v3761
  %v3763 = vpop.f32.mrb[0].mxu0
  %v3764 = vpop.f32.mrb[0].mxu0
  %3765 = vdwg.mxu0
  %3766 = vst [vmem:[%s9] sm:$0xff] %v3719
  %3767 = vst [vmem:[%s9 + $0x8] sm:$0xff] %v3721
  %3768 = vst [vmem:[%s9 + $0x10] sm:$0xff] %v3760
  %3769 = vst [vmem:[%s9 + $0x18] sm:$0xff] %v3762
  // Predicated region
  $region38: #{forward.5} parent=0 // pred_check
    _
  $region39: #{forward.5} parent=0 // pred_check_branch
    %3771 = sbr.rel (0) target = $region41
  $region40: #{forward.5} parent=0 // pred_region
    _
  $region41: #{forward.5} parent=0 // pred_fallthru
    _
  // Predicated region
  $region42: #{forward.5} parent=0 // pred_check
    _
  $region43: #{forward.5} parent=0 // pred_check_branch
    %3773 = sbr.rel (0) target = $region45
  $region44: #{forward.5} parent=0 // pred_region
    _
  $region45: #{forward.5} parent=0 // pred_fallthru
    _

// kernel: forward.4
$region0: #{forward.4}
  #allocation0 [shape = 'u32[]', space=smem, size = 0x4, offset = 0x4, fixed_abs, tag = 'smem constant byte address 0x4 - core index']
  #allocation1 [shape = 'u32[144,128]{1,0:T(1,128)}', space=vmem, size = 0x12000, scoped, tag = 'internal scratch']
  %s0 = inlined_call_operand.vmem [shape: bf16[9,128,128], index: 0, kind: input, shape index: {}]
  %s1 = inlined_call_operand.vmem [shape: bf16[9,128,128], index: 1, kind: input, shape index: {}]
  %s2 = inlined_call_operand.vmem [shape: bf16[3,128,128], index: 2, kind: input, shape index: {}]
  %s3 = inlined_call_operand.vmem [shape: bf16[1152,128], index: 3, kind: input, shape index: {}]
  %s4 = inlined_call_operand.vmem [shape: f32[4,128], index: 4, kind: input, shape index: {}]
  %s5 = inlined_call_operand.vmem [shape: f32[4,128], index: 5, kind: input, shape index: {}]
  %s6 = inlined_call_operand.vmem [shape: bf16[128,128], index: 6, kind: output, shape index: {}]
  %s7 = sld [smem:[#allocation0]]
  $region34: #{forward.4} parent=0
    _
  %s9 = ssub.s32 1, %s7
  %s10 = scalar_select 0, %s9, %s7
  // Predicated region
  $region2: #{forward.4} parent=0 // pred_check
    _
  $region3: #{forward.4} parent=0 // pred_check_branch
    %12 = sbr.rel (0) target = $region5
  $region4: #{forward.4} parent=0 // pred_region
    _
  $region5: #{forward.4} parent=0 // pred_fallthru
    _
  // Predicated region
  $region6: #{forward.4} parent=0 // pred_check
    _
  $region7: #{forward.4} parent=0 // pred_check_branch
    %14 = sbr.rel (0) target = $region9
  $region8: #{forward.4} parent=0 // pred_region
    _
  $region9: #{forward.4} parent=0 // pred_fallthru
    _
  // Predicated region
  $region10: #{forward.4} parent=0 // pred_check
    _
  $region11: #{forward.4} parent=0 // pred_check_branch
    %16 = sbr.rel (0) target = $region13
  $region12: #{forward.4} parent=0 // pred_region
    _
  $region13: #{forward.4} parent=0 // pred_fallthru
    _
  // Predicated region
  $region14: #{forward.4} parent=0 // pred_check
    _
  $region15: #{forward.4} parent=0 // pred_check_branch
    %18 = sbr.rel (0) target = $region17
  $region16: #{forward.4} parent=0 // pred_region
    _
  $region17: #{forward.4} parent=0 // pred_fallthru
    _
  // Predicated region
  $region18: #{forward.4} parent=0 // pred_check
    _
  $region19: #{forward.4} parent=0 // pred_check_branch
    %20 = sbr.rel (0) target = $region21
  $region20: #{forward.4} parent=0 // pred_region
    _
  $region21: #{forward.4} parent=0 // pred_fallthru
    _
  // Predicated region
  $region22: #{forward.4} parent=0 // pred_check
    _
  $region23: #{forward.4} parent=0 // pred_check_branch
    %22 = sbr.rel (0) target = $region25
  $region24: #{forward.4} parent=0 // pred_region
    _
  $region25: #{forward.4} parent=0 // pred_fallthru
    _
  %v24 = vld [vmem:[%s0] sm:$0xf]
  %v25 = vld [vmem:[%s0 + $0x4] sm:$0xf]
  %v26 = vld [vmem:[%s0 + $0x8] sm:$0xf]
  %v27 = vld [vmem:[%s0 + $0xc] sm:$0xf]
  %v28 = vld [vmem:[%s0 + $0x10] sm:$0xf]
  %v29 = vld [vmem:[%s0 + $0x14] sm:$0xf]
  %v30 = vld [vmem:[%s0 + $0x18] sm:$0xf]
  %v31 = vld [vmem:[%s0 + $0x1c] sm:$0xf]
  %v32 = vld [vmem:[%s0 + $0x20] sm:$0xf]
  %v33 = vld [vmem:[%s0 + $0x24] sm:$0xf]
  %v34 = vld [vmem:[%s0 + $0x28] sm:$0xf]
  %v35 = vld [vmem:[%s0 + $0x2c] sm:$0xf]
  %v36 = vld [vmem:[%s0 + $0x30] sm:$0xf]
  %v37 = vld [vmem:[%s0 + $0x34] sm:$0xf]
  %v38 = vld [vmem:[%s0 + $0x38] sm:$0xf]
  %v39 = vld [vmem:[%s0 + $0x3c] sm:$0xf]
  %s40 = scalar_lea.vmem %s0, 64
  %v41 = vld [vmem:[%s40] sm:$0xf]
  %v42 = vld [vmem:[%s40 + $0x4] sm:$0xf]
  %v43 = vld [vmem:[%s40 + $0x8] sm:$0xf]
  %v44 = vld [vmem:[%s40 + $0xc] sm:$0xf]
  %v45 = vld [vmem:[%s40 + $0x10] sm:$0xf]
  %v46 = vld [vmem:[%s40 + $0x14] sm:$0xf]
  %v47 = vld [vmem:[%s40 + $0x18] sm:$0xf]
  %v48 = vld [vmem:[%s40 + $0x1c] sm:$0xf]
  %v49 = vld [vmem:[%s40 + $0x20] sm:$0xf]
  %v50 = vld [vmem:[%s40 + $0x24] sm:$0xf]
  %v51 = vld [vmem:[%s40 + $0x28] sm:$0xf]
  %v52 = vld [vmem:[%s40 + $0x2c] sm:$0xf]
  %v53 = vld [vmem:[%s40 + $0x30] sm:$0xf]
  %v54 = vld [vmem:[%s40 + $0x34] sm:$0xf]
  %v55 = vld [vmem:[%s40 + $0x38] sm:$0xf]
  %v56 = vld [vmem:[%s40 + $0x3c] sm:$0xf]
  %v57 = vmax.bf16 %v24, %v41
  %v58 = vmax.bf16 %v25, %v42
  %v59 = vmax.bf16 %v26, %v43
  %v60 = vmax.bf16 %v27, %v44
  %v61 = vmax.bf16 %v28, %v45
  %v62 = vmax.bf16 %v29, %v46
  %v63 = vmax.bf16 %v30, %v47
  %v64 = vmax.bf16 %v31, %v48
  %v65 = vmax.bf16 %v32, %v49
  %v66 = vmax.bf16 %v33, %v50
  %v67 = vmax.bf16 %v34, %v51
  %v68 = vmax.bf16 %v35, %v52
  %v69 = vmax.bf16 %v36, %v53
  %v70 = vmax.bf16 %v37, %v54
  %v71 = vmax.bf16 %v38, %v55
  %v72 = vmax.bf16 %v39, %v56
  %s73 = scalar_lea.vmem %s0, 128
  %v74 = vld [vmem:[%s73] sm:$0xf]
  %v75 = vld [vmem:[%s73 + $0x4] sm:$0xf]
  %v76 = vld [vmem:[%s73 + $0x8] sm:$0xf]
  %v77 = vld [vmem:[%s73 + $0xc] sm:$0xf]
  %v78 = vld [vmem:[%s73 + $0x10] sm:$0xf]
  %v79 = vld [vmem:[%s73 + $0x14] sm:$0xf]
  %v80 = vld [vmem:[%s73 + $0x18] sm:$0xf]
  %v81 = vld [vmem:[%s73 + $0x1c] sm:$0xf]
  %v82 = vld [vmem:[%s73 + $0x20] sm:$0xf]
  %v83 = vld [vmem:[%s73 + $0x24] sm:$0xf]
  %v84 = vld [vmem:[%s73 + $0x28] sm:$0xf]
  %v85 = vld [vmem:[%s73 + $0x2c] sm:$0xf]
  %v86 = vld [vmem:[%s73 + $0x30] sm:$0xf]
  %v87 = vld [vmem:[%s73 + $0x34] sm:$0xf]
  %v88 = vld [vmem:[%s73 + $0x38] sm:$0xf]
  %v89 = vld [vmem:[%s73 + $0x3c] sm:$0xf]
  %v90 = vmax.bf16 %v57, %v74
  %v91 = vmax.bf16 %v58, %v75
  %v92 = vmax.bf16 %v59, %v76
  %v93 = vmax.bf16 %v60, %v77
  %v94 = vmax.bf16 %v61, %v78
  %v95 = vmax.bf16 %v62, %v79
  %v96 = vmax.bf16 %v63, %v80
  %v97 = vmax.bf16 %v64, %v81
  %v98 = vmax.bf16 %v65, %v82
  %v99 = vmax.bf16 %v66, %v83
  %v100 = vmax.bf16 %v67, %v84
  %v101 = vmax.bf16 %v68, %v85
  %v102 = vmax.bf16 %v69, %v86
  %v103 = vmax.bf16 %v70, %v87
  %v104 = vmax.bf16 %v71, %v88
  %v105 = vmax.bf16 %v72, %v89
  %s106 = scalar_lea.vmem %s0, 192
  %v107 = vld [vmem:[%s106] sm:$0xf]
  %v108 = vld [vmem:[%s106 + $0x4] sm:$0xf]
  %v109 = vld [vmem:[%s106 + $0x8] sm:$0xf]
  %v110 = vld [vmem:[%s106 + $0xc] sm:$0xf]
  %v111 = vld [vmem:[%s106 + $0x10] sm:$0xf]
  %v112 = vld [vmem:[%s106 + $0x14] sm:$0xf]
  %v113 = vld [vmem:[%s106 + $0x18] sm:$0xf]
  %v114 = vld [vmem:[%s106 + $0x1c] sm:$0xf]
  %v115 = vld [vmem:[%s106 + $0x20] sm:$0xf]
  %v116 = vld [vmem:[%s106 + $0x24] sm:$0xf]
  %v117 = vld [vmem:[%s106 + $0x28] sm:$0xf]
  %v118 = vld [vmem:[%s106 + $0x2c] sm:$0xf]
  %v119 = vld [vmem:[%s106 + $0x30] sm:$0xf]
  %v120 = vld [vmem:[%s106 + $0x34] sm:$0xf]
  %v121 = vld [vmem:[%s106 + $0x38] sm:$0xf]
  %v122 = vld [vmem:[%s106 + $0x3c] sm:$0xf]
  %v123 = vmax.bf16 %v90, %v107
  %v124 = vmax.bf16 %v91, %v108
  %v125 = vmax.bf16 %v92, %v109
  %v126 = vmax.bf16 %v93, %v110
  %v127 = vmax.bf16 %v94, %v111
  %v128 = vmax.bf16 %v95, %v112
  %v129 = vmax.bf16 %v96, %v113
  %v130 = vmax.bf16 %v97, %v114
  %v131 = vmax.bf16 %v98, %v115
  %v132 = vmax.bf16 %v99, %v116
  %v133 = vmax.bf16 %v100, %v117
  %v134 = vmax.bf16 %v101, %v118
  %v135 = vmax.bf16 %v102, %v119
  %v136 = vmax.bf16 %v103, %v120
  %v137 = vmax.bf16 %v104, %v121
  %v138 = vmax.bf16 %v105, %v122
  %s139 = scalar_lea.vmem %s0, 256
  %v140 = vld [vmem:[%s139] sm:$0xf]
  %v141 = vld [vmem:[%s139 + $0x4] sm:$0xf]
  %v142 = vld [vmem:[%s139 + $0x8] sm:$0xf]
  %v143 = vld [vmem:[%s139 + $0xc] sm:$0xf]
  %v144 = vld [vmem:[%s139 + $0x10] sm:$0xf]
  %v145 = vld [vmem:[%s139 + $0x14] sm:$0xf]
  %v146 = vld [vmem:[%s139 + $0x18] sm:$0xf]
  %v147 = vld [vmem:[%s139 + $0x1c] sm:$0xf]
  %v148 = vld [vmem:[%s139 + $0x20] sm:$0xf]
  %v149 = vld [vmem:[%s139 + $0x24] sm:$0xf]
  %v150 = vld [vmem:[%s139 + $0x28] sm:$0xf]
  %v151 = vld [vmem:[%s139 + $0x2c] sm:$0xf]
  %v152 = vld [vmem:[%s139 + $0x30] sm:$0xf]
  %v153 = vld [vmem:[%s139 + $0x34] sm:$0xf]
  %v154 = vld [vmem:[%s139 + $0x38] sm:$0xf]
  %v155 = vld [vmem:[%s139 + $0x3c] sm:$0xf]
  %v156 = vmax.bf16 %v123, %v140
  %v157 = vmax.bf16 %v124, %v141
  %v158 = vmax.bf16 %v125, %v142
  %v159 = vmax.bf16 %v126, %v143
  %v160 = vmax.bf16 %v127, %v144
  %v161 = vmax.bf16 %v128, %v145
  %v162 = vmax.bf16 %v129, %v146
  %v163 = vmax.bf16 %v130, %v147
  %v164 = vmax.bf16 %v131, %v148
  %v165 = vmax.bf16 %v132, %v149
  %v166 = vmax.bf16 %v133, %v150
  %v167 = vmax.bf16 %v134, %v151
  %v168 = vmax.bf16 %v135, %v152
  %v169 = vmax.bf16 %v136, %v153
  %v170 = vmax.bf16 %v137, %v154
  %v171 = vmax.bf16 %v138, %v155
  %s172 = scalar_lea.vmem %s0, 320
  %v173 = vld [vmem:[%s172] sm:$0xf]
  %v174 = vld [vmem:[%s172 + $0x4] sm:$0xf]
  %v175 = vld [vmem:[%s172 + $0x8] sm:$0xf]
  %v176 = vld [vmem:[%s172 + $0xc] sm:$0xf]
  %v177 = vld [vmem:[%s172 + $0x10] sm:$0xf]
  %v178 = vld [vmem:[%s172 + $0x14] sm:$0xf]
  %v179 = vld [vmem:[%s172 + $0x18] sm:$0xf]
  %v180 = vld [vmem:[%s172 + $0x1c] sm:$0xf]
  %v181 = vld [vmem:[%s172 + $0x20] sm:$0xf]
  %v182 = vld [vmem:[%s172 + $0x24] sm:$0xf]
  %v183 = vld [vmem:[%s172 + $0x28] sm:$0xf]
  %v184 = vld [vmem:[%s172 + $0x2c] sm:$0xf]
  %v185 = vld [vmem:[%s172 + $0x30] sm:$0xf]
  %v186 = vld [vmem:[%s172 + $0x34] sm:$0xf]
  %v187 = vld [vmem:[%s172 + $0x38] sm:$0xf]
  %v188 = vld [vmem:[%s172 + $0x3c] sm:$0xf]
  %v189 = vmax.bf16 %v156, %v173
  %v190 = vmax.bf16 %v157, %v174
  %v191 = vmax.bf16 %v158, %v175
  %v192 = vmax.bf16 %v159, %v176
  %v193 = vmax.bf16 %v160, %v177
  %v194 = vmax.bf16 %v161, %v178
  %v195 = vmax.bf16 %v162, %v179
  %v196 = vmax.bf16 %v163, %v180
  %v197 = vmax.bf16 %v164, %v181
  %v198 = vmax.bf16 %v165, %v182
  %v199 = vmax.bf16 %v166, %v183
  %v200 = vmax.bf16 %v167, %v184
  %v201 = vmax.bf16 %v168, %v185
  %v202 = vmax.bf16 %v169, %v186
  %v203 = vmax.bf16 %v170, %v187
  %v204 = vmax.bf16 %v171, %v188
  %s205 = scalar_lea.vmem %s0, 384
  %v206 = vld [vmem:[%s205] sm:$0xf]
  %v207 = vld [vmem:[%s205 + $0x4] sm:$0xf]
  %v208 = vld [vmem:[%s205 + $0x8] sm:$0xf]
  %v209 = vld [vmem:[%s205 + $0xc] sm:$0xf]
  %v210 = vld [vmem:[%s205 + $0x10] sm:$0xf]
  %v211 = vld [vmem:[%s205 + $0x14] sm:$0xf]
  %v212 = vld [vmem:[%s205 + $0x18] sm:$0xf]
  %v213 = vld [vmem:[%s205 + $0x1c] sm:$0xf]
  %v214 = vld [vmem:[%s205 + $0x20] sm:$0xf]
  %v215 = vld [vmem:[%s205 + $0x24] sm:$0xf]
  %v216 = vld [vmem:[%s205 + $0x28] sm:$0xf]
  %v217 = vld [vmem:[%s205 + $0x2c] sm:$0xf]
  %v218 = vld [vmem:[%s205 + $0x30] sm:$0xf]
  %v219 = vld [vmem:[%s205 + $0x34] sm:$0xf]
  %v220 = vld [vmem:[%s205 + $0x38] sm:$0xf]
  %v221 = vld [vmem:[%s205 + $0x3c] sm:$0xf]
  %v222 = vmax.bf16 %v189, %v206
  %v223 = vmax.bf16 %v190, %v207
  %v224 = vmax.bf16 %v191, %v208
  %v225 = vmax.bf16 %v192, %v209
  %v226 = vmax.bf16 %v193, %v210
  %v227 = vmax.bf16 %v194, %v211
  %v228 = vmax.bf16 %v195, %v212
  %v229 = vmax.bf16 %v196, %v213
  %v230 = vmax.bf16 %v197, %v214
  %v231 = vmax.bf16 %v198, %v215
  %v232 = vmax.bf16 %v199, %v216
  %v233 = vmax.bf16 %v200, %v217
  %v234 = vmax.bf16 %v201, %v218
  %v235 = vmax.bf16 %v202, %v219
  %v236 = vmax.bf16 %v203, %v220
  %v237 = vmax.bf16 %v204, %v221
  %s238 = scalar_lea.vmem %s0, 448
  %v239 = vld [vmem:[%s238] sm:$0xf]
  %v240 = vld [vmem:[%s238 + $0x4] sm:$0xf]
  %v241 = vld [vmem:[%s238 + $0x8] sm:$0xf]
  %v242 = vld [vmem:[%s238 + $0xc] sm:$0xf]
  %v243 = vld [vmem:[%s238 + $0x10] sm:$0xf]
  %v244 = vld [vmem:[%s238 + $0x14] sm:$0xf]
  %v245 = vld [vmem:[%s238 + $0x18] sm:$0xf]
  %v246 = vld [vmem:[%s238 + $0x1c] sm:$0xf]
  %v247 = vld [vmem:[%s238 + $0x20] sm:$0xf]
  %v248 = vld [vmem:[%s238 + $0x24] sm:$0xf]
  %v249 = vld [vmem:[%s238 + $0x28] sm:$0xf]
  %v250 = vld [vmem:[%s238 + $0x2c] sm:$0xf]
  %v251 = vld [vmem:[%s238 + $0x30] sm:$0xf]
  %v252 = vld [vmem:[%s238 + $0x34] sm:$0xf]
  %v253 = vld [vmem:[%s238 + $0x38] sm:$0xf]
  %v254 = vld [vmem:[%s238 + $0x3c] sm:$0xf]
  %v255 = vmax.bf16 %v222, %v239
  %v256 = vmax.bf16 %v223, %v240
  %v257 = vmax.bf16 %v224, %v241
  %v258 = vmax.bf16 %v225, %v242
  %v259 = vmax.bf16 %v226, %v243
  %v260 = vmax.bf16 %v227, %v244
  %v261 = vmax.bf16 %v228, %v245
  %v262 = vmax.bf16 %v229, %v246
  %v263 = vmax.bf16 %v230, %v247
  %v264 = vmax.bf16 %v231, %v248
  %v265 = vmax.bf16 %v232, %v249
  %v266 = vmax.bf16 %v233, %v250
  %v267 = vmax.bf16 %v234, %v251
  %v268 = vmax.bf16 %v235, %v252
  %v269 = vmax.bf16 %v236, %v253
  %v270 = vmax.bf16 %v237, %v254
  %s271 = scalar_lea.vmem %s0, 512
  %v272 = vld [vmem:[%s271] sm:$0xf]
  %v273 = vld [vmem:[%s271 + $0x4] sm:$0xf]
  %v274 = vld [vmem:[%s271 + $0x8] sm:$0xf]
  %v275 = vld [vmem:[%s271 + $0xc] sm:$0xf]
  %v276 = vld [vmem:[%s271 + $0x10] sm:$0xf]
  %v277 = vld [vmem:[%s271 + $0x14] sm:$0xf]
  %v278 = vld [vmem:[%s271 + $0x18] sm:$0xf]
  %v279 = vld [vmem:[%s271 + $0x1c] sm:$0xf]
  %v280 = vld [vmem:[%s271 + $0x20] sm:$0xf]
  %v281 = vld [vmem:[%s271 + $0x24] sm:$0xf]
  %v282 = vld [vmem:[%s271 + $0x28] sm:$0xf]
  %v283 = vld [vmem:[%s271 + $0x2c] sm:$0xf]
  %v284 = vld [vmem:[%s271 + $0x30] sm:$0xf]
  %v285 = vld [vmem:[%s271 + $0x34] sm:$0xf]
  %v286 = vld [vmem:[%s271 + $0x38] sm:$0xf]
  %v287 = vld [vmem:[%s271 + $0x3c] sm:$0xf]
  %v288 = vmax.bf16 %v255, %v272
  %v289 = vmax.bf16 %v256, %v273
  %v290 = vmax.bf16 %v257, %v274
  %v291 = vmax.bf16 %v258, %v275
  %v292 = vmax.bf16 %v259, %v276
  %v293 = vmax.bf16 %v260, %v277
  %v294 = vmax.bf16 %v261, %v278
  %v295 = vmax.bf16 %v262, %v279
  %v296 = vmax.bf16 %v263, %v280
  %v297 = vmax.bf16 %v264, %v281
  %v298 = vmax.bf16 %v265, %v282
  %v299 = vmax.bf16 %v266, %v283
  %v300 = vmax.bf16 %v267, %v284
  %v301 = vmax.bf16 %v268, %v285
  %v302 = vmax.bf16 %v269, %v286
  %v303 = vmax.bf16 %v270, %v287
  %v304 = vld [vmem:[%s4] sm:$0x1]
  %v305 = vld [vmem:[%s5] sm:$0x1]
  %v306 = vld [vmem:[%s4 + $0x1] sm:$0x1]
  %v307 = vld [vmem:[%s5 + $0x1] sm:$0x1]
  %v308 = vld [vmem:[%s4 + $0x2] sm:$0x1]
  %v309 = vld [vmem:[%s5 + $0x2] sm:$0x1]
  %v310 = vld [vmem:[%s4 + $0x3] sm:$0x1]
  %v311 = vld [vmem:[%s5 + $0x3] sm:$0x1]
  %v312 = vld [vmem:[%s2] sm:$0xf]
  %v313 = vld [vmem:[%s2 + $0x4] sm:$0xf]
  %v314 = vld [vmem:[%s2 + $0x8] sm:$0xf]
  %v315 = vld [vmem:[%s2 + $0xc] sm:$0xf]
  %v316 = vld [vmem:[%s2 + $0x10] sm:$0xf]
  %v317 = vld [vmem:[%s2 + $0x14] sm:$0xf]
  %v318 = vld [vmem:[%s2 + $0x18] sm:$0xf]
  %v319 = vld [vmem:[%s2 + $0x1c] sm:$0xf]
  %v320 = vld [vmem:[%s2 + $0x20] sm:$0xf]
  %v321 = vld [vmem:[%s2 + $0x24] sm:$0xf]
  %v322 = vld [vmem:[%s2 + $0x28] sm:$0xf]
  %v323 = vld [vmem:[%s2 + $0x2c] sm:$0xf]
  %v324 = vld [vmem:[%s2 + $0x30] sm:$0xf]
  %v325 = vld [vmem:[%s2 + $0x34] sm:$0xf]
  %v326 = vld [vmem:[%s2 + $0x38] sm:$0xf]
  %v327 = vld [vmem:[%s2 + $0x3c] sm:$0xf]
  %v344 = vunpack.c.l.b16 %v288
  %v345 = vunpack.c.l.b16 %v289
  %v346 = vunpack.c.l.b16 %v290
  %v347 = vunpack.c.l.b16 %v291
  %v348 = vunpack.c.l.b16 %v292
  %v349 = vunpack.c.l.b16 %v293
  %v350 = vunpack.c.l.b16 %v294
  %v351 = vunpack.c.l.b16 %v295
  %v352 = vunpack.c.l.b16 %v296
  %v353 = vunpack.c.l.b16 %v297
  %v354 = vunpack.c.l.b16 %v298
  %v355 = vunpack.c.l.b16 %v299
  %v356 = vunpack.c.l.b16 %v300
  %v357 = vunpack.c.l.b16 %v301
  %v358 = vunpack.c.l.b16 %v302
  %v359 = vunpack.c.l.b16 %v303
  %v360 = vpack.c.b16 %v345, %v344
  %v361 = vpack.c.b16 %v347, %v346
  %v362 = vpack.c.b16 %v349, %v348
  %v363 = vpack.c.b16 %v351, %v350
  %v364 = vpack.c.b16 %v353, %v352
  %v365 = vpack.c.b16 %v355, %v354
  %v366 = vpack.c.b16 %v357, %v356
  %v367 = vpack.c.b16 %v359, %v358
  %v392 = vunpack.c.l.b16 %v312
  %v393 = vunpack.c.l.b16 %v313
  %v394 = vunpack.c.l.b16 %v314
  %v395 = vunpack.c.l.b16 %v315
  %v396 = vunpack.c.l.b16 %v316
  %v397 = vunpack.c.l.b16 %v317
  %v398 = vunpack.c.l.b16 %v318
  %v399 = vunpack.c.l.b16 %v319
  %v400 = vunpack.c.l.b16 %v320
  %v401 = vunpack.c.l.b16 %v321
  %v402 = vunpack.c.l.b16 %v322
  %v403 = vunpack.c.l.b16 %v323
  %v404 = vunpack.c.l.b16 %v324
  %v405 = vunpack.c.l.b16 %v325
  %v406 = vunpack.c.l.b16 %v326
  %v407 = vunpack.c.l.b16 %v327
  %v408 = vpack.c.b16 %v393, %v392
  %v409 = vpack.c.b16 %v395, %v394
  %v410 = vpack.c.b16 %v397, %v396
  %v411 = vpack.c.b16 %v399, %v398
  %v412 = vpack.c.b16 %v401, %v400
  %v413 = vpack.c.b16 %v403, %v402
  %v414 = vpack.c.b16 %v405, %v404
  %v415 = vpack.c.b16 %v407, %v406
  %424 = vmatprep.subr.bf16.mxu0 0
  %425 = vmatpush1.bf16.msra.mxu0 %v408
  %426 = vmatprep.subr.bf16.mxu0 0
  %427 = vmatpush1.bf16.msra.mxu0 %v409
  %428 = vmatprep.subr.bf16.mxu0 0
  %429 = vmatpush1.bf16.msra.mxu0 %v410
  %430 = vmatprep.subr.bf16.mxu0 0
  %431 = vmatpush1.bf16.msra.mxu0 %v411
  %432 = vmatprep.subr.bf16.mxu0 0
  %433 = vmatpush1.bf16.msra.mxu0 %v412
  %434 = vmatprep.subr.bf16.mxu0 0
  %435 = vmatpush1.bf16.msra.mxu0 %v413
  %436 = vmatprep.subr.bf16.mxu0 0
  %437 = vmatpush1.bf16.msra.mxu0 %v414
  %438 = vmatprep.subr.bf16.mxu0 0
  %439 = vmatpush1.bf16.msra.mxu0 %v415
  %440 = vmatprep.subr.bf16.mxu0 0
  %441 = vmatpush1.bf16.msra.mxu0 0
  %442 = vmatprep.subr.bf16.mxu0 0
  %443 = vmatpush1.bf16.msra.mxu0 0
  %444 = vmatprep.subr.bf16.mxu0 0
  %445 = vmatpush1.bf16.msra.mxu0 0
  %446 = vmatprep.subr.bf16.mxu0 0
  %447 = vmatpush1.bf16.msra.mxu0 0
  %448 = vmatprep.subr.bf16.mxu0 0
  %449 = vmatpush1.bf16.msra.mxu0 0
  %450 = vmatprep.subr.bf16.mxu0 0
  %451 = vmatpush1.bf16.msra.mxu0 0
  %452 = vmatprep.subr.bf16.mxu0 0
  %453 = vmatpush1.bf16.msra.mxu0 0
  %454 = vmatprep.subr.bf16.mxu0 0
  %455 = vmatpush1.bf16.msra.mxu0 0
  %456 = vmatprep.mubr.bf16.mxu0 0
  %457 = vmatmul.mubr.bf16.gmra.mrb[0].mxu0 %v360
  %v458 = vpop.f32.mrb[0].mxu0
  %v459 = vadd.f32 0.0, %v458
  %v460 = vpop.f32.mrb[0].mxu0
  %v461 = vpop.f32.mrb[0].mxu0
  %v462 = vadd.f32 0.0, %v461
  %v463 = vpop.f32.mrb[0].mxu0
  %464 = vmatprep.mubr.bf16.mxu0 0
  %465 = vmatmul.mubr.bf16.gmra.mrb[0].mxu0 %v361
  %v466 = vpop.f32.mrb[0].mxu0
  %v467 = vadd.f32 0.0, %v466
  %v468 = vpop.f32.mrb[0].mxu0
  %v469 = vpop.f32.mrb[0].mxu0
  %v470 = vadd.f32 0.0, %v469
  %v471 = vpop.f32.mrb[0].mxu0
  %472 = vmatprep.mubr.bf16.mxu0 0
  %473 = vmatmul.mubr.bf16.gmra.mrb[0].mxu0 %v362
  %v474 = vpop.f32.mrb[0].mxu0
  %v475 = vadd.f32 0.0, %v474
  %v476 = vpop.f32.mrb[0].mxu0
  %v477 = vpop.f32.mrb[0].mxu0
  %v478 = vadd.f32 0.0, %v477
  %v479 = vpop.f32.mrb[0].mxu0
  %480 = vmatprep.mubr.bf16.mxu0 0
  %481 = vmatmul.mubr.bf16.gmra.mrb[0].mxu0 %v363
  %v482 = vpop.f32.mrb[0].mxu0
  %v483 = vadd.f32 0.0, %v482
  %v484 = vpop.f32.mrb[0].mxu0
  %v485 = vpop.f32.mrb[0].mxu0
  %v486 = vadd.f32 0.0, %v485
  %v487 = vpop.f32.mrb[0].mxu0
  %488 = vmatprep.mubr.bf16.mxu0 0
  %489 = vmatmul.mubr.bf16.gmra.mrb[0].mxu0 %v364
  %v490 = vpop.f32.mrb[0].mxu0
  %v491 = vadd.f32 0.0, %v490
  %v492 = vpop.f32.mrb[0].mxu0
  %v493 = vpop.f32.mrb[0].mxu0
  %v494 = vadd.f32 0.0, %v493
  %v495 = vpop.f32.mrb[0].mxu0
  %496 = vmatprep.mubr.bf16.mxu0 0
  %497 = vmatmul.mubr.bf16.gmra.mrb[0].mxu0 %v365
  %v498 = vpop.f32.mrb[0].mxu0
  %v499 = vadd.f32 0.0, %v498
  %v500 = vpop.f32.mrb[0].mxu0
  %v501 = vpop.f32.mrb[0].mxu0
  %v502 = vadd.f32 0.0, %v501
  %v503 = vpop.f32.mrb[0].mxu0
  %504 = vmatprep.mubr.bf16.mxu0 0
  %505 = vmatmul.mubr.bf16.gmra.mrb[0].mxu0 %v366
  %v506 = vpop.f32.mrb[0].mxu0
  %v507 = vadd.f32 0.0, %v506
  %v508 = vpop.f32.mrb[0].mxu0
  %v509 = vpop.f32.mrb[0].mxu0
  %v510 = vadd.f32 0.0, %v509
  %v511 = vpop.f32.mrb[0].mxu0
  %512 = vmatprep.mubr.bf16.mxu0 0
  %513 = vmatmul.mubr.bf16.gmra.mrb[0].mxu0 %v367
  %v514 = vpop.f32.mrb[0].mxu0
  %v515 = vadd.f32 0.0, %v514
  %v516 = vpop.f32.mrb[0].mxu0
  %v517 = vpop.f32.mrb[0].mxu0
  %v518 = vadd.f32 0.0, %v517
  %v519 = vpop.f32.mrb[0].mxu0
  %520 = vdwg.mxu0
  %v521 = vlaneseq
  %v522 = vshrl.u32 %v521, 7
  %v523 = vsub.s32 0, %v522
  %v524 = vrot.slane %v304, %v523
  %v525 = vmul.f32 %v459, %v524
  %v526 = vmul.f32 %v462, %v524
  %v527 = vmul.f32 %v467, %v524
  %v528 = vmul.f32 %v470, %v524
  %v529 = vmul.f32 %v475, %v524
  %v530 = vmul.f32 %v478, %v524
  %v531 = vmul.f32 %v483, %v524
  %v532 = vmul.f32 %v486, %v524
  %v533 = vmul.f32 %v491, %v524
  %v534 = vmul.f32 %v494, %v524
  %v535 = vmul.f32 %v499, %v524
  %v536 = vmul.f32 %v502, %v524
  %v537 = vmul.f32 %v507, %v524
  %v538 = vmul.f32 %v510, %v524
  %v539 = vmul.f32 %v515, %v524
  %v540 = vmul.f32 %v518, %v524
  %v541 = vlaneseq
  %v542 = vshrl.u32 %v541, 7
  %v543 = vsub.s32 0, %v542
  %v544 = vrot.slane %v305, %v543
  %v545 = vadd.f32 %v525, %v544
  %v546 = vadd.f32 %v526, %v544
  %v547 = vadd.f32 %v527, %v544
  %v548 = vadd.f32 %v528, %v544
  %v549 = vadd.f32 %v529, %v544
  %v550 = vadd.f32 %v530, %v544
  %v551 = vadd.f32 %v531, %v544
  %v552 = vadd.f32 %v532, %v544
  %v553 = vadd.f32 %v533, %v544
  %v554 = vadd.f32 %v534, %v544
  %v555 = vadd.f32 %v535, %v544
  %v556 = vadd.f32 %v536, %v544
  %v557 = vadd.f32 %v537, %v544
  %v558 = vadd.f32 %v538, %v544
  %v559 = vadd.f32 %v539, %v544
  %v560 = vadd.f32 %v540, %v544
  %v561 = vmax.f32 %v545, 0.0
  %v562 = vmax.f32 %v546, 0.0
  %v563 = vmax.f32 %v547, 0.0
  %v564 = vmax.f32 %v548, 0.0
  %v565 = vmax.f32 %v549, 0.0
  %v566 = vmax.f32 %v550, 0.0
  %v567 = vmax.f32 %v551, 0.0
  %v568 = vmax.f32 %v552, 0.0
  %v569 = vmax.f32 %v553, 0.0
  %v570 = vmax.f32 %v554, 0.0
  %v571 = vmax.f32 %v555, 0.0
  %v572 = vmax.f32 %v556, 0.0
  %v573 = vmax.f32 %v557, 0.0
  %v574 = vmax.f32 %v558, 0.0
  %v575 = vmax.f32 %v559, 0.0
  %v576 = vmax.f32 %v560, 0.0
  %v577 = vpack.c.bf16 %v562, %v561
  %v578 = vpack.c.bf16 %v564, %v563
  %v579 = vpack.c.bf16 %v566, %v565
  %v580 = vpack.c.bf16 %v568, %v567
  %v581 = vpack.c.bf16 %v570, %v569
  %v582 = vpack.c.bf16 %v572, %v571
  %v583 = vpack.c.bf16 %v574, %v573
  %v584 = vpack.c.bf16 %v576, %v575
  %v585 = vld [vmem:[%s1] sm:$0xf]
  %v586 = vld [vmem:[%s1 + $0x4] sm:$0xf]
  %v587 = vld [vmem:[%s1 + $0x8] sm:$0xf]
  %v588 = vld [vmem:[%s1 + $0xc] sm:$0xf]
  %v589 = vld [vmem:[%s1 + $0x10] sm:$0xf]
  %v590 = vld [vmem:[%s1 + $0x14] sm:$0xf]
  %v591 = vld [vmem:[%s1 + $0x18] sm:$0xf]
  %v592 = vld [vmem:[%s1 + $0x1c] sm:$0xf]
  %v593 = vld [vmem:[%s1 + $0x20] sm:$0xf]
  %v594 = vld [vmem:[%s1 + $0x24] sm:$0xf]
  %v595 = vld [vmem:[%s1 + $0x28] sm:$0xf]
  %v596 = vld [vmem:[%s1 + $0x2c] sm:$0xf]
  %v597 = vld [vmem:[%s1 + $0x30] sm:$0xf]
  %v598 = vld [vmem:[%s1 + $0x34] sm:$0xf]
  %v599 = vld [vmem:[%s1 + $0x38] sm:$0xf]
  %v600 = vld [vmem:[%s1 + $0x3c] sm:$0xf]
  %v617 = vunpack.c.l.b16 %v585
  %v618 = vunpack.c.l.b16 %v586
  %v619 = vunpack.c.l.b16 %v587
  %v620 = vunpack.c.l.b16 %v588
  %v621 = vunpack.c.l.b16 %v589
  %v622 = vunpack.c.l.b16 %v590
  %v623 = vunpack.c.l.b16 %v591
  %v624 = vunpack.c.l.b16 %v592
  %v625 = vunpack.c.l.b16 %v593
  %v626 = vunpack.c.l.b16 %v594
  %v627 = vunpack.c.l.b16 %v595
  %v628 = vunpack.c.l.b16 %v596
  %v629 = vunpack.c.l.b16 %v597
  %v630 = vunpack.c.l.b16 %v598
  %v631 = vunpack.c.l.b16 %v599
  %v632 = vunpack.c.l.b16 %v600
  %v633 = vpack.c.b16 %v618, %v617
  %v634 = vpack.c.b16 %v620, %v619
  %v635 = vpack.c.b16 %v622, %v621
  %v636 = vpack.c.b16 %v624, %v623
  %v637 = vpack.c.b16 %v626, %v625
  %v638 = vpack.c.b16 %v628, %v627
  %v639 = vpack.c.b16 %v630, %v629
  %v640 = vpack.c.b16 %v632, %v631
  %649 = vmatprep.subr.bf16.mxu0 0
  %650 = vmatpush1.bf16.msra.mxu0 %v577
  %651 = vmatprep.subr.bf16.mxu0 0
  %652 = vmatpush1.bf16.msra.mxu0 %v578
  %653 = vmatprep.subr.bf16.mxu0 0
  %654 = vmatpush1.bf16.msra.mxu0 %v579
  %655 = vmatprep.subr.bf16.mxu0 0
  %656 = vmatpush1.bf16.msra.mxu0 %v580
  %657 = vmatprep.subr.bf16.mxu0 0
  %658 = vmatpush1.bf16.msra.mxu0 %v581
  %659 = vmatprep.subr.bf16.mxu0 0
  %660 = vmatpush1.bf16.msra.mxu0 %v582
  %661 = vmatprep.subr.bf16.mxu0 0
  %662 = vmatpush1.bf16.msra.mxu0 %v583
  %663 = vmatprep.subr.bf16.mxu0 0
  %664 = vmatpush1.bf16.msra.mxu0 %v584
  %665 = vmatprep.subr.bf16.mxu0 0
  %666 = vmatpush1.bf16.msra.mxu0 0
  %667 = vmatprep.subr.bf16.mxu0 0
  %668 = vmatpush1.bf16.msra.mxu0 0
  %669 = vmatprep.subr.bf16.mxu0 0
  %670 = vmatpush1.bf16.msra.mxu0 0
  %671 = vmatprep.subr.bf16.mxu0 0
  %672 = vmatpush1.bf16.msra.mxu0 0
  %673 = vmatprep.subr.bf16.mxu0 0
  %674 = vmatpush1.bf16.msra.mxu0 0
  %675 = vmatprep.subr.bf16.mxu0 0
  %676 = vmatpush1.bf16.msra.mxu0 0
  %677 = vmatprep.subr.bf16.mxu0 0
  %678 = vmatpush1.bf16.msra.mxu0 0
  %679 = vmatprep.subr.bf16.mxu0 0
  %680 = vmatpush1.bf16.msra.mxu0 0
  %681 = vmatprep.mubr.bf16.mxu0 0
  %682 = vmatmul.mubr.bf16.gmra.mrb[0].mxu0 %v633
  %v683 = vpop.f32.mrb[0].mxu0
  %v684 = vadd.f32 0.0, %v683
  %v685 = vpop.f32.mrb[0].mxu0
  %v686 = vpop.f32.mrb[0].mxu0
  %v687 = vadd.f32 0.0, %v686
  %v688 = vpop.f32.mrb[0].mxu0
  %689 = vmatprep.mubr.bf16.mxu0 0
  %690 = vmatmul.mubr.bf16.gmra.mrb[0].mxu0 %v634
  %v691 = vpop.f32.mrb[0].mxu0
  %v692 = vadd.f32 0.0, %v691
  %v693 = vpop.f32.mrb[0].mxu0
  %v694 = vpop.f32.mrb[0].mxu0
  %v695 = vadd.f32 0.0, %v694
  %v696 = vpop.f32.mrb[0].mxu0
  %697 = vmatprep.mubr.bf16.mxu0 0
  %698 = vmatmul.mubr.bf16.gmra.mrb[0].mxu0 %v635
  %v699 = vpop.f32.mrb[0].mxu0
  %v700 = vadd.f32 0.0, %v699
  %v701 = vpop.f32.mrb[0].mxu0
  %v702 = vpop.f32.mrb[0].mxu0
  %v703 = vadd.f32 0.0, %v702
  %v704 = vpop.f32.mrb[0].mxu0
  %705 = vmatprep.mubr.bf16.mxu0 0
  %706 = vmatmul.mubr.bf16.gmra.mrb[0].mxu0 %v636
  %v707 = vpop.f32.mrb[0].mxu0
  %v708 = vadd.f32 0.0, %v707
  %v709 = vpop.f32.mrb[0].mxu0
  %v710 = vpop.f32.mrb[0].mxu0
  %v711 = vadd.f32 0.0, %v710
  %v712 = vpop.f32.mrb[0].mxu0
  %713 = vmatprep.mubr.bf16.mxu0 0
  %714 = vmatmul.mubr.bf16.gmra.mrb[0].mxu0 %v637
  %v715 = vpop.f32.mrb[0].mxu0
  %v716 = vadd.f32 0.0, %v715
  %v717 = vpop.f32.mrb[0].mxu0
  %v718 = vpop.f32.mrb[0].mxu0
  %v719 = vadd.f32 0.0, %v718
  %v720 = vpop.f32.mrb[0].mxu0
  %721 = vmatprep.mubr.bf16.mxu0 0
  %722 = vmatmul.mubr.bf16.gmra.mrb[0].mxu0 %v638
  %v723 = vpop.f32.mrb[0].mxu0
  %v724 = vadd.f32 0.0, %v723
  %v725 = vpop.f32.mrb[0].mxu0
  %v726 = vpop.f32.mrb[0].mxu0
  %v727 = vadd.f32 0.0, %v726
  %v728 = vpop.f32.mrb[0].mxu0
  %729 = vmatprep.mubr.bf16.mxu0 0
  %730 = vmatmul.mubr.bf16.gmra.mrb[0].mxu0 %v639
  %v731 = vpop.f32.mrb[0].mxu0
  %v732 = vadd.f32 0.0, %v731
  %v733 = vpop.f32.mrb[0].mxu0
  %v734 = vpop.f32.mrb[0].mxu0
  %v735 = vadd.f32 0.0, %v734
  %v736 = vpop.f32.mrb[0].mxu0
  %737 = vmatprep.mubr.bf16.mxu0 0
  %738 = vmatmul.mubr.bf16.gmra.mrb[0].mxu0 %v640
  %v739 = vpop.f32.mrb[0].mxu0
  %v740 = vadd.f32 0.0, %v739
  %v741 = vpop.f32.mrb[0].mxu0
  %v742 = vpop.f32.mrb[0].mxu0
  %v743 = vadd.f32 0.0, %v742
  %v744 = vpop.f32.mrb[0].mxu0
  %745 = vdwg.mxu0
  %v746 = vpack.c.bf16 %v687, %v684
  %v747 = vpack.c.bf16 %v695, %v692
  %v748 = vpack.c.bf16 %v703, %v700
  %v749 = vpack.c.bf16 %v711, %v708
  %v750 = vpack.c.bf16 %v719, %v716
  %v751 = vpack.c.bf16 %v727, %v724
  %v752 = vpack.c.bf16 %v735, %v732
  %v753 = vpack.c.bf16 %v743, %v740
  %s754 = scalar_lea.vmem %s1, 64
  %v755 = vld [vmem:[%s754] sm:$0xf]
  %v756 = vld [vmem:[%s754 + $0x4] sm:$0xf]
  %v757 = vld [vmem:[%s754 + $0x8] sm:$0xf]
  %v758 = vld [vmem:[%s754 + $0xc] sm:$0xf]
  %v759 = vld [vmem:[%s754 + $0x10] sm:$0xf]
  %v760 = vld [vmem:[%s754 + $0x14] sm:$0xf]
  %v761 = vld [vmem:[%s754 + $0x18] sm:$0xf]
  %v762 = vld [vmem:[%s754 + $0x1c] sm:$0xf]
  %v763 = vld [vmem:[%s754 + $0x20] sm:$0xf]
  %v764 = vld [vmem:[%s754 + $0x24] sm:$0xf]
  %v765 = vld [vmem:[%s754 + $0x28] sm:$0xf]
  %v766 = vld [vmem:[%s754 + $0x2c] sm:$0xf]
  %v767 = vld [vmem:[%s754 + $0x30] sm:$0xf]
  %v768 = vld [vmem:[%s754 + $0x34] sm:$0xf]
  %v769 = vld [vmem:[%s754 + $0x38] sm:$0xf]
  %v770 = vld [vmem:[%s754 + $0x3c] sm:$0xf]
  %v787 = vunpack.c.l.b16 %v755
  %v788 = vunpack.c.l.b16 %v756
  %v789 = vunpack.c.l.b16 %v757
  %v790 = vunpack.c.l.b16 %v758
  %v791 = vunpack.c.l.b16 %v759
  %v792 = vunpack.c.l.b16 %v760
  %v793 = vunpack.c.l.b16 %v761
  %v794 = vunpack.c.l.b16 %v762
  %v795 = vunpack.c.l.b16 %v763
  %v796 = vunpack.c.l.b16 %v764
  %v797 = vunpack.c.l.b16 %v765
  %v798 = vunpack.c.l.b16 %v766
  %v799 = vunpack.c.l.b16 %v767
  %v800 = vunpack.c.l.b16 %v768
  %v801 = vunpack.c.l.b16 %v769
  %v802 = vunpack.c.l.b16 %v770
  %v803 = vpack.c.b16 %v788, %v787
  %v804 = vpack.c.b16 %v790, %v789
  %v805 = vpack.c.b16 %v792, %v791
  %v806 = vpack.c.b16 %v794, %v793
  %v807 = vpack.c.b16 %v796, %v795
  %v808 = vpack.c.b16 %v798, %v797
  %v809 = vpack.c.b16 %v800, %v799
  %v810 = vpack.c.b16 %v802, %v801
  %819 = vmatprep.subr.bf16.mxu0 0
  %820 = vmatpush1.bf16.msra.mxu0 %v577
  %821 = vmatprep.subr.bf16.mxu0 0
  %822 = vmatpush1.bf16.msra.mxu0 %v578
  %823 = vmatprep.subr.bf16.mxu0 0
  %824 = vmatpush1.bf16.msra.mxu0 %v579
  %825 = vmatprep.subr.bf16.mxu0 0
  %826 = vmatpush1.bf16.msra.mxu0 %v580
  %827 = vmatprep.subr.bf16.mxu0 0
  %828 = vmatpush1.bf16.msra.mxu0 %v581
  %829 = vmatprep.subr.bf16.mxu0 0
  %830 = vmatpush1.bf16.msra.mxu0 %v582
  %831 = vmatprep.subr.bf16.mxu0 0
  %832 = vmatpush1.bf16.msra.mxu0 %v583
  %833 = vmatprep.subr.bf16.mxu0 0
  %834 = vmatpush1.bf16.msra.mxu0 %v584
  %835 = vmatprep.subr.bf16.mxu0 0
  %836 = vmatpush1.bf16.msra.mxu0 0
  %837 = vmatprep.subr.bf16.mxu0 0
  %838 = vmatpush1.bf16.msra.mxu0 0
  %839 = vmatprep.subr.bf16.mxu0 0
  %840 = vmatpush1.bf16.msra.mxu0 0
  %841 = vmatprep.subr.bf16.mxu0 0
  %842 = vmatpush1.bf16.msra.mxu0 0
  %843 = vmatprep.subr.bf16.mxu0 0
  %844 = vmatpush1.bf16.msra.mxu0 0
  %845 = vmatprep.subr.bf16.mxu0 0
  %846 = vmatpush1.bf16.msra.mxu0 0
  %847 = vmatprep.subr.bf16.mxu0 0
  %848 = vmatpush1.bf16.msra.mxu0 0
  %849 = vmatprep.subr.bf16.mxu0 0
  %850 = vmatpush1.bf16.msra.mxu0 0
  %851 = vmatprep.mubr.bf16.mxu0 0
  %852 = vmatmul.mubr.bf16.gmra.mrb[0].mxu0 %v803
  %v853 = vpop.f32.mrb[0].mxu0
  %v854 = vadd.f32 0.0, %v853
  %v855 = vpop.f32.mrb[0].mxu0
  %v856 = vpop.f32.mrb[0].mxu0
  %v857 = vadd.f32 0.0, %v856
  %v858 = vpop.f32.mrb[0].mxu0
  %859 = vmatprep.mubr.bf16.mxu0 0
  %860 = vmatmul.mubr.bf16.gmra.mrb[0].mxu0 %v804
  %v861 = vpop.f32.mrb[0].mxu0
  %v862 = vadd.f32 0.0, %v861
  %v863 = vpop.f32.mrb[0].mxu0
  %v864 = vpop.f32.mrb[0].mxu0
  %v865 = vadd.f32 0.0, %v864
  %v866 = vpop.f32.mrb[0].mxu0
  %867 = vmatprep.mubr.bf16.mxu0 0
  %868 = vmatmul.mubr.bf16.gmra.mrb[0].mxu0 %v805
  %v869 = vpop.f32.mrb[0].mxu0
  %v870 = vadd.f32 0.0, %v869
  %v871 = vpop.f32.mrb[0].mxu0
  %v872 = vpop.f32.mrb[0].mxu0
  %v873 = vadd.f32 0.0, %v872
  %v874 = vpop.f32.mrb[0].mxu0
  %875 = vmatprep.mubr.bf16.mxu0 0
  %876 = vmatmul.mubr.bf16.gmra.mrb[0].mxu0 %v806
  %v877 = vpop.f32.mrb[0].mxu0
  %v878 = vadd.f32 0.0, %v877
  %v879 = vpop.f32.mrb[0].mxu0
  %v880 = vpop.f32.mrb[0].mxu0
  %v881 = vadd.f32 0.0, %v880
  %v882 = vpop.f32.mrb[0].mxu0
  %883 = vmatprep.mubr.bf16.mxu0 0
  %884 = vmatmul.mubr.bf16.gmra.mrb[0].mxu0 %v807
  %v885 = vpop.f32.mrb[0].mxu0
  %v886 = vadd.f32 0.0, %v885
  %v887 = vpop.f32.mrb[0].mxu0
  %v888 = vpop.f32.mrb[0].mxu0
  %v889 = vadd.f32 0.0, %v888
  %v890 = vpop.f32.mrb[0].mxu0
  %891 = vmatprep.mubr.bf16.mxu0 0
  %892 = vmatmul.mubr.bf16.gmra.mrb[0].mxu0 %v808
  %v893 = vpop.f32.mrb[0].mxu0
  %v894 = vadd.f32 0.0, %v893
  %v895 = vpop.f32.mrb[0].mxu0
  %v896 = vpop.f32.mrb[0].mxu0
  %v897 = vadd.f32 0.0, %v896
  %v898 = vpop.f32.mrb[0].mxu0
  %899 = vmatprep.mubr.bf16.mxu0 0
  %900 = vmatmul.mubr.bf16.gmra.mrb[0].mxu0 %v809
  %v901 = vpop.f32.mrb[0].mxu0
  %v902 = vadd.f32 0.0, %v901
  %v903 = vpop.f32.mrb[0].mxu0
  %v904 = vpop.f32.mrb[0].mxu0
  %v905 = vadd.f32 0.0, %v904
  %v906 = vpop.f32.mrb[0].mxu0
  %907 = vmatprep.mubr.bf16.mxu0 0
  %908 = vmatmul.mubr.bf16.gmra.mrb[0].mxu0 %v810
  %v909 = vpop.f32.mrb[0].mxu0
  %v910 = vadd.f32 0.0, %v909
  %v911 = vpop.f32.mrb[0].mxu0
  %v912 = vpop.f32.mrb[0].mxu0
  %v913 = vadd.f32 0.0, %v912
  %v914 = vpop.f32.mrb[0].mxu0
  %915 = vdwg.mxu0
  %v916 = vpack.c.bf16 %v857, %v854
  %v917 = vpack.c.bf16 %v865, %v862
  %v918 = vpack.c.bf16 %v873, %v870
  %v919 = vpack.c.bf16 %v881, %v878
  %v920 = vpack.c.bf16 %v889, %v886
  %v921 = vpack.c.bf16 %v897, %v894
  %v922 = vpack.c.bf16 %v905, %v902
  %v923 = vpack.c.bf16 %v913, %v910
  %s924 = scalar_lea.vmem %s1, 128
  %v925 = vld [vmem:[%s924] sm:$0xf]
  %v926 = vld [vmem:[%s924 + $0x4] sm:$0xf]
  %v927 = vld [vmem:[%s924 + $0x8] sm:$0xf]
  %v928 = vld [vmem:[%s924 + $0xc] sm:$0xf]
  %v929 = vld [vmem:[%s924 + $0x10] sm:$0xf]
  %v930 = vld [vmem:[%s924 + $0x14] sm:$0xf]
  %v931 = vld [vmem:[%s924 + $0x18] sm:$0xf]
  %v932 = vld [vmem:[%s924 + $0x1c] sm:$0xf]
  %v933 = vld [vmem:[%s924 + $0x20] sm:$0xf]
  %v934 = vld [vmem:[%s924 + $0x24] sm:$0xf]
  %v935 = vld [vmem:[%s924 + $0x28] sm:$0xf]
  %v936 = vld [vmem:[%s924 + $0x2c] sm:$0xf]
  %v937 = vld [vmem:[%s924 + $0x30] sm:$0xf]
  %v938 = vld [vmem:[%s924 + $0x34] sm:$0xf]
  %v939 = vld [vmem:[%s924 + $0x38] sm:$0xf]
  %v940 = vld [vmem:[%s924 + $0x3c] sm:$0xf]
  %v957 = vunpack.c.l.b16 %v925
  %v958 = vunpack.c.l.b16 %v926
  %v959 = vunpack.c.l.b16 %v927
  %v960 = vunpack.c.l.b16 %v928
  %v961 = vunpack.c.l.b16 %v929
  %v962 = vunpack.c.l.b16 %v930
  %v963 = vunpack.c.l.b16 %v931
  %v964 = vunpack.c.l.b16 %v932
  %v965 = vunpack.c.l.b16 %v933
  %v966 = vunpack.c.l.b16 %v934
  %v967 = vunpack.c.l.b16 %v935
  %v968 = vunpack.c.l.b16 %v936
  %v969 = vunpack.c.l.b16 %v937
  %v970 = vunpack.c.l.b16 %v938
  %v971 = vunpack.c.l.b16 %v939
  %v972 = vunpack.c.l.b16 %v940
  %v973 = vpack.c.b16 %v958, %v957
  %v974 = vpack.c.b16 %v960, %v959
  %v975 = vpack.c.b16 %v962, %v961
  %v976 = vpack.c.b16 %v964, %v963
  %v977 = vpack.c.b16 %v966, %v965
  %v978 = vpack.c.b16 %v968, %v967
  %v979 = vpack.c.b16 %v970, %v969
  %v980 = vpack.c.b16 %v972, %v971
  %989 = vmatprep.subr.bf16.mxu0 0
  %990 = vmatpush1.bf16.msra.mxu0 %v577
  %991 = vmatprep.subr.bf16.mxu0 0
  %992 = vmatpush1.bf16.msra.mxu0 %v578
  %993 = vmatprep.subr.bf16.mxu0 0
  %994 = vmatpush1.bf16.msra.mxu0 %v579
  %995 = vmatprep.subr.bf16.mxu0 0
  %996 = vmatpush1.bf16.msra.mxu0 %v580
  %997 = vmatprep.subr.bf16.mxu0 0
  %998 = vmatpush1.bf16.msra.mxu0 %v581
  %999 = vmatprep.subr.bf16.mxu0 0
  %1000 = vmatpush1.bf16.msra.mxu0 %v582
  %1001 = vmatprep.subr.bf16.mxu0 0
  %1002 = vmatpush1.bf16.msra.mxu0 %v583
  %1003 = vmatprep.subr.bf16.mxu0 0
  %1004 = vmatpush1.bf16.msra.mxu0 %v584
  %1005 = vmatprep.subr.bf16.mxu0 0
  %1006 = vmatpush1.bf16.msra.mxu0 0
  %1007 = vmatprep.subr.bf16.mxu0 0
  %1008 = vmatpush1.bf16.msra.mxu0 0
  %1009 = vmatprep.subr.bf16.mxu0 0
  %1010 = vmatpush1.bf16.msra.mxu0 0
  %1011 = vmatprep.subr.bf16.mxu0 0
  %1012 = vmatpush1.bf16.msra.mxu0 0
  %1013 = vmatprep.subr.bf16.mxu0 0
  %1014 = vmatpush1.bf16.msra.mxu0 0
  %1015 = vmatprep.subr.bf16.mxu0 0
  %1016 = vmatpush1.bf16.msra.mxu0 0
  %1017 = vmatprep.subr.bf16.mxu0 0
  %1018 = vmatpush1.bf16.msra.mxu0 0
  %1019 = vmatprep.subr.bf16.mxu0 0
  %1020 = vmatpush1.bf16.msra.mxu0 0
  %1021 = vmatprep.mubr.bf16.mxu0 0
  %1022 = vmatmul.mubr.bf16.gmra.mrb[0].mxu0 %v973
  %v1023 = vpop.f32.mrb[0].mxu0
  %v1024 = vadd.f32 0.0, %v1023
  %v1025 = vpop.f32.mrb[0].mxu0
  %v1026 = vpop.f32.mrb[0].mxu0
  %v1027 = vadd.f32 0.0, %v1026
  %v1028 = vpop.f32.mrb[0].mxu0
  %1029 = vmatprep.mubr.bf16.mxu0 0
  %1030 = vmatmul.mubr.bf16.gmra.mrb[0].mxu0 %v974
  %v1031 = vpop.f32.mrb[0].mxu0
  %v1032 = vadd.f32 0.0, %v1031
  %v1033 = vpop.f32.mrb[0].mxu0
  %v1034 = vpop.f32.mrb[0].mxu0
  %v1035 = vadd.f32 0.0, %v1034
  %v1036 = vpop.f32.mrb[0].mxu0
  %1037 = vmatprep.mubr.bf16.mxu0 0
  %1038 = vmatmul.mubr.bf16.gmra.mrb[0].mxu0 %v975
  %v1039 = vpop.f32.mrb[0].mxu0
  %v1040 = vadd.f32 0.0, %v1039
  %v1041 = vpop.f32.mrb[0].mxu0
  %v1042 = vpop.f32.mrb[0].mxu0
  %v1043 = vadd.f32 0.0, %v1042
  %v1044 = vpop.f32.mrb[0].mxu0
  %1045 = vmatprep.mubr.bf16.mxu0 0
  %1046 = vmatmul.mubr.bf16.gmra.mrb[0].mxu0 %v976
  %v1047 = vpop.f32.mrb[0].mxu0
  %v1048 = vadd.f32 0.0, %v1047
  %v1049 = vpop.f32.mrb[0].mxu0
  %v1050 = vpop.f32.mrb[0].mxu0
  %v1051 = vadd.f32 0.0, %v1050
  %v1052 = vpop.f32.mrb[0].mxu0
  %1053 = vmatprep.mubr.bf16.mxu0 0
  %1054 = vmatmul.mubr.bf16.gmra.mrb[0].mxu0 %v977
  %v1055 = vpop.f32.mrb[0].mxu0
  %v1056 = vadd.f32 0.0, %v1055
  %v1057 = vpop.f32.mrb[0].mxu0
  %v1058 = vpop.f32.mrb[0].mxu0
  %v1059 = vadd.f32 0.0, %v1058
  %v1060 = vpop.f32.mrb[0].mxu0
  %1061 = vmatprep.mubr.bf16.mxu0 0
  %1062 = vmatmul.mubr.bf16.gmra.mrb[0].mxu0 %v978
  %v1063 = vpop.f32.mrb[0].mxu0
  %v1064 = vadd.f32 0.0, %v1063
  %v1065 = vpop.f32.mrb[0].mxu0
  %v1066 = vpop.f32.mrb[0].mxu0
  %v1067 = vadd.f32 0.0, %v1066
  %v1068 = vpop.f32.mrb[0].mxu0
  %1069 = vmatprep.mubr.bf16.mxu0 0
  %1070 = vmatmul.mubr.bf16.gmra.mrb[0].mxu0 %v979
  %v1071 = vpop.f32.mrb[0].mxu0
  %v1072 = vadd.f32 0.0, %v1071
  %v1073 = vpop.f32.mrb[0].mxu0
  %v1074 = vpop.f32.mrb[0].mxu0
  %v1075 = vadd.f32 0.0, %v1074
  %v1076 = vpop.f32.mrb[0].mxu0
  %1077 = vmatprep.mubr.bf16.mxu0 0
  %1078 = vmatmul.mubr.bf16.gmra.mrb[0].mxu0 %v980
  %v1079 = vpop.f32.mrb[0].mxu0
  %v1080 = vadd.f32 0.0, %v1079
  %v1081 = vpop.f32.mrb[0].mxu0
  %v1082 = vpop.f32.mrb[0].mxu0
  %v1083 = vadd.f32 0.0, %v1082
  %v1084 = vpop.f32.mrb[0].mxu0
  %1085 = vdwg.mxu0
  %v1086 = vpack.c.bf16 %v1027, %v1024
  %v1087 = vpack.c.bf16 %v1035, %v1032
  %v1088 = vpack.c.bf16 %v1043, %v1040
  %v1089 = vpack.c.bf16 %v1051, %v1048
  %v1090 = vpack.c.bf16 %v1059, %v1056
  %v1091 = vpack.c.bf16 %v1067, %v1064
  %v1092 = vpack.c.bf16 %v1075, %v1072
  %v1093 = vpack.c.bf16 %v1083, %v1080
  %s1094 = scalar_lea.vmem %s1, 192
  %v1095 = vld [vmem:[%s1094] sm:$0xf]
  %v1096 = vld [vmem:[%s1094 + $0x4] sm:$0xf]
  %v1097 = vld [vmem:[%s1094 + $0x8] sm:$0xf]
  %v1098 = vld [vmem:[%s1094 + $0xc] sm:$0xf]
  %v1099 = vld [vmem:[%s1094 + $0x10] sm:$0xf]
  %v1100 = vld [vmem:[%s1094 + $0x14] sm:$0xf]
  %v1101 = vld [vmem:[%s1094 + $0x18] sm:$0xf]
  %v1102 = vld [vmem:[%s1094 + $0x1c] sm:$0xf]
  %v1103 = vld [vmem:[%s1094 + $0x20] sm:$0xf]
  %v1104 = vld [vmem:[%s1094 + $0x24] sm:$0xf]
  %v1105 = vld [vmem:[%s1094 + $0x28] sm:$0xf]
  %v1106 = vld [vmem:[%s1094 + $0x2c] sm:$0xf]
  %v1107 = vld [vmem:[%s1094 + $0x30] sm:$0xf]
  %v1108 = vld [vmem:[%s1094 + $0x34] sm:$0xf]
  %v1109 = vld [vmem:[%s1094 + $0x38] sm:$0xf]
  %v1110 = vld [vmem:[%s1094 + $0x3c] sm:$0xf]
  %v1127 = vunpack.c.l.b16 %v1095
  %v1128 = vunpack.c.l.b16 %v1096
  %v1129 = vunpack.c.l.b16 %v1097
  %v1130 = vunpack.c.l.b16 %v1098
  %v1131 = vunpack.c.l.b16 %v1099
  %v1132 = vunpack.c.l.b16 %v1100
  %v1133 = vunpack.c.l.b16 %v1101
  %v1134 = vunpack.c.l.b16 %v1102
  %v1135 = vunpack.c.l.b16 %v1103
  %v1136 = vunpack.c.l.b16 %v1104
  %v1137 = vunpack.c.l.b16 %v1105
  %v1138 = vunpack.c.l.b16 %v1106
  %v1139 = vunpack.c.l.b16 %v1107
  %v1140 = vunpack.c.l.b16 %v1108
  %v1141 = vunpack.c.l.b16 %v1109
  %v1142 = vunpack.c.l.b16 %v1110
  %v1143 = vpack.c.b16 %v1128, %v1127
  %v1144 = vpack.c.b16 %v1130, %v1129
  %v1145 = vpack.c.b16 %v1132, %v1131
  %v1146 = vpack.c.b16 %v1134, %v1133
  %v1147 = vpack.c.b16 %v1136, %v1135
  %v1148 = vpack.c.b16 %v1138, %v1137
  %v1149 = vpack.c.b16 %v1140, %v1139
  %v1150 = vpack.c.b16 %v1142, %v1141
  %1159 = vmatprep.subr.bf16.mxu0 0
  %1160 = vmatpush1.bf16.msra.mxu0 %v577
  %1161 = vmatprep.subr.bf16.mxu0 0
  %1162 = vmatpush1.bf16.msra.mxu0 %v578
  %1163 = vmatprep.subr.bf16.mxu0 0
  %1164 = vmatpush1.bf16.msra.mxu0 %v579
  %1165 = vmatprep.subr.bf16.mxu0 0
  %1166 = vmatpush1.bf16.msra.mxu0 %v580
  %1167 = vmatprep.subr.bf16.mxu0 0
  %1168 = vmatpush1.bf16.msra.mxu0 %v581
  %1169 = vmatprep.subr.bf16.mxu0 0
  %1170 = vmatpush1.bf16.msra.mxu0 %v582
  %1171 = vmatprep.subr.bf16.mxu0 0
  %1172 = vmatpush1.bf16.msra.mxu0 %v583
  %1173 = vmatprep.subr.bf16.mxu0 0
  %1174 = vmatpush1.bf16.msra.mxu0 %v584
  %1175 = vmatprep.subr.bf16.mxu0 0
  %1176 = vmatpush1.bf16.msra.mxu0 0
  %1177 = vmatprep.subr.bf16.mxu0 0
  %1178 = vmatpush1.bf16.msra.mxu0 0
  %1179 = vmatprep.subr.bf16.mxu0 0
  %1180 = vmatpush1.bf16.msra.mxu0 0
  %1181 = vmatprep.subr.bf16.mxu0 0
  %1182 = vmatpush1.bf16.msra.mxu0 0
  %1183 = vmatprep.subr.bf16.mxu0 0
  %1184 = vmatpush1.bf16.msra.mxu0 0
  %1185 = vmatprep.subr.bf16.mxu0 0
  %1186 = vmatpush1.bf16.msra.mxu0 0
  %1187 = vmatprep.subr.bf16.mxu0 0
  %1188 = vmatpush1.bf16.msra.mxu0 0
  %1189 = vmatprep.subr.bf16.mxu0 0
  %1190 = vmatpush1.bf16.msra.mxu0 0
  %1191 = vmatprep.mubr.bf16.mxu0 0
  %1192 = vmatmul.mubr.bf16.gmra.mrb[0].mxu0 %v1143
  %v1193 = vpop.f32.mrb[0].mxu0
  %v1194 = vadd.f32 0.0, %v1193
  %v1195 = vpop.f32.mrb[0].mxu0
  %v1196 = vpop.f32.mrb[0].mxu0
  %v1197 = vadd.f32 0.0, %v1196
  %v1198 = vpop.f32.mrb[0].mxu0
  %1199 = vmatprep.mubr.bf16.mxu0 0
  %1200 = vmatmul.mubr.bf16.gmra.mrb[0].mxu0 %v1144
  %v1201 = vpop.f32.mrb[0].mxu0
  %v1202 = vadd.f32 0.0, %v1201
  %v1203 = vpop.f32.mrb[0].mxu0
  %v1204 = vpop.f32.mrb[0].mxu0
  %v1205 = vadd.f32 0.0, %v1204
  %v1206 = vpop.f32.mrb[0].mxu0
  %1207 = vmatprep.mubr.bf16.mxu0 0
  %1208 = vmatmul.mubr.bf16.gmra.mrb[0].mxu0 %v1145
  %v1209 = vpop.f32.mrb[0].mxu0
  %v1210 = vadd.f32 0.0, %v1209
  %v1211 = vpop.f32.mrb[0].mxu0
  %v1212 = vpop.f32.mrb[0].mxu0
  %v1213 = vadd.f32 0.0, %v1212
  %v1214 = vpop.f32.mrb[0].mxu0
  %1215 = vmatprep.mubr.bf16.mxu0 0
  %1216 = vmatmul.mubr.bf16.gmra.mrb[0].mxu0 %v1146
  %v1217 = vpop.f32.mrb[0].mxu0
  %v1218 = vadd.f32 0.0, %v1217
  %v1219 = vpop.f32.mrb[0].mxu0
  %v1220 = vpop.f32.mrb[0].mxu0
  %v1221 = vadd.f32 0.0, %v1220
  %v1222 = vpop.f32.mrb[0].mxu0
  %1223 = vmatprep.mubr.bf16.mxu0 0
  %1224 = vmatmul.mubr.bf16.gmra.mrb[0].mxu0 %v1147
  %v1225 = vpop.f32.mrb[0].mxu0
  %v1226 = vadd.f32 0.0, %v1225
  %v1227 = vpop.f32.mrb[0].mxu0
  %v1228 = vpop.f32.mrb[0].mxu0
  %v1229 = vadd.f32 0.0, %v1228
  %v1230 = vpop.f32.mrb[0].mxu0
  %1231 = vmatprep.mubr.bf16.mxu0 0
  %1232 = vmatmul.mubr.bf16.gmra.mrb[0].mxu0 %v1148
  %v1233 = vpop.f32.mrb[0].mxu0
  %v1234 = vadd.f32 0.0, %v1233
  %v1235 = vpop.f32.mrb[0].mxu0
  %v1236 = vpop.f32.mrb[0].mxu0
  %v1237 = vadd.f32 0.0, %v1236
  %v1238 = vpop.f32.mrb[0].mxu0
  %1239 = vmatprep.mubr.bf16.mxu0 0
  %1240 = vmatmul.mubr.bf16.gmra.mrb[0].mxu0 %v1149
  %v1241 = vpop.f32.mrb[0].mxu0
  %v1242 = vadd.f32 0.0, %v1241
  %v1243 = vpop.f32.mrb[0].mxu0
  %v1244 = vpop.f32.mrb[0].mxu0
  %v1245 = vadd.f32 0.0, %v1244
  %v1246 = vpop.f32.mrb[0].mxu0
  %1247 = vmatprep.mubr.bf16.mxu0 0
  %1248 = vmatmul.mubr.bf16.gmra.mrb[0].mxu0 %v1150
  %v1249 = vpop.f32.mrb[0].mxu0
  %v1250 = vadd.f32 0.0, %v1249
  %v1251 = vpop.f32.mrb[0].mxu0
  %v1252 = vpop.f32.mrb[0].mxu0
  %v1253 = vadd.f32 0.0, %v1252
  %v1254 = vpop.f32.mrb[0].mxu0
  %1255 = vdwg.mxu0
  %v1256 = vpack.c.bf16 %v1197, %v1194
  %v1257 = vpack.c.bf16 %v1205, %v1202
  %v1258 = vpack.c.bf16 %v1213, %v1210
  %v1259 = vpack.c.bf16 %v1221, %v1218
  %v1260 = vpack.c.bf16 %v1229, %v1226
  %v1261 = vpack.c.bf16 %v1237, %v1234
  %v1262 = vpack.c.bf16 %v1245, %v1242
  %v1263 = vpack.c.bf16 %v1253, %v1250
  %s1264 = scalar_lea.vmem %s1, 256
  %v1265 = vld [vmem:[%s1264] sm:$0xf]
  %v1266 = vld [vmem:[%s1264 + $0x4] sm:$0xf]
  %v1267 = vld [vmem:[%s1264 + $0x8] sm:$0xf]
  %v1268 = vld [vmem:[%s1264 + $0xc] sm:$0xf]
  %v1269 = vld [vmem:[%s1264 + $0x10] sm:$0xf]
  %v1270 = vld [vmem:[%s1264 + $0x14] sm:$0xf]
  %v1271 = vld [vmem:[%s1264 + $0x18] sm:$0xf]
  %v1272 = vld [vmem:[%s1264 + $0x1c] sm:$0xf]
  %v1273 = vld [vmem:[%s1264 + $0x20] sm:$0xf]
  %v1274 = vld [vmem:[%s1264 + $0x24] sm:$0xf]
  %v1275 = vld [vmem:[%s1264 + $0x28] sm:$0xf]
  %v1276 = vld [vmem:[%s1264 + $0x2c] sm:$0xf]
  %v1277 = vld [vmem:[%s1264 + $0x30] sm:$0xf]
  %v1278 = vld [vmem:[%s1264 + $0x34] sm:$0xf]
  %v1279 = vld [vmem:[%s1264 + $0x38] sm:$0xf]
  %v1280 = vld [vmem:[%s1264 + $0x3c] sm:$0xf]
  %v1297 = vunpack.c.l.b16 %v1265
  %v1298 = vunpack.c.l.b16 %v1266
  %v1299 = vunpack.c.l.b16 %v1267
  %v1300 = vunpack.c.l.b16 %v1268
  %v1301 = vunpack.c.l.b16 %v1269
  %v1302 = vunpack.c.l.b16 %v1270
  %v1303 = vunpack.c.l.b16 %v1271
  %v1304 = vunpack.c.l.b16 %v1272
  %v1305 = vunpack.c.l.b16 %v1273
  %v1306 = vunpack.c.l.b16 %v1274
  %v1307 = vunpack.c.l.b16 %v1275
  %v1308 = vunpack.c.l.b16 %v1276
  %v1309 = vunpack.c.l.b16 %v1277
  %v1310 = vunpack.c.l.b16 %v1278
  %v1311 = vunpack.c.l.b16 %v1279
  %v1312 = vunpack.c.l.b16 %v1280
  %v1313 = vpack.c.b16 %v1298, %v1297
  %v1314 = vpack.c.b16 %v1300, %v1299
  %v1315 = vpack.c.b16 %v1302, %v1301
  %v1316 = vpack.c.b16 %v1304, %v1303
  %v1317 = vpack.c.b16 %v1306, %v1305
  %v1318 = vpack.c.b16 %v1308, %v1307
  %v1319 = vpack.c.b16 %v1310, %v1309
  %v1320 = vpack.c.b16 %v1312, %v1311
  %1329 = vmatprep.subr.bf16.mxu0 0
  %1330 = vmatpush1.bf16.msra.mxu0 %v577
  %1331 = vmatprep.subr.bf16.mxu0 0
  %1332 = vmatpush1.bf16.msra.mxu0 %v578
  %1333 = vmatprep.subr.bf16.mxu0 0
  %1334 = vmatpush1.bf16.msra.mxu0 %v579
  %1335 = vmatprep.subr.bf16.mxu0 0
  %1336 = vmatpush1.bf16.msra.mxu0 %v580
  %1337 = vmatprep.subr.bf16.mxu0 0
  %1338 = vmatpush1.bf16.msra.mxu0 %v581
  %1339 = vmatprep.subr.bf16.mxu0 0
  %1340 = vmatpush1.bf16.msra.mxu0 %v582
  %1341 = vmatprep.subr.bf16.mxu0 0
  %1342 = vmatpush1.bf16.msra.mxu0 %v583
  %1343 = vmatprep.subr.bf16.mxu0 0
  %1344 = vmatpush1.bf16.msra.mxu0 %v584
  %1345 = vmatprep.subr.bf16.mxu0 0
  %1346 = vmatpush1.bf16.msra.mxu0 0
  %1347 = vmatprep.subr.bf16.mxu0 0
  %1348 = vmatpush1.bf16.msra.mxu0 0
  %1349 = vmatprep.subr.bf16.mxu0 0
  %1350 = vmatpush1.bf16.msra.mxu0 0
  %1351 = vmatprep.subr.bf16.mxu0 0
  %1352 = vmatpush1.bf16.msra.mxu0 0
  %1353 = vmatprep.subr.bf16.mxu0 0
  %1354 = vmatpush1.bf16.msra.mxu0 0
  %1355 = vmatprep.subr.bf16.mxu0 0
  %1356 = vmatpush1.bf16.msra.mxu0 0
  %1357 = vmatprep.subr.bf16.mxu0 0
  %1358 = vmatpush1.bf16.msra.mxu0 0
  %1359 = vmatprep.subr.bf16.mxu0 0
  %1360 = vmatpush1.bf16.msra.mxu0 0
  %1361 = vmatprep.mubr.bf16.mxu0 0
  %1362 = vmatmul.mubr.bf16.gmra.mrb[0].mxu0 %v1313
  %v1363 = vpop.f32.mrb[0].mxu0
  %v1364 = vadd.f32 0.0, %v1363
  %v1365 = vpop.f32.mrb[0].mxu0
  %v1366 = vpop.f32.mrb[0].mxu0
  %v1367 = vadd.f32 0.0, %v1366
  %v1368 = vpop.f32.mrb[0].mxu0
  %1369 = vmatprep.mubr.bf16.mxu0 0
  %1370 = vmatmul.mubr.bf16.gmra.mrb[0].mxu0 %v1314
  %v1371 = vpop.f32.mrb[0].mxu0
  %v1372 = vadd.f32 0.0, %v1371
  %v1373 = vpop.f32.mrb[0].mxu0
  %v1374 = vpop.f32.mrb[0].mxu0
  %v1375 = vadd.f32 0.0, %v1374
  %v1376 = vpop.f32.mrb[0].mxu0
  %1377 = vmatprep.mubr.bf16.mxu0 0
  %1378 = vmatmul.mubr.bf16.gmra.mrb[0].mxu0 %v1315
  %v1379 = vpop.f32.mrb[0].mxu0
  %v1380 = vadd.f32 0.0, %v1379
  %v1381 = vpop.f32.mrb[0].mxu0
  %v1382 = vpop.f32.mrb[0].mxu0
  %v1383 = vadd.f32 0.0, %v1382
  %v1384 = vpop.f32.mrb[0].mxu0
  %1385 = vmatprep.mubr.bf16.mxu0 0
  %1386 = vmatmul.mubr.bf16.gmra.mrb[0].mxu0 %v1316
  %v1387 = vpop.f32.mrb[0].mxu0
  %v1388 = vadd.f32 0.0, %v1387
  %v1389 = vpop.f32.mrb[0].mxu0
  %v1390 = vpop.f32.mrb[0].mxu0
  %v1391 = vadd.f32 0.0, %v1390
  %v1392 = vpop.f32.mrb[0].mxu0
  %1393 = vmatprep.mubr.bf16.mxu0 0
  %1394 = vmatmul.mubr.bf16.gmra.mrb[0].mxu0 %v1317
  %v1395 = vpop.f32.mrb[0].mxu0
  %v1396 = vadd.f32 0.0, %v1395
  %v1397 = vpop.f32.mrb[0].mxu0
  %v1398 = vpop.f32.mrb[0].mxu0
  %v1399 = vadd.f32 0.0, %v1398
  %v1400 = vpop.f32.mrb[0].mxu0
  %1401 = vmatprep.mubr.bf16.mxu0 0
  %1402 = vmatmul.mubr.bf16.gmra.mrb[0].mxu0 %v1318
  %v1403 = vpop.f32.mrb[0].mxu0
  %v1404 = vadd.f32 0.0, %v1403
  %v1405 = vpop.f32.mrb[0].mxu0
  %v1406 = vpop.f32.mrb[0].mxu0
  %v1407 = vadd.f32 0.0, %v1406
  %v1408 = vpop.f32.mrb[0].mxu0
  %1409 = vmatprep.mubr.bf16.mxu0 0
  %1410 = vmatmul.mubr.bf16.gmra.mrb[0].mxu0 %v1319
  %v1411 = vpop.f32.mrb[0].mxu0
  %v1412 = vadd.f32 0.0, %v1411
  %v1413 = vpop.f32.mrb[0].mxu0
  %v1414 = vpop.f32.mrb[0].mxu0
  %v1415 = vadd.f32 0.0, %v1414
  %v1416 = vpop.f32.mrb[0].mxu0
  %1417 = vmatprep.mubr.bf16.mxu0 0
  %1418 = vmatmul.mubr.bf16.gmra.mrb[0].mxu0 %v1320
  %v1419 = vpop.f32.mrb[0].mxu0
  %v1420 = vadd.f32 0.0, %v1419
  %v1421 = vpop.f32.mrb[0].mxu0
  %v1422 = vpop.f32.mrb[0].mxu0
  %v1423 = vadd.f32 0.0, %v1422
  %v1424 = vpop.f32.mrb[0].mxu0
  %1425 = vdwg.mxu0
  %v1426 = vpack.c.bf16 %v1367, %v1364
  %v1427 = vpack.c.bf16 %v1375, %v1372
  %v1428 = vpack.c.bf16 %v1383, %v1380
  %v1429 = vpack.c.bf16 %v1391, %v1388
  %v1430 = vpack.c.bf16 %v1399, %v1396
  %v1431 = vpack.c.bf16 %v1407, %v1404
  %v1432 = vpack.c.bf16 %v1415, %v1412
  %v1433 = vpack.c.bf16 %v1423, %v1420
  %s1434 = scalar_lea.vmem %s1, 320
  %v1435 = vld [vmem:[%s1434] sm:$0xf]
  %v1436 = vld [vmem:[%s1434 + $0x4] sm:$0xf]
  %v1437 = vld [vmem:[%s1434 + $0x8] sm:$0xf]
  %v1438 = vld [vmem:[%s1434 + $0xc] sm:$0xf]
  %v1439 = vld [vmem:[%s1434 + $0x10] sm:$0xf]
  %v1440 = vld [vmem:[%s1434 + $0x14] sm:$0xf]
  %v1441 = vld [vmem:[%s1434 + $0x18] sm:$0xf]
  %v1442 = vld [vmem:[%s1434 + $0x1c] sm:$0xf]
  %v1443 = vld [vmem:[%s1434 + $0x20] sm:$0xf]
  %v1444 = vld [vmem:[%s1434 + $0x24] sm:$0xf]
  %v1445 = vld [vmem:[%s1434 + $0x28] sm:$0xf]
  %v1446 = vld [vmem:[%s1434 + $0x2c] sm:$0xf]
  %v1447 = vld [vmem:[%s1434 + $0x30] sm:$0xf]
  %v1448 = vld [vmem:[%s1434 + $0x34] sm:$0xf]
  %v1449 = vld [vmem:[%s1434 + $0x38] sm:$0xf]
  %v1450 = vld [vmem:[%s1434 + $0x3c] sm:$0xf]
  %v1467 = vunpack.c.l.b16 %v1435
  %v1468 = vunpack.c.l.b16 %v1436
  %v1469 = vunpack.c.l.b16 %v1437
  %v1470 = vunpack.c.l.b16 %v1438
  %v1471 = vunpack.c.l.b16 %v1439
  %v1472 = vunpack.c.l.b16 %v1440
  %v1473 = vunpack.c.l.b16 %v1441
  %v1474 = vunpack.c.l.b16 %v1442
  %v1475 = vunpack.c.l.b16 %v1443
  %v1476 = vunpack.c.l.b16 %v1444
  %v1477 = vunpack.c.l.b16 %v1445
  %v1478 = vunpack.c.l.b16 %v1446
  %v1479 = vunpack.c.l.b16 %v1447
  %v1480 = vunpack.c.l.b16 %v1448
  %v1481 = vunpack.c.l.b16 %v1449
  %v1482 = vunpack.c.l.b16 %v1450
  %v1483 = vpack.c.b16 %v1468, %v1467
  %v1484 = vpack.c.b16 %v1470, %v1469
  %v1485 = vpack.c.b16 %v1472, %v1471
  %v1486 = vpack.c.b16 %v1474, %v1473
  %v1487 = vpack.c.b16 %v1476, %v1475
  %v1488 = vpack.c.b16 %v1478, %v1477
  %v1489 = vpack.c.b16 %v1480, %v1479
  %v1490 = vpack.c.b16 %v1482, %v1481
  %1499 = vmatprep.subr.bf16.mxu0 0
  %1500 = vmatpush1.bf16.msra.mxu0 %v577
  %1501 = vmatprep.subr.bf16.mxu0 0
  %1502 = vmatpush1.bf16.msra.mxu0 %v578
  %1503 = vmatprep.subr.bf16.mxu0 0
  %1504 = vmatpush1.bf16.msra.mxu0 %v579
  %1505 = vmatprep.subr.bf16.mxu0 0
  %1506 = vmatpush1.bf16.msra.mxu0 %v580
  %1507 = vmatprep.subr.bf16.mxu0 0
  %1508 = vmatpush1.bf16.msra.mxu0 %v581
  %1509 = vmatprep.subr.bf16.mxu0 0
  %1510 = vmatpush1.bf16.msra.mxu0 %v582
  %1511 = vmatprep.subr.bf16.mxu0 0
  %1512 = vmatpush1.bf16.msra.mxu0 %v583
  %1513 = vmatprep.subr.bf16.mxu0 0
  %1514 = vmatpush1.bf16.msra.mxu0 %v584
  %1515 = vmatprep.subr.bf16.mxu0 0
  %1516 = vmatpush1.bf16.msra.mxu0 0
  %1517 = vmatprep.subr.bf16.mxu0 0
  %1518 = vmatpush1.bf16.msra.mxu0 0
  %1519 = vmatprep.subr.bf16.mxu0 0
  %1520 = vmatpush1.bf16.msra.mxu0 0
  %1521 = vmatprep.subr.bf16.mxu0 0
  %1522 = vmatpush1.bf16.msra.mxu0 0
  %1523 = vmatprep.subr.bf16.mxu0 0
  %1524 = vmatpush1.bf16.msra.mxu0 0
  %1525 = vmatprep.subr.bf16.mxu0 0
  %1526 = vmatpush1.bf16.msra.mxu0 0
  %1527 = vmatprep.subr.bf16.mxu0 0
  %1528 = vmatpush1.bf16.msra.mxu0 0
  %1529 = vmatprep.subr.bf16.mxu0 0
  %1530 = vmatpush1.bf16.msra.mxu0 0
  %1531 = vmatprep.mubr.bf16.mxu0 0
  %1532 = vmatmul.mubr.bf16.gmra.mrb[0].mxu0 %v1483
  %v1533 = vpop.f32.mrb[0].mxu0
  %v1534 = vadd.f32 0.0, %v1533
  %v1535 = vpop.f32.mrb[0].mxu0
  %v1536 = vpop.f32.mrb[0].mxu0
  %v1537 = vadd.f32 0.0, %v1536
  %v1538 = vpop.f32.mrb[0].mxu0
  %1539 = vmatprep.mubr.bf16.mxu0 0
  %1540 = vmatmul.mubr.bf16.gmra.mrb[0].mxu0 %v1484
  %v1541 = vpop.f32.mrb[0].mxu0
  %v1542 = vadd.f32 0.0, %v1541
  %v1543 = vpop.f32.mrb[0].mxu0
  %v1544 = vpop.f32.mrb[0].mxu0
  %v1545 = vadd.f32 0.0, %v1544
  %v1546 = vpop.f32.mrb[0].mxu0
  %1547 = vmatprep.mubr.bf16.mxu0 0
  %1548 = vmatmul.mubr.bf16.gmra.mrb[0].mxu0 %v1485
  %v1549 = vpop.f32.mrb[0].mxu0
  %v1550 = vadd.f32 0.0, %v1549
  %v1551 = vpop.f32.mrb[0].mxu0
  %v1552 = vpop.f32.mrb[0].mxu0
  %v1553 = vadd.f32 0.0, %v1552
  %v1554 = vpop.f32.mrb[0].mxu0
  %1555 = vmatprep.mubr.bf16.mxu0 0
  %1556 = vmatmul.mubr.bf16.gmra.mrb[0].mxu0 %v1486
  %v1557 = vpop.f32.mrb[0].mxu0
  %v1558 = vadd.f32 0.0, %v1557
  %v1559 = vpop.f32.mrb[0].mxu0
  %v1560 = vpop.f32.mrb[0].mxu0
  %v1561 = vadd.f32 0.0, %v1560
  %v1562 = vpop.f32.mrb[0].mxu0
  %1563 = vmatprep.mubr.bf16.mxu0 0
  %1564 = vmatmul.mubr.bf16.gmra.mrb[0].mxu0 %v1487
  %v1565 = vpop.f32.mrb[0].mxu0
  %v1566 = vadd.f32 0.0, %v1565
  %v1567 = vpop.f32.mrb[0].mxu0
  %v1568 = vpop.f32.mrb[0].mxu0
  %v1569 = vadd.f32 0.0, %v1568
  %v1570 = vpop.f32.mrb[0].mxu0
  %1571 = vmatprep.mubr.bf16.mxu0 0
  %1572 = vmatmul.mubr.bf16.gmra.mrb[0].mxu0 %v1488
  %v1573 = vpop.f32.mrb[0].mxu0
  %v1574 = vadd.f32 0.0, %v1573
  %v1575 = vpop.f32.mrb[0].mxu0
  %v1576 = vpop.f32.mrb[0].mxu0
  %v1577 = vadd.f32 0.0, %v1576
  %v1578 = vpop.f32.mrb[0].mxu0
  %1579 = vmatprep.mubr.bf16.mxu0 0
  %1580 = vmatmul.mubr.bf16.gmra.mrb[0].mxu0 %v1489
  %v1581 = vpop.f32.mrb[0].mxu0
  %v1582 = vadd.f32 0.0, %v1581
  %v1583 = vpop.f32.mrb[0].mxu0
  %v1584 = vpop.f32.mrb[0].mxu0
  %v1585 = vadd.f32 0.0, %v1584
  %v1586 = vpop.f32.mrb[0].mxu0
  %1587 = vmatprep.mubr.bf16.mxu0 0
  %1588 = vmatmul.mubr.bf16.gmra.mrb[0].mxu0 %v1490
  %v1589 = vpop.f32.mrb[0].mxu0
  %v1590 = vadd.f32 0.0, %v1589
  %v1591 = vpop.f32.mrb[0].mxu0
  %v1592 = vpop.f32.mrb[0].mxu0
  %v1593 = vadd.f32 0.0, %v1592
  %v1594 = vpop.f32.mrb[0].mxu0
  %1595 = vdwg.mxu0
  %v1596 = vpack.c.bf16 %v1537, %v1534
  %v1597 = vpack.c.bf16 %v1545, %v1542
  %v1598 = vpack.c.bf16 %v1553, %v1550
  %v1599 = vpack.c.bf16 %v1561, %v1558
  %v1600 = vpack.c.bf16 %v1569, %v1566
  %v1601 = vpack.c.bf16 %v1577, %v1574
  %v1602 = vpack.c.bf16 %v1585, %v1582
  %v1603 = vpack.c.bf16 %v1593, %v1590
  %s1604 = scalar_lea.vmem %s1, 384
  %v1605 = vld [vmem:[%s1604] sm:$0xf]
  %v1606 = vld [vmem:[%s1604 + $0x4] sm:$0xf]
  %v1607 = vld [vmem:[%s1604 + $0x8] sm:$0xf]
  %v1608 = vld [vmem:[%s1604 + $0xc] sm:$0xf]
  %v1609 = vld [vmem:[%s1604 + $0x10] sm:$0xf]
  %v1610 = vld [vmem:[%s1604 + $0x14] sm:$0xf]
  %v1611 = vld [vmem:[%s1604 + $0x18] sm:$0xf]
  %v1612 = vld [vmem:[%s1604 + $0x1c] sm:$0xf]
  %v1613 = vld [vmem:[%s1604 + $0x20] sm:$0xf]
  %v1614 = vld [vmem:[%s1604 + $0x24] sm:$0xf]
  %v1615 = vld [vmem:[%s1604 + $0x28] sm:$0xf]
  %v1616 = vld [vmem:[%s1604 + $0x2c] sm:$0xf]
  %v1617 = vld [vmem:[%s1604 + $0x30] sm:$0xf]
  %v1618 = vld [vmem:[%s1604 + $0x34] sm:$0xf]
  %v1619 = vld [vmem:[%s1604 + $0x38] sm:$0xf]
  %v1620 = vld [vmem:[%s1604 + $0x3c] sm:$0xf]
  %v1637 = vunpack.c.l.b16 %v1605
  %v1638 = vunpack.c.l.b16 %v1606
  %v1639 = vunpack.c.l.b16 %v1607
  %v1640 = vunpack.c.l.b16 %v1608
  %v1641 = vunpack.c.l.b16 %v1609
  %v1642 = vunpack.c.l.b16 %v1610
  %v1643 = vunpack.c.l.b16 %v1611
  %v1644 = vunpack.c.l.b16 %v1612
  %v1645 = vunpack.c.l.b16 %v1613
  %v1646 = vunpack.c.l.b16 %v1614
  %v1647 = vunpack.c.l.b16 %v1615
  %v1648 = vunpack.c.l.b16 %v1616
  %v1649 = vunpack.c.l.b16 %v1617
  %v1650 = vunpack.c.l.b16 %v1618
  %v1651 = vunpack.c.l.b16 %v1619
  %v1652 = vunpack.c.l.b16 %v1620
  %v1653 = vpack.c.b16 %v1638, %v1637
  %v1654 = vpack.c.b16 %v1640, %v1639
  %v1655 = vpack.c.b16 %v1642, %v1641
  %v1656 = vpack.c.b16 %v1644, %v1643
  %v1657 = vpack.c.b16 %v1646, %v1645
  %v1658 = vpack.c.b16 %v1648, %v1647
  %v1659 = vpack.c.b16 %v1650, %v1649
  %v1660 = vpack.c.b16 %v1652, %v1651
  %1669 = vmatprep.subr.bf16.mxu0 0
  %1670 = vmatpush1.bf16.msra.mxu0 %v577
  %1671 = vmatprep.subr.bf16.mxu0 0
  %1672 = vmatpush1.bf16.msra.mxu0 %v578
  %1673 = vmatprep.subr.bf16.mxu0 0
  %1674 = vmatpush1.bf16.msra.mxu0 %v579
  %1675 = vmatprep.subr.bf16.mxu0 0
  %1676 = vmatpush1.bf16.msra.mxu0 %v580
  %1677 = vmatprep.subr.bf16.mxu0 0
  %1678 = vmatpush1.bf16.msra.mxu0 %v581
  %1679 = vmatprep.subr.bf16.mxu0 0
  %1680 = vmatpush1.bf16.msra.mxu0 %v582
  %1681 = vmatprep.subr.bf16.mxu0 0
  %1682 = vmatpush1.bf16.msra.mxu0 %v583
  %1683 = vmatprep.subr.bf16.mxu0 0
  %1684 = vmatpush1.bf16.msra.mxu0 %v584
  %1685 = vmatprep.subr.bf16.mxu0 0
  %1686 = vmatpush1.bf16.msra.mxu0 0
  %1687 = vmatprep.subr.bf16.mxu0 0
  %1688 = vmatpush1.bf16.msra.mxu0 0
  %1689 = vmatprep.subr.bf16.mxu0 0
  %1690 = vmatpush1.bf16.msra.mxu0 0
  %1691 = vmatprep.subr.bf16.mxu0 0
  %1692 = vmatpush1.bf16.msra.mxu0 0
  %1693 = vmatprep.subr.bf16.mxu0 0
  %1694 = vmatpush1.bf16.msra.mxu0 0
  %1695 = vmatprep.subr.bf16.mxu0 0
  %1696 = vmatpush1.bf16.msra.mxu0 0
  %1697 = vmatprep.subr.bf16.mxu0 0
  %1698 = vmatpush1.bf16.msra.mxu0 0
  %1699 = vmatprep.subr.bf16.mxu0 0
  %1700 = vmatpush1.bf16.msra.mxu0 0
  %1701 = vmatprep.mubr.bf16.mxu0 0
  %1702 = vmatmul.mubr.bf16.gmra.mrb[0].mxu0 %v1653
  %v1703 = vpop.f32.mrb[0].mxu0
  %v1704 = vadd.f32 0.0, %v1703
  %v1705 = vpop.f32.mrb[0].mxu0
  %v1706 = vpop.f32.mrb[0].mxu0
  %v1707 = vadd.f32 0.0, %v1706
  %v1708 = vpop.f32.mrb[0].mxu0
  %1709 = vmatprep.mubr.bf16.mxu0 0
  %1710 = vmatmul.mubr.bf16.gmra.mrb[0].mxu0 %v1654
  %v1711 = vpop.f32.mrb[0].mxu0
  %v1712 = vadd.f32 0.0, %v1711
  %v1713 = vpop.f32.mrb[0].mxu0
  %v1714 = vpop.f32.mrb[0].mxu0
  %v1715 = vadd.f32 0.0, %v1714
  %v1716 = vpop.f32.mrb[0].mxu0
  %1717 = vmatprep.mubr.bf16.mxu0 0
  %1718 = vmatmul.mubr.bf16.gmra.mrb[0].mxu0 %v1655
  %v1719 = vpop.f32.mrb[0].mxu0
  %v1720 = vadd.f32 0.0, %v1719
  %v1721 = vpop.f32.mrb[0].mxu0
  %v1722 = vpop.f32.mrb[0].mxu0
  %v1723 = vadd.f32 0.0, %v1722
  %v1724 = vpop.f32.mrb[0].mxu0
  %1725 = vmatprep.mubr.bf16.mxu0 0
  %1726 = vmatmul.mubr.bf16.gmra.mrb[0].mxu0 %v1656
  %v1727 = vpop.f32.mrb[0].mxu0
  %v1728 = vadd.f32 0.0, %v1727
  %v1729 = vpop.f32.mrb[0].mxu0
  %v1730 = vpop.f32.mrb[0].mxu0
  %v1731 = vadd.f32 0.0, %v1730
  %v1732 = vpop.f32.mrb[0].mxu0
  %1733 = vmatprep.mubr.bf16.mxu0 0
  %1734 = vmatmul.mubr.bf16.gmra.mrb[0].mxu0 %v1657
  %v1735 = vpop.f32.mrb[0].mxu0
  %v1736 = vadd.f32 0.0, %v1735
  %v1737 = vpop.f32.mrb[0].mxu0
  %v1738 = vpop.f32.mrb[0].mxu0
  %v1739 = vadd.f32 0.0, %v1738
  %v1740 = vpop.f32.mrb[0].mxu0
  %1741 = vmatprep.mubr.bf16.mxu0 0
  %1742 = vmatmul.mubr.bf16.gmra.mrb[0].mxu0 %v1658
  %v1743 = vpop.f32.mrb[0].mxu0
  %v1744 = vadd.f32 0.0, %v1743
  %v1745 = vpop.f32.mrb[0].mxu0
  %v1746 = vpop.f32.mrb[0].mxu0
  %v1747 = vadd.f32 0.0, %v1746
  %v1748 = vpop.f32.mrb[0].mxu0
  %1749 = vmatprep.mubr.bf16.mxu0 0
  %1750 = vmatmul.mubr.bf16.gmra.mrb[0].mxu0 %v1659
  %v1751 = vpop.f32.mrb[0].mxu0
  %v1752 = vadd.f32 0.0, %v1751
  %v1753 = vpop.f32.mrb[0].mxu0
  %v1754 = vpop.f32.mrb[0].mxu0
  %v1755 = vadd.f32 0.0, %v1754
  %v1756 = vpop.f32.mrb[0].mxu0
  %1757 = vmatprep.mubr.bf16.mxu0 0
  %1758 = vmatmul.mubr.bf16.gmra.mrb[0].mxu0 %v1660
  %v1759 = vpop.f32.mrb[0].mxu0
  %v1760 = vadd.f32 0.0, %v1759
  %v1761 = vpop.f32.mrb[0].mxu0
  %v1762 = vpop.f32.mrb[0].mxu0
  %v1763 = vadd.f32 0.0, %v1762
  %v1764 = vpop.f32.mrb[0].mxu0
  %1765 = vdwg.mxu0
  %v1766 = vpack.c.bf16 %v1707, %v1704
  %v1767 = vpack.c.bf16 %v1715, %v1712
  %v1768 = vpack.c.bf16 %v1723, %v1720
  %v1769 = vpack.c.bf16 %v1731, %v1728
  %v1770 = vpack.c.bf16 %v1739, %v1736
  %v1771 = vpack.c.bf16 %v1747, %v1744
  %v1772 = vpack.c.bf16 %v1755, %v1752
  %v1773 = vpack.c.bf16 %v1763, %v1760
  %s1774 = scalar_lea.vmem %s1, 448
  %v1775 = vld [vmem:[%s1774] sm:$0xf]
  %v1776 = vld [vmem:[%s1774 + $0x4] sm:$0xf]
  %v1777 = vld [vmem:[%s1774 + $0x8] sm:$0xf]
  %v1778 = vld [vmem:[%s1774 + $0xc] sm:$0xf]
  %v1779 = vld [vmem:[%s1774 + $0x10] sm:$0xf]
  %v1780 = vld [vmem:[%s1774 + $0x14] sm:$0xf]
  %v1781 = vld [vmem:[%s1774 + $0x18] sm:$0xf]
  %v1782 = vld [vmem:[%s1774 + $0x1c] sm:$0xf]
  %v1783 = vld [vmem:[%s1774 + $0x20] sm:$0xf]
  %v1784 = vld [vmem:[%s1774 + $0x24] sm:$0xf]
  %v1785 = vld [vmem:[%s1774 + $0x28] sm:$0xf]
  %v1786 = vld [vmem:[%s1774 + $0x2c] sm:$0xf]
  %v1787 = vld [vmem:[%s1774 + $0x30] sm:$0xf]
  %v1788 = vld [vmem:[%s1774 + $0x34] sm:$0xf]
  %v1789 = vld [vmem:[%s1774 + $0x38] sm:$0xf]
  %v1790 = vld [vmem:[%s1774 + $0x3c] sm:$0xf]
  %v1807 = vunpack.c.l.b16 %v1775
  %v1808 = vunpack.c.l.b16 %v1776
  %v1809 = vunpack.c.l.b16 %v1777
  %v1810 = vunpack.c.l.b16 %v1778
  %v1811 = vunpack.c.l.b16 %v1779
  %v1812 = vunpack.c.l.b16 %v1780
  %v1813 = vunpack.c.l.b16 %v1781
  %v1814 = vunpack.c.l.b16 %v1782
  %v1815 = vunpack.c.l.b16 %v1783
  %v1816 = vunpack.c.l.b16 %v1784
  %v1817 = vunpack.c.l.b16 %v1785
  %v1818 = vunpack.c.l.b16 %v1786
  %v1819 = vunpack.c.l.b16 %v1787
  %v1820 = vunpack.c.l.b16 %v1788
  %v1821 = vunpack.c.l.b16 %v1789
  %v1822 = vunpack.c.l.b16 %v1790
  %v1823 = vpack.c.b16 %v1808, %v1807
  %v1824 = vpack.c.b16 %v1810, %v1809
  %v1825 = vpack.c.b16 %v1812, %v1811
  %v1826 = vpack.c.b16 %v1814, %v1813
  %v1827 = vpack.c.b16 %v1816, %v1815
  %v1828 = vpack.c.b16 %v1818, %v1817
  %v1829 = vpack.c.b16 %v1820, %v1819
  %v1830 = vpack.c.b16 %v1822, %v1821
  %1839 = vmatprep.subr.bf16.mxu0 0
  %1840 = vmatpush1.bf16.msra.mxu0 %v577
  %1841 = vmatprep.subr.bf16.mxu0 0
  %1842 = vmatpush1.bf16.msra.mxu0 %v578
  %1843 = vmatprep.subr.bf16.mxu0 0
  %1844 = vmatpush1.bf16.msra.mxu0 %v579
  %1845 = vmatprep.subr.bf16.mxu0 0
  %1846 = vmatpush1.bf16.msra.mxu0 %v580
  %1847 = vmatprep.subr.bf16.mxu0 0
  %1848 = vmatpush1.bf16.msra.mxu0 %v581
  %1849 = vmatprep.subr.bf16.mxu0 0
  %1850 = vmatpush1.bf16.msra.mxu0 %v582
  %1851 = vmatprep.subr.bf16.mxu0 0
  %1852 = vmatpush1.bf16.msra.mxu0 %v583
  %1853 = vmatprep.subr.bf16.mxu0 0
  %1854 = vmatpush1.bf16.msra.mxu0 %v584
  %1855 = vmatprep.subr.bf16.mxu0 0
  %1856 = vmatpush1.bf16.msra.mxu0 0
  %1857 = vmatprep.subr.bf16.mxu0 0
  %1858 = vmatpush1.bf16.msra.mxu0 0
  %1859 = vmatprep.subr.bf16.mxu0 0
  %1860 = vmatpush1.bf16.msra.mxu0 0
  %1861 = vmatprep.subr.bf16.mxu0 0
  %1862 = vmatpush1.bf16.msra.mxu0 0
  %1863 = vmatprep.subr.bf16.mxu0 0
  %1864 = vmatpush1.bf16.msra.mxu0 0
  %1865 = vmatprep.subr.bf16.mxu0 0
  %1866 = vmatpush1.bf16.msra.mxu0 0
  %1867 = vmatprep.subr.bf16.mxu0 0
  %1868 = vmatpush1.bf16.msra.mxu0 0
  %1869 = vmatprep.subr.bf16.mxu0 0
  %1870 = vmatpush1.bf16.msra.mxu0 0
  %1871 = vmatprep.mubr.bf16.mxu0 0
  %1872 = vmatmul.mubr.bf16.gmra.mrb[0].mxu0 %v1823
  %v1873 = vpop.f32.mrb[0].mxu0
  %v1874 = vadd.f32 0.0, %v1873
  %v1875 = vpop.f32.mrb[0].mxu0
  %v1876 = vpop.f32.mrb[0].mxu0
  %v1877 = vadd.f32 0.0, %v1876
  %v1878 = vpop.f32.mrb[0].mxu0
  %1879 = vmatprep.mubr.bf16.mxu0 0
  %1880 = vmatmul.mubr.bf16.gmra.mrb[0].mxu0 %v1824
  %v1881 = vpop.f32.mrb[0].mxu0
  %v1882 = vadd.f32 0.0, %v1881
  %v1883 = vpop.f32.mrb[0].mxu0
  %v1884 = vpop.f32.mrb[0].mxu0
  %v1885 = vadd.f32 0.0, %v1884
  %v1886 = vpop.f32.mrb[0].mxu0
  %1887 = vmatprep.mubr.bf16.mxu0 0
  %1888 = vmatmul.mubr.bf16.gmra.mrb[0].mxu0 %v1825
  %v1889 = vpop.f32.mrb[0].mxu0
  %v1890 = vadd.f32 0.0, %v1889
  %v1891 = vpop.f32.mrb[0].mxu0
  %v1892 = vpop.f32.mrb[0].mxu0
  %v1893 = vadd.f32 0.0, %v1892
  %v1894 = vpop.f32.mrb[0].mxu0
  %1895 = vmatprep.mubr.bf16.mxu0 0
  %1896 = vmatmul.mubr.bf16.gmra.mrb[0].mxu0 %v1826
  %v1897 = vpop.f32.mrb[0].mxu0
  %v1898 = vadd.f32 0.0, %v1897
  %v1899 = vpop.f32.mrb[0].mxu0
  %v1900 = vpop.f32.mrb[0].mxu0
  %v1901 = vadd.f32 0.0, %v1900
  %v1902 = vpop.f32.mrb[0].mxu0
  %1903 = vmatprep.mubr.bf16.mxu0 0
  %1904 = vmatmul.mubr.bf16.gmra.mrb[0].mxu0 %v1827
  %v1905 = vpop.f32.mrb[0].mxu0
  %v1906 = vadd.f32 0.0, %v1905
  %v1907 = vpop.f32.mrb[0].mxu0
  %v1908 = vpop.f32.mrb[0].mxu0
  %v1909 = vadd.f32 0.0, %v1908
  %v1910 = vpop.f32.mrb[0].mxu0
  %1911 = vmatprep.mubr.bf16.mxu0 0
  %1912 = vmatmul.mubr.bf16.gmra.mrb[0].mxu0 %v1828
  %v1913 = vpop.f32.mrb[0].mxu0
  %v1914 = vadd.f32 0.0, %v1913
  %v1915 = vpop.f32.mrb[0].mxu0
  %v1916 = vpop.f32.mrb[0].mxu0
  %v1917 = vadd.f32 0.0, %v1916
  %v1918 = vpop.f32.mrb[0].mxu0
  %1919 = vmatprep.mubr.bf16.mxu0 0
  %1920 = vmatmul.mubr.bf16.gmra.mrb[0].mxu0 %v1829
  %v1921 = vpop.f32.mrb[0].mxu0
  %v1922 = vadd.f32 0.0, %v1921
  %v1923 = vpop.f32.mrb[0].mxu0
  %v1924 = vpop.f32.mrb[0].mxu0
  %v1925 = vadd.f32 0.0, %v1924
  %v1926 = vpop.f32.mrb[0].mxu0
  %1927 = vmatprep.mubr.bf16.mxu0 0
  %1928 = vmatmul.mubr.bf16.gmra.mrb[0].mxu0 %v1830
  %v1929 = vpop.f32.mrb[0].mxu0
  %v1930 = vadd.f32 0.0, %v1929
  %v1931 = vpop.f32.mrb[0].mxu0
  %v1932 = vpop.f32.mrb[0].mxu0
  %v1933 = vadd.f32 0.0, %v1932
  %v1934 = vpop.f32.mrb[0].mxu0
  %1935 = vdwg.mxu0
  %v1936 = vpack.c.bf16 %v1877, %v1874
  %v1937 = vpack.c.bf16 %v1885, %v1882
  %v1938 = vpack.c.bf16 %v1893, %v1890
  %v1939 = vpack.c.bf16 %v1901, %v1898
  %v1940 = vpack.c.bf16 %v1909, %v1906
  %v1941 = vpack.c.bf16 %v1917, %v1914
  %v1942 = vpack.c.bf16 %v1925, %v1922
  %v1943 = vpack.c.bf16 %v1933, %v1930
  %s1944 = scalar_lea.vmem %s1, 512
  %v1945 = vld [vmem:[%s1944] sm:$0xf]
  %v1946 = vld [vmem:[%s1944 + $0x4] sm:$0xf]
  %v1947 = vld [vmem:[%s1944 + $0x8] sm:$0xf]
  %v1948 = vld [vmem:[%s1944 + $0xc] sm:$0xf]
  %v1949 = vld [vmem:[%s1944 + $0x10] sm:$0xf]
  %v1950 = vld [vmem:[%s1944 + $0x14] sm:$0xf]
  %v1951 = vld [vmem:[%s1944 + $0x18] sm:$0xf]
  %v1952 = vld [vmem:[%s1944 + $0x1c] sm:$0xf]
  %v1953 = vld [vmem:[%s1944 + $0x20] sm:$0xf]
  %v1954 = vld [vmem:[%s1944 + $0x24] sm:$0xf]
  %v1955 = vld [vmem:[%s1944 + $0x28] sm:$0xf]
  %v1956 = vld [vmem:[%s1944 + $0x2c] sm:$0xf]
  %v1957 = vld [vmem:[%s1944 + $0x30] sm:$0xf]
  %v1958 = vld [vmem:[%s1944 + $0x34] sm:$0xf]
  %v1959 = vld [vmem:[%s1944 + $0x38] sm:$0xf]
  %v1960 = vld [vmem:[%s1944 + $0x3c] sm:$0xf]
  %v1977 = vunpack.c.l.b16 %v1945
  %v1978 = vunpack.c.l.b16 %v1946
  %v1979 = vunpack.c.l.b16 %v1947
  %v1980 = vunpack.c.l.b16 %v1948
  %v1981 = vunpack.c.l.b16 %v1949
  %v1982 = vunpack.c.l.b16 %v1950
  %v1983 = vunpack.c.l.b16 %v1951
  %v1984 = vunpack.c.l.b16 %v1952
  %v1985 = vunpack.c.l.b16 %v1953
  %v1986 = vunpack.c.l.b16 %v1954
  %v1987 = vunpack.c.l.b16 %v1955
  %v1988 = vunpack.c.l.b16 %v1956
  %v1989 = vunpack.c.l.b16 %v1957
  %v1990 = vunpack.c.l.b16 %v1958
  %v1991 = vunpack.c.l.b16 %v1959
  %v1992 = vunpack.c.l.b16 %v1960
  %v1993 = vpack.c.b16 %v1978, %v1977
  %v1994 = vpack.c.b16 %v1980, %v1979
  %v1995 = vpack.c.b16 %v1982, %v1981
  %v1996 = vpack.c.b16 %v1984, %v1983
  %v1997 = vpack.c.b16 %v1986, %v1985
  %v1998 = vpack.c.b16 %v1988, %v1987
  %v1999 = vpack.c.b16 %v1990, %v1989
  %v2000 = vpack.c.b16 %v1992, %v1991
  %2009 = vmatprep.subr.bf16.mxu0 0
  %2010 = vmatpush1.bf16.msra.mxu0 %v577
  %2011 = vmatprep.subr.bf16.mxu0 0
  %2012 = vmatpush1.bf16.msra.mxu0 %v578
  %2013 = vmatprep.subr.bf16.mxu0 0
  %2014 = vmatpush1.bf16.msra.mxu0 %v579
  %2015 = vmatprep.subr.bf16.mxu0 0
  %2016 = vmatpush1.bf16.msra.mxu0 %v580
  %2017 = vmatprep.subr.bf16.mxu0 0
  %2018 = vmatpush1.bf16.msra.mxu0 %v581
  %2019 = vmatprep.subr.bf16.mxu0 0
  %2020 = vmatpush1.bf16.msra.mxu0 %v582
  %2021 = vmatprep.subr.bf16.mxu0 0
  %2022 = vmatpush1.bf16.msra.mxu0 %v583
  %2023 = vmatprep.subr.bf16.mxu0 0
  %2024 = vmatpush1.bf16.msra.mxu0 %v584
  %2025 = vmatprep.subr.bf16.mxu0 0
  %2026 = vmatpush1.bf16.msra.mxu0 0
  %2027 = vmatprep.subr.bf16.mxu0 0
  %2028 = vmatpush1.bf16.msra.mxu0 0
  %2029 = vmatprep.subr.bf16.mxu0 0
  %2030 = vmatpush1.bf16.msra.mxu0 0
  %2031 = vmatprep.subr.bf16.mxu0 0
  %2032 = vmatpush1.bf16.msra.mxu0 0
  %2033 = vmatprep.subr.bf16.mxu0 0
  %2034 = vmatpush1.bf16.msra.mxu0 0
  %2035 = vmatprep.subr.bf16.mxu0 0
  %2036 = vmatpush1.bf16.msra.mxu0 0
  %2037 = vmatprep.subr.bf16.mxu0 0
  %2038 = vmatpush1.bf16.msra.mxu0 0
  %2039 = vmatprep.subr.bf16.mxu0 0
  %2040 = vmatpush1.bf16.msra.mxu0 0
  %2041 = vmatprep.mubr.bf16.mxu0 0
  %2042 = vmatmul.mubr.bf16.gmra.mrb[0].mxu0 %v1993
  %v2043 = vpop.f32.mrb[0].mxu0
  %v2044 = vadd.f32 0.0, %v2043
  %v2045 = vpop.f32.mrb[0].mxu0
  %v2046 = vpop.f32.mrb[0].mxu0
  %v2047 = vadd.f32 0.0, %v2046
  %v2048 = vpop.f32.mrb[0].mxu0
  %2049 = vmatprep.mubr.bf16.mxu0 0
  %2050 = vmatmul.mubr.bf16.gmra.mrb[0].mxu0 %v1994
  %v2051 = vpop.f32.mrb[0].mxu0
  %v2052 = vadd.f32 0.0, %v2051
  %v2053 = vpop.f32.mrb[0].mxu0
  %v2054 = vpop.f32.mrb[0].mxu0
  %v2055 = vadd.f32 0.0, %v2054
  %v2056 = vpop.f32.mrb[0].mxu0
  %2057 = vmatprep.mubr.bf16.mxu0 0
  %2058 = vmatmul.mubr.bf16.gmra.mrb[0].mxu0 %v1995
  %v2059 = vpop.f32.mrb[0].mxu0
  %v2060 = vadd.f32 0.0, %v2059
  %v2061 = vpop.f32.mrb[0].mxu0
  %v2062 = vpop.f32.mrb[0].mxu0
  %v2063 = vadd.f32 0.0, %v2062
  %v2064 = vpop.f32.mrb[0].mxu0
  %2065 = vmatprep.mubr.bf16.mxu0 0
  %2066 = vmatmul.mubr.bf16.gmra.mrb[0].mxu0 %v1996
  %v2067 = vpop.f32.mrb[0].mxu0
  %v2068 = vadd.f32 0.0, %v2067
  %v2069 = vpop.f32.mrb[0].mxu0
  %v2070 = vpop.f32.mrb[0].mxu0
  %v2071 = vadd.f32 0.0, %v2070
  %v2072 = vpop.f32.mrb[0].mxu0
  %2073 = vmatprep.mubr.bf16.mxu0 0
  %2074 = vmatmul.mubr.bf16.gmra.mrb[0].mxu0 %v1997
  %v2075 = vpop.f32.mrb[0].mxu0
  %v2076 = vadd.f32 0.0, %v2075
  %v2077 = vpop.f32.mrb[0].mxu0
  %v2078 = vpop.f32.mrb[0].mxu0
  %v2079 = vadd.f32 0.0, %v2078
  %v2080 = vpop.f32.mrb[0].mxu0
  %2081 = vmatprep.mubr.bf16.mxu0 0
  %2082 = vmatmul.mubr.bf16.gmra.mrb[0].mxu0 %v1998
  %v2083 = vpop.f32.mrb[0].mxu0
  %v2084 = vadd.f32 0.0, %v2083
  %v2085 = vpop.f32.mrb[0].mxu0
  %v2086 = vpop.f32.mrb[0].mxu0
  %v2087 = vadd.f32 0.0, %v2086
  %v2088 = vpop.f32.mrb[0].mxu0
  %2089 = vmatprep.mubr.bf16.mxu0 0
  %2090 = vmatmul.mubr.bf16.gmra.mrb[0].mxu0 %v1999
  %v2091 = vpop.f32.mrb[0].mxu0
  %v2092 = vadd.f32 0.0, %v2091
  %v2093 = vpop.f32.mrb[0].mxu0
  %v2094 = vpop.f32.mrb[0].mxu0
  %v2095 = vadd.f32 0.0, %v2094
  %v2096 = vpop.f32.mrb[0].mxu0
  %2097 = vmatprep.mubr.bf16.mxu0 0
  %2098 = vmatmul.mubr.bf16.gmra.mrb[0].mxu0 %v2000
  %v2099 = vpop.f32.mrb[0].mxu0
  %v2100 = vadd.f32 0.0, %v2099
  %v2101 = vpop.f32.mrb[0].mxu0
  %v2102 = vpop.f32.mrb[0].mxu0
  %v2103 = vadd.f32 0.0, %v2102
  %v2104 = vpop.f32.mrb[0].mxu0
  %2105 = vdwg.mxu0
  %v2106 = vpack.c.bf16 %v2047, %v2044
  %v2107 = vpack.c.bf16 %v2055, %v2052
  %v2108 = vpack.c.bf16 %v2063, %v2060
  %v2109 = vpack.c.bf16 %v2071, %v2068
  %v2110 = vpack.c.bf16 %v2079, %v2076
  %v2111 = vpack.c.bf16 %v2087, %v2084
  %v2112 = vpack.c.bf16 %v2095, %v2092
  %v2113 = vpack.c.bf16 %v2103, %v2100
  %v2114 = vld [vmem:[%s3] sm:$0xf]
  %v2115 = vld [vmem:[%s3 + $0x4] sm:$0xf]
  %v2116 = vld [vmem:[%s3 + $0x8] sm:$0xf]
  %v2117 = vld [vmem:[%s3 + $0xc] sm:$0xf]
  %v2118 = vld [vmem:[%s3 + $0x10] sm:$0xf]
  %v2119 = vld [vmem:[%s3 + $0x14] sm:$0xf]
  %v2120 = vld [vmem:[%s3 + $0x18] sm:$0xf]
  %v2121 = vld [vmem:[%s3 + $0x1c] sm:$0xf]
  %v2122 = vld [vmem:[%s3 + $0x20] sm:$0xf]
  %v2123 = vld [vmem:[%s3 + $0x24] sm:$0xf]
  %v2124 = vld [vmem:[%s3 + $0x28] sm:$0xf]
  %v2125 = vld [vmem:[%s3 + $0x2c] sm:$0xf]
  %v2126 = vld [vmem:[%s3 + $0x30] sm:$0xf]
  %v2127 = vld [vmem:[%s3 + $0x34] sm:$0xf]
  %v2128 = vld [vmem:[%s3 + $0x38] sm:$0xf]
  %v2129 = vld [vmem:[%s3 + $0x3c] sm:$0xf]
  %v2130 = vld [vmem:[%s3 + $0x40] sm:$0xf]
  %v2131 = vld [vmem:[%s3 + $0x44] sm:$0xf]
  %v2132 = vld [vmem:[%s3 + $0x48] sm:$0xf]
  %v2133 = vld [vmem:[%s3 + $0x4c] sm:$0xf]
  %v2134 = vld [vmem:[%s3 + $0x50] sm:$0xf]
  %v2135 = vld [vmem:[%s3 + $0x54] sm:$0xf]
  %v2136 = vld [vmem:[%s3 + $0x58] sm:$0xf]
  %v2137 = vld [vmem:[%s3 + $0x5c] sm:$0xf]
  %v2138 = vld [vmem:[%s3 + $0x60] sm:$0xf]
  %v2139 = vld [vmem:[%s3 + $0x64] sm:$0xf]
  %v2140 = vld [vmem:[%s3 + $0x68] sm:$0xf]
  %v2141 = vld [vmem:[%s3 + $0x6c] sm:$0xf]
  %v2142 = vld [vmem:[%s3 + $0x70] sm:$0xf]
  %v2143 = vld [vmem:[%s3 + $0x74] sm:$0xf]
  %v2144 = vld [vmem:[%s3 + $0x78] sm:$0xf]
  %v2145 = vld [vmem:[%s3 + $0x7c] sm:$0xf]
  %v2146 = vld [vmem:[%s3 + $0x80] sm:$0xf]
  %v2147 = vld [vmem:[%s3 + $0x84] sm:$0xf]
  %v2148 = vld [vmem:[%s3 + $0x88] sm:$0xf]
  %v2149 = vld [vmem:[%s3 + $0x8c] sm:$0xf]
  %v2150 = vld [vmem:[%s3 + $0x90] sm:$0xf]
  %v2151 = vld [vmem:[%s3 + $0x94] sm:$0xf]
  %v2152 = vld [vmem:[%s3 + $0x98] sm:$0xf]
  %v2153 = vld [vmem:[%s3 + $0x9c] sm:$0xf]
  %v2154 = vld [vmem:[%s3 + $0xa0] sm:$0xf]
  %v2155 = vld [vmem:[%s3 + $0xa4] sm:$0xf]
  %v2156 = vld [vmem:[%s3 + $0xa8] sm:$0xf]
  %v2157 = vld [vmem:[%s3 + $0xac] sm:$0xf]
  %v2158 = vld [vmem:[%s3 + $0xb0] sm:$0xf]
  %v2159 = vld [vmem:[%s3 + $0xb4] sm:$0xf]
  %v2160 = vld [vmem:[%s3 + $0xb8] sm:$0xf]
  %v2161 = vld [vmem:[%s3 + $0xbc] sm:$0xf]
  %v2162 = vld [vmem:[%s3 + $0xc0] sm:$0xf]
  %v2163 = vld [vmem:[%s3 + $0xc4] sm:$0xf]
  %v2164 = vld [vmem:[%s3 + $0xc8] sm:$0xf]
  %v2165 = vld [vmem:[%s3 + $0xcc] sm:$0xf]
  %v2166 = vld [vmem:[%s3 + $0xd0] sm:$0xf]
  %v2167 = vld [vmem:[%s3 + $0xd4] sm:$0xf]
  %v2168 = vld [vmem:[%s3 + $0xd8] sm:$0xf]
  %v2169 = vld [vmem:[%s3 + $0xdc] sm:$0xf]
  %v2170 = vld [vmem:[%s3 + $0xe0] sm:$0xf]
  %v2171 = vld [vmem:[%s3 + $0xe4] sm:$0xf]
  %v2172 = vld [vmem:[%s3 + $0xe8] sm:$0xf]
  %v2173 = vld [vmem:[%s3 + $0xec] sm:$0xf]
  %v2174 = vld [vmem:[%s3 + $0xf0] sm:$0xf]
  %v2175 = vld [vmem:[%s3 + $0xf4] sm:$0xf]
  %v2176 = vld [vmem:[%s3 + $0xf8] sm:$0xf]
  %v2177 = vld [vmem:[%s3 + $0xfc] sm:$0xf]
  %v2178 = vld [vmem:[%s3 + $0x100] sm:$0xf]
  %v2179 = vld [vmem:[%s3 + $0x104] sm:$0xf]
  %v2180 = vld [vmem:[%s3 + $0x108] sm:$0xf]
  %v2181 = vld [vmem:[%s3 + $0x10c] sm:$0xf]
  %v2182 = vld [vmem:[%s3 + $0x110] sm:$0xf]
  %v2183 = vld [vmem:[%s3 + $0x114] sm:$0xf]
  %v2184 = vld [vmem:[%s3 + $0x118] sm:$0xf]
  %v2185 = vld [vmem:[%s3 + $0x11c] sm:$0xf]
  %v2186 = vld [vmem:[%s3 + $0x120] sm:$0xf]
  %v2187 = vld [vmem:[%s3 + $0x124] sm:$0xf]
  %v2188 = vld [vmem:[%s3 + $0x128] sm:$0xf]
  %v2189 = vld [vmem:[%s3 + $0x12c] sm:$0xf]
  %v2190 = vld [vmem:[%s3 + $0x130] sm:$0xf]
  %v2191 = vld [vmem:[%s3 + $0x134] sm:$0xf]
  %v2192 = vld [vmem:[%s3 + $0x138] sm:$0xf]
  %v2193 = vld [vmem:[%s3 + $0x13c] sm:$0xf]
  %v2194 = vld [vmem:[%s3 + $0x140] sm:$0xf]
  %v2195 = vld [vmem:[%s3 + $0x144] sm:$0xf]
  %v2196 = vld [vmem:[%s3 + $0x148] sm:$0xf]
  %v2197 = vld [vmem:[%s3 + $0x14c] sm:$0xf]
  %v2198 = vld [vmem:[%s3 + $0x150] sm:$0xf]
  %v2199 = vld [vmem:[%s3 + $0x154] sm:$0xf]
  %v2200 = vld [vmem:[%s3 + $0x158] sm:$0xf]
  %v2201 = vld [vmem:[%s3 + $0x15c] sm:$0xf]
  %v2202 = vld [vmem:[%s3 + $0x160] sm:$0xf]
  %v2203 = vld [vmem:[%s3 + $0x164] sm:$0xf]
  %v2204 = vld [vmem:[%s3 + $0x168] sm:$0xf]
  %v2205 = vld [vmem:[%s3 + $0x16c] sm:$0xf]
  %v2206 = vld [vmem:[%s3 + $0x170] sm:$0xf]
  %v2207 = vld [vmem:[%s3 + $0x174] sm:$0xf]
  %v2208 = vld [vmem:[%s3 + $0x178] sm:$0xf]
  %v2209 = vld [vmem:[%s3 + $0x17c] sm:$0xf]
  %v2210 = vld [vmem:[%s3 + $0x180] sm:$0xf]
  %v2211 = vld [vmem:[%s3 + $0x184] sm:$0xf]
  %v2212 = vld [vmem:[%s3 + $0x188] sm:$0xf]
  %v2213 = vld [vmem:[%s3 + $0x18c] sm:$0xf]
  %v2214 = vld [vmem:[%s3 + $0x190] sm:$0xf]
  %v2215 = vld [vmem:[%s3 + $0x194] sm:$0xf]
  %v2216 = vld [vmem:[%s3 + $0x198] sm:$0xf]
  %v2217 = vld [vmem:[%s3 + $0x19c] sm:$0xf]
  %v2218 = vld [vmem:[%s3 + $0x1a0] sm:$0xf]
  %v2219 = vld [vmem:[%s3 + $0x1a4] sm:$0xf]
  %v2220 = vld [vmem:[%s3 + $0x1a8] sm:$0xf]
  %v2221 = vld [vmem:[%s3 + $0x1ac] sm:$0xf]
  %v2222 = vld [vmem:[%s3 + $0x1b0] sm:$0xf]
  %v2223 = vld [vmem:[%s3 + $0x1b4] sm:$0xf]
  %v2224 = vld [vmem:[%s3 + $0x1b8] sm:$0xf]
  %v2225 = vld [vmem:[%s3 + $0x1bc] sm:$0xf]
  %v2226 = vld [vmem:[%s3 + $0x1c0] sm:$0xf]
  %v2227 = vld [vmem:[%s3 + $0x1c4] sm:$0xf]
  %v2228 = vld [vmem:[%s3 + $0x1c8] sm:$0xf]
  %v2229 = vld [vmem:[%s3 + $0x1cc] sm:$0xf]
  %v2230 = vld [vmem:[%s3 + $0x1d0] sm:$0xf]
  %v2231 = vld [vmem:[%s3 + $0x1d4] sm:$0xf]
  %v2232 = vld [vmem:[%s3 + $0x1d8] sm:$0xf]
  %v2233 = vld [vmem:[%s3 + $0x1dc] sm:$0xf]
  %v2234 = vld [vmem:[%s3 + $0x1e0] sm:$0xf]
  %v2235 = vld [vmem:[%s3 + $0x1e4] sm:$0xf]
  %v2236 = vld [vmem:[%s3 + $0x1e8] sm:$0xf]
  %v2237 = vld [vmem:[%s3 + $0x1ec] sm:$0xf]
  %v2238 = vld [vmem:[%s3 + $0x1f0] sm:$0xf]
  %v2239 = vld [vmem:[%s3 + $0x1f4] sm:$0xf]
  %v2240 = vld [vmem:[%s3 + $0x1f8] sm:$0xf]
  %v2241 = vld [vmem:[%s3 + $0x1fc] sm:$0xf]
  %v2242 = vld [vmem:[%s3 + $0x200] sm:$0xf]
  %v2243 = vld [vmem:[%s3 + $0x204] sm:$0xf]
  %v2244 = vld [vmem:[%s3 + $0x208] sm:$0xf]
  %v2245 = vld [vmem:[%s3 + $0x20c] sm:$0xf]
  %v2246 = vld [vmem:[%s3 + $0x210] sm:$0xf]
  %v2247 = vld [vmem:[%s3 + $0x214] sm:$0xf]
  %v2248 = vld [vmem:[%s3 + $0x218] sm:$0xf]
  %v2249 = vld [vmem:[%s3 + $0x21c] sm:$0xf]
  %v2250 = vld [vmem:[%s3 + $0x220] sm:$0xf]
  %v2251 = vld [vmem:[%s3 + $0x224] sm:$0xf]
  %v2252 = vld [vmem:[%s3 + $0x228] sm:$0xf]
  %v2253 = vld [vmem:[%s3 + $0x22c] sm:$0xf]
  %v2254 = vld [vmem:[%s3 + $0x230] sm:$0xf]
  %v2255 = vld [vmem:[%s3 + $0x234] sm:$0xf]
  %v2256 = vld [vmem:[%s3 + $0x238] sm:$0xf]
  %v2257 = vld [vmem:[%s3 + $0x23c] sm:$0xf]
  %v2402 = vunpack.c.l.b16 %v2114
  %v2403 = vunpack.c.l.b16 %v2115
  %v2404 = vunpack.c.l.b16 %v2116
  %v2405 = vunpack.c.l.b16 %v2117
  %v2406 = vunpack.c.l.b16 %v2118
  %v2407 = vunpack.c.l.b16 %v2119
  %v2408 = vunpack.c.l.b16 %v2120
  %v2409 = vunpack.c.l.b16 %v2121
  %v2410 = vunpack.c.l.b16 %v2122
  %v2411 = vunpack.c.l.b16 %v2123
  %v2412 = vunpack.c.l.b16 %v2124
  %v2413 = vunpack.c.l.b16 %v2125
  %v2414 = vunpack.c.l.b16 %v2126
  %v2415 = vunpack.c.l.b16 %v2127
  %v2416 = vunpack.c.l.b16 %v2128
  %v2417 = vunpack.c.l.b16 %v2129
  %v2418 = vunpack.c.l.b16 %v2130
  %v2419 = vunpack.c.l.b16 %v2131
  %v2420 = vunpack.c.l.b16 %v2132
  %v2421 = vunpack.c.l.b16 %v2133
  %v2422 = vunpack.c.l.b16 %v2134
  %v2423 = vunpack.c.l.b16 %v2135
  %v2424 = vunpack.c.l.b16 %v2136
  %v2425 = vunpack.c.l.b16 %v2137
  %v2426 = vunpack.c.l.b16 %v2138
  %v2427 = vunpack.c.l.b16 %v2139
  %v2428 = vunpack.c.l.b16 %v2140
  %v2429 = vunpack.c.l.b16 %v2141
  %v2430 = vunpack.c.l.b16 %v2142
  %v2431 = vunpack.c.l.b16 %v2143
  %v2432 = vunpack.c.l.b16 %v2144
  %v2433 = vunpack.c.l.b16 %v2145
  %v2434 = vunpack.c.l.b16 %v2146
  %v2435 = vunpack.c.l.b16 %v2147
  %v2436 = vunpack.c.l.b16 %v2148
  %v2437 = vunpack.c.l.b16 %v2149
  %v2438 = vunpack.c.l.b16 %v2150
  %v2439 = vunpack.c.l.b16 %v2151
  %v2440 = vunpack.c.l.b16 %v2152
  %v2441 = vunpack.c.l.b16 %v2153
  %v2442 = vunpack.c.l.b16 %v2154
  %v2443 = vunpack.c.l.b16 %v2155
  %v2444 = vunpack.c.l.b16 %v2156
  %v2445 = vunpack.c.l.b16 %v2157
  %v2446 = vunpack.c.l.b16 %v2158
  %v2447 = vunpack.c.l.b16 %v2159
  %v2448 = vunpack.c.l.b16 %v2160
  %v2449 = vunpack.c.l.b16 %v2161
  %v2450 = vunpack.c.l.b16 %v2162
  %v2451 = vunpack.c.l.b16 %v2163
  %v2452 = vunpack.c.l.b16 %v2164
  %v2453 = vunpack.c.l.b16 %v2165
  %v2454 = vunpack.c.l.b16 %v2166
  %v2455 = vunpack.c.l.b16 %v2167
  %v2456 = vunpack.c.l.b16 %v2168
  %v2457 = vunpack.c.l.b16 %v2169
  %v2458 = vunpack.c.l.b16 %v2170
  %v2459 = vunpack.c.l.b16 %v2171
  %v2460 = vunpack.c.l.b16 %v2172
  %v2461 = vunpack.c.l.b16 %v2173
  %v2462 = vunpack.c.l.b16 %v2174
  %v2463 = vunpack.c.l.b16 %v2175
  %v2464 = vunpack.c.l.b16 %v2176
  %v2465 = vunpack.c.l.b16 %v2177
  %v2466 = vunpack.c.l.b16 %v2178
  %v2467 = vunpack.c.l.b16 %v2179
  %v2468 = vunpack.c.l.b16 %v2180
  %v2469 = vunpack.c.l.b16 %v2181
  %v2470 = vunpack.c.l.b16 %v2182
  %v2471 = vunpack.c.l.b16 %v2183
  %v2472 = vunpack.c.l.b16 %v2184
  %v2473 = vunpack.c.l.b16 %v2185
  %v2474 = vunpack.c.l.b16 %v2186
  %v2475 = vunpack.c.l.b16 %v2187
  %v2476 = vunpack.c.l.b16 %v2188
  %v2477 = vunpack.c.l.b16 %v2189
  %v2478 = vunpack.c.l.b16 %v2190
  %v2479 = vunpack.c.l.b16 %v2191
  %v2480 = vunpack.c.l.b16 %v2192
  %v2481 = vunpack.c.l.b16 %v2193
  %v2482 = vunpack.c.l.b16 %v2194
  %v2483 = vunpack.c.l.b16 %v2195
  %v2484 = vunpack.c.l.b16 %v2196
  %v2485 = vunpack.c.l.b16 %v2197
  %v2486 = vunpack.c.l.b16 %v2198
  %v2487 = vunpack.c.l.b16 %v2199
  %v2488 = vunpack.c.l.b16 %v2200
  %v2489 = vunpack.c.l.b16 %v2201
  %v2490 = vunpack.c.l.b16 %v2202
  %v2491 = vunpack.c.l.b16 %v2203
  %v2492 = vunpack.c.l.b16 %v2204
  %v2493 = vunpack.c.l.b16 %v2205
  %v2494 = vunpack.c.l.b16 %v2206
  %v2495 = vunpack.c.l.b16 %v2207
  %v2496 = vunpack.c.l.b16 %v2208
  %v2497 = vunpack.c.l.b16 %v2209
  %v2498 = vunpack.c.l.b16 %v2210
  %v2499 = vunpack.c.l.b16 %v2211
  %v2500 = vunpack.c.l.b16 %v2212
  %v2501 = vunpack.c.l.b16 %v2213
  %v2502 = vunpack.c.l.b16 %v2214
  %v2503 = vunpack.c.l.b16 %v2215
  %v2504 = vunpack.c.l.b16 %v2216
  %v2505 = vunpack.c.l.b16 %v2217
  %v2506 = vunpack.c.l.b16 %v2218
  %v2507 = vunpack.c.l.b16 %v2219
  %v2508 = vunpack.c.l.b16 %v2220
  %v2509 = vunpack.c.l.b16 %v2221
  %v2510 = vunpack.c.l.b16 %v2222
  %v2511 = vunpack.c.l.b16 %v2223
  %v2512 = vunpack.c.l.b16 %v2224
  %v2513 = vunpack.c.l.b16 %v2225
  %v2514 = vunpack.c.l.b16 %v2226
  %v2515 = vunpack.c.l.b16 %v2227
  %v2516 = vunpack.c.l.b16 %v2228
  %v2517 = vunpack.c.l.b16 %v2229
  %v2518 = vunpack.c.l.b16 %v2230
  %v2519 = vunpack.c.l.b16 %v2231
  %v2520 = vunpack.c.l.b16 %v2232
  %v2521 = vunpack.c.l.b16 %v2233
  %v2522 = vunpack.c.l.b16 %v2234
  %v2523 = vunpack.c.l.b16 %v2235
  %v2524 = vunpack.c.l.b16 %v2236
  %v2525 = vunpack.c.l.b16 %v2237
  %v2526 = vunpack.c.l.b16 %v2238
  %v2527 = vunpack.c.l.b16 %v2239
  %v2528 = vunpack.c.l.b16 %v2240
  %v2529 = vunpack.c.l.b16 %v2241
  %v2530 = vunpack.c.l.b16 %v2242
  %v2531 = vunpack.c.l.b16 %v2243
  %v2532 = vunpack.c.l.b16 %v2244
  %v2533 = vunpack.c.l.b16 %v2245
  %v2534 = vunpack.c.l.b16 %v2246
  %v2535 = vunpack.c.l.b16 %v2247
  %v2536 = vunpack.c.l.b16 %v2248
  %v2537 = vunpack.c.l.b16 %v2249
  %v2538 = vunpack.c.l.b16 %v2250
  %v2539 = vunpack.c.l.b16 %v2251
  %v2540 = vunpack.c.l.b16 %v2252
  %v2541 = vunpack.c.l.b16 %v2253
  %v2542 = vunpack.c.l.b16 %v2254
  %v2543 = vunpack.c.l.b16 %v2255
  %v2544 = vunpack.c.l.b16 %v2256
  %v2545 = vunpack.c.l.b16 %v2257
  %v2546 = vpack.c.b16 %v2403, %v2402
  %v2547 = vpack.c.b16 %v2405, %v2404
  %v2548 = vpack.c.b16 %v2407, %v2406
  %v2549 = vpack.c.b16 %v2409, %v2408
  %v2550 = vpack.c.b16 %v2411, %v2410
  %v2551 = vpack.c.b16 %v2413, %v2412
  %v2552 = vpack.c.b16 %v2415, %v2414
  %v2553 = vpack.c.b16 %v2417, %v2416
  %v2554 = vpack.c.b16 %v2419, %v2418
  %v2555 = vpack.c.b16 %v2421, %v2420
  %v2556 = vpack.c.b16 %v2423, %v2422
  %v2557 = vpack.c.b16 %v2425, %v2424
  %v2558 = vpack.c.b16 %v2427, %v2426
  %v2559 = vpack.c.b16 %v2429, %v2428
  %v2560 = vpack.c.b16 %v2431, %v2430
  %v2561 = vpack.c.b16 %v2433, %v2432
  %v2562 = vpack.c.b16 %v2435, %v2434
  %v2563 = vpack.c.b16 %v2437, %v2436
  %v2564 = vpack.c.b16 %v2439, %v2438
  %v2565 = vpack.c.b16 %v2441, %v2440
  %v2566 = vpack.c.b16 %v2443, %v2442
  %v2567 = vpack.c.b16 %v2445, %v2444
  %v2568 = vpack.c.b16 %v2447, %v2446
  %v2569 = vpack.c.b16 %v2449, %v2448
  %v2570 = vpack.c.b16 %v2451, %v2450
  %v2571 = vpack.c.b16 %v2453, %v2452
  %v2572 = vpack.c.b16 %v2455, %v2454
  %v2573 = vpack.c.b16 %v2457, %v2456
  %v2574 = vpack.c.b16 %v2459, %v2458
  %v2575 = vpack.c.b16 %v2461, %v2460
  %v2576 = vpack.c.b16 %v2463, %v2462
  %v2577 = vpack.c.b16 %v2465, %v2464
  %v2578 = vpack.c.b16 %v2467, %v2466
  %v2579 = vpack.c.b16 %v2469, %v2468
  %v2580 = vpack.c.b16 %v2471, %v2470
  %v2581 = vpack.c.b16 %v2473, %v2472
  %v2582 = vpack.c.b16 %v2475, %v2474
  %v2583 = vpack.c.b16 %v2477, %v2476
  %v2584 = vpack.c.b16 %v2479, %v2478
  %v2585 = vpack.c.b16 %v2481, %v2480
  %v2586 = vpack.c.b16 %v2483, %v2482
  %v2587 = vpack.c.b16 %v2485, %v2484
  %v2588 = vpack.c.b16 %v2487, %v2486
  %v2589 = vpack.c.b16 %v2489, %v2488
  %v2590 = vpack.c.b16 %v2491, %v2490
  %v2591 = vpack.c.b16 %v2493, %v2492
  %v2592 = vpack.c.b16 %v2495, %v2494
  %v2593 = vpack.c.b16 %v2497, %v2496
  %v2594 = vpack.c.b16 %v2499, %v2498
  %v2595 = vpack.c.b16 %v2501, %v2500
  %v2596 = vpack.c.b16 %v2503, %v2502
  %v2597 = vpack.c.b16 %v2505, %v2504
  %v2598 = vpack.c.b16 %v2507, %v2506
  %v2599 = vpack.c.b16 %v2509, %v2508
  %v2600 = vpack.c.b16 %v2511, %v2510
  %v2601 = vpack.c.b16 %v2513, %v2512
  %v2602 = vpack.c.b16 %v2515, %v2514
  %v2603 = vpack.c.b16 %v2517, %v2516
  %v2604 = vpack.c.b16 %v2519, %v2518
  %v2605 = vpack.c.b16 %v2521, %v2520
  %v2606 = vpack.c.b16 %v2523, %v2522
  %v2607 = vpack.c.b16 %v2525, %v2524
  %v2608 = vpack.c.b16 %v2527, %v2526
  %v2609 = vpack.c.b16 %v2529, %v2528
  %v2610 = vpack.c.b16 %v2531, %v2530
  %v2611 = vpack.c.b16 %v2533, %v2532
  %v2612 = vpack.c.b16 %v2535, %v2534
  %v2613 = vpack.c.b16 %v2537, %v2536
  %v2614 = vpack.c.b16 %v2539, %v2538
  %v2615 = vpack.c.b16 %v2541, %v2540
  %v2616 = vpack.c.b16 %v2543, %v2542
  %v2617 = vpack.c.b16 %v2545, %v2544
  %2690 = vmatprep.subr.bf16.mxu0 0
  %2691 = vmatpush1.bf16.msra.mxu0 %v2546
  %2692 = vmatprep.subr.bf16.mxu0 0
  %2693 = vmatpush1.bf16.msra.mxu0 %v2547
  %2694 = vmatprep.subr.bf16.mxu0 0
  %2695 = vmatpush1.bf16.msra.mxu0 %v2548
  %2696 = vmatprep.subr.bf16.mxu0 0
  %2697 = vmatpush1.bf16.msra.mxu0 %v2549
  %2698 = vmatprep.subr.bf16.mxu0 0
  %2699 = vmatpush1.bf16.msra.mxu0 %v2550
  %2700 = vmatprep.subr.bf16.mxu0 0
  %2701 = vmatpush1.bf16.msra.mxu0 %v2551
  %2702 = vmatprep.subr.bf16.mxu0 0
  %2703 = vmatpush1.bf16.msra.mxu0 %v2552
  %2704 = vmatprep.subr.bf16.mxu0 0
  %2705 = vmatpush1.bf16.msra.mxu0 %v2553
  %2706 = vmatprep.subr.bf16.mxu0 0
  %2707 = vmatpush1.bf16.msra.mxu0 %v2554
  %2708 = vmatprep.subr.bf16.mxu0 0
  %2709 = vmatpush1.bf16.msra.mxu0 %v2555
  %2710 = vmatprep.subr.bf16.mxu0 0
  %2711 = vmatpush1.bf16.msra.mxu0 %v2556
  %2712 = vmatprep.subr.bf16.mxu0 0
  %2713 = vmatpush1.bf16.msra.mxu0 %v2557
  %2714 = vmatprep.subr.bf16.mxu0 0
  %2715 = vmatpush1.bf16.msra.mxu0 %v2558
  %2716 = vmatprep.subr.bf16.mxu0 0
  %2717 = vmatpush1.bf16.msra.mxu0 %v2559
  %2718 = vmatprep.subr.bf16.mxu0 0
  %2719 = vmatpush1.bf16.msra.mxu0 %v2560
  %2720 = vmatprep.subr.bf16.mxu0 0
  %2721 = vmatpush1.bf16.msra.mxu0 %v2561
  %2722 = vmatprep.mubr.bf16.mxu0 %v916
  %2723 = vmatmul.mubr.bf16.gmra.mrb[0].mxu0 %v746
  %v2724 = vpop.f32.mrb[0].mxu0
  %v2725 = vadd.f32 0.0, %v2724
  %v2726 = vpop.f32.mrb[0].mxu0
  %v2727 = vpop.f32.mrb[0].mxu0
  %v2728 = vadd.f32 0.0, %v2727
  %v2729 = vpop.f32.mrb[0].mxu0
  %2730 = vmatprep.mubr.bf16.mxu0 %v917
  %2731 = vmatmul.mubr.bf16.gmra.mrb[0].mxu0 %v747
  %v2732 = vpop.f32.mrb[0].mxu0
  %v2733 = vadd.f32 0.0, %v2732
  %v2734 = vpop.f32.mrb[0].mxu0
  %v2735 = vpop.f32.mrb[0].mxu0
  %v2736 = vadd.f32 0.0, %v2735
  %v2737 = vpop.f32.mrb[0].mxu0
  %2738 = vmatprep.mubr.bf16.mxu0 %v918
  %2739 = vmatmul.mubr.bf16.gmra.mrb[0].mxu0 %v748
  %v2740 = vpop.f32.mrb[0].mxu0
  %v2741 = vadd.f32 0.0, %v2740
  %v2742 = vpop.f32.mrb[0].mxu0
  %v2743 = vpop.f32.mrb[0].mxu0
  %v2744 = vadd.f32 0.0, %v2743
  %v2745 = vpop.f32.mrb[0].mxu0
  %2746 = vmatprep.mubr.bf16.mxu0 %v919
  %2747 = vmatmul.mubr.bf16.gmra.mrb[0].mxu0 %v749
  %v2748 = vpop.f32.mrb[0].mxu0
  %v2749 = vadd.f32 0.0, %v2748
  %v2750 = vpop.f32.mrb[0].mxu0
  %v2751 = vpop.f32.mrb[0].mxu0
  %v2752 = vadd.f32 0.0, %v2751
  %v2753 = vpop.f32.mrb[0].mxu0
  %2754 = vmatprep.mubr.bf16.mxu0 %v920
  %2755 = vmatmul.mubr.bf16.gmra.mrb[0].mxu0 %v750
  %v2756 = vpop.f32.mrb[0].mxu0
  %v2757 = vadd.f32 0.0, %v2756
  %v2758 = vpop.f32.mrb[0].mxu0
  %v2759 = vpop.f32.mrb[0].mxu0
  %v2760 = vadd.f32 0.0, %v2759
  %v2761 = vpop.f32.mrb[0].mxu0
  %2762 = vmatprep.mubr.bf16.mxu0 %v921
  %2763 = vmatmul.mubr.bf16.gmra.mrb[0].mxu0 %v751
  %v2764 = vpop.f32.mrb[0].mxu0
  %v2765 = vadd.f32 0.0, %v2764
  %v2766 = vpop.f32.mrb[0].mxu0
  %v2767 = vpop.f32.mrb[0].mxu0
  %v2768 = vadd.f32 0.0, %v2767
  %v2769 = vpop.f32.mrb[0].mxu0
  %2770 = vmatprep.mubr.bf16.mxu0 %v922
  %2771 = vmatmul.mubr.bf16.gmra.mrb[0].mxu0 %v752
  %v2772 = vpop.f32.mrb[0].mxu0
  %v2773 = vadd.f32 0.0, %v2772
  %v2774 = vpop.f32.mrb[0].mxu0
  %v2775 = vpop.f32.mrb[0].mxu0
  %v2776 = vadd.f32 0.0, %v2775
  %v2777 = vpop.f32.mrb[0].mxu0
  %2778 = vmatprep.mubr.bf16.mxu0 %v923
  %2779 = vmatmul.mubr.bf16.gmra.mrb[0].mxu0 %v753
  %v2780 = vpop.f32.mrb[0].mxu0
  %v2781 = vadd.f32 0.0, %v2780
  %v2782 = vpop.f32.mrb[0].mxu0
  %v2783 = vpop.f32.mrb[0].mxu0
  %v2784 = vadd.f32 0.0, %v2783
  %v2785 = vpop.f32.mrb[0].mxu0
  %2786 = vdwg.mxu0
  %2787 = vmatprep.subr.bf16.mxu0 0
  %2788 = vmatpush1.bf16.msra.mxu0 %v2562
  %2789 = vmatprep.subr.bf16.mxu0 0
  %2790 = vmatpush1.bf16.msra.mxu0 %v2563
  %2791 = vmatprep.subr.bf16.mxu0 0
  %2792 = vmatpush1.bf16.msra.mxu0 %v2564
  %2793 = vmatprep.subr.bf16.mxu0 0
  %2794 = vmatpush1.bf16.msra.mxu0 %v2565
  %2795 = vmatprep.subr.bf16.mxu0 0
  %2796 = vmatpush1.bf16.msra.mxu0 %v2566
  %2797 = vmatprep.subr.bf16.mxu0 0
  %2798 = vmatpush1.bf16.msra.mxu0 %v2567
  %2799 = vmatprep.subr.bf16.mxu0 0
  %2800 = vmatpush1.bf16.msra.mxu0 %v2568
  %2801 = vmatprep.subr.bf16.mxu0 0
  %2802 = vmatpush1.bf16.msra.mxu0 %v2569
  %2803 = vmatprep.subr.bf16.mxu0 0
  %2804 = vmatpush1.bf16.msra.mxu0 %v2570
  %2805 = vmatprep.subr.bf16.mxu0 0
  %2806 = vmatpush1.bf16.msra.mxu0 %v2571
  %2807 = vmatprep.subr.bf16.mxu0 0
  %2808 = vmatpush1.bf16.msra.mxu0 %v2572
  %2809 = vmatprep.subr.bf16.mxu0 0
  %2810 = vmatpush1.bf16.msra.mxu0 %v2573
  %2811 = vmatprep.subr.bf16.mxu0 0
  %2812 = vmatpush1.bf16.msra.mxu0 %v2574
  %2813 = vmatprep.subr.bf16.mxu0 0
  %2814 = vmatpush1.bf16.msra.mxu0 %v2575
  %2815 = vmatprep.subr.bf16.mxu0 0
  %2816 = vmatpush1.bf16.msra.mxu0 %v2576
  %2817 = vmatprep.subr.bf16.mxu0 0
  %2818 = vmatpush1.bf16.msra.mxu0 %v2577
  %2819 = vmatprep.mubr.bf16.mxu0 %v1256
  %2820 = vmatmul.mubr.bf16.gmra.mrb[0].mxu0 %v1086
  %v2821 = vpop.f32.mrb[0].mxu0
  %v2822 = vadd.f32 %v2725, %v2821
  %v2823 = vpop.f32.mrb[0].mxu0
  %v2824 = vpop.f32.mrb[0].mxu0
  %v2825 = vadd.f32 %v2728, %v2824
  %v2826 = vpop.f32.mrb[0].mxu0
  %2827 = vmatprep.mubr.bf16.mxu0 %v1257
  %2828 = vmatmul.mubr.bf16.gmra.mrb[0].mxu0 %v1087
  %v2829 = vpop.f32.mrb[0].mxu0
  %v2830 = vadd.f32 %v2733, %v2829
  %v2831 = vpop.f32.mrb[0].mxu0
  %v2832 = vpop.f32.mrb[0].mxu0
  %v2833 = vadd.f32 %v2736, %v2832
  %v2834 = vpop.f32.mrb[0].mxu0
  %2835 = vmatprep.mubr.bf16.mxu0 %v1258
  %2836 = vmatmul.mubr.bf16.gmra.mrb[0].mxu0 %v1088
  %v2837 = vpop.f32.mrb[0].mxu0
  %v2838 = vadd.f32 %v2741, %v2837
  %v2839 = vpop.f32.mrb[0].mxu0
  %v2840 = vpop.f32.mrb[0].mxu0
  %v2841 = vadd.f32 %v2744, %v2840
  %v2842 = vpop.f32.mrb[0].mxu0
  %2843 = vmatprep.mubr.bf16.mxu0 %v1259
  %2844 = vmatmul.mubr.bf16.gmra.mrb[0].mxu0 %v1089
  %v2845 = vpop.f32.mrb[0].mxu0
  %v2846 = vadd.f32 %v2749, %v2845
  %v2847 = vpop.f32.mrb[0].mxu0
  %v2848 = vpop.f32.mrb[0].mxu0
  %v2849 = vadd.f32 %v2752, %v2848
  %v2850 = vpop.f32.mrb[0].mxu0
  %2851 = vmatprep.mubr.bf16.mxu0 %v1260
  %2852 = vmatmul.mubr.bf16.gmra.mrb[0].mxu0 %v1090
  %v2853 = vpop.f32.mrb[0].mxu0
  %v2854 = vadd.f32 %v2757, %v2853
  %v2855 = vpop.f32.mrb[0].mxu0
  %v2856 = vpop.f32.mrb[0].mxu0
  %v2857 = vadd.f32 %v2760, %v2856
  %v2858 = vpop.f32.mrb[0].mxu0
  %2859 = vmatprep.mubr.bf16.mxu0 %v1261
  %2860 = vmatmul.mubr.bf16.gmra.mrb[0].mxu0 %v1091
  %v2861 = vpop.f32.mrb[0].mxu0
  %v2862 = vadd.f32 %v2765, %v2861
  %v2863 = vpop.f32.mrb[0].mxu0
  %v2864 = vpop.f32.mrb[0].mxu0
  %v2865 = vadd.f32 %v2768, %v2864
  %v2866 = vpop.f32.mrb[0].mxu0
  %2867 = vmatprep.mubr.bf16.mxu0 %v1262
  %2868 = vmatmul.mubr.bf16.gmra.mrb[0].mxu0 %v1092
  %v2869 = vpop.f32.mrb[0].mxu0
  %v2870 = vadd.f32 %v2773, %v2869
  %v2871 = vpop.f32.mrb[0].mxu0
  %v2872 = vpop.f32.mrb[0].mxu0
  %v2873 = vadd.f32 %v2776, %v2872
  %v2874 = vpop.f32.mrb[0].mxu0
  %2875 = vmatprep.mubr.bf16.mxu0 %v1263
  %2876 = vmatmul.mubr.bf16.gmra.mrb[0].mxu0 %v1093
  %v2877 = vpop.f32.mrb[0].mxu0
  %v2878 = vadd.f32 %v2781, %v2877
  %v2879 = vpop.f32.mrb[0].mxu0
  %v2880 = vpop.f32.mrb[0].mxu0
  %v2881 = vadd.f32 %v2784, %v2880
  %v2882 = vpop.f32.mrb[0].mxu0
  %2883 = vdwg.mxu0
  %2884 = vmatprep.subr.bf16.mxu0 0
  %2885 = vmatpush1.bf16.msra.mxu0 %v2578
  %2886 = vmatprep.subr.bf16.mxu0 0
  %2887 = vmatpush1.bf16.msra.mxu0 %v2579
  %2888 = vmatprep.subr.bf16.mxu0 0
  %2889 = vmatpush1.bf16.msra.mxu0 %v2580
  %2890 = vmatprep.subr.bf16.mxu0 0
  %2891 = vmatpush1.bf16.msra.mxu0 %v2581
  %2892 = vmatprep.subr.bf16.mxu0 0
  %2893 = vmatpush1.bf16.msra.mxu0 %v2582
  %2894 = vmatprep.subr.bf16.mxu0 0
  %2895 = vmatpush1.bf16.msra.mxu0 %v2583
  %2896 = vmatprep.subr.bf16.mxu0 0
  %2897 = vmatpush1.bf16.msra.mxu0 %v2584
  %2898 = vmatprep.subr.bf16.mxu0 0
  %2899 = vmatpush1.bf16.msra.mxu0 %v2585
  %2900 = vmatprep.subr.bf16.mxu0 0
  %2901 = vmatpush1.bf16.msra.mxu0 %v2586
  %2902 = vmatprep.subr.bf16.mxu0 0
  %2903 = vmatpush1.bf16.msra.mxu0 %v2587
  %2904 = vmatprep.subr.bf16.mxu0 0
  %2905 = vmatpush1.bf16.msra.mxu0 %v2588
  %2906 = vmatprep.subr.bf16.mxu0 0
  %2907 = vmatpush1.bf16.msra.mxu0 %v2589
  %2908 = vmatprep.subr.bf16.mxu0 0
  %2909 = vmatpush1.bf16.msra.mxu0 %v2590
  %2910 = vmatprep.subr.bf16.mxu0 0
  %2911 = vmatpush1.bf16.msra.mxu0 %v2591
  %2912 = vmatprep.subr.bf16.mxu0 0
  %2913 = vmatpush1.bf16.msra.mxu0 %v2592
  %2914 = vmatprep.subr.bf16.mxu0 0
  %2915 = vmatpush1.bf16.msra.mxu0 %v2593
  %2916 = vmatprep.mubr.bf16.mxu0 %v1596
  %2917 = vmatmul.mubr.bf16.gmra.mrb[0].mxu0 %v1426
  %v2918 = vpop.f32.mrb[0].mxu0
  %v2919 = vadd.f32 %v2822, %v2918
  %v2920 = vpop.f32.mrb[0].mxu0
  %v2921 = vpop.f32.mrb[0].mxu0
  %v2922 = vadd.f32 %v2825, %v2921
  %v2923 = vpop.f32.mrb[0].mxu0
  %2924 = vmatprep.mubr.bf16.mxu0 %v1597
  %2925 = vmatmul.mubr.bf16.gmra.mrb[0].mxu0 %v1427
  %v2926 = vpop.f32.mrb[0].mxu0
  %v2927 = vadd.f32 %v2830, %v2926
  %v2928 = vpop.f32.mrb[0].mxu0
  %v2929 = vpop.f32.mrb[0].mxu0
  %v2930 = vadd.f32 %v2833, %v2929
  %v2931 = vpop.f32.mrb[0].mxu0
  %2932 = vmatprep.mubr.bf16.mxu0 %v1598
  %2933 = vmatmul.mubr.bf16.gmra.mrb[0].mxu0 %v1428
  %v2934 = vpop.f32.mrb[0].mxu0
  %v2935 = vadd.f32 %v2838, %v2934
  %v2936 = vpop.f32.mrb[0].mxu0
  %v2937 = vpop.f32.mrb[0].mxu0
  %v2938 = vadd.f32 %v2841, %v2937
  %v2939 = vpop.f32.mrb[0].mxu0
  %2940 = vmatprep.mubr.bf16.mxu0 %v1599
  %2941 = vmatmul.mubr.bf16.gmra.mrb[0].mxu0 %v1429
  %v2942 = vpop.f32.mrb[0].mxu0
  %v2943 = vadd.f32 %v2846, %v2942
  %v2944 = vpop.f32.mrb[0].mxu0
  %v2945 = vpop.f32.mrb[0].mxu0
  %v2946 = vadd.f32 %v2849, %v2945
  %v2947 = vpop.f32.mrb[0].mxu0
  %2948 = vmatprep.mubr.bf16.mxu0 %v1600
  %2949 = vmatmul.mubr.bf16.gmra.mrb[0].mxu0 %v1430
  %v2950 = vpop.f32.mrb[0].mxu0
  %v2951 = vadd.f32 %v2854, %v2950
  %v2952 = vpop.f32.mrb[0].mxu0
  %v2953 = vpop.f32.mrb[0].mxu0
  %v2954 = vadd.f32 %v2857, %v2953
  %v2955 = vpop.f32.mrb[0].mxu0
  %2956 = vmatprep.mubr.bf16.mxu0 %v1601
  %2957 = vmatmul.mubr.bf16.gmra.mrb[0].mxu0 %v1431
  %v2958 = vpop.f32.mrb[0].mxu0
  %v2959 = vadd.f32 %v2862, %v2958
  %v2960 = vpop.f32.mrb[0].mxu0
  %v2961 = vpop.f32.mrb[0].mxu0
  %v2962 = vadd.f32 %v2865, %v2961
  %v2963 = vpop.f32.mrb[0].mxu0
  %2964 = vmatprep.mubr.bf16.mxu0 %v1602
  %2965 = vmatmul.mubr.bf16.gmra.mrb[0].mxu0 %v1432
  %v2966 = vpop.f32.mrb[0].mxu0
  %v2967 = vadd.f32 %v2870, %v2966
  %v2968 = vpop.f32.mrb[0].mxu0
  %v2969 = vpop.f32.mrb[0].mxu0
  %v2970 = vadd.f32 %v2873, %v2969
  %v2971 = vpop.f32.mrb[0].mxu0
  %2972 = vmatprep.mubr.bf16.mxu0 %v1603
  %2973 = vmatmul.mubr.bf16.gmra.mrb[0].mxu0 %v1433
  %v2974 = vpop.f32.mrb[0].mxu0
  %v2975 = vadd.f32 %v2878, %v2974
  %v2976 = vpop.f32.mrb[0].mxu0
  %v2977 = vpop.f32.mrb[0].mxu0
  %v2978 = vadd.f32 %v2881, %v2977
  %v2979 = vpop.f32.mrb[0].mxu0
  %2980 = vdwg.mxu0
  %2981 = vmatprep.subr.bf16.mxu0 0
  %2982 = vmatpush1.bf16.msra.mxu0 %v2594
  %2983 = vmatprep.subr.bf16.mxu0 0
  %2984 = vmatpush1.bf16.msra.mxu0 %v2595
  %2985 = vmatprep.subr.bf16.mxu0 0
  %2986 = vmatpush1.bf16.msra.mxu0 %v2596
  %2987 = vmatprep.subr.bf16.mxu0 0
  %2988 = vmatpush1.bf16.msra.mxu0 %v2597
  %2989 = vmatprep.subr.bf16.mxu0 0
  %2990 = vmatpush1.bf16.msra.mxu0 %v2598
  %2991 = vmatprep.subr.bf16.mxu0 0
  %2992 = vmatpush1.bf16.msra.mxu0 %v2599
  %2993 = vmatprep.subr.bf16.mxu0 0
  %2994 = vmatpush1.bf16.msra.mxu0 %v2600
  %2995 = vmatprep.subr.bf16.mxu0 0
  %2996 = vmatpush1.bf16.msra.mxu0 %v2601
  %2997 = vmatprep.subr.bf16.mxu0 0
  %2998 = vmatpush1.bf16.msra.mxu0 %v2602
  %2999 = vmatprep.subr.bf16.mxu0 0
  %3000 = vmatpush1.bf16.msra.mxu0 %v2603
  %3001 = vmatprep.subr.bf16.mxu0 0
  %3002 = vmatpush1.bf16.msra.mxu0 %v2604
  %3003 = vmatprep.subr.bf16.mxu0 0
  %3004 = vmatpush1.bf16.msra.mxu0 %v2605
  %3005 = vmatprep.subr.bf16.mxu0 0
  %3006 = vmatpush1.bf16.msra.mxu0 %v2606
  %3007 = vmatprep.subr.bf16.mxu0 0
  %3008 = vmatpush1.bf16.msra.mxu0 %v2607
  %3009 = vmatprep.subr.bf16.mxu0 0
  %3010 = vmatpush1.bf16.msra.mxu0 %v2608
  %3011 = vmatprep.subr.bf16.mxu0 0
  %3012 = vmatpush1.bf16.msra.mxu0 %v2609
  %3013 = vmatprep.mubr.bf16.mxu0 %v1936
  %3014 = vmatmul.mubr.bf16.gmra.mrb[0].mxu0 %v1766
  %v3015 = vpop.f32.mrb[0].mxu0
  %v3016 = vadd.f32 %v2919, %v3015
  %v3017 = vpop.f32.mrb[0].mxu0
  %v3018 = vpop.f32.mrb[0].mxu0
  %v3019 = vadd.f32 %v2922, %v3018
  %v3020 = vpop.f32.mrb[0].mxu0
  %3021 = vmatprep.mubr.bf16.mxu0 %v1937
  %3022 = vmatmul.mubr.bf16.gmra.mrb[0].mxu0 %v1767
  %v3023 = vpop.f32.mrb[0].mxu0
  %v3024 = vadd.f32 %v2927, %v3023
  %v3025 = vpop.f32.mrb[0].mxu0
  %v3026 = vpop.f32.mrb[0].mxu0
  %v3027 = vadd.f32 %v2930, %v3026
  %v3028 = vpop.f32.mrb[0].mxu0
  %3029 = vmatprep.mubr.bf16.mxu0 %v1938
  %3030 = vmatmul.mubr.bf16.gmra.mrb[0].mxu0 %v1768
  %v3031 = vpop.f32.mrb[0].mxu0
  %v3032 = vadd.f32 %v2935, %v3031
  %v3033 = vpop.f32.mrb[0].mxu0
  %v3034 = vpop.f32.mrb[0].mxu0
  %v3035 = vadd.f32 %v2938, %v3034
  %v3036 = vpop.f32.mrb[0].mxu0
  %3037 = vmatprep.mubr.bf16.mxu0 %v1939
  %3038 = vmatmul.mubr.bf16.gmra.mrb[0].mxu0 %v1769
  %v3039 = vpop.f32.mrb[0].mxu0
  %v3040 = vadd.f32 %v2943, %v3039
  %v3041 = vpop.f32.mrb[0].mxu0
  %v3042 = vpop.f32.mrb[0].mxu0
  %v3043 = vadd.f32 %v2946, %v3042
  %v3044 = vpop.f32.mrb[0].mxu0
  %3045 = vmatprep.mubr.bf16.mxu0 %v1940
  %3046 = vmatmul.mubr.bf16.gmra.mrb[0].mxu0 %v1770
  %v3047 = vpop.f32.mrb[0].mxu0
  %v3048 = vadd.f32 %v2951, %v3047
  %v3049 = vpop.f32.mrb[0].mxu0
  %v3050 = vpop.f32.mrb[0].mxu0
  %v3051 = vadd.f32 %v2954, %v3050
  %v3052 = vpop.f32.mrb[0].mxu0
  %3053 = vmatprep.mubr.bf16.mxu0 %v1941
  %3054 = vmatmul.mubr.bf16.gmra.mrb[0].mxu0 %v1771
  %v3055 = vpop.f32.mrb[0].mxu0
  %v3056 = vadd.f32 %v2959, %v3055
  %v3057 = vpop.f32.mrb[0].mxu0
  %v3058 = vpop.f32.mrb[0].mxu0
  %v3059 = vadd.f32 %v2962, %v3058
  %v3060 = vpop.f32.mrb[0].mxu0
  %3061 = vmatprep.mubr.bf16.mxu0 %v1942
  %3062 = vmatmul.mubr.bf16.gmra.mrb[0].mxu0 %v1772
  %v3063 = vpop.f32.mrb[0].mxu0
  %v3064 = vadd.f32 %v2967, %v3063
  %v3065 = vpop.f32.mrb[0].mxu0
  %v3066 = vpop.f32.mrb[0].mxu0
  %v3067 = vadd.f32 %v2970, %v3066
  %v3068 = vpop.f32.mrb[0].mxu0
  %3069 = vmatprep.mubr.bf16.mxu0 %v1943
  %3070 = vmatmul.mubr.bf16.gmra.mrb[0].mxu0 %v1773
  %v3071 = vpop.f32.mrb[0].mxu0
  %v3072 = vadd.f32 %v2975, %v3071
  %v3073 = vpop.f32.mrb[0].mxu0
  %v3074 = vpop.f32.mrb[0].mxu0
  %v3075 = vadd.f32 %v2978, %v3074
  %v3076 = vpop.f32.mrb[0].mxu0
  %3077 = vdwg.mxu0
  %3078 = vmatprep.subr.bf16.mxu0 0
  %3079 = vmatpush1.bf16.msra.mxu0 %v2610
  %3080 = vmatprep.subr.bf16.mxu0 0
  %3081 = vmatpush1.bf16.msra.mxu0 %v2611
  %3082 = vmatprep.subr.bf16.mxu0 0
  %3083 = vmatpush1.bf16.msra.mxu0 %v2612
  %3084 = vmatprep.subr.bf16.mxu0 0
  %3085 = vmatpush1.bf16.msra.mxu0 %v2613
  %3086 = vmatprep.subr.bf16.mxu0 0
  %3087 = vmatpush1.bf16.msra.mxu0 %v2614
  %3088 = vmatprep.subr.bf16.mxu0 0
  %3089 = vmatpush1.bf16.msra.mxu0 %v2615
  %3090 = vmatprep.subr.bf16.mxu0 0
  %3091 = vmatpush1.bf16.msra.mxu0 %v2616
  %3092 = vmatprep.subr.bf16.mxu0 0
  %3093 = vmatpush1.bf16.msra.mxu0 %v2617
  %3094 = vmatprep.subr.bf16.mxu0 0
  %3095 = vmatpush1.bf16.msra.mxu0 0
  %3096 = vmatprep.subr.bf16.mxu0 0
  %3097 = vmatpush1.bf16.msra.mxu0 0
  %3098 = vmatprep.subr.bf16.mxu0 0
  %3099 = vmatpush1.bf16.msra.mxu0 0
  %3100 = vmatprep.subr.bf16.mxu0 0
  %3101 = vmatpush1.bf16.msra.mxu0 0
  %3102 = vmatprep.subr.bf16.mxu0 0
  %3103 = vmatpush1.bf16.msra.mxu0 0
  %3104 = vmatprep.subr.bf16.mxu0 0
  %3105 = vmatpush1.bf16.msra.mxu0 0
  %3106 = vmatprep.subr.bf16.mxu0 0
  %3107 = vmatpush1.bf16.msra.mxu0 0
  %3108 = vmatprep.subr.bf16.mxu0 0
  %3109 = vmatpush1.bf16.msra.mxu0 0
  %3110 = vmatprep.mubr.bf16.mxu0 0
  %3111 = vmatmul.mubr.bf16.gmra.mrb[0].mxu0 %v2106
  %v3112 = vpop.f32.mrb[0].mxu0
  %v3113 = vadd.f32 %v3016, %v3112
  %v3114 = vpop.f32.mrb[0].mxu0
  %v3115 = vpop.f32.mrb[0].mxu0
  %v3116 = vadd.f32 %v3019, %v3115
  %v3117 = vpop.f32.mrb[0].mxu0
  %3118 = vmatprep.mubr.bf16.mxu0 0
  %3119 = vmatmul.mubr.bf16.gmra.mrb[0].mxu0 %v2107
  %v3120 = vpop.f32.mrb[0].mxu0
  %v3121 = vadd.f32 %v3024, %v3120
  %v3122 = vpop.f32.mrb[0].mxu0
  %v3123 = vpop.f32.mrb[0].mxu0
  %v3124 = vadd.f32 %v3027, %v3123
  %v3125 = vpop.f32.mrb[0].mxu0
  %3126 = vmatprep.mubr.bf16.mxu0 0
  %3127 = vmatmul.mubr.bf16.gmra.mrb[0].mxu0 %v2108
  %v3128 = vpop.f32.mrb[0].mxu0
  %v3129 = vadd.f32 %v3032, %v3128
  %v3130 = vpop.f32.mrb[0].mxu0
  %v3131 = vpop.f32.mrb[0].mxu0
  %v3132 = vadd.f32 %v3035, %v3131
  %v3133 = vpop.f32.mrb[0].mxu0
  %3134 = vmatprep.mubr.bf16.mxu0 0
  %3135 = vmatmul.mubr.bf16.gmra.mrb[0].mxu0 %v2109
  %v3136 = vpop.f32.mrb[0].mxu0
  %v3137 = vadd.f32 %v3040, %v3136
  %v3138 = vpop.f32.mrb[0].mxu0
  %v3139 = vpop.f32.mrb[0].mxu0
  %v3140 = vadd.f32 %v3043, %v3139
  %v3141 = vpop.f32.mrb[0].mxu0
  %3142 = vmatprep.mubr.bf16.mxu0 0
  %3143 = vmatmul.mubr.bf16.gmra.mrb[0].mxu0 %v2110
  %v3144 = vpop.f32.mrb[0].mxu0
  %v3145 = vadd.f32 %v3048, %v3144
  %v3146 = vpop.f32.mrb[0].mxu0
  %v3147 = vpop.f32.mrb[0].mxu0
  %v3148 = vadd.f32 %v3051, %v3147
  %v3149 = vpop.f32.mrb[0].mxu0
  %3150 = vmatprep.mubr.bf16.mxu0 0
  %3151 = vmatmul.mubr.bf16.gmra.mrb[0].mxu0 %v2111
  %v3152 = vpop.f32.mrb[0].mxu0
  %v3153 = vadd.f32 %v3056, %v3152
  %v3154 = vpop.f32.mrb[0].mxu0
  %v3155 = vpop.f32.mrb[0].mxu0
  %v3156 = vadd.f32 %v3059, %v3155
  %v3157 = vpop.f32.mrb[0].mxu0
  %3158 = vmatprep.mubr.bf16.mxu0 0
  %3159 = vmatmul.mubr.bf16.gmra.mrb[0].mxu0 %v2112
  %v3160 = vpop.f32.mrb[0].mxu0
  %v3161 = vadd.f32 %v3064, %v3160
  %v3162 = vpop.f32.mrb[0].mxu0
  %v3163 = vpop.f32.mrb[0].mxu0
  %v3164 = vadd.f32 %v3067, %v3163
  %v3165 = vpop.f32.mrb[0].mxu0
  %3166 = vmatprep.mubr.bf16.mxu0 0
  %3167 = vmatmul.mubr.bf16.gmra.mrb[0].mxu0 %v2113
  %v3168 = vpop.f32.mrb[0].mxu0
  %v3169 = vadd.f32 %v3072, %v3168
  %v3170 = vpop.f32.mrb[0].mxu0
  %v3171 = vpop.f32.mrb[0].mxu0
  %v3172 = vadd.f32 %v3075, %v3171
  %v3173 = vpop.f32.mrb[0].mxu0
  %3174 = vdwg.mxu0
  %v3175 = vlaneseq
  %v3176 = vshrl.u32 %v3175, 7
  %v3177 = vsub.s32 0, %v3176
  %v3178 = vrot.slane %v306, %v3177
  %v3179 = vmul.f32 %v3113, %v3178
  %v3180 = vmul.f32 %v3116, %v3178
  %v3181 = vmul.f32 %v3121, %v3178
  %v3182 = vmul.f32 %v3124, %v3178
  %v3183 = vmul.f32 %v3129, %v3178
  %v3184 = vmul.f32 %v3132, %v3178
  %v3185 = vmul.f32 %v3137, %v3178
  %v3186 = vmul.f32 %v3140, %v3178
  %v3187 = vmul.f32 %v3145, %v3178
  %v3188 = vmul.f32 %v3148, %v3178
  %v3189 = vmul.f32 %v3153, %v3178
  %v3190 = vmul.f32 %v3156, %v3178
  %v3191 = vmul.f32 %v3161, %v3178
  %v3192 = vmul.f32 %v3164, %v3178
  %v3193 = vmul.f32 %v3169, %v3178
  %v3194 = vmul.f32 %v3172, %v3178
  %v3195 = vlaneseq
  %v3196 = vshrl.u32 %v3195, 7
  %v3197 = vsub.s32 0, %v3196
  %v3198 = vrot.slane %v307, %v3197
  %v3199 = vadd.f32 %v3179, %v3198
  %v3200 = vadd.f32 %v3180, %v3198
  %v3201 = vadd.f32 %v3181, %v3198
  %v3202 = vadd.f32 %v3182, %v3198
  %v3203 = vadd.f32 %v3183, %v3198
  %v3204 = vadd.f32 %v3184, %v3198
  %v3205 = vadd.f32 %v3185, %v3198
  %v3206 = vadd.f32 %v3186, %v3198
  %v3207 = vadd.f32 %v3187, %v3198
  %v3208 = vadd.f32 %v3188, %v3198
  %v3209 = vadd.f32 %v3189, %v3198
  %v3210 = vadd.f32 %v3190, %v3198
  %v3211 = vadd.f32 %v3191, %v3198
  %v3212 = vadd.f32 %v3192, %v3198
  %v3213 = vadd.f32 %v3193, %v3198
  %v3214 = vadd.f32 %v3194, %v3198
  %v3215 = vmax.f32 %v3199, 0.0
  %v3216 = vmax.f32 %v3200, 0.0
  %v3217 = vmax.f32 %v3201, 0.0
  %v3218 = vmax.f32 %v3202, 0.0
  %v3219 = vmax.f32 %v3203, 0.0
  %v3220 = vmax.f32 %v3204, 0.0
  %v3221 = vmax.f32 %v3205, 0.0
  %v3222 = vmax.f32 %v3206, 0.0
  %v3223 = vmax.f32 %v3207, 0.0
  %v3224 = vmax.f32 %v3208, 0.0
  %v3225 = vmax.f32 %v3209, 0.0
  %v3226 = vmax.f32 %v3210, 0.0
  %v3227 = vmax.f32 %v3211, 0.0
  %v3228 = vmax.f32 %v3212, 0.0
  %v3229 = vmax.f32 %v3213, 0.0
  %v3230 = vmax.f32 %v3214, 0.0
  %v3231 = vpack.c.bf16 %v3216, %v3215
  %v3232 = vpack.c.bf16 %v3218, %v3217
  %v3233 = vpack.c.bf16 %v3220, %v3219
  %v3234 = vpack.c.bf16 %v3222, %v3221
  %v3235 = vpack.c.bf16 %v3224, %v3223
  %v3236 = vpack.c.bf16 %v3226, %v3225
  %v3237 = vpack.c.bf16 %v3228, %v3227
  %v3238 = vpack.c.bf16 %v3230, %v3229
  %s3239 = scalar_lea.vmem %s2, 64
  %v3240 = vld [vmem:[%s3239] sm:$0xf]
  %v3241 = vld [vmem:[%s3239 + $0x4] sm:$0xf]
  %v3242 = vld [vmem:[%s3239 + $0x8] sm:$0xf]
  %v3243 = vld [vmem:[%s3239 + $0xc] sm:$0xf]
  %v3244 = vld [vmem:[%s3239 + $0x10] sm:$0xf]
  %v3245 = vld [vmem:[%s3239 + $0x14] sm:$0xf]
  %v3246 = vld [vmem:[%s3239 + $0x18] sm:$0xf]
  %v3247 = vld [vmem:[%s3239 + $0x1c] sm:$0xf]
  %v3248 = vld [vmem:[%s3239 + $0x20] sm:$0xf]
  %v3249 = vld [vmem:[%s3239 + $0x24] sm:$0xf]
  %v3250 = vld [vmem:[%s3239 + $0x28] sm:$0xf]
  %v3251 = vld [vmem:[%s3239 + $0x2c] sm:$0xf]
  %v3252 = vld [vmem:[%s3239 + $0x30] sm:$0xf]
  %v3253 = vld [vmem:[%s3239 + $0x34] sm:$0xf]
  %v3254 = vld [vmem:[%s3239 + $0x38] sm:$0xf]
  %v3255 = vld [vmem:[%s3239 + $0x3c] sm:$0xf]
  %v3272 = vunpack.c.l.b16 %v3240
  %v3273 = vunpack.c.l.b16 %v3241
  %v3274 = vunpack.c.l.b16 %v3242
  %v3275 = vunpack.c.l.b16 %v3243
  %v3276 = vunpack.c.l.b16 %v3244
  %v3277 = vunpack.c.l.b16 %v3245
  %v3278 = vunpack.c.l.b16 %v3246
  %v3279 = vunpack.c.l.b16 %v3247
  %v3280 = vunpack.c.l.b16 %v3248
  %v3281 = vunpack.c.l.b16 %v3249
  %v3282 = vunpack.c.l.b16 %v3250
  %v3283 = vunpack.c.l.b16 %v3251
  %v3284 = vunpack.c.l.b16 %v3252
  %v3285 = vunpack.c.l.b16 %v3253
  %v3286 = vunpack.c.l.b16 %v3254
  %v3287 = vunpack.c.l.b16 %v3255
  %v3288 = vpack.c.b16 %v3273, %v3272
  %v3289 = vpack.c.b16 %v3275, %v3274
  %v3290 = vpack.c.b16 %v3277, %v3276
  %v3291 = vpack.c.b16 %v3279, %v3278
  %v3292 = vpack.c.b16 %v3281, %v3280
  %v3293 = vpack.c.b16 %v3283, %v3282
  %v3294 = vpack.c.b16 %v3285, %v3284
  %v3295 = vpack.c.b16 %v3287, %v3286
  %3304 = vmatprep.subr.bf16.mxu0 0
  %3305 = vmatpush1.bf16.msra.mxu0 %v3288
  %3306 = vmatprep.subr.bf16.mxu0 0
  %3307 = vmatpush1.bf16.msra.mxu0 %v3289
  %3308 = vmatprep.subr.bf16.mxu0 0
  %3309 = vmatpush1.bf16.msra.mxu0 %v3290
  %3310 = vmatprep.subr.bf16.mxu0 0
  %3311 = vmatpush1.bf16.msra.mxu0 %v3291
  %3312 = vmatprep.subr.bf16.mxu0 0
  %3313 = vmatpush1.bf16.msra.mxu0 %v3292
  %3314 = vmatprep.subr.bf16.mxu0 0
  %3315 = vmatpush1.bf16.msra.mxu0 %v3293
  %3316 = vmatprep.subr.bf16.mxu0 0
  %3317 = vmatpush1.bf16.msra.mxu0 %v3294
  %3318 = vmatprep.subr.bf16.mxu0 0
  %3319 = vmatpush1.bf16.msra.mxu0 %v3295
  %3320 = vmatprep.subr.bf16.mxu0 0
  %3321 = vmatpush1.bf16.msra.mxu0 0
  %3322 = vmatprep.subr.bf16.mxu0 0
  %3323 = vmatpush1.bf16.msra.mxu0 0
  %3324 = vmatprep.subr.bf16.mxu0 0
  %3325 = vmatpush1.bf16.msra.mxu0 0
  %3326 = vmatprep.subr.bf16.mxu0 0
  %3327 = vmatpush1.bf16.msra.mxu0 0
  %3328 = vmatprep.subr.bf16.mxu0 0
  %3329 = vmatpush1.bf16.msra.mxu0 0
  %3330 = vmatprep.subr.bf16.mxu0 0
  %3331 = vmatpush1.bf16.msra.mxu0 0
  %3332 = vmatprep.subr.bf16.mxu0 0
  %3333 = vmatpush1.bf16.msra.mxu0 0
  %3334 = vmatprep.subr.bf16.mxu0 0
  %3335 = vmatpush1.bf16.msra.mxu0 0
  %3336 = vmatprep.mubr.bf16.mxu0 0
  %3337 = vmatmul.mubr.bf16.gmra.mrb[0].mxu0 %v3231
  %v3338 = vpop.f32.mrb[0].mxu0
  %v3339 = vadd.f32 0.0, %v3338
  %v3340 = vpop.f32.mrb[0].mxu0
  %v3341 = vpop.f32.mrb[0].mxu0
  %v3342 = vadd.f32 0.0, %v3341
  %v3343 = vpop.f32.mrb[0].mxu0
  %3344 = vmatprep.mubr.bf16.mxu0 0
  %3345 = vmatmul.mubr.bf16.gmra.mrb[0].mxu0 %v3232
  %v3346 = vpop.f32.mrb[0].mxu0
  %v3347 = vadd.f32 0.0, %v3346
  %v3348 = vpop.f32.mrb[0].mxu0
  %v3349 = vpop.f32.mrb[0].mxu0
  %v3350 = vadd.f32 0.0, %v3349
  %v3351 = vpop.f32.mrb[0].mxu0
  %3352 = vmatprep.mubr.bf16.mxu0 0
  %3353 = vmatmul.mubr.bf16.gmra.mrb[0].mxu0 %v3233
  %v3354 = vpop.f32.mrb[0].mxu0
  %v3355 = vadd.f32 0.0, %v3354
  %v3356 = vpop.f32.mrb[0].mxu0
  %v3357 = vpop.f32.mrb[0].mxu0
  %v3358 = vadd.f32 0.0, %v3357
  %v3359 = vpop.f32.mrb[0].mxu0
  %3360 = vmatprep.mubr.bf16.mxu0 0
  %3361 = vmatmul.mubr.bf16.gmra.mrb[0].mxu0 %v3234
  %v3362 = vpop.f32.mrb[0].mxu0
  %v3363 = vadd.f32 0.0, %v3362
  %v3364 = vpop.f32.mrb[0].mxu0
  %v3365 = vpop.f32.mrb[0].mxu0
  %v3366 = vadd.f32 0.0, %v3365
  %v3367 = vpop.f32.mrb[0].mxu0
  %3368 = vmatprep.mubr.bf16.mxu0 0
  %3369 = vmatmul.mubr.bf16.gmra.mrb[0].mxu0 %v3235
  %v3370 = vpop.f32.mrb[0].mxu0
  %v3371 = vadd.f32 0.0, %v3370
  %v3372 = vpop.f32.mrb[0].mxu0
  %v3373 = vpop.f32.mrb[0].mxu0
  %v3374 = vadd.f32 0.0, %v3373
  %v3375 = vpop.f32.mrb[0].mxu0
  %3376 = vmatprep.mubr.bf16.mxu0 0
  %3377 = vmatmul.mubr.bf16.gmra.mrb[0].mxu0 %v3236
  %v3378 = vpop.f32.mrb[0].mxu0
  %v3379 = vadd.f32 0.0, %v3378
  %v3380 = vpop.f32.mrb[0].mxu0
  %v3381 = vpop.f32.mrb[0].mxu0
  %v3382 = vadd.f32 0.0, %v3381
  %v3383 = vpop.f32.mrb[0].mxu0
  %3384 = vmatprep.mubr.bf16.mxu0 0
  %3385 = vmatmul.mubr.bf16.gmra.mrb[0].mxu0 %v3237
  %v3386 = vpop.f32.mrb[0].mxu0
  %v3387 = vadd.f32 0.0, %v3386
  %v3388 = vpop.f32.mrb[0].mxu0
  %v3389 = vpop.f32.mrb[0].mxu0
  %v3390 = vadd.f32 0.0, %v3389
  %v3391 = vpop.f32.mrb[0].mxu0
  %3392 = vmatprep.mubr.bf16.mxu0 0
  %3393 = vmatmul.mubr.bf16.gmra.mrb[0].mxu0 %v3238
  %v3394 = vpop.f32.mrb[0].mxu0
  %v3395 = vadd.f32 0.0, %v3394
  %v3396 = vpop.f32.mrb[0].mxu0
  %v3397 = vpop.f32.mrb[0].mxu0
  %v3398 = vadd.f32 0.0, %v3397
  %v3399 = vpop.f32.mrb[0].mxu0
  %3400 = vdwg.mxu0
  %v3401 = vlaneseq
  %v3402 = vshrl.u32 %v3401, 7
  %v3403 = vsub.s32 0, %v3402
  %v3404 = vrot.slane %v308, %v3403
  %v3405 = vmul.f32 %v3339, %v3404
  %v3406 = vmul.f32 %v3342, %v3404
  %v3407 = vmul.f32 %v3347, %v3404
  %v3408 = vmul.f32 %v3350, %v3404
  %v3409 = vmul.f32 %v3355, %v3404
  %v3410 = vmul.f32 %v3358, %v3404
  %v3411 = vmul.f32 %v3363, %v3404
  %v3412 = vmul.f32 %v3366, %v3404
  %v3413 = vmul.f32 %v3371, %v3404
  %v3414 = vmul.f32 %v3374, %v3404
  %v3415 = vmul.f32 %v3379, %v3404
  %v3416 = vmul.f32 %v3382, %v3404
  %v3417 = vmul.f32 %v3387, %v3404
  %v3418 = vmul.f32 %v3390, %v3404
  %v3419 = vmul.f32 %v3395, %v3404
  %v3420 = vmul.f32 %v3398, %v3404
  %v3421 = vlaneseq
  %v3422 = vshrl.u32 %v3421, 7
  %v3423 = vsub.s32 0, %v3422
  %v3424 = vrot.slane %v309, %v3423
  %v3425 = vadd.f32 %v3405, %v3424
  %v3426 = vadd.f32 %v3406, %v3424
  %v3427 = vadd.f32 %v3407, %v3424
  %v3428 = vadd.f32 %v3408, %v3424
  %v3429 = vadd.f32 %v3409, %v3424
  %v3430 = vadd.f32 %v3410, %v3424
  %v3431 = vadd.f32 %v3411, %v3424
  %v3432 = vadd.f32 %v3412, %v3424
  %v3433 = vadd.f32 %v3413, %v3424
  %v3434 = vadd.f32 %v3414, %v3424
  %v3435 = vadd.f32 %v3415, %v3424
  %v3436 = vadd.f32 %v3416, %v3424
  %v3437 = vadd.f32 %v3417, %v3424
  %v3438 = vadd.f32 %v3418, %v3424
  %v3439 = vadd.f32 %v3419, %v3424
  %v3440 = vadd.f32 %v3420, %v3424
  %s3441 = scalar_lea.vmem %s2, 128
  %v3442 = vld [vmem:[%s3441] sm:$0xf]
  %v3443 = vld [vmem:[%s3441 + $0x4] sm:$0xf]
  %v3444 = vld [vmem:[%s3441 + $0x8] sm:$0xf]
  %v3445 = vld [vmem:[%s3441 + $0xc] sm:$0xf]
  %v3446 = vld [vmem:[%s3441 + $0x10] sm:$0xf]
  %v3447 = vld [vmem:[%s3441 + $0x14] sm:$0xf]
  %v3448 = vld [vmem:[%s3441 + $0x18] sm:$0xf]
  %v3449 = vld [vmem:[%s3441 + $0x1c] sm:$0xf]
  %v3450 = vld [vmem:[%s3441 + $0x20] sm:$0xf]
  %v3451 = vld [vmem:[%s3441 + $0x24] sm:$0xf]
  %v3452 = vld [vmem:[%s3441 + $0x28] sm:$0xf]
  %v3453 = vld [vmem:[%s3441 + $0x2c] sm:$0xf]
  %v3454 = vld [vmem:[%s3441 + $0x30] sm:$0xf]
  %v3455 = vld [vmem:[%s3441 + $0x34] sm:$0xf]
  %v3456 = vld [vmem:[%s3441 + $0x38] sm:$0xf]
  %v3457 = vld [vmem:[%s3441 + $0x3c] sm:$0xf]
  %v3474 = vunpack.c.l.b16 %v3442
  %v3475 = vunpack.c.l.b16 %v3443
  %v3476 = vunpack.c.l.b16 %v3444
  %v3477 = vunpack.c.l.b16 %v3445
  %v3478 = vunpack.c.l.b16 %v3446
  %v3479 = vunpack.c.l.b16 %v3447
  %v3480 = vunpack.c.l.b16 %v3448
  %v3481 = vunpack.c.l.b16 %v3449
  %v3482 = vunpack.c.l.b16 %v3450
  %v3483 = vunpack.c.l.b16 %v3451
  %v3484 = vunpack.c.l.b16 %v3452
  %v3485 = vunpack.c.l.b16 %v3453
  %v3486 = vunpack.c.l.b16 %v3454
  %v3487 = vunpack.c.l.b16 %v3455
  %v3488 = vunpack.c.l.b16 %v3456
  %v3489 = vunpack.c.l.b16 %v3457
  %v3490 = vpack.c.b16 %v3475, %v3474
  %v3491 = vpack.c.b16 %v3477, %v3476
  %v3492 = vpack.c.b16 %v3479, %v3478
  %v3493 = vpack.c.b16 %v3481, %v3480
  %v3494 = vpack.c.b16 %v3483, %v3482
  %v3495 = vpack.c.b16 %v3485, %v3484
  %v3496 = vpack.c.b16 %v3487, %v3486
  %v3497 = vpack.c.b16 %v3489, %v3488
  %3506 = vmatprep.subr.bf16.mxu0 0
  %3507 = vmatpush1.bf16.msra.mxu0 %v3490
  %3508 = vmatprep.subr.bf16.mxu0 0
  %3509 = vmatpush1.bf16.msra.mxu0 %v3491
  %3510 = vmatprep.subr.bf16.mxu0 0
  %3511 = vmatpush1.bf16.msra.mxu0 %v3492
  %3512 = vmatprep.subr.bf16.mxu0 0
  %3513 = vmatpush1.bf16.msra.mxu0 %v3493
  %3514 = vmatprep.subr.bf16.mxu0 0
  %3515 = vmatpush1.bf16.msra.mxu0 %v3494
  %3516 = vmatprep.subr.bf16.mxu0 0
  %3517 = vmatpush1.bf16.msra.mxu0 %v3495
  %3518 = vmatprep.subr.bf16.mxu0 0
  %3519 = vmatpush1.bf16.msra.mxu0 %v3496
  %3520 = vmatprep.subr.bf16.mxu0 0
  %3521 = vmatpush1.bf16.msra.mxu0 %v3497
  %3522 = vmatprep.subr.bf16.mxu0 0
  %3523 = vmatpush1.bf16.msra.mxu0 0
  %3524 = vmatprep.subr.bf16.mxu0 0
  %3525 = vmatpush1.bf16.msra.mxu0 0
  %3526 = vmatprep.subr.bf16.mxu0 0
  %3527 = vmatpush1.bf16.msra.mxu0 0
  %3528 = vmatprep.subr.bf16.mxu0 0
  %3529 = vmatpush1.bf16.msra.mxu0 0
  %3530 = vmatprep.subr.bf16.mxu0 0
  %3531 = vmatpush1.bf16.msra.mxu0 0
  %3532 = vmatprep.subr.bf16.mxu0 0
  %3533 = vmatpush1.bf16.msra.mxu0 0
  %3534 = vmatprep.subr.bf16.mxu0 0
  %3535 = vmatpush1.bf16.msra.mxu0 0
  %3536 = vmatprep.subr.bf16.mxu0 0
  %3537 = vmatpush1.bf16.msra.mxu0 0
  %3538 = vmatprep.mubr.bf16.mxu0 0
  %3539 = vmatmul.mubr.bf16.gmra.mrb[0].mxu0 %v360
  %v3540 = vpop.f32.mrb[0].mxu0
  %v3541 = vadd.f32 0.0, %v3540
  %v3542 = vpop.f32.mrb[0].mxu0
  %v3543 = vpop.f32.mrb[0].mxu0
  %v3544 = vadd.f32 0.0, %v3543
  %v3545 = vpop.f32.mrb[0].mxu0
  %3546 = vmatprep.mubr.bf16.mxu0 0
  %3547 = vmatmul.mubr.bf16.gmra.mrb[0].mxu0 %v361
  %v3548 = vpop.f32.mrb[0].mxu0
  %v3549 = vadd.f32 0.0, %v3548
  %v3550 = vpop.f32.mrb[0].mxu0
  %v3551 = vpop.f32.mrb[0].mxu0
  %v3552 = vadd.f32 0.0, %v3551
  %v3553 = vpop.f32.mrb[0].mxu0
  %3554 = vmatprep.mubr.bf16.mxu0 0
  %3555 = vmatmul.mubr.bf16.gmra.mrb[0].mxu0 %v362
  %v3556 = vpop.f32.mrb[0].mxu0
  %v3557 = vadd.f32 0.0, %v3556
  %v3558 = vpop.f32.mrb[0].mxu0
  %v3559 = vpop.f32.mrb[0].mxu0
  %v3560 = vadd.f32 0.0, %v3559
  %v3561 = vpop.f32.mrb[0].mxu0
  %3562 = vmatprep.mubr.bf16.mxu0 0
  %3563 = vmatmul.mubr.bf16.gmra.mrb[0].mxu0 %v363
  %v3564 = vpop.f32.mrb[0].mxu0
  %v3565 = vadd.f32 0.0, %v3564
  %v3566 = vpop.f32.mrb[0].mxu0
  %v3567 = vpop.f32.mrb[0].mxu0
  %v3568 = vadd.f32 0.0, %v3567
  %v3569 = vpop.f32.mrb[0].mxu0
  %3570 = vmatprep.mubr.bf16.mxu0 0
  %3571 = vmatmul.mubr.bf16.gmra.mrb[0].mxu0 %v364
  %v3572 = vpop.f32.mrb[0].mxu0
  %v3573 = vadd.f32 0.0, %v3572
  %v3574 = vpop.f32.mrb[0].mxu0
  %v3575 = vpop.f32.mrb[0].mxu0
  %v3576 = vadd.f32 0.0, %v3575
  %v3577 = vpop.f32.mrb[0].mxu0
  %3578 = vmatprep.mubr.bf16.mxu0 0
  %3579 = vmatmul.mubr.bf16.gmra.mrb[0].mxu0 %v365
  %v3580 = vpop.f32.mrb[0].mxu0
  %v3581 = vadd.f32 0.0, %v3580
  %v3582 = vpop.f32.mrb[0].mxu0
  %v3583 = vpop.f32.mrb[0].mxu0
  %v3584 = vadd.f32 0.0, %v3583
  %v3585 = vpop.f32.mrb[0].mxu0
  %3586 = vmatprep.mubr.bf16.mxu0 0
  %3587 = vmatmul.mubr.bf16.gmra.mrb[0].mxu0 %v366
  %v3588 = vpop.f32.mrb[0].mxu0
  %v3589 = vadd.f32 0.0, %v3588
  %v3590 = vpop.f32.mrb[0].mxu0
  %v3591 = vpop.f32.mrb[0].mxu0
  %v3592 = vadd.f32 0.0, %v3591
  %v3593 = vpop.f32.mrb[0].mxu0
  %3594 = vmatprep.mubr.bf16.mxu0 0
  %3595 = vmatmul.mubr.bf16.gmra.mrb[0].mxu0 %v367
  %v3596 = vpop.f32.mrb[0].mxu0
  %v3597 = vadd.f32 0.0, %v3596
  %v3598 = vpop.f32.mrb[0].mxu0
  %v3599 = vpop.f32.mrb[0].mxu0
  %v3600 = vadd.f32 0.0, %v3599
  %v3601 = vpop.f32.mrb[0].mxu0
  %3602 = vdwg.mxu0
  %v3603 = vlaneseq
  %v3604 = vshrl.u32 %v3603, 7
  %v3605 = vsub.s32 0, %v3604
  %v3606 = vrot.slane %v310, %v3605
  %v3607 = vmul.f32 %v3541, %v3606
  %v3608 = vmul.f32 %v3544, %v3606
  %v3609 = vmul.f32 %v3549, %v3606
  %v3610 = vmul.f32 %v3552, %v3606
  %v3611 = vmul.f32 %v3557, %v3606
  %v3612 = vmul.f32 %v3560, %v3606
  %v3613 = vmul.f32 %v3565, %v3606
  %v3614 = vmul.f32 %v3568, %v3606
  %v3615 = vmul.f32 %v3573, %v3606
  %v3616 = vmul.f32 %v3576, %v3606
  %v3617 = vmul.f32 %v3581, %v3606
  %v3618 = vmul.f32 %v3584, %v3606
  %v3619 = vmul.f32 %v3589, %v3606
  %v3620 = vmul.f32 %v3592, %v3606
  %v3621 = vmul.f32 %v3597, %v3606
  %v3622 = vmul.f32 %v3600, %v3606
  %v3623 = vlaneseq
  %v3624 = vshrl.u32 %v3623, 7
  %v3625 = vsub.s32 0, %v3624
  %v3626 = vrot.slane %v311, %v3625
  %v3627 = vadd.f32 %v3607, %v3626
  %v3628 = vadd.f32 %v3608, %v3626
  %v3629 = vadd.f32 %v3609, %v3626
  %v3630 = vadd.f32 %v3610, %v3626
  %v3631 = vadd.f32 %v3611, %v3626
  %v3632 = vadd.f32 %v3612, %v3626
  %v3633 = vadd.f32 %v3613, %v3626
  %v3634 = vadd.f32 %v3614, %v3626
  %v3635 = vadd.f32 %v3615, %v3626
  %v3636 = vadd.f32 %v3616, %v3626
  %v3637 = vadd.f32 %v3617, %v3626
  %v3638 = vadd.f32 %v3618, %v3626
  %v3639 = vadd.f32 %v3619, %v3626
  %v3640 = vadd.f32 %v3620, %v3626
  %v3641 = vadd.f32 %v3621, %v3626
  %v3642 = vadd.f32 %v3622, %v3626
  %v3643 = vadd.f32 %v3425, %v3627
  %v3644 = vadd.f32 %v3426, %v3628
  %v3645 = vadd.f32 %v3427, %v3629
  %v3646 = vadd.f32 %v3428, %v3630
  %v3647 = vadd.f32 %v3429, %v3631
  %v3648 = vadd.f32 %v3430, %v3632
  %v3649 = vadd.f32 %v3431, %v3633
  %v3650 = vadd.f32 %v3432, %v3634
  %v3651 = vadd.f32 %v3433, %v3635
  %v3652 = vadd.f32 %v3434, %v3636
  %v3653 = vadd.f32 %v3435, %v3637
  %v3654 = vadd.f32 %v3436, %v3638
  %v3655 = vadd.f32 %v3437, %v3639
  %v3656 = vadd.f32 %v3438, %v3640
  %v3657 = vadd.f32 %v3439, %v3641
  %v3658 = vadd.f32 %v3440, %v3642
  %v3659 = vmax.f32 %v3643, 0.0
  %v3660 = vmax.f32 %v3644, 0.0
  %v3661 = vmax.f32 %v3645, 0.0
  %v3662 = vmax.f32 %v3646, 0.0
  %v3663 = vmax.f32 %v3647, 0.0
  %v3664 = vmax.f32 %v3648, 0.0
  %v3665 = vmax.f32 %v3649, 0.0
  %v3666 = vmax.f32 %v3650, 0.0
  %v3667 = vmax.f32 %v3651, 0.0
  %v3668 = vmax.f32 %v3652, 0.0
  %v3669 = vmax.f32 %v3653, 0.0
  %v3670 = vmax.f32 %v3654, 0.0
  %v3671 = vmax.f32 %v3655, 0.0
  %v3672 = vmax.f32 %v3656, 0.0
  %v3673 = vmax.f32 %v3657, 0.0
  %v3674 = vmax.f32 %v3658, 0.0
  %v3675 = vpack.c.bf16 %v3660, %v3659
  %v3676 = vpack.c.bf16 %v3662, %v3661
  %v3677 = vpack.c.bf16 %v3664, %v3663
  %v3678 = vpack.c.bf16 %v3666, %v3665
  %v3679 = vpack.c.bf16 %v3668, %v3667
  %v3680 = vpack.c.bf16 %v3670, %v3669
  %v3681 = vpack.c.bf16 %v3672, %v3671
  %v3682 = vpack.c.bf16 %v3674, %v3673
  %v3691 = vunpack.c.l.b16 %v3675
  %v3692 = vunpack.c.h.b16 %v3675
  %v3693 = vunpack.c.l.b16 %v3676
  %v3694 = vunpack.c.h.b16 %v3676
  %v3695 = vunpack.c.l.b16 %v3677
  %v3696 = vunpack.c.h.b16 %v3677
  %v3697 = vunpack.c.l.b16 %v3678
  %v3698 = vunpack.c.h.b16 %v3678
  %v3699 = vunpack.c.l.b16 %v3679
  %v3700 = vunpack.c.h.b16 %v3679
  %v3701 = vunpack.c.l.b16 %v3680
  %v3702 = vunpack.c.h.b16 %v3680
  %v3703 = vunpack.c.l.b16 %v3681
  %v3704 = vunpack.c.h.b16 %v3681
  %v3705 = vunpack.c.l.b16 %v3682
  %v3706 = vunpack.c.h.b16 %v3682
  %v3707 = vpack.c.b16 %v3691, %v3691
  %v3708 = vpack.c.b16 %v3692, %v3692
  %v3709 = vpack.c.b16 %v3693, %v3693
  %v3710 = vpack.c.b16 %v3694, %v3694
  %v3711 = vpack.c.b16 %v3695, %v3695
  %v3712 = vpack.c.b16 %v3696, %v3696
  %v3713 = vpack.c.b16 %v3697, %v3697
  %v3714 = vpack.c.b16 %v3698, %v3698
  %v3715 = vpack.c.b16 %v3699, %v3699
  %v3716 = vpack.c.b16 %v3700, %v3700
  %v3717 = vpack.c.b16 %v3701, %v3701
  %v3718 = vpack.c.b16 %v3702, %v3702
  %v3719 = vpack.c.b16 %v3703, %v3703
  %v3720 = vpack.c.b16 %v3704, %v3704
  %v3721 = vpack.c.b16 %v3705, %v3705
  %v3722 = vpack.c.b16 %v3706, %v3706
  %3739 = vst [vmem:[%s6] sm:$0xf] %v3707
  %3740 = vst [vmem:[%s6 + $0x4] sm:$0xf] %v3708
  %3741 = vst [vmem:[%s6 + $0x8] sm:$0xf] %v3709
  %3742 = vst [vmem:[%s6 + $0xc] sm:$0xf] %v3710
  %3743 = vst [vmem:[%s6 + $0x10] sm:$0xf] %v3711
  %3744 = vst [vmem:[%s6 + $0x14] sm:$0xf] %v3712
  %3745 = vst [vmem:[%s6 + $0x18] sm:$0xf] %v3713
  %3746 = vst [vmem:[%s6 + $0x1c] sm:$0xf] %v3714
  %3747 = vst [vmem:[%s6 + $0x20] sm:$0xf] %v3715
  %3748 = vst [vmem:[%s6 + $0x24] sm:$0xf] %v3716
  %3749 = vst [vmem:[%s6 + $0x28] sm:$0xf] %v3717
  %3750 = vst [vmem:[%s6 + $0x2c] sm:$0xf] %v3718
  %3751 = vst [vmem:[%s6 + $0x30] sm:$0xf] %v3719
  %3752 = vst [vmem:[%s6 + $0x34] sm:$0xf] %v3720
  %3753 = vst [vmem:[%s6 + $0x38] sm:$0xf] %v3721
  %3754 = vst [vmem:[%s6 + $0x3c] sm:$0xf] %v3722
  // Predicated region
  $region26: #{forward.4} parent=0 // pred_check
    _
  $region27: #{forward.4} parent=0 // pred_check_branch
    %3756 = sbr.rel (0) target = $region29
  $region28: #{forward.4} parent=0 // pred_region
    _
  $region29: #{forward.4} parent=0 // pred_fallthru
    _
  // Predicated region
  $region30: #{forward.4} parent=0 // pred_check
    _
  $region31: #{forward.4} parent=0 // pred_check_branch
    %3758 = sbr.rel (0) target = $region33
  $region32: #{forward.4} parent=0 // pred_region
    _
  $region33: #{forward.4} parent=0 // pred_fallthru
    _

</llo_original>
